<compile_context>
chip_gen: v7x
topology: tpu7x:2x2x1
jax: 0.10.0
libtpu: 0.0.40
codegen_flags: <defaults>
</compile_context>

<pallas_src>
import functools

import jax
import jax.numpy as jnp
from jax.experimental import pallas as pl
from jax.experimental.pallas import tpu as pltpu


def mutual_dynamics_kernel(b, k, c, d, e, h,
                           xi_ref, a_ref, xjT_ref, out_ref):
    xi = xi_ref[...]          # [Bi, D]   node states for this row block
    a = a_ref[...]            # [Bi, N]   adjacency rows for this block
    xjT = xjT_ref[...]        # [D,  N]   all node states, transposed (VMEM-resident)

    # ---- self dynamics (tiny, [Bi, D]) ------------------------------------
    f = b + xi * (1.0 - xi * (1.0 / k)) * (xi * (1.0 / c) - 1.0)

    # ---- mutualistic interaction ------------------------------------------
    # term[i, dd, j] = A[i, j] * x[i, dd] * x[j, dd] / (d + e*x[i,dd] + h*x[j,dd])
    # Hoist broadcast-invariant pieces off the big [Bi, D, N] tensor and factor
    # x_i out of the numerator:
    #     inter[i, dd] = x[i, dd] * sum_j A[i, j] * x[j, dd] * inv[i, dd, j]
    dexi = d + e * xi                                   # [Bi, D]  (small)
    hxj = h * xjT                                       # [D,  N]  (small)

    den = dexi[:, :, None] + hxj[None, :, :]            # [Bi, D, N], N on lanes
    inv = pl.reciprocal(den, approx=True)               # EUP slot
    inv = inv * (2.0 - den * inv)                       # one Newton step -> ~f32 exact

    w = a[:, None, :] * xjT[None, :, :]                 # [Bi, D, N]
    ssum = jnp.sum(w * inv, axis=-1)                    # [Bi, D]   (XLU lane reduce)

    out_ref[...] = (f + xi * ssum).astype(out_ref.dtype)


def _default_block_rows(n, dim):
    """Whole problem in one grid step on 1-TC chips; split rows in two on v7x."""
    try:
        kind = jax.devices()[0].device_kind.lower()
    except Exception:  # pragma: no cover - non-TPU / odd backends
        kind = ""
    block = n
    if "v7" in kind and n % 2 == 0 and (n // 2) % 8 == 0:
        block = n // 2          # shard the "parallel" row axis across the 2 TensorCores
    # Keep the (~4 live) [block, dim, n] f32 intermediates well under scoped VMEM.
    budget = 24 * 1024 * 1024
    while (block >= 16 and block % 16 == 0 and n % (block // 2) == 0
           and 4 * block * dim * n * 4 > budget):
        block //= 2
    return block


def mutual_dynamics(t, x, A, *, b=0.1, k=5.0, c=1.0, d=5.0, e=0.9, h=0.1,
                    block_rows=None):
    """Pallas forward of MutualDynamics.forward(t, x). `t` unused (autonomous)."""
    del t
    n, dim = x.shape
    if block_rows is None:
        block_rows = _default_block_rows(n, dim)
    block_rows = min(block_rows, n)
    assert n % block_rows == 0, (n, block_rows)

    xT = x.T  # [D, N]: wrapper-side transpose so N is the lane axis in-kernel

    kernel = functools.partial(mutual_dynamics_kernel, b, k, c, d, e, h)
    return pl.pallas_call(
        kernel,
        out_shape=jax.ShapeDtypeStruct((n, dim), jnp.float32),
        grid=(n // block_rows,),
        in_specs=[
            pl.BlockSpec((block_rows, dim), lambda i: (i, 0)),   # x rows of block
            pl.BlockSpec((block_rows, n), lambda i: (i, 0)),     # A rows of block
            pl.BlockSpec((dim, n), lambda i: (0, 0)),            # x^T, VMEM-resident
        ],
        out_specs=pl.BlockSpec((block_rows, dim), lambda i: (i, 0)),
        compiler_params=pltpu.CompilerParams(
            dimension_semantics=("parallel",)),
    )(x, A, xT)


def mutual_dynamics_ref(x, A, b, k, c, d, e, h):
    """Pure-JAX reference (mirrors the PyTorch semantics for all branches)."""
    f = b + x * (1.0 - x / k) * (x / c - 1.0)
    num = x[:, None, :] * x[None, :, :]
    den = d + e * x[:, None, :] + h * x[None, :, :]
    return f + jnp.sum(A[:, :, None] * num / den, axis=1)


if __name__ == "__main__":
    key = jax.random.PRNGKey(0)
    k_x, k_m, k_w = jax.random.split(key, 3)

    N, DIM = 128, 32        # n nodes, feature dim (small, consistent with n*dim input)
    B, K, C, D, E, H = 0.1, 5.0, 1.0, 5.0, 0.9, 0.1

    # Positive abundances, as in mutualistic dynamics.
    x = jax.random.uniform(k_x, (N, DIM), jnp.float32, minval=0.1, maxval=2.0)

    # Dense weighted adjacency with ~15% density (zeros == no edge).
    mask = jax.random.uniform(k_m, (N, N)) > 0.85
    w = jax.random.uniform(k_w, (N, N), jnp.float32, minval=0.5, maxval=1.5)
    A = jnp.where(mask, w, 0.0).astype(jnp.float32)

    out = mutual_dynamics(0.0, x, A, b=B, k=K, c=C, d=D, e=E, h=H)
    out = jax.block_until_ready(out)

    ref = mutual_dynamics_ref(x, A, B, K, C, D, E, H)

    assert out.shape == (N, DIM), out.shape
    assert bool(jnp.all(jnp.isfinite(out)))
    # Newton-refined approximate reciprocal -> near-f32 accuracy.
    assert bool(jnp.allclose(out, ref, rtol=1e-4, atol=1e-4)), (
        float(jnp.max(jnp.abs(out - ref))))
    print("KERNEL_OK")
</pallas_src>

<mosaic_0001>
module attributes {stable_mosaic.version = 11 : i64} {
  func.func @mutual_dynamics_kernel(%arg0: i32, %arg1: memref<128x32xf32, #tpu.memory_space<vmem>>, %arg2: memref<128x128xf32, #tpu.memory_space<vmem>>, %arg3: memref<32x128xf32, #tpu.memory_space<vmem>>, %arg4: memref<128x32xf32, #tpu.memory_space<vmem>>) attributes {dimension_semantics = [#tpu.dimension_semantics<parallel>], iteration_bounds = array<i64: 1>, scalar_prefetch = 0 : i64, scratch_operands = 0 : i64, tpu.core_type = #tpu.core_type<tc>, window_params = [{transform_indices = @transform_0, window_bounds = array<i64: 128, 32>}, {transform_indices = @transform_1, window_bounds = array<i64: 128, 128>}, {pipeline_mode = #tpu.pipeline_mode<synchronous>, transform_indices = @transform_2, window_bounds = array<i64: 32, 128>}, {transform_indices = @transform_3, window_bounds = array<i64: 128, 32>}]} {
    %c0 = arith.constant 0 : index
    %c0_0 = arith.constant 0 : index
    %0 = vector.load %arg1[%c0, %c0_0] : memref<128x32xf32, #tpu.memory_space<vmem>>, vector<128x32xf32>
    %c0_1 = arith.constant 0 : index
    %c0_2 = arith.constant 0 : index
    %1 = vector.load %arg2[%c0_1, %c0_2] : memref<128x128xf32, #tpu.memory_space<vmem>>, vector<128x128xf32>
    %c0_3 = arith.constant 0 : index
    %c0_4 = arith.constant 0 : index
    %2 = vector.load %arg3[%c0_3, %c0_4] : memref<32x128xf32, #tpu.memory_space<vmem>>, vector<32x128xf32>
    %cst = arith.constant 2.000000e-01 : f32
    %3 = vector.broadcast %cst : f32 to vector<128x32xf32>
    %4 = arith.mulf %0, %3 : vector<128x32xf32>
    %cst_5 = arith.constant 1.000000e+00 : f32
    %5 = vector.broadcast %cst_5 : f32 to vector<128x32xf32>
    %6 = arith.subf %5, %4 : vector<128x32xf32>
    %7 = arith.mulf %0, %6 : vector<128x32xf32>
    %cst_6 = arith.constant 1.000000e+00 : f32
    %8 = vector.broadcast %cst_6 : f32 to vector<128x32xf32>
    %9 = arith.mulf %0, %8 : vector<128x32xf32>
    %cst_7 = arith.constant 1.000000e+00 : f32
    %10 = vector.broadcast %cst_7 : f32 to vector<128x32xf32>
    %11 = arith.subf %9, %10 : vector<128x32xf32>
    %12 = arith.mulf %7, %11 : vector<128x32xf32>
    %cst_8 = arith.constant 1.000000e-01 : f32
    %13 = vector.broadcast %cst_8 : f32 to vector<128x32xf32>
    %14 = arith.addf %13, %12 : vector<128x32xf32>
    %cst_9 = arith.constant 0.899999976 : f32
    %15 = vector.broadcast %cst_9 : f32 to vector<128x32xf32>
    %16 = arith.mulf %15, %0 : vector<128x32xf32>
    %cst_10 = arith.constant 5.000000e+00 : f32
    %17 = vector.broadcast %cst_10 : f32 to vector<128x32xf32>
    %18 = arith.addf %17, %16 : vector<128x32xf32>
    %cst_11 = arith.constant 1.000000e-01 : f32
    %19 = vector.broadcast %cst_11 : f32 to vector<32x128xf32>
    %20 = arith.mulf %19, %2 : vector<32x128xf32>
    %21 = vector.shape_cast %18 : vector<128x32xf32> to vector<128x32x1xf32>
    %22 = vector.shape_cast %20 : vector<32x128xf32> to vector<1x32x128xf32>
    %23 = vector.broadcast %21 : vector<128x32x1xf32> to vector<128x32x128xf32>
    %24 = vector.broadcast %22 : vector<1x32x128xf32> to vector<128x32x128xf32>
    %25 = arith.addf %23, %24 : vector<128x32x128xf32>
    %26 = tpu.reciprocal %25 {approx = true} : vector<128x32x128xf32> -> vector<128x32x128xf32>
    %27 = arith.mulf %25, %26 : vector<128x32x128xf32>
    %cst_12 = arith.constant 2.000000e+00 : f32
    %28 = vector.broadcast %cst_12 : f32 to vector<128x32x128xf32>
    %29 = arith.subf %28, %27 : vector<128x32x128xf32>
    %30 = arith.mulf %26, %29 : vector<128x32x128xf32>
    %31 = vector.shape_cast %1 : vector<128x128xf32> to vector<128x1x128xf32>
    %32 = vector.shape_cast %2 : vector<32x128xf32> to vector<1x32x128xf32>
    %33 = vector.broadcast %31 : vector<128x1x128xf32> to vector<128x32x128xf32>
    %34 = vector.broadcast %32 : vector<1x32x128xf32> to vector<128x32x128xf32>
    %35 = arith.mulf %33, %34 : vector<128x32x128xf32>
    %36 = arith.mulf %35, %30 : vector<128x32x128xf32>
    %cst_13 = arith.constant dense<0.000000e+00> : vector<128x32xf32>
    %37 = vector.multi_reduction <add>, %36, %cst_13 [2] : vector<128x32x128xf32> to vector<128x32xf32>
    %38 = arith.mulf %0, %37 : vector<128x32xf32>
    %39 = arith.addf %14, %38 : vector<128x32xf32>
    %c0_14 = arith.constant 0 : index
    %c0_15 = arith.constant 0 : index
    %40 = vector.load %arg4[%c0_14, %c0_15] : memref<128x32xf32, #tpu.memory_space<vmem>>, vector<128x32xf32>
    tpu.vector_store %arg4[%c0_14, %c0_15], %39 {strides = array<i32>} : memref<128x32xf32, #tpu.memory_space<vmem>>, vector<128x32xf32>,
    return
  }
  func.func @transform_0(%arg0: i32) -> (i32, i32) {
    %c0_i32 = arith.constant 0 : i32
    %c0_i32_0 = arith.constant 0 : i32
    return %arg0, %c0_i32 : i32, i32
  }
  func.func @transform_1(%arg0: i32) -> (i32, i32) {
    %c0_i32 = arith.constant 0 : i32
    %c0_i32_0 = arith.constant 0 : i32
    return %arg0, %c0_i32 : i32, i32
  }
  func.func @transform_2(%arg0: i32) -> (i32, i32) {
    %c0_i32 = arith.constant 0 : i32
    %c0_i32_0 = arith.constant 0 : i32
    %c0_i32_1 = arith.constant 0 : i32
    return %c0_i32, %c0_i32_0 : i32, i32
  }
  func.func @transform_3(%arg0: i32) -> (i32, i32) {
    %c0_i32 = arith.constant 0 : i32
    %c0_i32_0 = arith.constant 0 : i32
    return %arg0, %c0_i32 : i32, i32
  }
}

</mosaic_0001>

<llo_original>
// kernel: tpu_custom_call.1
$region0: #{tpu_custom_call.1}
  #allocation0 [shape = 'u32[]', space=smem, size = 0x4, offset = 0x4, fixed_abs, tag = 'smem constant byte address 0x4 - core index']
  #allocation1 [shape = 'u32[144,128]{1,0:T(1,128)}', space=vmem, size = 0x12000, scoped, tag = 'internal scratch']
  %s0 = inlined_call_operand.vmem [shape: f32[128,32], index: 0, kind: input, shape index: {}]
  %s1 = inlined_call_operand.vmem [shape: f32[128,128], index: 1, kind: input, shape index: {}]
  %s2 = inlined_call_operand.vmem [shape: f32[32,128], index: 2, kind: input, shape index: {}]
  %s3 = inlined_call_operand.vmem [shape: f32[128,32], index: 3, kind: output, shape index: {}]
  %s4 = sld [smem:[#allocation0]]
  $region22: #{tpu_custom_call.1} parent=0
    _
  %s6 = ssub.s32 1, %s4
  %s7 = scalar_select 0, %s6, %s4
  // Predicated region
  $region2: #{tpu_custom_call.1} parent=0 // pred_check
    _
  $region3: #{tpu_custom_call.1} parent=0 // pred_check_branch
    %9 = sbr.rel (0) target = $region5
  $region4: #{tpu_custom_call.1} parent=0 // pred_region
    _
  $region5: #{tpu_custom_call.1} parent=0 // pred_fallthru
    _
  // Predicated region
  $region6: #{tpu_custom_call.1} parent=0 // pred_check
    _
  $region7: #{tpu_custom_call.1} parent=0 // pred_check_branch
    %11 = sbr.rel (0) target = $region9
  $region8: #{tpu_custom_call.1} parent=0 // pred_region
    _
  $region9: #{tpu_custom_call.1} parent=0 // pred_fallthru
    _
  // Predicated region
  $region10: #{tpu_custom_call.1} parent=0 // pred_check
    _
  $region11: #{tpu_custom_call.1} parent=0 // pred_check_branch
    %13 = sbr.rel (0) target = $region13
  $region12: #{tpu_custom_call.1} parent=0 // pred_region
    _
  $region13: #{tpu_custom_call.1} parent=0 // pred_fallthru
    _
  %v14 = vld [vmem:[%s0] sm:$0xff]
  %v15 = vld [vmem:[%s0 + $0x8] sm:$0xff]
  %v16 = vld [vmem:[%s0 + $0x10] sm:$0xff]
  %v17 = vld [vmem:[%s0 + $0x18] sm:$0xff]
  %v18 = vld [vmem:[%s0 + $0x20] sm:$0xff]
  %v19 = vld [vmem:[%s0 + $0x28] sm:$0xff]
  %v20 = vld [vmem:[%s0 + $0x30] sm:$0xff]
  %v21 = vld [vmem:[%s0 + $0x38] sm:$0xff]
  %v22 = vld [vmem:[%s0 + $0x40] sm:$0xff]
  %v23 = vld [vmem:[%s0 + $0x48] sm:$0xff]
  %v24 = vld [vmem:[%s0 + $0x50] sm:$0xff]
  %v25 = vld [vmem:[%s0 + $0x58] sm:$0xff]
  %v26 = vld [vmem:[%s0 + $0x60] sm:$0xff]
  %v27 = vld [vmem:[%s0 + $0x68] sm:$0xff]
  %v28 = vld [vmem:[%s0 + $0x70] sm:$0xff]
  %v29 = vld [vmem:[%s0 + $0x78] sm:$0xff]
  %v30 = vld [vmem:[%s1] sm:$0xff]
  %v31 = vld [vmem:[%s1 + $0x8] sm:$0xff]
  %v32 = vld [vmem:[%s1 + $0x10] sm:$0xff]
  %v33 = vld [vmem:[%s1 + $0x18] sm:$0xff]
  %v34 = vld [vmem:[%s1 + $0x20] sm:$0xff]
  %v35 = vld [vmem:[%s1 + $0x28] sm:$0xff]
  %v36 = vld [vmem:[%s1 + $0x30] sm:$0xff]
  %v37 = vld [vmem:[%s1 + $0x38] sm:$0xff]
  %v38 = vld [vmem:[%s1 + $0x40] sm:$0xff]
  %v39 = vld [vmem:[%s1 + $0x48] sm:$0xff]
  %v40 = vld [vmem:[%s1 + $0x50] sm:$0xff]
  %v41 = vld [vmem:[%s1 + $0x58] sm:$0xff]
  %v42 = vld [vmem:[%s1 + $0x60] sm:$0xff]
  %v43 = vld [vmem:[%s1 + $0x68] sm:$0xff]
  %v44 = vld [vmem:[%s1 + $0x70] sm:$0xff]
  %v45 = vld [vmem:[%s1 + $0x78] sm:$0xff]
  %v46 = vld [vmem:[%s2] sm:$0xff]
  %v47 = vld [vmem:[%s2 + $0x8] sm:$0xff]
  %v48 = vld [vmem:[%s2 + $0x10] sm:$0xff]
  %v49 = vld [vmem:[%s2 + $0x18] sm:$0xff]
  %v50 = vmul.f32 %v14, 0.2
  %v51 = vmul.f32 %v15, 0.2
  %v52 = vmul.f32 %v16, 0.2
  %v53 = vmul.f32 %v17, 0.2
  %v54 = vmul.f32 %v18, 0.2
  %v55 = vmul.f32 %v19, 0.2
  %v56 = vmul.f32 %v20, 0.2
  %v57 = vmul.f32 %v21, 0.2
  %v58 = vmul.f32 %v22, 0.2
  %v59 = vmul.f32 %v23, 0.2
  %v60 = vmul.f32 %v24, 0.2
  %v61 = vmul.f32 %v25, 0.2
  %v62 = vmul.f32 %v26, 0.2
  %v63 = vmul.f32 %v27, 0.2
  %v64 = vmul.f32 %v28, 0.2
  %v65 = vmul.f32 %v29, 0.2
  %v66 = vsub.f32 1.0, %v50
  %v67 = vsub.f32 1.0, %v51
  %v68 = vsub.f32 1.0, %v52
  %v69 = vsub.f32 1.0, %v53
  %v70 = vsub.f32 1.0, %v54
  %v71 = vsub.f32 1.0, %v55
  %v72 = vsub.f32 1.0, %v56
  %v73 = vsub.f32 1.0, %v57
  %v74 = vsub.f32 1.0, %v58
  %v75 = vsub.f32 1.0, %v59
  %v76 = vsub.f32 1.0, %v60
  %v77 = vsub.f32 1.0, %v61
  %v78 = vsub.f32 1.0, %v62
  %v79 = vsub.f32 1.0, %v63
  %v80 = vsub.f32 1.0, %v64
  %v81 = vsub.f32 1.0, %v65
  %v82 = vmul.f32 %v14, %v66
  %v83 = vmul.f32 %v15, %v67
  %v84 = vmul.f32 %v16, %v68
  %v85 = vmul.f32 %v17, %v69
  %v86 = vmul.f32 %v18, %v70
  %v87 = vmul.f32 %v19, %v71
  %v88 = vmul.f32 %v20, %v72
  %v89 = vmul.f32 %v21, %v73
  %v90 = vmul.f32 %v22, %v74
  %v91 = vmul.f32 %v23, %v75
  %v92 = vmul.f32 %v24, %v76
  %v93 = vmul.f32 %v25, %v77
  %v94 = vmul.f32 %v26, %v78
  %v95 = vmul.f32 %v27, %v79
  %v96 = vmul.f32 %v28, %v80
  %v97 = vmul.f32 %v29, %v81
  %v98 = vsub.f32 %v14, 1.0
  %v99 = vsub.f32 %v15, 1.0
  %v100 = vsub.f32 %v16, 1.0
  %v101 = vsub.f32 %v17, 1.0
  %v102 = vsub.f32 %v18, 1.0
  %v103 = vsub.f32 %v19, 1.0
  %v104 = vsub.f32 %v20, 1.0
  %v105 = vsub.f32 %v21, 1.0
  %v106 = vsub.f32 %v22, 1.0
  %v107 = vsub.f32 %v23, 1.0
  %v108 = vsub.f32 %v24, 1.0
  %v109 = vsub.f32 %v25, 1.0
  %v110 = vsub.f32 %v26, 1.0
  %v111 = vsub.f32 %v27, 1.0
  %v112 = vsub.f32 %v28, 1.0
  %v113 = vsub.f32 %v29, 1.0
  %v114 = vmul.f32 %v82, %v98
  %v115 = vmul.f32 %v83, %v99
  %v116 = vmul.f32 %v84, %v100
  %v117 = vmul.f32 %v85, %v101
  %v118 = vmul.f32 %v86, %v102
  %v119 = vmul.f32 %v87, %v103
  %v120 = vmul.f32 %v88, %v104
  %v121 = vmul.f32 %v89, %v105
  %v122 = vmul.f32 %v90, %v106
  %v123 = vmul.f32 %v91, %v107
  %v124 = vmul.f32 %v92, %v108
  %v125 = vmul.f32 %v93, %v109
  %v126 = vmul.f32 %v94, %v110
  %v127 = vmul.f32 %v95, %v111
  %v128 = vmul.f32 %v96, %v112
  %v129 = vmul.f32 %v97, %v113
  %v130 = vadd.f32 %v114, 0.1
  %v131 = vadd.f32 %v115, 0.1
  %v132 = vadd.f32 %v116, 0.1
  %v133 = vadd.f32 %v117, 0.1
  %v134 = vadd.f32 %v118, 0.1
  %v135 = vadd.f32 %v119, 0.1
  %v136 = vadd.f32 %v120, 0.1
  %v137 = vadd.f32 %v121, 0.1
  %v138 = vadd.f32 %v122, 0.1
  %v139 = vadd.f32 %v123, 0.1
  %v140 = vadd.f32 %v124, 0.1
  %v141 = vadd.f32 %v125, 0.1
  %v142 = vadd.f32 %v126, 0.1
  %v143 = vadd.f32 %v127, 0.1
  %v144 = vadd.f32 %v128, 0.1
  %v145 = vadd.f32 %v129, 0.1
  %v146 = vmul.f32 %v14, 0.9
  %v147 = vmul.f32 %v15, 0.9
  %v148 = vmul.f32 %v16, 0.9
  %v149 = vmul.f32 %v17, 0.9
  %v150 = vmul.f32 %v18, 0.9
  %v151 = vmul.f32 %v19, 0.9
  %v152 = vmul.f32 %v20, 0.9
  %v153 = vmul.f32 %v21, 0.9
  %v154 = vmul.f32 %v22, 0.9
  %v155 = vmul.f32 %v23, 0.9
  %v156 = vmul.f32 %v24, 0.9
  %v157 = vmul.f32 %v25, 0.9
  %v158 = vmul.f32 %v26, 0.9
  %v159 = vmul.f32 %v27, 0.9
  %v160 = vmul.f32 %v28, 0.9
  %v161 = vmul.f32 %v29, 0.9
  %v162 = vadd.f32 %v146, 5.0
  %v163 = vadd.f32 %v147, 5.0
  %v164 = vadd.f32 %v148, 5.0
  %v165 = vadd.f32 %v149, 5.0
  %v166 = vadd.f32 %v150, 5.0
  %v167 = vadd.f32 %v151, 5.0
  %v168 = vadd.f32 %v152, 5.0
  %v169 = vadd.f32 %v153, 5.0
  %v170 = vadd.f32 %v154, 5.0
  %v171 = vadd.f32 %v155, 5.0
  %v172 = vadd.f32 %v156, 5.0
  %v173 = vadd.f32 %v157, 5.0
  %v174 = vadd.f32 %v158, 5.0
  %v175 = vadd.f32 %v159, 5.0
  %v176 = vadd.f32 %v160, 5.0
  %v177 = vadd.f32 %v161, 5.0
  %v178 = vmul.f32 %v46, 0.1
  %v179 = vmul.f32 %v47, 0.1
  %v180 = vmul.f32 %v48, 0.1
  %v181 = vmul.f32 %v49, 0.1
  %v182 = vlaneseq
  %v183 = vshrl.u32 %v182, 7
  %v184 = vsub.s32 0, %v183
  %v185 = vrot.slane %v162, %v184
  %187 = vbcast.lane.b32.xlu0 %v185, 256
  %v188 = vpop.permute.xlu0 %187
  %s190 = sor.u32 256, 8
  %191 = vbcast.lane.b32.xlu0 %v185, %s190
  %v192 = vpop.permute.xlu0 %191
  %s194 = sor.u32 256, 16
  %195 = vbcast.lane.b32.xlu0 %v185, %s194
  %v196 = vpop.permute.xlu0 %195
  %s198 = sor.u32 256, 24
  %199 = vbcast.lane.b32.xlu0 %v185, %s198
  %v200 = vpop.permute.xlu0 %199
  %v201 = vlaneseq
  %v202 = vshrl.u32 %v201, 7
  %v203 = vsub.s32 1, %v202
  %v204 = vrot.slane %v162, %v203
  %206 = vbcast.lane.b32.xlu0 %v204, 256
  %v207 = vpop.permute.xlu0 %206
  %s209 = sor.u32 256, 8
  %210 = vbcast.lane.b32.xlu0 %v204, %s209
  %v211 = vpop.permute.xlu0 %210
  %s213 = sor.u32 256, 16
  %214 = vbcast.lane.b32.xlu0 %v204, %s213
  %v215 = vpop.permute.xlu0 %214
  %s217 = sor.u32 256, 24
  %218 = vbcast.lane.b32.xlu0 %v204, %s217
  %v219 = vpop.permute.xlu0 %218
  %v220 = vlaneseq
  %v221 = vshrl.u32 %v220, 7
  %v222 = vsub.s32 2, %v221
  %v223 = vrot.slane %v162, %v222
  %225 = vbcast.lane.b32.xlu0 %v223, 256
  %v226 = vpop.permute.xlu0 %225
  %s228 = sor.u32 256, 8
  %229 = vbcast.lane.b32.xlu0 %v223, %s228
  %v230 = vpop.permute.xlu0 %229
  %s232 = sor.u32 256, 16
  %233 = vbcast.lane.b32.xlu0 %v223, %s232
  %v234 = vpop.permute.xlu0 %233
  %s236 = sor.u32 256, 24
  %237 = vbcast.lane.b32.xlu0 %v223, %s236
  %v238 = vpop.permute.xlu0 %237
  %v239 = vlaneseq
  %v240 = vshrl.u32 %v239, 7
  %v241 = vsub.s32 3, %v240
  %v242 = vrot.slane %v162, %v241
  %244 = vbcast.lane.b32.xlu0 %v242, 256
  %v245 = vpop.permute.xlu0 %244
  %s247 = sor.u32 256, 8
  %248 = vbcast.lane.b32.xlu0 %v242, %s247
  %v249 = vpop.permute.xlu0 %248
  %s251 = sor.u32 256, 16
  %252 = vbcast.lane.b32.xlu0 %v242, %s251
  %v253 = vpop.permute.xlu0 %252
  %s255 = sor.u32 256, 24
  %256 = vbcast.lane.b32.xlu0 %v242, %s255
  %v257 = vpop.permute.xlu0 %256
  %v258 = vlaneseq
  %v259 = vshrl.u32 %v258, 7
  %v260 = vsub.s32 4, %v259
  %v261 = vrot.slane %v162, %v260
  %263 = vbcast.lane.b32.xlu0 %v261, 256
  %v264 = vpop.permute.xlu0 %263
  %s266 = sor.u32 256, 8
  %267 = vbcast.lane.b32.xlu0 %v261, %s266
  %v268 = vpop.permute.xlu0 %267
  %s270 = sor.u32 256, 16
  %271 = vbcast.lane.b32.xlu0 %v261, %s270
  %v272 = vpop.permute.xlu0 %271
  %s274 = sor.u32 256, 24
  %275 = vbcast.lane.b32.xlu0 %v261, %s274
  %v276 = vpop.permute.xlu0 %275
  %v277 = vlaneseq
  %v278 = vshrl.u32 %v277, 7
  %v279 = vsub.s32 5, %v278
  %v280 = vrot.slane %v162, %v279
  %282 = vbcast.lane.b32.xlu0 %v280, 256
  %v283 = vpop.permute.xlu0 %282
  %s285 = sor.u32 256, 8
  %286 = vbcast.lane.b32.xlu0 %v280, %s285
  %v287 = vpop.permute.xlu0 %286
  %s289 = sor.u32 256, 16
  %290 = vbcast.lane.b32.xlu0 %v280, %s289
  %v291 = vpop.permute.xlu0 %290
  %s293 = sor.u32 256, 24
  %294 = vbcast.lane.b32.xlu0 %v280, %s293
  %v295 = vpop.permute.xlu0 %294
  %v296 = vlaneseq
  %v297 = vshrl.u32 %v296, 7
  %v298 = vsub.s32 6, %v297
  %v299 = vrot.slane %v162, %v298
  %301 = vbcast.lane.b32.xlu0 %v299, 256
  %v302 = vpop.permute.xlu0 %301
  %s304 = sor.u32 256, 8
  %305 = vbcast.lane.b32.xlu0 %v299, %s304
  %v306 = vpop.permute.xlu0 %305
  %s308 = sor.u32 256, 16
  %309 = vbcast.lane.b32.xlu0 %v299, %s308
  %v310 = vpop.permute.xlu0 %309
  %s312 = sor.u32 256, 24
  %313 = vbcast.lane.b32.xlu0 %v299, %s312
  %v314 = vpop.permute.xlu0 %313
  %v315 = vlaneseq
  %v316 = vshrl.u32 %v315, 7
  %v317 = vsub.s32 7, %v316
  %v318 = vrot.slane %v162, %v317
  %320 = vbcast.lane.b32.xlu0 %v318, 256
  %v321 = vpop.permute.xlu0 %320
  %s323 = sor.u32 256, 8
  %324 = vbcast.lane.b32.xlu0 %v318, %s323
  %v325 = vpop.permute.xlu0 %324
  %s327 = sor.u32 256, 16
  %328 = vbcast.lane.b32.xlu0 %v318, %s327
  %v329 = vpop.permute.xlu0 %328
  %s331 = sor.u32 256, 24
  %332 = vbcast.lane.b32.xlu0 %v318, %s331
  %v333 = vpop.permute.xlu0 %332
  %v334 = vlaneseq
  %v335 = vshrl.u32 %v334, 7
  %v336 = vsub.s32 0, %v335
  %v337 = vrot.slane %v163, %v336
  %339 = vbcast.lane.b32.xlu0 %v337, 256
  %v340 = vpop.permute.xlu0 %339
  %s342 = sor.u32 256, 8
  %343 = vbcast.lane.b32.xlu0 %v337, %s342
  %v344 = vpop.permute.xlu0 %343
  %s346 = sor.u32 256, 16
  %347 = vbcast.lane.b32.xlu0 %v337, %s346
  %v348 = vpop.permute.xlu0 %347
  %s350 = sor.u32 256, 24
  %351 = vbcast.lane.b32.xlu0 %v337, %s350
  %v352 = vpop.permute.xlu0 %351
  %v353 = vlaneseq
  %v354 = vshrl.u32 %v353, 7
  %v355 = vsub.s32 1, %v354
  %v356 = vrot.slane %v163, %v355
  %358 = vbcast.lane.b32.xlu0 %v356, 256
  %v359 = vpop.permute.xlu0 %358
  %s361 = sor.u32 256, 8
  %362 = vbcast.lane.b32.xlu0 %v356, %s361
  %v363 = vpop.permute.xlu0 %362
  %s365 = sor.u32 256, 16
  %366 = vbcast.lane.b32.xlu0 %v356, %s365
  %v367 = vpop.permute.xlu0 %366
  %s369 = sor.u32 256, 24
  %370 = vbcast.lane.b32.xlu0 %v356, %s369
  %v371 = vpop.permute.xlu0 %370
  %v372 = vlaneseq
  %v373 = vshrl.u32 %v372, 7
  %v374 = vsub.s32 2, %v373
  %v375 = vrot.slane %v163, %v374
  %377 = vbcast.lane.b32.xlu0 %v375, 256
  %v378 = vpop.permute.xlu0 %377
  %s380 = sor.u32 256, 8
  %381 = vbcast.lane.b32.xlu0 %v375, %s380
  %v382 = vpop.permute.xlu0 %381
  %s384 = sor.u32 256, 16
  %385 = vbcast.lane.b32.xlu0 %v375, %s384
  %v386 = vpop.permute.xlu0 %385
  %s388 = sor.u32 256, 24
  %389 = vbcast.lane.b32.xlu0 %v375, %s388
  %v390 = vpop.permute.xlu0 %389
  %v391 = vlaneseq
  %v392 = vshrl.u32 %v391, 7
  %v393 = vsub.s32 3, %v392
  %v394 = vrot.slane %v163, %v393
  %396 = vbcast.lane.b32.xlu0 %v394, 256
  %v397 = vpop.permute.xlu0 %396
  %s399 = sor.u32 256, 8
  %400 = vbcast.lane.b32.xlu0 %v394, %s399
  %v401 = vpop.permute.xlu0 %400
  %s403 = sor.u32 256, 16
  %404 = vbcast.lane.b32.xlu0 %v394, %s403
  %v405 = vpop.permute.xlu0 %404
  %s407 = sor.u32 256, 24
  %408 = vbcast.lane.b32.xlu0 %v394, %s407
  %v409 = vpop.permute.xlu0 %408
  %v410 = vlaneseq
  %v411 = vshrl.u32 %v410, 7
  %v412 = vsub.s32 4, %v411
  %v413 = vrot.slane %v163, %v412
  %415 = vbcast.lane.b32.xlu0 %v413, 256
  %v416 = vpop.permute.xlu0 %415
  %s418 = sor.u32 256, 8
  %419 = vbcast.lane.b32.xlu0 %v413, %s418
  %v420 = vpop.permute.xlu0 %419
  %s422 = sor.u32 256, 16
  %423 = vbcast.lane.b32.xlu0 %v413, %s422
  %v424 = vpop.permute.xlu0 %423
  %s426 = sor.u32 256, 24
  %427 = vbcast.lane.b32.xlu0 %v413, %s426
  %v428 = vpop.permute.xlu0 %427
  %v429 = vlaneseq
  %v430 = vshrl.u32 %v429, 7
  %v431 = vsub.s32 5, %v430
  %v432 = vrot.slane %v163, %v431
  %434 = vbcast.lane.b32.xlu0 %v432, 256
  %v435 = vpop.permute.xlu0 %434
  %s437 = sor.u32 256, 8
  %438 = vbcast.lane.b32.xlu0 %v432, %s437
  %v439 = vpop.permute.xlu0 %438
  %s441 = sor.u32 256, 16
  %442 = vbcast.lane.b32.xlu0 %v432, %s441
  %v443 = vpop.permute.xlu0 %442
  %s445 = sor.u32 256, 24
  %446 = vbcast.lane.b32.xlu0 %v432, %s445
  %v447 = vpop.permute.xlu0 %446
  %v448 = vlaneseq
  %v449 = vshrl.u32 %v448, 7
  %v450 = vsub.s32 6, %v449
  %v451 = vrot.slane %v163, %v450
  %453 = vbcast.lane.b32.xlu0 %v451, 256
  %v454 = vpop.permute.xlu0 %453
  %s456 = sor.u32 256, 8
  %457 = vbcast.lane.b32.xlu0 %v451, %s456
  %v458 = vpop.permute.xlu0 %457
  %s460 = sor.u32 256, 16
  %461 = vbcast.lane.b32.xlu0 %v451, %s460
  %v462 = vpop.permute.xlu0 %461
  %s464 = sor.u32 256, 24
  %465 = vbcast.lane.b32.xlu0 %v451, %s464
  %v466 = vpop.permute.xlu0 %465
  %v467 = vlaneseq
  %v468 = vshrl.u32 %v467, 7
  %v469 = vsub.s32 7, %v468
  %v470 = vrot.slane %v163, %v469
  %472 = vbcast.lane.b32.xlu0 %v470, 256
  %v473 = vpop.permute.xlu0 %472
  %s475 = sor.u32 256, 8
  %476 = vbcast.lane.b32.xlu0 %v470, %s475
  %v477 = vpop.permute.xlu0 %476
  %s479 = sor.u32 256, 16
  %480 = vbcast.lane.b32.xlu0 %v470, %s479
  %v481 = vpop.permute.xlu0 %480
  %s483 = sor.u32 256, 24
  %484 = vbcast.lane.b32.xlu0 %v470, %s483
  %v485 = vpop.permute.xlu0 %484
  %v486 = vlaneseq
  %v487 = vshrl.u32 %v486, 7
  %v488 = vsub.s32 0, %v487
  %v489 = vrot.slane %v164, %v488
  %491 = vbcast.lane.b32.xlu0 %v489, 256
  %v492 = vpop.permute.xlu0 %491
  %s494 = sor.u32 256, 8
  %495 = vbcast.lane.b32.xlu0 %v489, %s494
  %v496 = vpop.permute.xlu0 %495
  %s498 = sor.u32 256, 16
  %499 = vbcast.lane.b32.xlu0 %v489, %s498
  %v500 = vpop.permute.xlu0 %499
  %s502 = sor.u32 256, 24
  %503 = vbcast.lane.b32.xlu0 %v489, %s502
  %v504 = vpop.permute.xlu0 %503
  %v505 = vlaneseq
  %v506 = vshrl.u32 %v505, 7
  %v507 = vsub.s32 1, %v506
  %v508 = vrot.slane %v164, %v507
  %510 = vbcast.lane.b32.xlu0 %v508, 256
  %v511 = vpop.permute.xlu0 %510
  %s513 = sor.u32 256, 8
  %514 = vbcast.lane.b32.xlu0 %v508, %s513
  %v515 = vpop.permute.xlu0 %514
  %s517 = sor.u32 256, 16
  %518 = vbcast.lane.b32.xlu0 %v508, %s517
  %v519 = vpop.permute.xlu0 %518
  %s521 = sor.u32 256, 24
  %522 = vbcast.lane.b32.xlu0 %v508, %s521
  %v523 = vpop.permute.xlu0 %522
  %v524 = vlaneseq
  %v525 = vshrl.u32 %v524, 7
  %v526 = vsub.s32 2, %v525
  %v527 = vrot.slane %v164, %v526
  %529 = vbcast.lane.b32.xlu0 %v527, 256
  %v530 = vpop.permute.xlu0 %529
  %s532 = sor.u32 256, 8
  %533 = vbcast.lane.b32.xlu0 %v527, %s532
  %v534 = vpop.permute.xlu0 %533
  %s536 = sor.u32 256, 16
  %537 = vbcast.lane.b32.xlu0 %v527, %s536
  %v538 = vpop.permute.xlu0 %537
  %s540 = sor.u32 256, 24
  %541 = vbcast.lane.b32.xlu0 %v527, %s540
  %v542 = vpop.permute.xlu0 %541
  %v543 = vlaneseq
  %v544 = vshrl.u32 %v543, 7
  %v545 = vsub.s32 3, %v544
  %v546 = vrot.slane %v164, %v545
  %548 = vbcast.lane.b32.xlu0 %v546, 256
  %v549 = vpop.permute.xlu0 %548
  %s551 = sor.u32 256, 8
  %552 = vbcast.lane.b32.xlu0 %v546, %s551
  %v553 = vpop.permute.xlu0 %552
  %s555 = sor.u32 256, 16
  %556 = vbcast.lane.b32.xlu0 %v546, %s555
  %v557 = vpop.permute.xlu0 %556
  %s559 = sor.u32 256, 24
  %560 = vbcast.lane.b32.xlu0 %v546, %s559
  %v561 = vpop.permute.xlu0 %560
  %v562 = vlaneseq
  %v563 = vshrl.u32 %v562, 7
  %v564 = vsub.s32 4, %v563
  %v565 = vrot.slane %v164, %v564
  %567 = vbcast.lane.b32.xlu0 %v565, 256
  %v568 = vpop.permute.xlu0 %567
  %s570 = sor.u32 256, 8
  %571 = vbcast.lane.b32.xlu0 %v565, %s570
  %v572 = vpop.permute.xlu0 %571
  %s574 = sor.u32 256, 16
  %575 = vbcast.lane.b32.xlu0 %v565, %s574
  %v576 = vpop.permute.xlu0 %575
  %s578 = sor.u32 256, 24
  %579 = vbcast.lane.b32.xlu0 %v565, %s578
  %v580 = vpop.permute.xlu0 %579
  %v581 = vlaneseq
  %v582 = vshrl.u32 %v581, 7
  %v583 = vsub.s32 5, %v582
  %v584 = vrot.slane %v164, %v583
  %586 = vbcast.lane.b32.xlu0 %v584, 256
  %v587 = vpop.permute.xlu0 %586
  %s589 = sor.u32 256, 8
  %590 = vbcast.lane.b32.xlu0 %v584, %s589
  %v591 = vpop.permute.xlu0 %590
  %s593 = sor.u32 256, 16
  %594 = vbcast.lane.b32.xlu0 %v584, %s593
  %v595 = vpop.permute.xlu0 %594
  %s597 = sor.u32 256, 24
  %598 = vbcast.lane.b32.xlu0 %v584, %s597
  %v599 = vpop.permute.xlu0 %598
  %v600 = vlaneseq
  %v601 = vshrl.u32 %v600, 7
  %v602 = vsub.s32 6, %v601
  %v603 = vrot.slane %v164, %v602
  %605 = vbcast.lane.b32.xlu0 %v603, 256
  %v606 = vpop.permute.xlu0 %605
  %s608 = sor.u32 256, 8
  %609 = vbcast.lane.b32.xlu0 %v603, %s608
  %v610 = vpop.permute.xlu0 %609
  %s612 = sor.u32 256, 16
  %613 = vbcast.lane.b32.xlu0 %v603, %s612
  %v614 = vpop.permute.xlu0 %613
  %s616 = sor.u32 256, 24
  %617 = vbcast.lane.b32.xlu0 %v603, %s616
  %v618 = vpop.permute.xlu0 %617
  %v619 = vlaneseq
  %v620 = vshrl.u32 %v619, 7
  %v621 = vsub.s32 7, %v620
  %v622 = vrot.slane %v164, %v621
  %624 = vbcast.lane.b32.xlu0 %v622, 256
  %v625 = vpop.permute.xlu0 %624
  %s627 = sor.u32 256, 8
  %628 = vbcast.lane.b32.xlu0 %v622, %s627
  %v629 = vpop.permute.xlu0 %628
  %s631 = sor.u32 256, 16
  %632 = vbcast.lane.b32.xlu0 %v622, %s631
  %v633 = vpop.permute.xlu0 %632
  %s635 = sor.u32 256, 24
  %636 = vbcast.lane.b32.xlu0 %v622, %s635
  %v637 = vpop.permute.xlu0 %636
  %v638 = vlaneseq
  %v639 = vshrl.u32 %v638, 7
  %v640 = vsub.s32 0, %v639
  %v641 = vrot.slane %v165, %v640
  %643 = vbcast.lane.b32.xlu0 %v641, 256
  %v644 = vpop.permute.xlu0 %643
  %s646 = sor.u32 256, 8
  %647 = vbcast.lane.b32.xlu0 %v641, %s646
  %v648 = vpop.permute.xlu0 %647
  %s650 = sor.u32 256, 16
  %651 = vbcast.lane.b32.xlu0 %v641, %s650
  %v652 = vpop.permute.xlu0 %651
  %s654 = sor.u32 256, 24
  %655 = vbcast.lane.b32.xlu0 %v641, %s654
  %v656 = vpop.permute.xlu0 %655
  %v657 = vlaneseq
  %v658 = vshrl.u32 %v657, 7
  %v659 = vsub.s32 1, %v658
  %v660 = vrot.slane %v165, %v659
  %662 = vbcast.lane.b32.xlu0 %v660, 256
  %v663 = vpop.permute.xlu0 %662
  %s665 = sor.u32 256, 8
  %666 = vbcast.lane.b32.xlu0 %v660, %s665
  %v667 = vpop.permute.xlu0 %666
  %s669 = sor.u32 256, 16
  %670 = vbcast.lane.b32.xlu0 %v660, %s669
  %v671 = vpop.permute.xlu0 %670
  %s673 = sor.u32 256, 24
  %674 = vbcast.lane.b32.xlu0 %v660, %s673
  %v675 = vpop.permute.xlu0 %674
  %v676 = vlaneseq
  %v677 = vshrl.u32 %v676, 7
  %v678 = vsub.s32 2, %v677
  %v679 = vrot.slane %v165, %v678
  %681 = vbcast.lane.b32.xlu0 %v679, 256
  %v682 = vpop.permute.xlu0 %681
  %s684 = sor.u32 256, 8
  %685 = vbcast.lane.b32.xlu0 %v679, %s684
  %v686 = vpop.permute.xlu0 %685
  %s688 = sor.u32 256, 16
  %689 = vbcast.lane.b32.xlu0 %v679, %s688
  %v690 = vpop.permute.xlu0 %689
  %s692 = sor.u32 256, 24
  %693 = vbcast.lane.b32.xlu0 %v679, %s692
  %v694 = vpop.permute.xlu0 %693
  %v695 = vlaneseq
  %v696 = vshrl.u32 %v695, 7
  %v697 = vsub.s32 3, %v696
  %v698 = vrot.slane %v165, %v697
  %700 = vbcast.lane.b32.xlu0 %v698, 256
  %v701 = vpop.permute.xlu0 %700
  %s703 = sor.u32 256, 8
  %704 = vbcast.lane.b32.xlu0 %v698, %s703
  %v705 = vpop.permute.xlu0 %704
  %s707 = sor.u32 256, 16
  %708 = vbcast.lane.b32.xlu0 %v698, %s707
  %v709 = vpop.permute.xlu0 %708
  %s711 = sor.u32 256, 24
  %712 = vbcast.lane.b32.xlu0 %v698, %s711
  %v713 = vpop.permute.xlu0 %712
  %v714 = vlaneseq
  %v715 = vshrl.u32 %v714, 7
  %v716 = vsub.s32 4, %v715
  %v717 = vrot.slane %v165, %v716
  %719 = vbcast.lane.b32.xlu0 %v717, 256
  %v720 = vpop.permute.xlu0 %719
  %s722 = sor.u32 256, 8
  %723 = vbcast.lane.b32.xlu0 %v717, %s722
  %v724 = vpop.permute.xlu0 %723
  %s726 = sor.u32 256, 16
  %727 = vbcast.lane.b32.xlu0 %v717, %s726
  %v728 = vpop.permute.xlu0 %727
  %s730 = sor.u32 256, 24
  %731 = vbcast.lane.b32.xlu0 %v717, %s730
  %v732 = vpop.permute.xlu0 %731
  %v733 = vlaneseq
  %v734 = vshrl.u32 %v733, 7
  %v735 = vsub.s32 5, %v734
  %v736 = vrot.slane %v165, %v735
  %738 = vbcast.lane.b32.xlu0 %v736, 256
  %v739 = vpop.permute.xlu0 %738
  %s741 = sor.u32 256, 8
  %742 = vbcast.lane.b32.xlu0 %v736, %s741
  %v743 = vpop.permute.xlu0 %742
  %s745 = sor.u32 256, 16
  %746 = vbcast.lane.b32.xlu0 %v736, %s745
  %v747 = vpop.permute.xlu0 %746
  %s749 = sor.u32 256, 24
  %750 = vbcast.lane.b32.xlu0 %v736, %s749
  %v751 = vpop.permute.xlu0 %750
  %v752 = vlaneseq
  %v753 = vshrl.u32 %v752, 7
  %v754 = vsub.s32 6, %v753
  %v755 = vrot.slane %v165, %v754
  %757 = vbcast.lane.b32.xlu0 %v755, 256
  %v758 = vpop.permute.xlu0 %757
  %s760 = sor.u32 256, 8
  %761 = vbcast.lane.b32.xlu0 %v755, %s760
  %v762 = vpop.permute.xlu0 %761
  %s764 = sor.u32 256, 16
  %765 = vbcast.lane.b32.xlu0 %v755, %s764
  %v766 = vpop.permute.xlu0 %765
  %s768 = sor.u32 256, 24
  %769 = vbcast.lane.b32.xlu0 %v755, %s768
  %v770 = vpop.permute.xlu0 %769
  %v771 = vlaneseq
  %v772 = vshrl.u32 %v771, 7
  %v773 = vsub.s32 7, %v772
  %v774 = vrot.slane %v165, %v773
  %776 = vbcast.lane.b32.xlu0 %v774, 256
  %v777 = vpop.permute.xlu0 %776
  %s779 = sor.u32 256, 8
  %780 = vbcast.lane.b32.xlu0 %v774, %s779
  %v781 = vpop.permute.xlu0 %780
  %s783 = sor.u32 256, 16
  %784 = vbcast.lane.b32.xlu0 %v774, %s783
  %v785 = vpop.permute.xlu0 %784
  %s787 = sor.u32 256, 24
  %788 = vbcast.lane.b32.xlu0 %v774, %s787
  %v789 = vpop.permute.xlu0 %788
  %v790 = vlaneseq
  %v791 = vshrl.u32 %v790, 7
  %v792 = vsub.s32 0, %v791
  %v793 = vrot.slane %v166, %v792
  %795 = vbcast.lane.b32.xlu0 %v793, 256
  %v796 = vpop.permute.xlu0 %795
  %s798 = sor.u32 256, 8
  %799 = vbcast.lane.b32.xlu0 %v793, %s798
  %v800 = vpop.permute.xlu0 %799
  %s802 = sor.u32 256, 16
  %803 = vbcast.lane.b32.xlu0 %v793, %s802
  %v804 = vpop.permute.xlu0 %803
  %s806 = sor.u32 256, 24
  %807 = vbcast.lane.b32.xlu0 %v793, %s806
  %v808 = vpop.permute.xlu0 %807
  %v809 = vlaneseq
  %v810 = vshrl.u32 %v809, 7
  %v811 = vsub.s32 1, %v810
  %v812 = vrot.slane %v166, %v811
  %814 = vbcast.lane.b32.xlu0 %v812, 256
  %v815 = vpop.permute.xlu0 %814
  %s817 = sor.u32 256, 8
  %818 = vbcast.lane.b32.xlu0 %v812, %s817
  %v819 = vpop.permute.xlu0 %818
  %s821 = sor.u32 256, 16
  %822 = vbcast.lane.b32.xlu0 %v812, %s821
  %v823 = vpop.permute.xlu0 %822
  %s825 = sor.u32 256, 24
  %826 = vbcast.lane.b32.xlu0 %v812, %s825
  %v827 = vpop.permute.xlu0 %826
  %v828 = vlaneseq
  %v829 = vshrl.u32 %v828, 7
  %v830 = vsub.s32 2, %v829
  %v831 = vrot.slane %v166, %v830
  %833 = vbcast.lane.b32.xlu0 %v831, 256
  %v834 = vpop.permute.xlu0 %833
  %s836 = sor.u32 256, 8
  %837 = vbcast.lane.b32.xlu0 %v831, %s836
  %v838 = vpop.permute.xlu0 %837
  %s840 = sor.u32 256, 16
  %841 = vbcast.lane.b32.xlu0 %v831, %s840
  %v842 = vpop.permute.xlu0 %841
  %s844 = sor.u32 256, 24
  %845 = vbcast.lane.b32.xlu0 %v831, %s844
  %v846 = vpop.permute.xlu0 %845
  %v847 = vlaneseq
  %v848 = vshrl.u32 %v847, 7
  %v849 = vsub.s32 3, %v848
  %v850 = vrot.slane %v166, %v849
  %852 = vbcast.lane.b32.xlu0 %v850, 256
  %v853 = vpop.permute.xlu0 %852
  %s855 = sor.u32 256, 8
  %856 = vbcast.lane.b32.xlu0 %v850, %s855
  %v857 = vpop.permute.xlu0 %856
  %s859 = sor.u32 256, 16
  %860 = vbcast.lane.b32.xlu0 %v850, %s859
  %v861 = vpop.permute.xlu0 %860
  %s863 = sor.u32 256, 24
  %864 = vbcast.lane.b32.xlu0 %v850, %s863
  %v865 = vpop.permute.xlu0 %864
  %v866 = vlaneseq
  %v867 = vshrl.u32 %v866, 7
  %v868 = vsub.s32 4, %v867
  %v869 = vrot.slane %v166, %v868
  %871 = vbcast.lane.b32.xlu0 %v869, 256
  %v872 = vpop.permute.xlu0 %871
  %s874 = sor.u32 256, 8
  %875 = vbcast.lane.b32.xlu0 %v869, %s874
  %v876 = vpop.permute.xlu0 %875
  %s878 = sor.u32 256, 16
  %879 = vbcast.lane.b32.xlu0 %v869, %s878
  %v880 = vpop.permute.xlu0 %879
  %s882 = sor.u32 256, 24
  %883 = vbcast.lane.b32.xlu0 %v869, %s882
  %v884 = vpop.permute.xlu0 %883
  %v885 = vlaneseq
  %v886 = vshrl.u32 %v885, 7
  %v887 = vsub.s32 5, %v886
  %v888 = vrot.slane %v166, %v887
  %890 = vbcast.lane.b32.xlu0 %v888, 256
  %v891 = vpop.permute.xlu0 %890
  %s893 = sor.u32 256, 8
  %894 = vbcast.lane.b32.xlu0 %v888, %s893
  %v895 = vpop.permute.xlu0 %894
  %s897 = sor.u32 256, 16
  %898 = vbcast.lane.b32.xlu0 %v888, %s897
  %v899 = vpop.permute.xlu0 %898
  %s901 = sor.u32 256, 24
  %902 = vbcast.lane.b32.xlu0 %v888, %s901
  %v903 = vpop.permute.xlu0 %902
  %v904 = vlaneseq
  %v905 = vshrl.u32 %v904, 7
  %v906 = vsub.s32 6, %v905
  %v907 = vrot.slane %v166, %v906
  %909 = vbcast.lane.b32.xlu0 %v907, 256
  %v910 = vpop.permute.xlu0 %909
  %s912 = sor.u32 256, 8
  %913 = vbcast.lane.b32.xlu0 %v907, %s912
  %v914 = vpop.permute.xlu0 %913
  %s916 = sor.u32 256, 16
  %917 = vbcast.lane.b32.xlu0 %v907, %s916
  %v918 = vpop.permute.xlu0 %917
  %s920 = sor.u32 256, 24
  %921 = vbcast.lane.b32.xlu0 %v907, %s920
  %v922 = vpop.permute.xlu0 %921
  %v923 = vlaneseq
  %v924 = vshrl.u32 %v923, 7
  %v925 = vsub.s32 7, %v924
  %v926 = vrot.slane %v166, %v925
  %928 = vbcast.lane.b32.xlu0 %v926, 256
  %v929 = vpop.permute.xlu0 %928
  %s931 = sor.u32 256, 8
  %932 = vbcast.lane.b32.xlu0 %v926, %s931
  %v933 = vpop.permute.xlu0 %932
  %s935 = sor.u32 256, 16
  %936 = vbcast.lane.b32.xlu0 %v926, %s935
  %v937 = vpop.permute.xlu0 %936
  %s939 = sor.u32 256, 24
  %940 = vbcast.lane.b32.xlu0 %v926, %s939
  %v941 = vpop.permute.xlu0 %940
  %v942 = vlaneseq
  %v943 = vshrl.u32 %v942, 7
  %v944 = vsub.s32 0, %v943
  %v945 = vrot.slane %v167, %v944
  %947 = vbcast.lane.b32.xlu0 %v945, 256
  %v948 = vpop.permute.xlu0 %947
  %s950 = sor.u32 256, 8
  %951 = vbcast.lane.b32.xlu0 %v945, %s950
  %v952 = vpop.permute.xlu0 %951
  %s954 = sor.u32 256, 16
  %955 = vbcast.lane.b32.xlu0 %v945, %s954
  %v956 = vpop.permute.xlu0 %955
  %s958 = sor.u32 256, 24
  %959 = vbcast.lane.b32.xlu0 %v945, %s958
  %v960 = vpop.permute.xlu0 %959
  %v961 = vlaneseq
  %v962 = vshrl.u32 %v961, 7
  %v963 = vsub.s32 1, %v962
  %v964 = vrot.slane %v167, %v963
  %966 = vbcast.lane.b32.xlu0 %v964, 256
  %v967 = vpop.permute.xlu0 %966
  %s969 = sor.u32 256, 8
  %970 = vbcast.lane.b32.xlu0 %v964, %s969
  %v971 = vpop.permute.xlu0 %970
  %s973 = sor.u32 256, 16
  %974 = vbcast.lane.b32.xlu0 %v964, %s973
  %v975 = vpop.permute.xlu0 %974
  %s977 = sor.u32 256, 24
  %978 = vbcast.lane.b32.xlu0 %v964, %s977
  %v979 = vpop.permute.xlu0 %978
  %v980 = vlaneseq
  %v981 = vshrl.u32 %v980, 7
  %v982 = vsub.s32 2, %v981
  %v983 = vrot.slane %v167, %v982
  %985 = vbcast.lane.b32.xlu0 %v983, 256
  %v986 = vpop.permute.xlu0 %985
  %s988 = sor.u32 256, 8
  %989 = vbcast.lane.b32.xlu0 %v983, %s988
  %v990 = vpop.permute.xlu0 %989
  %s992 = sor.u32 256, 16
  %993 = vbcast.lane.b32.xlu0 %v983, %s992
  %v994 = vpop.permute.xlu0 %993
  %s996 = sor.u32 256, 24
  %997 = vbcast.lane.b32.xlu0 %v983, %s996
  %v998 = vpop.permute.xlu0 %997
  %v999 = vlaneseq
  %v1000 = vshrl.u32 %v999, 7
  %v1001 = vsub.s32 3, %v1000
  %v1002 = vrot.slane %v167, %v1001
  %1004 = vbcast.lane.b32.xlu0 %v1002, 256
  %v1005 = vpop.permute.xlu0 %1004
  %s1007 = sor.u32 256, 8
  %1008 = vbcast.lane.b32.xlu0 %v1002, %s1007
  %v1009 = vpop.permute.xlu0 %1008
  %s1011 = sor.u32 256, 16
  %1012 = vbcast.lane.b32.xlu0 %v1002, %s1011
  %v1013 = vpop.permute.xlu0 %1012
  %s1015 = sor.u32 256, 24
  %1016 = vbcast.lane.b32.xlu0 %v1002, %s1015
  %v1017 = vpop.permute.xlu0 %1016
  %v1018 = vlaneseq
  %v1019 = vshrl.u32 %v1018, 7
  %v1020 = vsub.s32 4, %v1019
  %v1021 = vrot.slane %v167, %v1020
  %1023 = vbcast.lane.b32.xlu0 %v1021, 256
  %v1024 = vpop.permute.xlu0 %1023
  %s1026 = sor.u32 256, 8
  %1027 = vbcast.lane.b32.xlu0 %v1021, %s1026
  %v1028 = vpop.permute.xlu0 %1027
  %s1030 = sor.u32 256, 16
  %1031 = vbcast.lane.b32.xlu0 %v1021, %s1030
  %v1032 = vpop.permute.xlu0 %1031
  %s1034 = sor.u32 256, 24
  %1035 = vbcast.lane.b32.xlu0 %v1021, %s1034
  %v1036 = vpop.permute.xlu0 %1035
  %v1037 = vlaneseq
  %v1038 = vshrl.u32 %v1037, 7
  %v1039 = vsub.s32 5, %v1038
  %v1040 = vrot.slane %v167, %v1039
  %1042 = vbcast.lane.b32.xlu0 %v1040, 256
  %v1043 = vpop.permute.xlu0 %1042
  %s1045 = sor.u32 256, 8
  %1046 = vbcast.lane.b32.xlu0 %v1040, %s1045
  %v1047 = vpop.permute.xlu0 %1046
  %s1049 = sor.u32 256, 16
  %1050 = vbcast.lane.b32.xlu0 %v1040, %s1049
  %v1051 = vpop.permute.xlu0 %1050
  %s1053 = sor.u32 256, 24
  %1054 = vbcast.lane.b32.xlu0 %v1040, %s1053
  %v1055 = vpop.permute.xlu0 %1054
  %v1056 = vlaneseq
  %v1057 = vshrl.u32 %v1056, 7
  %v1058 = vsub.s32 6, %v1057
  %v1059 = vrot.slane %v167, %v1058
  %1061 = vbcast.lane.b32.xlu0 %v1059, 256
  %v1062 = vpop.permute.xlu0 %1061
  %s1064 = sor.u32 256, 8
  %1065 = vbcast.lane.b32.xlu0 %v1059, %s1064
  %v1066 = vpop.permute.xlu0 %1065
  %s1068 = sor.u32 256, 16
  %1069 = vbcast.lane.b32.xlu0 %v1059, %s1068
  %v1070 = vpop.permute.xlu0 %1069
  %s1072 = sor.u32 256, 24
  %1073 = vbcast.lane.b32.xlu0 %v1059, %s1072
  %v1074 = vpop.permute.xlu0 %1073
  %v1075 = vlaneseq
  %v1076 = vshrl.u32 %v1075, 7
  %v1077 = vsub.s32 7, %v1076
  %v1078 = vrot.slane %v167, %v1077
  %1080 = vbcast.lane.b32.xlu0 %v1078, 256
  %v1081 = vpop.permute.xlu0 %1080
  %s1083 = sor.u32 256, 8
  %1084 = vbcast.lane.b32.xlu0 %v1078, %s1083
  %v1085 = vpop.permute.xlu0 %1084
  %s1087 = sor.u32 256, 16
  %1088 = vbcast.lane.b32.xlu0 %v1078, %s1087
  %v1089 = vpop.permute.xlu0 %1088
  %s1091 = sor.u32 256, 24
  %1092 = vbcast.lane.b32.xlu0 %v1078, %s1091
  %v1093 = vpop.permute.xlu0 %1092
  %v1094 = vlaneseq
  %v1095 = vshrl.u32 %v1094, 7
  %v1096 = vsub.s32 0, %v1095
  %v1097 = vrot.slane %v168, %v1096
  %1099 = vbcast.lane.b32.xlu0 %v1097, 256
  %v1100 = vpop.permute.xlu0 %1099
  %s1102 = sor.u32 256, 8
  %1103 = vbcast.lane.b32.xlu0 %v1097, %s1102
  %v1104 = vpop.permute.xlu0 %1103
  %s1106 = sor.u32 256, 16
  %1107 = vbcast.lane.b32.xlu0 %v1097, %s1106
  %v1108 = vpop.permute.xlu0 %1107
  %s1110 = sor.u32 256, 24
  %1111 = vbcast.lane.b32.xlu0 %v1097, %s1110
  %v1112 = vpop.permute.xlu0 %1111
  %v1113 = vlaneseq
  %v1114 = vshrl.u32 %v1113, 7
  %v1115 = vsub.s32 1, %v1114
  %v1116 = vrot.slane %v168, %v1115
  %1118 = vbcast.lane.b32.xlu0 %v1116, 256
  %v1119 = vpop.permute.xlu0 %1118
  %s1121 = sor.u32 256, 8
  %1122 = vbcast.lane.b32.xlu0 %v1116, %s1121
  %v1123 = vpop.permute.xlu0 %1122
  %s1125 = sor.u32 256, 16
  %1126 = vbcast.lane.b32.xlu0 %v1116, %s1125
  %v1127 = vpop.permute.xlu0 %1126
  %s1129 = sor.u32 256, 24
  %1130 = vbcast.lane.b32.xlu0 %v1116, %s1129
  %v1131 = vpop.permute.xlu0 %1130
  %v1132 = vlaneseq
  %v1133 = vshrl.u32 %v1132, 7
  %v1134 = vsub.s32 2, %v1133
  %v1135 = vrot.slane %v168, %v1134
  %1137 = vbcast.lane.b32.xlu0 %v1135, 256
  %v1138 = vpop.permute.xlu0 %1137
  %s1140 = sor.u32 256, 8
  %1141 = vbcast.lane.b32.xlu0 %v1135, %s1140
  %v1142 = vpop.permute.xlu0 %1141
  %s1144 = sor.u32 256, 16
  %1145 = vbcast.lane.b32.xlu0 %v1135, %s1144
  %v1146 = vpop.permute.xlu0 %1145
  %s1148 = sor.u32 256, 24
  %1149 = vbcast.lane.b32.xlu0 %v1135, %s1148
  %v1150 = vpop.permute.xlu0 %1149
  %v1151 = vlaneseq
  %v1152 = vshrl.u32 %v1151, 7
  %v1153 = vsub.s32 3, %v1152
  %v1154 = vrot.slane %v168, %v1153
  %1156 = vbcast.lane.b32.xlu0 %v1154, 256
  %v1157 = vpop.permute.xlu0 %1156
  %s1159 = sor.u32 256, 8
  %1160 = vbcast.lane.b32.xlu0 %v1154, %s1159
  %v1161 = vpop.permute.xlu0 %1160
  %s1163 = sor.u32 256, 16
  %1164 = vbcast.lane.b32.xlu0 %v1154, %s1163
  %v1165 = vpop.permute.xlu0 %1164
  %s1167 = sor.u32 256, 24
  %1168 = vbcast.lane.b32.xlu0 %v1154, %s1167
  %v1169 = vpop.permute.xlu0 %1168
  %v1170 = vlaneseq
  %v1171 = vshrl.u32 %v1170, 7
  %v1172 = vsub.s32 4, %v1171
  %v1173 = vrot.slane %v168, %v1172
  %1175 = vbcast.lane.b32.xlu0 %v1173, 256
  %v1176 = vpop.permute.xlu0 %1175
  %s1178 = sor.u32 256, 8
  %1179 = vbcast.lane.b32.xlu0 %v1173, %s1178
  %v1180 = vpop.permute.xlu0 %1179
  %s1182 = sor.u32 256, 16
  %1183 = vbcast.lane.b32.xlu0 %v1173, %s1182
  %v1184 = vpop.permute.xlu0 %1183
  %s1186 = sor.u32 256, 24
  %1187 = vbcast.lane.b32.xlu0 %v1173, %s1186
  %v1188 = vpop.permute.xlu0 %1187
  %v1189 = vlaneseq
  %v1190 = vshrl.u32 %v1189, 7
  %v1191 = vsub.s32 5, %v1190
  %v1192 = vrot.slane %v168, %v1191
  %1194 = vbcast.lane.b32.xlu0 %v1192, 256
  %v1195 = vpop.permute.xlu0 %1194
  %s1197 = sor.u32 256, 8
  %1198 = vbcast.lane.b32.xlu0 %v1192, %s1197
  %v1199 = vpop.permute.xlu0 %1198
  %s1201 = sor.u32 256, 16
  %1202 = vbcast.lane.b32.xlu0 %v1192, %s1201
  %v1203 = vpop.permute.xlu0 %1202
  %s1205 = sor.u32 256, 24
  %1206 = vbcast.lane.b32.xlu0 %v1192, %s1205
  %v1207 = vpop.permute.xlu0 %1206
  %v1208 = vlaneseq
  %v1209 = vshrl.u32 %v1208, 7
  %v1210 = vsub.s32 6, %v1209
  %v1211 = vrot.slane %v168, %v1210
  %1213 = vbcast.lane.b32.xlu0 %v1211, 256
  %v1214 = vpop.permute.xlu0 %1213
  %s1216 = sor.u32 256, 8
  %1217 = vbcast.lane.b32.xlu0 %v1211, %s1216
  %v1218 = vpop.permute.xlu0 %1217
  %s1220 = sor.u32 256, 16
  %1221 = vbcast.lane.b32.xlu0 %v1211, %s1220
  %v1222 = vpop.permute.xlu0 %1221
  %s1224 = sor.u32 256, 24
  %1225 = vbcast.lane.b32.xlu0 %v1211, %s1224
  %v1226 = vpop.permute.xlu0 %1225
  %v1227 = vlaneseq
  %v1228 = vshrl.u32 %v1227, 7
  %v1229 = vsub.s32 7, %v1228
  %v1230 = vrot.slane %v168, %v1229
  %1232 = vbcast.lane.b32.xlu0 %v1230, 256
  %v1233 = vpop.permute.xlu0 %1232
  %s1235 = sor.u32 256, 8
  %1236 = vbcast.lane.b32.xlu0 %v1230, %s1235
  %v1237 = vpop.permute.xlu0 %1236
  %s1239 = sor.u32 256, 16
  %1240 = vbcast.lane.b32.xlu0 %v1230, %s1239
  %v1241 = vpop.permute.xlu0 %1240
  %s1243 = sor.u32 256, 24
  %1244 = vbcast.lane.b32.xlu0 %v1230, %s1243
  %v1245 = vpop.permute.xlu0 %1244
  %v1246 = vlaneseq
  %v1247 = vshrl.u32 %v1246, 7
  %v1248 = vsub.s32 0, %v1247
  %v1249 = vrot.slane %v169, %v1248
  %1251 = vbcast.lane.b32.xlu0 %v1249, 256
  %v1252 = vpop.permute.xlu0 %1251
  %s1254 = sor.u32 256, 8
  %1255 = vbcast.lane.b32.xlu0 %v1249, %s1254
  %v1256 = vpop.permute.xlu0 %1255
  %s1258 = sor.u32 256, 16
  %1259 = vbcast.lane.b32.xlu0 %v1249, %s1258
  %v1260 = vpop.permute.xlu0 %1259
  %s1262 = sor.u32 256, 24
  %1263 = vbcast.lane.b32.xlu0 %v1249, %s1262
  %v1264 = vpop.permute.xlu0 %1263
  %v1265 = vlaneseq
  %v1266 = vshrl.u32 %v1265, 7
  %v1267 = vsub.s32 1, %v1266
  %v1268 = vrot.slane %v169, %v1267
  %1270 = vbcast.lane.b32.xlu0 %v1268, 256
  %v1271 = vpop.permute.xlu0 %1270
  %s1273 = sor.u32 256, 8
  %1274 = vbcast.lane.b32.xlu0 %v1268, %s1273
  %v1275 = vpop.permute.xlu0 %1274
  %s1277 = sor.u32 256, 16
  %1278 = vbcast.lane.b32.xlu0 %v1268, %s1277
  %v1279 = vpop.permute.xlu0 %1278
  %s1281 = sor.u32 256, 24
  %1282 = vbcast.lane.b32.xlu0 %v1268, %s1281
  %v1283 = vpop.permute.xlu0 %1282
  %v1284 = vlaneseq
  %v1285 = vshrl.u32 %v1284, 7
  %v1286 = vsub.s32 2, %v1285
  %v1287 = vrot.slane %v169, %v1286
  %1289 = vbcast.lane.b32.xlu0 %v1287, 256
  %v1290 = vpop.permute.xlu0 %1289
  %s1292 = sor.u32 256, 8
  %1293 = vbcast.lane.b32.xlu0 %v1287, %s1292
  %v1294 = vpop.permute.xlu0 %1293
  %s1296 = sor.u32 256, 16
  %1297 = vbcast.lane.b32.xlu0 %v1287, %s1296
  %v1298 = vpop.permute.xlu0 %1297
  %s1300 = sor.u32 256, 24
  %1301 = vbcast.lane.b32.xlu0 %v1287, %s1300
  %v1302 = vpop.permute.xlu0 %1301
  %v1303 = vlaneseq
  %v1304 = vshrl.u32 %v1303, 7
  %v1305 = vsub.s32 3, %v1304
  %v1306 = vrot.slane %v169, %v1305
  %1308 = vbcast.lane.b32.xlu0 %v1306, 256
  %v1309 = vpop.permute.xlu0 %1308
  %s1311 = sor.u32 256, 8
  %1312 = vbcast.lane.b32.xlu0 %v1306, %s1311
  %v1313 = vpop.permute.xlu0 %1312
  %s1315 = sor.u32 256, 16
  %1316 = vbcast.lane.b32.xlu0 %v1306, %s1315
  %v1317 = vpop.permute.xlu0 %1316
  %s1319 = sor.u32 256, 24
  %1320 = vbcast.lane.b32.xlu0 %v1306, %s1319
  %v1321 = vpop.permute.xlu0 %1320
  %v1322 = vlaneseq
  %v1323 = vshrl.u32 %v1322, 7
  %v1324 = vsub.s32 4, %v1323
  %v1325 = vrot.slane %v169, %v1324
  %1327 = vbcast.lane.b32.xlu0 %v1325, 256
  %v1328 = vpop.permute.xlu0 %1327
  %s1330 = sor.u32 256, 8
  %1331 = vbcast.lane.b32.xlu0 %v1325, %s1330
  %v1332 = vpop.permute.xlu0 %1331
  %s1334 = sor.u32 256, 16
  %1335 = vbcast.lane.b32.xlu0 %v1325, %s1334
  %v1336 = vpop.permute.xlu0 %1335
  %s1338 = sor.u32 256, 24
  %1339 = vbcast.lane.b32.xlu0 %v1325, %s1338
  %v1340 = vpop.permute.xlu0 %1339
  %v1341 = vlaneseq
  %v1342 = vshrl.u32 %v1341, 7
  %v1343 = vsub.s32 5, %v1342
  %v1344 = vrot.slane %v169, %v1343
  %1346 = vbcast.lane.b32.xlu0 %v1344, 256
  %v1347 = vpop.permute.xlu0 %1346
  %s1349 = sor.u32 256, 8
  %1350 = vbcast.lane.b32.xlu0 %v1344, %s1349
  %v1351 = vpop.permute.xlu0 %1350
  %s1353 = sor.u32 256, 16
  %1354 = vbcast.lane.b32.xlu0 %v1344, %s1353
  %v1355 = vpop.permute.xlu0 %1354
  %s1357 = sor.u32 256, 24
  %1358 = vbcast.lane.b32.xlu0 %v1344, %s1357
  %v1359 = vpop.permute.xlu0 %1358
  %v1360 = vlaneseq
  %v1361 = vshrl.u32 %v1360, 7
  %v1362 = vsub.s32 6, %v1361
  %v1363 = vrot.slane %v169, %v1362
  %1365 = vbcast.lane.b32.xlu0 %v1363, 256
  %v1366 = vpop.permute.xlu0 %1365
  %s1368 = sor.u32 256, 8
  %1369 = vbcast.lane.b32.xlu0 %v1363, %s1368
  %v1370 = vpop.permute.xlu0 %1369
  %s1372 = sor.u32 256, 16
  %1373 = vbcast.lane.b32.xlu0 %v1363, %s1372
  %v1374 = vpop.permute.xlu0 %1373
  %s1376 = sor.u32 256, 24
  %1377 = vbcast.lane.b32.xlu0 %v1363, %s1376
  %v1378 = vpop.permute.xlu0 %1377
  %v1379 = vlaneseq
  %v1380 = vshrl.u32 %v1379, 7
  %v1381 = vsub.s32 7, %v1380
  %v1382 = vrot.slane %v169, %v1381
  %1384 = vbcast.lane.b32.xlu0 %v1382, 256
  %v1385 = vpop.permute.xlu0 %1384
  %s1387 = sor.u32 256, 8
  %1388 = vbcast.lane.b32.xlu0 %v1382, %s1387
  %v1389 = vpop.permute.xlu0 %1388
  %s1391 = sor.u32 256, 16
  %1392 = vbcast.lane.b32.xlu0 %v1382, %s1391
  %v1393 = vpop.permute.xlu0 %1392
  %s1395 = sor.u32 256, 24
  %1396 = vbcast.lane.b32.xlu0 %v1382, %s1395
  %v1397 = vpop.permute.xlu0 %1396
  %v1398 = vlaneseq
  %v1399 = vshrl.u32 %v1398, 7
  %v1400 = vsub.s32 0, %v1399
  %v1401 = vrot.slane %v170, %v1400
  %1403 = vbcast.lane.b32.xlu0 %v1401, 256
  %v1404 = vpop.permute.xlu0 %1403
  %s1406 = sor.u32 256, 8
  %1407 = vbcast.lane.b32.xlu0 %v1401, %s1406
  %v1408 = vpop.permute.xlu0 %1407
  %s1410 = sor.u32 256, 16
  %1411 = vbcast.lane.b32.xlu0 %v1401, %s1410
  %v1412 = vpop.permute.xlu0 %1411
  %s1414 = sor.u32 256, 24
  %1415 = vbcast.lane.b32.xlu0 %v1401, %s1414
  %v1416 = vpop.permute.xlu0 %1415
  %v1417 = vlaneseq
  %v1418 = vshrl.u32 %v1417, 7
  %v1419 = vsub.s32 1, %v1418
  %v1420 = vrot.slane %v170, %v1419
  %1422 = vbcast.lane.b32.xlu0 %v1420, 256
  %v1423 = vpop.permute.xlu0 %1422
  %s1425 = sor.u32 256, 8
  %1426 = vbcast.lane.b32.xlu0 %v1420, %s1425
  %v1427 = vpop.permute.xlu0 %1426
  %s1429 = sor.u32 256, 16
  %1430 = vbcast.lane.b32.xlu0 %v1420, %s1429
  %v1431 = vpop.permute.xlu0 %1430
  %s1433 = sor.u32 256, 24
  %1434 = vbcast.lane.b32.xlu0 %v1420, %s1433
  %v1435 = vpop.permute.xlu0 %1434
  %v1436 = vlaneseq
  %v1437 = vshrl.u32 %v1436, 7
  %v1438 = vsub.s32 2, %v1437
  %v1439 = vrot.slane %v170, %v1438
  %1441 = vbcast.lane.b32.xlu0 %v1439, 256
  %v1442 = vpop.permute.xlu0 %1441
  %s1444 = sor.u32 256, 8
  %1445 = vbcast.lane.b32.xlu0 %v1439, %s1444
  %v1446 = vpop.permute.xlu0 %1445
  %s1448 = sor.u32 256, 16
  %1449 = vbcast.lane.b32.xlu0 %v1439, %s1448
  %v1450 = vpop.permute.xlu0 %1449
  %s1452 = sor.u32 256, 24
  %1453 = vbcast.lane.b32.xlu0 %v1439, %s1452
  %v1454 = vpop.permute.xlu0 %1453
  %v1455 = vlaneseq
  %v1456 = vshrl.u32 %v1455, 7
  %v1457 = vsub.s32 3, %v1456
  %v1458 = vrot.slane %v170, %v1457
  %1460 = vbcast.lane.b32.xlu0 %v1458, 256
  %v1461 = vpop.permute.xlu0 %1460
  %s1463 = sor.u32 256, 8
  %1464 = vbcast.lane.b32.xlu0 %v1458, %s1463
  %v1465 = vpop.permute.xlu0 %1464
  %s1467 = sor.u32 256, 16
  %1468 = vbcast.lane.b32.xlu0 %v1458, %s1467
  %v1469 = vpop.permute.xlu0 %1468
  %s1471 = sor.u32 256, 24
  %1472 = vbcast.lane.b32.xlu0 %v1458, %s1471
  %v1473 = vpop.permute.xlu0 %1472
  %v1474 = vlaneseq
  %v1475 = vshrl.u32 %v1474, 7
  %v1476 = vsub.s32 4, %v1475
  %v1477 = vrot.slane %v170, %v1476
  %1479 = vbcast.lane.b32.xlu0 %v1477, 256
  %v1480 = vpop.permute.xlu0 %1479
  %s1482 = sor.u32 256, 8
  %1483 = vbcast.lane.b32.xlu0 %v1477, %s1482
  %v1484 = vpop.permute.xlu0 %1483
  %s1486 = sor.u32 256, 16
  %1487 = vbcast.lane.b32.xlu0 %v1477, %s1486
  %v1488 = vpop.permute.xlu0 %1487
  %s1490 = sor.u32 256, 24
  %1491 = vbcast.lane.b32.xlu0 %v1477, %s1490
  %v1492 = vpop.permute.xlu0 %1491
  %v1493 = vlaneseq
  %v1494 = vshrl.u32 %v1493, 7
  %v1495 = vsub.s32 5, %v1494
  %v1496 = vrot.slane %v170, %v1495
  %1498 = vbcast.lane.b32.xlu0 %v1496, 256
  %v1499 = vpop.permute.xlu0 %1498
  %s1501 = sor.u32 256, 8
  %1502 = vbcast.lane.b32.xlu0 %v1496, %s1501
  %v1503 = vpop.permute.xlu0 %1502
  %s1505 = sor.u32 256, 16
  %1506 = vbcast.lane.b32.xlu0 %v1496, %s1505
  %v1507 = vpop.permute.xlu0 %1506
  %s1509 = sor.u32 256, 24
  %1510 = vbcast.lane.b32.xlu0 %v1496, %s1509
  %v1511 = vpop.permute.xlu0 %1510
  %v1512 = vlaneseq
  %v1513 = vshrl.u32 %v1512, 7
  %v1514 = vsub.s32 6, %v1513
  %v1515 = vrot.slane %v170, %v1514
  %1517 = vbcast.lane.b32.xlu0 %v1515, 256
  %v1518 = vpop.permute.xlu0 %1517
  %s1520 = sor.u32 256, 8
  %1521 = vbcast.lane.b32.xlu0 %v1515, %s1520
  %v1522 = vpop.permute.xlu0 %1521
  %s1524 = sor.u32 256, 16
  %1525 = vbcast.lane.b32.xlu0 %v1515, %s1524
  %v1526 = vpop.permute.xlu0 %1525
  %s1528 = sor.u32 256, 24
  %1529 = vbcast.lane.b32.xlu0 %v1515, %s1528
  %v1530 = vpop.permute.xlu0 %1529
  %v1531 = vlaneseq
  %v1532 = vshrl.u32 %v1531, 7
  %v1533 = vsub.s32 7, %v1532
  %v1534 = vrot.slane %v170, %v1533
  %1536 = vbcast.lane.b32.xlu0 %v1534, 256
  %v1537 = vpop.permute.xlu0 %1536
  %s1539 = sor.u32 256, 8
  %1540 = vbcast.lane.b32.xlu0 %v1534, %s1539
  %v1541 = vpop.permute.xlu0 %1540
  %s1543 = sor.u32 256, 16
  %1544 = vbcast.lane.b32.xlu0 %v1534, %s1543
  %v1545 = vpop.permute.xlu0 %1544
  %s1547 = sor.u32 256, 24
  %1548 = vbcast.lane.b32.xlu0 %v1534, %s1547
  %v1549 = vpop.permute.xlu0 %1548
  %v1550 = vlaneseq
  %v1551 = vshrl.u32 %v1550, 7
  %v1552 = vsub.s32 0, %v1551
  %v1553 = vrot.slane %v171, %v1552
  %1555 = vbcast.lane.b32.xlu0 %v1553, 256
  %v1556 = vpop.permute.xlu0 %1555
  %s1558 = sor.u32 256, 8
  %1559 = vbcast.lane.b32.xlu0 %v1553, %s1558
  %v1560 = vpop.permute.xlu0 %1559
  %s1562 = sor.u32 256, 16
  %1563 = vbcast.lane.b32.xlu0 %v1553, %s1562
  %v1564 = vpop.permute.xlu0 %1563
  %s1566 = sor.u32 256, 24
  %1567 = vbcast.lane.b32.xlu0 %v1553, %s1566
  %v1568 = vpop.permute.xlu0 %1567
  %v1569 = vlaneseq
  %v1570 = vshrl.u32 %v1569, 7
  %v1571 = vsub.s32 1, %v1570
  %v1572 = vrot.slane %v171, %v1571
  %1574 = vbcast.lane.b32.xlu0 %v1572, 256
  %v1575 = vpop.permute.xlu0 %1574
  %s1577 = sor.u32 256, 8
  %1578 = vbcast.lane.b32.xlu0 %v1572, %s1577
  %v1579 = vpop.permute.xlu0 %1578
  %s1581 = sor.u32 256, 16
  %1582 = vbcast.lane.b32.xlu0 %v1572, %s1581
  %v1583 = vpop.permute.xlu0 %1582
  %s1585 = sor.u32 256, 24
  %1586 = vbcast.lane.b32.xlu0 %v1572, %s1585
  %v1587 = vpop.permute.xlu0 %1586
  %v1588 = vlaneseq
  %v1589 = vshrl.u32 %v1588, 7
  %v1590 = vsub.s32 2, %v1589
  %v1591 = vrot.slane %v171, %v1590
  %1593 = vbcast.lane.b32.xlu0 %v1591, 256
  %v1594 = vpop.permute.xlu0 %1593
  %s1596 = sor.u32 256, 8
  %1597 = vbcast.lane.b32.xlu0 %v1591, %s1596
  %v1598 = vpop.permute.xlu0 %1597
  %s1600 = sor.u32 256, 16
  %1601 = vbcast.lane.b32.xlu0 %v1591, %s1600
  %v1602 = vpop.permute.xlu0 %1601
  %s1604 = sor.u32 256, 24
  %1605 = vbcast.lane.b32.xlu0 %v1591, %s1604
  %v1606 = vpop.permute.xlu0 %1605
  %v1607 = vlaneseq
  %v1608 = vshrl.u32 %v1607, 7
  %v1609 = vsub.s32 3, %v1608
  %v1610 = vrot.slane %v171, %v1609
  %1612 = vbcast.lane.b32.xlu0 %v1610, 256
  %v1613 = vpop.permute.xlu0 %1612
  %s1615 = sor.u32 256, 8
  %1616 = vbcast.lane.b32.xlu0 %v1610, %s1615
  %v1617 = vpop.permute.xlu0 %1616
  %s1619 = sor.u32 256, 16
  %1620 = vbcast.lane.b32.xlu0 %v1610, %s1619
  %v1621 = vpop.permute.xlu0 %1620
  %s1623 = sor.u32 256, 24
  %1624 = vbcast.lane.b32.xlu0 %v1610, %s1623
  %v1625 = vpop.permute.xlu0 %1624
  %v1626 = vlaneseq
  %v1627 = vshrl.u32 %v1626, 7
  %v1628 = vsub.s32 4, %v1627
  %v1629 = vrot.slane %v171, %v1628
  %1631 = vbcast.lane.b32.xlu0 %v1629, 256
  %v1632 = vpop.permute.xlu0 %1631
  %s1634 = sor.u32 256, 8
  %1635 = vbcast.lane.b32.xlu0 %v1629, %s1634
  %v1636 = vpop.permute.xlu0 %1635
  %s1638 = sor.u32 256, 16
  %1639 = vbcast.lane.b32.xlu0 %v1629, %s1638
  %v1640 = vpop.permute.xlu0 %1639
  %s1642 = sor.u32 256, 24
  %1643 = vbcast.lane.b32.xlu0 %v1629, %s1642
  %v1644 = vpop.permute.xlu0 %1643
  %v1645 = vlaneseq
  %v1646 = vshrl.u32 %v1645, 7
  %v1647 = vsub.s32 5, %v1646
  %v1648 = vrot.slane %v171, %v1647
  %1650 = vbcast.lane.b32.xlu0 %v1648, 256
  %v1651 = vpop.permute.xlu0 %1650
  %s1653 = sor.u32 256, 8
  %1654 = vbcast.lane.b32.xlu0 %v1648, %s1653
  %v1655 = vpop.permute.xlu0 %1654
  %s1657 = sor.u32 256, 16
  %1658 = vbcast.lane.b32.xlu0 %v1648, %s1657
  %v1659 = vpop.permute.xlu0 %1658
  %s1661 = sor.u32 256, 24
  %1662 = vbcast.lane.b32.xlu0 %v1648, %s1661
  %v1663 = vpop.permute.xlu0 %1662
  %v1664 = vlaneseq
  %v1665 = vshrl.u32 %v1664, 7
  %v1666 = vsub.s32 6, %v1665
  %v1667 = vrot.slane %v171, %v1666
  %1669 = vbcast.lane.b32.xlu0 %v1667, 256
  %v1670 = vpop.permute.xlu0 %1669
  %s1672 = sor.u32 256, 8
  %1673 = vbcast.lane.b32.xlu0 %v1667, %s1672
  %v1674 = vpop.permute.xlu0 %1673
  %s1676 = sor.u32 256, 16
  %1677 = vbcast.lane.b32.xlu0 %v1667, %s1676
  %v1678 = vpop.permute.xlu0 %1677
  %s1680 = sor.u32 256, 24
  %1681 = vbcast.lane.b32.xlu0 %v1667, %s1680
  %v1682 = vpop.permute.xlu0 %1681
  %v1683 = vlaneseq
  %v1684 = vshrl.u32 %v1683, 7
  %v1685 = vsub.s32 7, %v1684
  %v1686 = vrot.slane %v171, %v1685
  %1688 = vbcast.lane.b32.xlu0 %v1686, 256
  %v1689 = vpop.permute.xlu0 %1688
  %s1691 = sor.u32 256, 8
  %1692 = vbcast.lane.b32.xlu0 %v1686, %s1691
  %v1693 = vpop.permute.xlu0 %1692
  %s1695 = sor.u32 256, 16
  %1696 = vbcast.lane.b32.xlu0 %v1686, %s1695
  %v1697 = vpop.permute.xlu0 %1696
  %s1699 = sor.u32 256, 24
  %1700 = vbcast.lane.b32.xlu0 %v1686, %s1699
  %v1701 = vpop.permute.xlu0 %1700
  %v1702 = vlaneseq
  %v1703 = vshrl.u32 %v1702, 7
  %v1704 = vsub.s32 0, %v1703
  %v1705 = vrot.slane %v172, %v1704
  %1707 = vbcast.lane.b32.xlu0 %v1705, 256
  %v1708 = vpop.permute.xlu0 %1707
  %s1710 = sor.u32 256, 8
  %1711 = vbcast.lane.b32.xlu0 %v1705, %s1710
  %v1712 = vpop.permute.xlu0 %1711
  %s1714 = sor.u32 256, 16
  %1715 = vbcast.lane.b32.xlu0 %v1705, %s1714
  %v1716 = vpop.permute.xlu0 %1715
  %s1718 = sor.u32 256, 24
  %1719 = vbcast.lane.b32.xlu0 %v1705, %s1718
  %v1720 = vpop.permute.xlu0 %1719
  %v1721 = vlaneseq
  %v1722 = vshrl.u32 %v1721, 7
  %v1723 = vsub.s32 1, %v1722
  %v1724 = vrot.slane %v172, %v1723
  %1726 = vbcast.lane.b32.xlu0 %v1724, 256
  %v1727 = vpop.permute.xlu0 %1726
  %s1729 = sor.u32 256, 8
  %1730 = vbcast.lane.b32.xlu0 %v1724, %s1729
  %v1731 = vpop.permute.xlu0 %1730
  %s1733 = sor.u32 256, 16
  %1734 = vbcast.lane.b32.xlu0 %v1724, %s1733
  %v1735 = vpop.permute.xlu0 %1734
  %s1737 = sor.u32 256, 24
  %1738 = vbcast.lane.b32.xlu0 %v1724, %s1737
  %v1739 = vpop.permute.xlu0 %1738
  %v1740 = vlaneseq
  %v1741 = vshrl.u32 %v1740, 7
  %v1742 = vsub.s32 2, %v1741
  %v1743 = vrot.slane %v172, %v1742
  %1745 = vbcast.lane.b32.xlu0 %v1743, 256
  %v1746 = vpop.permute.xlu0 %1745
  %s1748 = sor.u32 256, 8
  %1749 = vbcast.lane.b32.xlu0 %v1743, %s1748
  %v1750 = vpop.permute.xlu0 %1749
  %s1752 = sor.u32 256, 16
  %1753 = vbcast.lane.b32.xlu0 %v1743, %s1752
  %v1754 = vpop.permute.xlu0 %1753
  %s1756 = sor.u32 256, 24
  %1757 = vbcast.lane.b32.xlu0 %v1743, %s1756
  %v1758 = vpop.permute.xlu0 %1757
  %v1759 = vlaneseq
  %v1760 = vshrl.u32 %v1759, 7
  %v1761 = vsub.s32 3, %v1760
  %v1762 = vrot.slane %v172, %v1761
  %1764 = vbcast.lane.b32.xlu0 %v1762, 256
  %v1765 = vpop.permute.xlu0 %1764
  %s1767 = sor.u32 256, 8
  %1768 = vbcast.lane.b32.xlu0 %v1762, %s1767
  %v1769 = vpop.permute.xlu0 %1768
  %s1771 = sor.u32 256, 16
  %1772 = vbcast.lane.b32.xlu0 %v1762, %s1771
  %v1773 = vpop.permute.xlu0 %1772
  %s1775 = sor.u32 256, 24
  %1776 = vbcast.lane.b32.xlu0 %v1762, %s1775
  %v1777 = vpop.permute.xlu0 %1776
  %v1778 = vlaneseq
  %v1779 = vshrl.u32 %v1778, 7
  %v1780 = vsub.s32 4, %v1779
  %v1781 = vrot.slane %v172, %v1780
  %1783 = vbcast.lane.b32.xlu0 %v1781, 256
  %v1784 = vpop.permute.xlu0 %1783
  %s1786 = sor.u32 256, 8
  %1787 = vbcast.lane.b32.xlu0 %v1781, %s1786
  %v1788 = vpop.permute.xlu0 %1787
  %s1790 = sor.u32 256, 16
  %1791 = vbcast.lane.b32.xlu0 %v1781, %s1790
  %v1792 = vpop.permute.xlu0 %1791
  %s1794 = sor.u32 256, 24
  %1795 = vbcast.lane.b32.xlu0 %v1781, %s1794
  %v1796 = vpop.permute.xlu0 %1795
  %v1797 = vlaneseq
  %v1798 = vshrl.u32 %v1797, 7
  %v1799 = vsub.s32 5, %v1798
  %v1800 = vrot.slane %v172, %v1799
  %1802 = vbcast.lane.b32.xlu0 %v1800, 256
  %v1803 = vpop.permute.xlu0 %1802
  %s1805 = sor.u32 256, 8
  %1806 = vbcast.lane.b32.xlu0 %v1800, %s1805
  %v1807 = vpop.permute.xlu0 %1806
  %s1809 = sor.u32 256, 16
  %1810 = vbcast.lane.b32.xlu0 %v1800, %s1809
  %v1811 = vpop.permute.xlu0 %1810
  %s1813 = sor.u32 256, 24
  %1814 = vbcast.lane.b32.xlu0 %v1800, %s1813
  %v1815 = vpop.permute.xlu0 %1814
  %v1816 = vlaneseq
  %v1817 = vshrl.u32 %v1816, 7
  %v1818 = vsub.s32 6, %v1817
  %v1819 = vrot.slane %v172, %v1818
  %1821 = vbcast.lane.b32.xlu0 %v1819, 256
  %v1822 = vpop.permute.xlu0 %1821
  %s1824 = sor.u32 256, 8
  %1825 = vbcast.lane.b32.xlu0 %v1819, %s1824
  %v1826 = vpop.permute.xlu0 %1825
  %s1828 = sor.u32 256, 16
  %1829 = vbcast.lane.b32.xlu0 %v1819, %s1828
  %v1830 = vpop.permute.xlu0 %1829
  %s1832 = sor.u32 256, 24
  %1833 = vbcast.lane.b32.xlu0 %v1819, %s1832
  %v1834 = vpop.permute.xlu0 %1833
  %v1835 = vlaneseq
  %v1836 = vshrl.u32 %v1835, 7
  %v1837 = vsub.s32 7, %v1836
  %v1838 = vrot.slane %v172, %v1837
  %1840 = vbcast.lane.b32.xlu0 %v1838, 256
  %v1841 = vpop.permute.xlu0 %1840
  %s1843 = sor.u32 256, 8
  %1844 = vbcast.lane.b32.xlu0 %v1838, %s1843
  %v1845 = vpop.permute.xlu0 %1844
  %s1847 = sor.u32 256, 16
  %1848 = vbcast.lane.b32.xlu0 %v1838, %s1847
  %v1849 = vpop.permute.xlu0 %1848
  %s1851 = sor.u32 256, 24
  %1852 = vbcast.lane.b32.xlu0 %v1838, %s1851
  %v1853 = vpop.permute.xlu0 %1852
  %v1854 = vlaneseq
  %v1855 = vshrl.u32 %v1854, 7
  %v1856 = vsub.s32 0, %v1855
  %v1857 = vrot.slane %v173, %v1856
  %1859 = vbcast.lane.b32.xlu0 %v1857, 256
  %v1860 = vpop.permute.xlu0 %1859
  %s1862 = sor.u32 256, 8
  %1863 = vbcast.lane.b32.xlu0 %v1857, %s1862
  %v1864 = vpop.permute.xlu0 %1863
  %s1866 = sor.u32 256, 16
  %1867 = vbcast.lane.b32.xlu0 %v1857, %s1866
  %v1868 = vpop.permute.xlu0 %1867
  %s1870 = sor.u32 256, 24
  %1871 = vbcast.lane.b32.xlu0 %v1857, %s1870
  %v1872 = vpop.permute.xlu0 %1871
  %v1873 = vlaneseq
  %v1874 = vshrl.u32 %v1873, 7
  %v1875 = vsub.s32 1, %v1874
  %v1876 = vrot.slane %v173, %v1875
  %1878 = vbcast.lane.b32.xlu0 %v1876, 256
  %v1879 = vpop.permute.xlu0 %1878
  %s1881 = sor.u32 256, 8
  %1882 = vbcast.lane.b32.xlu0 %v1876, %s1881
  %v1883 = vpop.permute.xlu0 %1882
  %s1885 = sor.u32 256, 16
  %1886 = vbcast.lane.b32.xlu0 %v1876, %s1885
  %v1887 = vpop.permute.xlu0 %1886
  %s1889 = sor.u32 256, 24
  %1890 = vbcast.lane.b32.xlu0 %v1876, %s1889
  %v1891 = vpop.permute.xlu0 %1890
  %v1892 = vlaneseq
  %v1893 = vshrl.u32 %v1892, 7
  %v1894 = vsub.s32 2, %v1893
  %v1895 = vrot.slane %v173, %v1894
  %1897 = vbcast.lane.b32.xlu0 %v1895, 256
  %v1898 = vpop.permute.xlu0 %1897
  %s1900 = sor.u32 256, 8
  %1901 = vbcast.lane.b32.xlu0 %v1895, %s1900
  %v1902 = vpop.permute.xlu0 %1901
  %s1904 = sor.u32 256, 16
  %1905 = vbcast.lane.b32.xlu0 %v1895, %s1904
  %v1906 = vpop.permute.xlu0 %1905
  %s1908 = sor.u32 256, 24
  %1909 = vbcast.lane.b32.xlu0 %v1895, %s1908
  %v1910 = vpop.permute.xlu0 %1909
  %v1911 = vlaneseq
  %v1912 = vshrl.u32 %v1911, 7
  %v1913 = vsub.s32 3, %v1912
  %v1914 = vrot.slane %v173, %v1913
  %1916 = vbcast.lane.b32.xlu0 %v1914, 256
  %v1917 = vpop.permute.xlu0 %1916
  %s1919 = sor.u32 256, 8
  %1920 = vbcast.lane.b32.xlu0 %v1914, %s1919
  %v1921 = vpop.permute.xlu0 %1920
  %s1923 = sor.u32 256, 16
  %1924 = vbcast.lane.b32.xlu0 %v1914, %s1923
  %v1925 = vpop.permute.xlu0 %1924
  %s1927 = sor.u32 256, 24
  %1928 = vbcast.lane.b32.xlu0 %v1914, %s1927
  %v1929 = vpop.permute.xlu0 %1928
  %v1930 = vlaneseq
  %v1931 = vshrl.u32 %v1930, 7
  %v1932 = vsub.s32 4, %v1931
  %v1933 = vrot.slane %v173, %v1932
  %1935 = vbcast.lane.b32.xlu0 %v1933, 256
  %v1936 = vpop.permute.xlu0 %1935
  %s1938 = sor.u32 256, 8
  %1939 = vbcast.lane.b32.xlu0 %v1933, %s1938
  %v1940 = vpop.permute.xlu0 %1939
  %s1942 = sor.u32 256, 16
  %1943 = vbcast.lane.b32.xlu0 %v1933, %s1942
  %v1944 = vpop.permute.xlu0 %1943
  %s1946 = sor.u32 256, 24
  %1947 = vbcast.lane.b32.xlu0 %v1933, %s1946
  %v1948 = vpop.permute.xlu0 %1947
  %v1949 = vlaneseq
  %v1950 = vshrl.u32 %v1949, 7
  %v1951 = vsub.s32 5, %v1950
  %v1952 = vrot.slane %v173, %v1951
  %1954 = vbcast.lane.b32.xlu0 %v1952, 256
  %v1955 = vpop.permute.xlu0 %1954
  %s1957 = sor.u32 256, 8
  %1958 = vbcast.lane.b32.xlu0 %v1952, %s1957
  %v1959 = vpop.permute.xlu0 %1958
  %s1961 = sor.u32 256, 16
  %1962 = vbcast.lane.b32.xlu0 %v1952, %s1961
  %v1963 = vpop.permute.xlu0 %1962
  %s1965 = sor.u32 256, 24
  %1966 = vbcast.lane.b32.xlu0 %v1952, %s1965
  %v1967 = vpop.permute.xlu0 %1966
  %v1968 = vlaneseq
  %v1969 = vshrl.u32 %v1968, 7
  %v1970 = vsub.s32 6, %v1969
  %v1971 = vrot.slane %v173, %v1970
  %1973 = vbcast.lane.b32.xlu0 %v1971, 256
  %v1974 = vpop.permute.xlu0 %1973
  %s1976 = sor.u32 256, 8
  %1977 = vbcast.lane.b32.xlu0 %v1971, %s1976
  %v1978 = vpop.permute.xlu0 %1977
  %s1980 = sor.u32 256, 16
  %1981 = vbcast.lane.b32.xlu0 %v1971, %s1980
  %v1982 = vpop.permute.xlu0 %1981
  %s1984 = sor.u32 256, 24
  %1985 = vbcast.lane.b32.xlu0 %v1971, %s1984
  %v1986 = vpop.permute.xlu0 %1985
  %v1987 = vlaneseq
  %v1988 = vshrl.u32 %v1987, 7
  %v1989 = vsub.s32 7, %v1988
  %v1990 = vrot.slane %v173, %v1989
  %1992 = vbcast.lane.b32.xlu0 %v1990, 256
  %v1993 = vpop.permute.xlu0 %1992
  %s1995 = sor.u32 256, 8
  %1996 = vbcast.lane.b32.xlu0 %v1990, %s1995
  %v1997 = vpop.permute.xlu0 %1996
  %s1999 = sor.u32 256, 16
  %2000 = vbcast.lane.b32.xlu0 %v1990, %s1999
  %v2001 = vpop.permute.xlu0 %2000
  %s2003 = sor.u32 256, 24
  %2004 = vbcast.lane.b32.xlu0 %v1990, %s2003
  %v2005 = vpop.permute.xlu0 %2004
  %v2006 = vlaneseq
  %v2007 = vshrl.u32 %v2006, 7
  %v2008 = vsub.s32 0, %v2007
  %v2009 = vrot.slane %v174, %v2008
  %2011 = vbcast.lane.b32.xlu0 %v2009, 256
  %v2012 = vpop.permute.xlu0 %2011
  %s2014 = sor.u32 256, 8
  %2015 = vbcast.lane.b32.xlu0 %v2009, %s2014
  %v2016 = vpop.permute.xlu0 %2015
  %s2018 = sor.u32 256, 16
  %2019 = vbcast.lane.b32.xlu0 %v2009, %s2018
  %v2020 = vpop.permute.xlu0 %2019
  %s2022 = sor.u32 256, 24
  %2023 = vbcast.lane.b32.xlu0 %v2009, %s2022
  %v2024 = vpop.permute.xlu0 %2023
  %v2025 = vlaneseq
  %v2026 = vshrl.u32 %v2025, 7
  %v2027 = vsub.s32 1, %v2026
  %v2028 = vrot.slane %v174, %v2027
  %2030 = vbcast.lane.b32.xlu0 %v2028, 256
  %v2031 = vpop.permute.xlu0 %2030
  %s2033 = sor.u32 256, 8
  %2034 = vbcast.lane.b32.xlu0 %v2028, %s2033
  %v2035 = vpop.permute.xlu0 %2034
  %s2037 = sor.u32 256, 16
  %2038 = vbcast.lane.b32.xlu0 %v2028, %s2037
  %v2039 = vpop.permute.xlu0 %2038
  %s2041 = sor.u32 256, 24
  %2042 = vbcast.lane.b32.xlu0 %v2028, %s2041
  %v2043 = vpop.permute.xlu0 %2042
  %v2044 = vlaneseq
  %v2045 = vshrl.u32 %v2044, 7
  %v2046 = vsub.s32 2, %v2045
  %v2047 = vrot.slane %v174, %v2046
  %2049 = vbcast.lane.b32.xlu0 %v2047, 256
  %v2050 = vpop.permute.xlu0 %2049
  %s2052 = sor.u32 256, 8
  %2053 = vbcast.lane.b32.xlu0 %v2047, %s2052
  %v2054 = vpop.permute.xlu0 %2053
  %s2056 = sor.u32 256, 16
  %2057 = vbcast.lane.b32.xlu0 %v2047, %s2056
  %v2058 = vpop.permute.xlu0 %2057
  %s2060 = sor.u32 256, 24
  %2061 = vbcast.lane.b32.xlu0 %v2047, %s2060
  %v2062 = vpop.permute.xlu0 %2061
  %v2063 = vlaneseq
  %v2064 = vshrl.u32 %v2063, 7
  %v2065 = vsub.s32 3, %v2064
  %v2066 = vrot.slane %v174, %v2065
  %2068 = vbcast.lane.b32.xlu0 %v2066, 256
  %v2069 = vpop.permute.xlu0 %2068
  %s2071 = sor.u32 256, 8
  %2072 = vbcast.lane.b32.xlu0 %v2066, %s2071
  %v2073 = vpop.permute.xlu0 %2072
  %s2075 = sor.u32 256, 16
  %2076 = vbcast.lane.b32.xlu0 %v2066, %s2075
  %v2077 = vpop.permute.xlu0 %2076
  %s2079 = sor.u32 256, 24
  %2080 = vbcast.lane.b32.xlu0 %v2066, %s2079
  %v2081 = vpop.permute.xlu0 %2080
  %v2082 = vlaneseq
  %v2083 = vshrl.u32 %v2082, 7
  %v2084 = vsub.s32 4, %v2083
  %v2085 = vrot.slane %v174, %v2084
  %2087 = vbcast.lane.b32.xlu0 %v2085, 256
  %v2088 = vpop.permute.xlu0 %2087
  %s2090 = sor.u32 256, 8
  %2091 = vbcast.lane.b32.xlu0 %v2085, %s2090
  %v2092 = vpop.permute.xlu0 %2091
  %s2094 = sor.u32 256, 16
  %2095 = vbcast.lane.b32.xlu0 %v2085, %s2094
  %v2096 = vpop.permute.xlu0 %2095
  %s2098 = sor.u32 256, 24
  %2099 = vbcast.lane.b32.xlu0 %v2085, %s2098
  %v2100 = vpop.permute.xlu0 %2099
  %v2101 = vlaneseq
  %v2102 = vshrl.u32 %v2101, 7
  %v2103 = vsub.s32 5, %v2102
  %v2104 = vrot.slane %v174, %v2103
  %2106 = vbcast.lane.b32.xlu0 %v2104, 256
  %v2107 = vpop.permute.xlu0 %2106
  %s2109 = sor.u32 256, 8
  %2110 = vbcast.lane.b32.xlu0 %v2104, %s2109
  %v2111 = vpop.permute.xlu0 %2110
  %s2113 = sor.u32 256, 16
  %2114 = vbcast.lane.b32.xlu0 %v2104, %s2113
  %v2115 = vpop.permute.xlu0 %2114
  %s2117 = sor.u32 256, 24
  %2118 = vbcast.lane.b32.xlu0 %v2104, %s2117
  %v2119 = vpop.permute.xlu0 %2118
  %v2120 = vlaneseq
  %v2121 = vshrl.u32 %v2120, 7
  %v2122 = vsub.s32 6, %v2121
  %v2123 = vrot.slane %v174, %v2122
  %2125 = vbcast.lane.b32.xlu0 %v2123, 256
  %v2126 = vpop.permute.xlu0 %2125
  %s2128 = sor.u32 256, 8
  %2129 = vbcast.lane.b32.xlu0 %v2123, %s2128
  %v2130 = vpop.permute.xlu0 %2129
  %s2132 = sor.u32 256, 16
  %2133 = vbcast.lane.b32.xlu0 %v2123, %s2132
  %v2134 = vpop.permute.xlu0 %2133
  %s2136 = sor.u32 256, 24
  %2137 = vbcast.lane.b32.xlu0 %v2123, %s2136
  %v2138 = vpop.permute.xlu0 %2137
  %v2139 = vlaneseq
  %v2140 = vshrl.u32 %v2139, 7
  %v2141 = vsub.s32 7, %v2140
  %v2142 = vrot.slane %v174, %v2141
  %2144 = vbcast.lane.b32.xlu0 %v2142, 256
  %v2145 = vpop.permute.xlu0 %2144
  %s2147 = sor.u32 256, 8
  %2148 = vbcast.lane.b32.xlu0 %v2142, %s2147
  %v2149 = vpop.permute.xlu0 %2148
  %s2151 = sor.u32 256, 16
  %2152 = vbcast.lane.b32.xlu0 %v2142, %s2151
  %v2153 = vpop.permute.xlu0 %2152
  %s2155 = sor.u32 256, 24
  %2156 = vbcast.lane.b32.xlu0 %v2142, %s2155
  %v2157 = vpop.permute.xlu0 %2156
  %v2158 = vlaneseq
  %v2159 = vshrl.u32 %v2158, 7
  %v2160 = vsub.s32 0, %v2159
  %v2161 = vrot.slane %v175, %v2160
  %2163 = vbcast.lane.b32.xlu0 %v2161, 256
  %v2164 = vpop.permute.xlu0 %2163
  %s2166 = sor.u32 256, 8
  %2167 = vbcast.lane.b32.xlu0 %v2161, %s2166
  %v2168 = vpop.permute.xlu0 %2167
  %s2170 = sor.u32 256, 16
  %2171 = vbcast.lane.b32.xlu0 %v2161, %s2170
  %v2172 = vpop.permute.xlu0 %2171
  %s2174 = sor.u32 256, 24
  %2175 = vbcast.lane.b32.xlu0 %v2161, %s2174
  %v2176 = vpop.permute.xlu0 %2175
  %v2177 = vlaneseq
  %v2178 = vshrl.u32 %v2177, 7
  %v2179 = vsub.s32 1, %v2178
  %v2180 = vrot.slane %v175, %v2179
  %2182 = vbcast.lane.b32.xlu0 %v2180, 256
  %v2183 = vpop.permute.xlu0 %2182
  %s2185 = sor.u32 256, 8
  %2186 = vbcast.lane.b32.xlu0 %v2180, %s2185
  %v2187 = vpop.permute.xlu0 %2186
  %s2189 = sor.u32 256, 16
  %2190 = vbcast.lane.b32.xlu0 %v2180, %s2189
  %v2191 = vpop.permute.xlu0 %2190
  %s2193 = sor.u32 256, 24
  %2194 = vbcast.lane.b32.xlu0 %v2180, %s2193
  %v2195 = vpop.permute.xlu0 %2194
  %v2196 = vlaneseq
  %v2197 = vshrl.u32 %v2196, 7
  %v2198 = vsub.s32 2, %v2197
  %v2199 = vrot.slane %v175, %v2198
  %2201 = vbcast.lane.b32.xlu0 %v2199, 256
  %v2202 = vpop.permute.xlu0 %2201
  %s2204 = sor.u32 256, 8
  %2205 = vbcast.lane.b32.xlu0 %v2199, %s2204
  %v2206 = vpop.permute.xlu0 %2205
  %s2208 = sor.u32 256, 16
  %2209 = vbcast.lane.b32.xlu0 %v2199, %s2208
  %v2210 = vpop.permute.xlu0 %2209
  %s2212 = sor.u32 256, 24
  %2213 = vbcast.lane.b32.xlu0 %v2199, %s2212
  %v2214 = vpop.permute.xlu0 %2213
  %v2215 = vlaneseq
  %v2216 = vshrl.u32 %v2215, 7
  %v2217 = vsub.s32 3, %v2216
  %v2218 = vrot.slane %v175, %v2217
  %2220 = vbcast.lane.b32.xlu0 %v2218, 256
  %v2221 = vpop.permute.xlu0 %2220
  %s2223 = sor.u32 256, 8
  %2224 = vbcast.lane.b32.xlu0 %v2218, %s2223
  %v2225 = vpop.permute.xlu0 %2224
  %s2227 = sor.u32 256, 16
  %2228 = vbcast.lane.b32.xlu0 %v2218, %s2227
  %v2229 = vpop.permute.xlu0 %2228
  %s2231 = sor.u32 256, 24
  %2232 = vbcast.lane.b32.xlu0 %v2218, %s2231
  %v2233 = vpop.permute.xlu0 %2232
  %v2234 = vlaneseq
  %v2235 = vshrl.u32 %v2234, 7
  %v2236 = vsub.s32 4, %v2235
  %v2237 = vrot.slane %v175, %v2236
  %2239 = vbcast.lane.b32.xlu0 %v2237, 256
  %v2240 = vpop.permute.xlu0 %2239
  %s2242 = sor.u32 256, 8
  %2243 = vbcast.lane.b32.xlu0 %v2237, %s2242
  %v2244 = vpop.permute.xlu0 %2243
  %s2246 = sor.u32 256, 16
  %2247 = vbcast.lane.b32.xlu0 %v2237, %s2246
  %v2248 = vpop.permute.xlu0 %2247
  %s2250 = sor.u32 256, 24
  %2251 = vbcast.lane.b32.xlu0 %v2237, %s2250
  %v2252 = vpop.permute.xlu0 %2251
  %v2253 = vlaneseq
  %v2254 = vshrl.u32 %v2253, 7
  %v2255 = vsub.s32 5, %v2254
  %v2256 = vrot.slane %v175, %v2255
  %2258 = vbcast.lane.b32.xlu0 %v2256, 256
  %v2259 = vpop.permute.xlu0 %2258
  %s2261 = sor.u32 256, 8
  %2262 = vbcast.lane.b32.xlu0 %v2256, %s2261
  %v2263 = vpop.permute.xlu0 %2262
  %s2265 = sor.u32 256, 16
  %2266 = vbcast.lane.b32.xlu0 %v2256, %s2265
  %v2267 = vpop.permute.xlu0 %2266
  %s2269 = sor.u32 256, 24
  %2270 = vbcast.lane.b32.xlu0 %v2256, %s2269
  %v2271 = vpop.permute.xlu0 %2270
  %v2272 = vlaneseq
  %v2273 = vshrl.u32 %v2272, 7
  %v2274 = vsub.s32 6, %v2273
  %v2275 = vrot.slane %v175, %v2274
  %2277 = vbcast.lane.b32.xlu0 %v2275, 256
  %v2278 = vpop.permute.xlu0 %2277
  %s2280 = sor.u32 256, 8
  %2281 = vbcast.lane.b32.xlu0 %v2275, %s2280
  %v2282 = vpop.permute.xlu0 %2281
  %s2284 = sor.u32 256, 16
  %2285 = vbcast.lane.b32.xlu0 %v2275, %s2284
  %v2286 = vpop.permute.xlu0 %2285
  %s2288 = sor.u32 256, 24
  %2289 = vbcast.lane.b32.xlu0 %v2275, %s2288
  %v2290 = vpop.permute.xlu0 %2289
  %v2291 = vlaneseq
  %v2292 = vshrl.u32 %v2291, 7
  %v2293 = vsub.s32 7, %v2292
  %v2294 = vrot.slane %v175, %v2293
  %2296 = vbcast.lane.b32.xlu0 %v2294, 256
  %v2297 = vpop.permute.xlu0 %2296
  %s2299 = sor.u32 256, 8
  %2300 = vbcast.lane.b32.xlu0 %v2294, %s2299
  %v2301 = vpop.permute.xlu0 %2300
  %s2303 = sor.u32 256, 16
  %2304 = vbcast.lane.b32.xlu0 %v2294, %s2303
  %v2305 = vpop.permute.xlu0 %2304
  %s2307 = sor.u32 256, 24
  %2308 = vbcast.lane.b32.xlu0 %v2294, %s2307
  %v2309 = vpop.permute.xlu0 %2308
  %v2310 = vlaneseq
  %v2311 = vshrl.u32 %v2310, 7
  %v2312 = vsub.s32 0, %v2311
  %v2313 = vrot.slane %v176, %v2312
  %2315 = vbcast.lane.b32.xlu0 %v2313, 256
  %v2316 = vpop.permute.xlu0 %2315
  %s2318 = sor.u32 256, 8
  %2319 = vbcast.lane.b32.xlu0 %v2313, %s2318
  %v2320 = vpop.permute.xlu0 %2319
  %s2322 = sor.u32 256, 16
  %2323 = vbcast.lane.b32.xlu0 %v2313, %s2322
  %v2324 = vpop.permute.xlu0 %2323
  %s2326 = sor.u32 256, 24
  %2327 = vbcast.lane.b32.xlu0 %v2313, %s2326
  %v2328 = vpop.permute.xlu0 %2327
  %v2329 = vlaneseq
  %v2330 = vshrl.u32 %v2329, 7
  %v2331 = vsub.s32 1, %v2330
  %v2332 = vrot.slane %v176, %v2331
  %2334 = vbcast.lane.b32.xlu0 %v2332, 256
  %v2335 = vpop.permute.xlu0 %2334
  %s2337 = sor.u32 256, 8
  %2338 = vbcast.lane.b32.xlu0 %v2332, %s2337
  %v2339 = vpop.permute.xlu0 %2338
  %s2341 = sor.u32 256, 16
  %2342 = vbcast.lane.b32.xlu0 %v2332, %s2341
  %v2343 = vpop.permute.xlu0 %2342
  %s2345 = sor.u32 256, 24
  %2346 = vbcast.lane.b32.xlu0 %v2332, %s2345
  %v2347 = vpop.permute.xlu0 %2346
  %v2348 = vlaneseq
  %v2349 = vshrl.u32 %v2348, 7
  %v2350 = vsub.s32 2, %v2349
  %v2351 = vrot.slane %v176, %v2350
  %2353 = vbcast.lane.b32.xlu0 %v2351, 256
  %v2354 = vpop.permute.xlu0 %2353
  %s2356 = sor.u32 256, 8
  %2357 = vbcast.lane.b32.xlu0 %v2351, %s2356
  %v2358 = vpop.permute.xlu0 %2357
  %s2360 = sor.u32 256, 16
  %2361 = vbcast.lane.b32.xlu0 %v2351, %s2360
  %v2362 = vpop.permute.xlu0 %2361
  %s2364 = sor.u32 256, 24
  %2365 = vbcast.lane.b32.xlu0 %v2351, %s2364
  %v2366 = vpop.permute.xlu0 %2365
  %v2367 = vlaneseq
  %v2368 = vshrl.u32 %v2367, 7
  %v2369 = vsub.s32 3, %v2368
  %v2370 = vrot.slane %v176, %v2369
  %2372 = vbcast.lane.b32.xlu0 %v2370, 256
  %v2373 = vpop.permute.xlu0 %2372
  %s2375 = sor.u32 256, 8
  %2376 = vbcast.lane.b32.xlu0 %v2370, %s2375
  %v2377 = vpop.permute.xlu0 %2376
  %s2379 = sor.u32 256, 16
  %2380 = vbcast.lane.b32.xlu0 %v2370, %s2379
  %v2381 = vpop.permute.xlu0 %2380
  %s2383 = sor.u32 256, 24
  %2384 = vbcast.lane.b32.xlu0 %v2370, %s2383
  %v2385 = vpop.permute.xlu0 %2384
  %v2386 = vlaneseq
  %v2387 = vshrl.u32 %v2386, 7
  %v2388 = vsub.s32 4, %v2387
  %v2389 = vrot.slane %v176, %v2388
  %2391 = vbcast.lane.b32.xlu0 %v2389, 256
  %v2392 = vpop.permute.xlu0 %2391
  %s2394 = sor.u32 256, 8
  %2395 = vbcast.lane.b32.xlu0 %v2389, %s2394
  %v2396 = vpop.permute.xlu0 %2395
  %s2398 = sor.u32 256, 16
  %2399 = vbcast.lane.b32.xlu0 %v2389, %s2398
  %v2400 = vpop.permute.xlu0 %2399
  %s2402 = sor.u32 256, 24
  %2403 = vbcast.lane.b32.xlu0 %v2389, %s2402
  %v2404 = vpop.permute.xlu0 %2403
  %v2405 = vlaneseq
  %v2406 = vshrl.u32 %v2405, 7
  %v2407 = vsub.s32 5, %v2406
  %v2408 = vrot.slane %v176, %v2407
  %2410 = vbcast.lane.b32.xlu0 %v2408, 256
  %v2411 = vpop.permute.xlu0 %2410
  %s2413 = sor.u32 256, 8
  %2414 = vbcast.lane.b32.xlu0 %v2408, %s2413
  %v2415 = vpop.permute.xlu0 %2414
  %s2417 = sor.u32 256, 16
  %2418 = vbcast.lane.b32.xlu0 %v2408, %s2417
  %v2419 = vpop.permute.xlu0 %2418
  %s2421 = sor.u32 256, 24
  %2422 = vbcast.lane.b32.xlu0 %v2408, %s2421
  %v2423 = vpop.permute.xlu0 %2422
  %v2424 = vlaneseq
  %v2425 = vshrl.u32 %v2424, 7
  %v2426 = vsub.s32 6, %v2425
  %v2427 = vrot.slane %v176, %v2426
  %2429 = vbcast.lane.b32.xlu0 %v2427, 256
  %v2430 = vpop.permute.xlu0 %2429
  %s2432 = sor.u32 256, 8
  %2433 = vbcast.lane.b32.xlu0 %v2427, %s2432
  %v2434 = vpop.permute.xlu0 %2433
  %s2436 = sor.u32 256, 16
  %2437 = vbcast.lane.b32.xlu0 %v2427, %s2436
  %v2438 = vpop.permute.xlu0 %2437
  %s2440 = sor.u32 256, 24
  %2441 = vbcast.lane.b32.xlu0 %v2427, %s2440
  %v2442 = vpop.permute.xlu0 %2441
  %v2443 = vlaneseq
  %v2444 = vshrl.u32 %v2443, 7
  %v2445 = vsub.s32 7, %v2444
  %v2446 = vrot.slane %v176, %v2445
  %2448 = vbcast.lane.b32.xlu0 %v2446, 256
  %v2449 = vpop.permute.xlu0 %2448
  %s2451 = sor.u32 256, 8
  %2452 = vbcast.lane.b32.xlu0 %v2446, %s2451
  %v2453 = vpop.permute.xlu0 %2452
  %s2455 = sor.u32 256, 16
  %2456 = vbcast.lane.b32.xlu0 %v2446, %s2455
  %v2457 = vpop.permute.xlu0 %2456
  %s2459 = sor.u32 256, 24
  %2460 = vbcast.lane.b32.xlu0 %v2446, %s2459
  %v2461 = vpop.permute.xlu0 %2460
  %v2462 = vlaneseq
  %v2463 = vshrl.u32 %v2462, 7
  %v2464 = vsub.s32 0, %v2463
  %v2465 = vrot.slane %v177, %v2464
  %2467 = vbcast.lane.b32.xlu0 %v2465, 256
  %v2468 = vpop.permute.xlu0 %2467
  %s2470 = sor.u32 256, 8
  %2471 = vbcast.lane.b32.xlu0 %v2465, %s2470
  %v2472 = vpop.permute.xlu0 %2471
  %s2474 = sor.u32 256, 16
  %2475 = vbcast.lane.b32.xlu0 %v2465, %s2474
  %v2476 = vpop.permute.xlu0 %2475
  %s2478 = sor.u32 256, 24
  %2479 = vbcast.lane.b32.xlu0 %v2465, %s2478
  %v2480 = vpop.permute.xlu0 %2479
  %v2481 = vlaneseq
  %v2482 = vshrl.u32 %v2481, 7
  %v2483 = vsub.s32 1, %v2482
  %v2484 = vrot.slane %v177, %v2483
  %2486 = vbcast.lane.b32.xlu0 %v2484, 256
  %v2487 = vpop.permute.xlu0 %2486
  %s2489 = sor.u32 256, 8
  %2490 = vbcast.lane.b32.xlu0 %v2484, %s2489
  %v2491 = vpop.permute.xlu0 %2490
  %s2493 = sor.u32 256, 16
  %2494 = vbcast.lane.b32.xlu0 %v2484, %s2493
  %v2495 = vpop.permute.xlu0 %2494
  %s2497 = sor.u32 256, 24
  %2498 = vbcast.lane.b32.xlu0 %v2484, %s2497
  %v2499 = vpop.permute.xlu0 %2498
  %v2500 = vlaneseq
  %v2501 = vshrl.u32 %v2500, 7
  %v2502 = vsub.s32 2, %v2501
  %v2503 = vrot.slane %v177, %v2502
  %2505 = vbcast.lane.b32.xlu0 %v2503, 256
  %v2506 = vpop.permute.xlu0 %2505
  %s2508 = sor.u32 256, 8
  %2509 = vbcast.lane.b32.xlu0 %v2503, %s2508
  %v2510 = vpop.permute.xlu0 %2509
  %s2512 = sor.u32 256, 16
  %2513 = vbcast.lane.b32.xlu0 %v2503, %s2512
  %v2514 = vpop.permute.xlu0 %2513
  %s2516 = sor.u32 256, 24
  %2517 = vbcast.lane.b32.xlu0 %v2503, %s2516
  %v2518 = vpop.permute.xlu0 %2517
  %v2519 = vlaneseq
  %v2520 = vshrl.u32 %v2519, 7
  %v2521 = vsub.s32 3, %v2520
  %v2522 = vrot.slane %v177, %v2521
  %2524 = vbcast.lane.b32.xlu0 %v2522, 256
  %v2525 = vpop.permute.xlu0 %2524
  %s2527 = sor.u32 256, 8
  %2528 = vbcast.lane.b32.xlu0 %v2522, %s2527
  %v2529 = vpop.permute.xlu0 %2528
  %s2531 = sor.u32 256, 16
  %2532 = vbcast.lane.b32.xlu0 %v2522, %s2531
  %v2533 = vpop.permute.xlu0 %2532
  %s2535 = sor.u32 256, 24
  %2536 = vbcast.lane.b32.xlu0 %v2522, %s2535
  %v2537 = vpop.permute.xlu0 %2536
  %v2538 = vlaneseq
  %v2539 = vshrl.u32 %v2538, 7
  %v2540 = vsub.s32 4, %v2539
  %v2541 = vrot.slane %v177, %v2540
  %2543 = vbcast.lane.b32.xlu0 %v2541, 256
  %v2544 = vpop.permute.xlu0 %2543
  %s2546 = sor.u32 256, 8
  %2547 = vbcast.lane.b32.xlu0 %v2541, %s2546
  %v2548 = vpop.permute.xlu0 %2547
  %s2550 = sor.u32 256, 16
  %2551 = vbcast.lane.b32.xlu0 %v2541, %s2550
  %v2552 = vpop.permute.xlu0 %2551
  %s2554 = sor.u32 256, 24
  %2555 = vbcast.lane.b32.xlu0 %v2541, %s2554
  %v2556 = vpop.permute.xlu0 %2555
  %v2557 = vlaneseq
  %v2558 = vshrl.u32 %v2557, 7
  %v2559 = vsub.s32 5, %v2558
  %v2560 = vrot.slane %v177, %v2559
  %2562 = vbcast.lane.b32.xlu0 %v2560, 256
  %v2563 = vpop.permute.xlu0 %2562
  %s2565 = sor.u32 256, 8
  %2566 = vbcast.lane.b32.xlu0 %v2560, %s2565
  %v2567 = vpop.permute.xlu0 %2566
  %s2569 = sor.u32 256, 16
  %2570 = vbcast.lane.b32.xlu0 %v2560, %s2569
  %v2571 = vpop.permute.xlu0 %2570
  %s2573 = sor.u32 256, 24
  %2574 = vbcast.lane.b32.xlu0 %v2560, %s2573
  %v2575 = vpop.permute.xlu0 %2574
  %v2576 = vlaneseq
  %v2577 = vshrl.u32 %v2576, 7
  %v2578 = vsub.s32 6, %v2577
  %v2579 = vrot.slane %v177, %v2578
  %2581 = vbcast.lane.b32.xlu0 %v2579, 256
  %v2582 = vpop.permute.xlu0 %2581
  %s2584 = sor.u32 256, 8
  %2585 = vbcast.lane.b32.xlu0 %v2579, %s2584
  %v2586 = vpop.permute.xlu0 %2585
  %s2588 = sor.u32 256, 16
  %2589 = vbcast.lane.b32.xlu0 %v2579, %s2588
  %v2590 = vpop.permute.xlu0 %2589
  %s2592 = sor.u32 256, 24
  %2593 = vbcast.lane.b32.xlu0 %v2579, %s2592
  %v2594 = vpop.permute.xlu0 %2593
  %v2595 = vlaneseq
  %v2596 = vshrl.u32 %v2595, 7
  %v2597 = vsub.s32 7, %v2596
  %v2598 = vrot.slane %v177, %v2597
  %2600 = vbcast.lane.b32.xlu0 %v2598, 256
  %v2601 = vpop.permute.xlu0 %2600
  %s2603 = sor.u32 256, 8
  %2604 = vbcast.lane.b32.xlu0 %v2598, %s2603
  %v2605 = vpop.permute.xlu0 %2604
  %s2607 = sor.u32 256, 16
  %2608 = vbcast.lane.b32.xlu0 %v2598, %s2607
  %v2609 = vpop.permute.xlu0 %2608
  %s2611 = sor.u32 256, 24
  %2612 = vbcast.lane.b32.xlu0 %v2598, %s2611
  %v2613 = vpop.permute.xlu0 %2612
  %v2614 = vadd.f32 %v188, %v178
  %v2615 = vadd.f32 %v192, %v179
  %v2616 = vadd.f32 %v196, %v180
  %v2617 = vadd.f32 %v200, %v181
  %v2618 = vadd.f32 %v207, %v178
  %v2619 = vadd.f32 %v211, %v179
  %v2620 = vadd.f32 %v215, %v180
  %v2621 = vadd.f32 %v219, %v181
  %v2622 = vadd.f32 %v226, %v178
  %v2623 = vadd.f32 %v230, %v179
  %v2624 = vadd.f32 %v234, %v180
  %v2625 = vadd.f32 %v238, %v181
  %v2626 = vadd.f32 %v245, %v178
  %v2627 = vadd.f32 %v249, %v179
  %v2628 = vadd.f32 %v253, %v180
  %v2629 = vadd.f32 %v257, %v181
  %v2630 = vadd.f32 %v264, %v178
  %v2631 = vadd.f32 %v268, %v179
  %v2632 = vadd.f32 %v272, %v180
  %v2633 = vadd.f32 %v276, %v181
  %v2634 = vadd.f32 %v283, %v178
  %v2635 = vadd.f32 %v287, %v179
  %v2636 = vadd.f32 %v291, %v180
  %v2637 = vadd.f32 %v295, %v181
  %v2638 = vadd.f32 %v302, %v178
  %v2639 = vadd.f32 %v306, %v179
  %v2640 = vadd.f32 %v310, %v180
  %v2641 = vadd.f32 %v314, %v181
  %v2642 = vadd.f32 %v321, %v178
  %v2643 = vadd.f32 %v325, %v179
  %v2644 = vadd.f32 %v329, %v180
  %v2645 = vadd.f32 %v333, %v181
  %v2646 = vadd.f32 %v340, %v178
  %v2647 = vadd.f32 %v344, %v179
  %v2648 = vadd.f32 %v348, %v180
  %v2649 = vadd.f32 %v352, %v181
  %v2650 = vadd.f32 %v359, %v178
  %v2651 = vadd.f32 %v363, %v179
  %v2652 = vadd.f32 %v367, %v180
  %v2653 = vadd.f32 %v371, %v181
  %v2654 = vadd.f32 %v378, %v178
  %v2655 = vadd.f32 %v382, %v179
  %v2656 = vadd.f32 %v386, %v180
  %v2657 = vadd.f32 %v390, %v181
  %v2658 = vadd.f32 %v397, %v178
  %v2659 = vadd.f32 %v401, %v179
  %v2660 = vadd.f32 %v405, %v180
  %v2661 = vadd.f32 %v409, %v181
  %v2662 = vadd.f32 %v416, %v178
  %v2663 = vadd.f32 %v420, %v179
  %v2664 = vadd.f32 %v424, %v180
  %v2665 = vadd.f32 %v428, %v181
  %v2666 = vadd.f32 %v435, %v178
  %v2667 = vadd.f32 %v439, %v179
  %v2668 = vadd.f32 %v443, %v180
  %v2669 = vadd.f32 %v447, %v181
  %v2670 = vadd.f32 %v454, %v178
  %v2671 = vadd.f32 %v458, %v179
  %v2672 = vadd.f32 %v462, %v180
  %v2673 = vadd.f32 %v466, %v181
  %v2674 = vadd.f32 %v473, %v178
  %v2675 = vadd.f32 %v477, %v179
  %v2676 = vadd.f32 %v481, %v180
  %v2677 = vadd.f32 %v485, %v181
  %v2678 = vadd.f32 %v492, %v178
  %v2679 = vadd.f32 %v496, %v179
  %v2680 = vadd.f32 %v500, %v180
  %v2681 = vadd.f32 %v504, %v181
  %v2682 = vadd.f32 %v511, %v178
  %v2683 = vadd.f32 %v515, %v179
  %v2684 = vadd.f32 %v519, %v180
  %v2685 = vadd.f32 %v523, %v181
  %v2686 = vadd.f32 %v530, %v178
  %v2687 = vadd.f32 %v534, %v179
  %v2688 = vadd.f32 %v538, %v180
  %v2689 = vadd.f32 %v542, %v181
  %v2690 = vadd.f32 %v549, %v178
  %v2691 = vadd.f32 %v553, %v179
  %v2692 = vadd.f32 %v557, %v180
  %v2693 = vadd.f32 %v561, %v181
  %v2694 = vadd.f32 %v568, %v178
  %v2695 = vadd.f32 %v572, %v179
  %v2696 = vadd.f32 %v576, %v180
  %v2697 = vadd.f32 %v580, %v181
  %v2698 = vadd.f32 %v587, %v178
  %v2699 = vadd.f32 %v591, %v179
  %v2700 = vadd.f32 %v595, %v180
  %v2701 = vadd.f32 %v599, %v181
  %v2702 = vadd.f32 %v606, %v178
  %v2703 = vadd.f32 %v610, %v179
  %v2704 = vadd.f32 %v614, %v180
  %v2705 = vadd.f32 %v618, %v181
  %v2706 = vadd.f32 %v625, %v178
  %v2707 = vadd.f32 %v629, %v179
  %v2708 = vadd.f32 %v633, %v180
  %v2709 = vadd.f32 %v637, %v181
  %v2710 = vadd.f32 %v644, %v178
  %v2711 = vadd.f32 %v648, %v179
  %v2712 = vadd.f32 %v652, %v180
  %v2713 = vadd.f32 %v656, %v181
  %v2714 = vadd.f32 %v663, %v178
  %v2715 = vadd.f32 %v667, %v179
  %v2716 = vadd.f32 %v671, %v180
  %v2717 = vadd.f32 %v675, %v181
  %v2718 = vadd.f32 %v682, %v178
  %v2719 = vadd.f32 %v686, %v179
  %v2720 = vadd.f32 %v690, %v180
  %v2721 = vadd.f32 %v694, %v181
  %v2722 = vadd.f32 %v701, %v178
  %v2723 = vadd.f32 %v705, %v179
  %v2724 = vadd.f32 %v709, %v180
  %v2725 = vadd.f32 %v713, %v181
  %v2726 = vadd.f32 %v720, %v178
  %v2727 = vadd.f32 %v724, %v179
  %v2728 = vadd.f32 %v728, %v180
  %v2729 = vadd.f32 %v732, %v181
  %v2730 = vadd.f32 %v739, %v178
  %v2731 = vadd.f32 %v743, %v179
  %v2732 = vadd.f32 %v747, %v180
  %v2733 = vadd.f32 %v751, %v181
  %v2734 = vadd.f32 %v758, %v178
  %v2735 = vadd.f32 %v762, %v179
  %v2736 = vadd.f32 %v766, %v180
  %v2737 = vadd.f32 %v770, %v181
  %v2738 = vadd.f32 %v777, %v178
  %v2739 = vadd.f32 %v781, %v179
  %v2740 = vadd.f32 %v785, %v180
  %v2741 = vadd.f32 %v789, %v181
  %v2742 = vadd.f32 %v796, %v178
  %v2743 = vadd.f32 %v800, %v179
  %v2744 = vadd.f32 %v804, %v180
  %v2745 = vadd.f32 %v808, %v181
  %v2746 = vadd.f32 %v815, %v178
  %v2747 = vadd.f32 %v819, %v179
  %v2748 = vadd.f32 %v823, %v180
  %v2749 = vadd.f32 %v827, %v181
  %v2750 = vadd.f32 %v834, %v178
  %v2751 = vadd.f32 %v838, %v179
  %v2752 = vadd.f32 %v842, %v180
  %v2753 = vadd.f32 %v846, %v181
  %v2754 = vadd.f32 %v853, %v178
  %v2755 = vadd.f32 %v857, %v179
  %v2756 = vadd.f32 %v861, %v180
  %v2757 = vadd.f32 %v865, %v181
  %v2758 = vadd.f32 %v872, %v178
  %v2759 = vadd.f32 %v876, %v179
  %v2760 = vadd.f32 %v880, %v180
  %v2761 = vadd.f32 %v884, %v181
  %v2762 = vadd.f32 %v891, %v178
  %v2763 = vadd.f32 %v895, %v179
  %v2764 = vadd.f32 %v899, %v180
  %v2765 = vadd.f32 %v903, %v181
  %v2766 = vadd.f32 %v910, %v178
  %v2767 = vadd.f32 %v914, %v179
  %v2768 = vadd.f32 %v918, %v180
  %v2769 = vadd.f32 %v922, %v181
  %v2770 = vadd.f32 %v929, %v178
  %v2771 = vadd.f32 %v933, %v179
  %v2772 = vadd.f32 %v937, %v180
  %v2773 = vadd.f32 %v941, %v181
  %v2774 = vadd.f32 %v948, %v178
  %v2775 = vadd.f32 %v952, %v179
  %v2776 = vadd.f32 %v956, %v180
  %v2777 = vadd.f32 %v960, %v181
  %v2778 = vadd.f32 %v967, %v178
  %v2779 = vadd.f32 %v971, %v179
  %v2780 = vadd.f32 %v975, %v180
  %v2781 = vadd.f32 %v979, %v181
  %v2782 = vadd.f32 %v986, %v178
  %v2783 = vadd.f32 %v990, %v179
  %v2784 = vadd.f32 %v994, %v180
  %v2785 = vadd.f32 %v998, %v181
  %v2786 = vadd.f32 %v1005, %v178
  %v2787 = vadd.f32 %v1009, %v179
  %v2788 = vadd.f32 %v1013, %v180
  %v2789 = vadd.f32 %v1017, %v181
  %v2790 = vadd.f32 %v1024, %v178
  %v2791 = vadd.f32 %v1028, %v179
  %v2792 = vadd.f32 %v1032, %v180
  %v2793 = vadd.f32 %v1036, %v181
  %v2794 = vadd.f32 %v1043, %v178
  %v2795 = vadd.f32 %v1047, %v179
  %v2796 = vadd.f32 %v1051, %v180
  %v2797 = vadd.f32 %v1055, %v181
  %v2798 = vadd.f32 %v1062, %v178
  %v2799 = vadd.f32 %v1066, %v179
  %v2800 = vadd.f32 %v1070, %v180
  %v2801 = vadd.f32 %v1074, %v181
  %v2802 = vadd.f32 %v1081, %v178
  %v2803 = vadd.f32 %v1085, %v179
  %v2804 = vadd.f32 %v1089, %v180
  %v2805 = vadd.f32 %v1093, %v181
  %v2806 = vadd.f32 %v1100, %v178
  %v2807 = vadd.f32 %v1104, %v179
  %v2808 = vadd.f32 %v1108, %v180
  %v2809 = vadd.f32 %v1112, %v181
  %v2810 = vadd.f32 %v1119, %v178
  %v2811 = vadd.f32 %v1123, %v179
  %v2812 = vadd.f32 %v1127, %v180
  %v2813 = vadd.f32 %v1131, %v181
  %v2814 = vadd.f32 %v1138, %v178
  %v2815 = vadd.f32 %v1142, %v179
  %v2816 = vadd.f32 %v1146, %v180
  %v2817 = vadd.f32 %v1150, %v181
  %v2818 = vadd.f32 %v1157, %v178
  %v2819 = vadd.f32 %v1161, %v179
  %v2820 = vadd.f32 %v1165, %v180
  %v2821 = vadd.f32 %v1169, %v181
  %v2822 = vadd.f32 %v1176, %v178
  %v2823 = vadd.f32 %v1180, %v179
  %v2824 = vadd.f32 %v1184, %v180
  %v2825 = vadd.f32 %v1188, %v181
  %v2826 = vadd.f32 %v1195, %v178
  %v2827 = vadd.f32 %v1199, %v179
  %v2828 = vadd.f32 %v1203, %v180
  %v2829 = vadd.f32 %v1207, %v181
  %v2830 = vadd.f32 %v1214, %v178
  %v2831 = vadd.f32 %v1218, %v179
  %v2832 = vadd.f32 %v1222, %v180
  %v2833 = vadd.f32 %v1226, %v181
  %v2834 = vadd.f32 %v1233, %v178
  %v2835 = vadd.f32 %v1237, %v179
  %v2836 = vadd.f32 %v1241, %v180
  %v2837 = vadd.f32 %v1245, %v181
  %v2838 = vadd.f32 %v1252, %v178
  %v2839 = vadd.f32 %v1256, %v179
  %v2840 = vadd.f32 %v1260, %v180
  %v2841 = vadd.f32 %v1264, %v181
  %v2842 = vadd.f32 %v1271, %v178
  %v2843 = vadd.f32 %v1275, %v179
  %v2844 = vadd.f32 %v1279, %v180
  %v2845 = vadd.f32 %v1283, %v181
  %v2846 = vadd.f32 %v1290, %v178
  %v2847 = vadd.f32 %v1294, %v179
  %v2848 = vadd.f32 %v1298, %v180
  %v2849 = vadd.f32 %v1302, %v181
  %v2850 = vadd.f32 %v1309, %v178
  %v2851 = vadd.f32 %v1313, %v179
  %v2852 = vadd.f32 %v1317, %v180
  %v2853 = vadd.f32 %v1321, %v181
  %v2854 = vadd.f32 %v1328, %v178
  %v2855 = vadd.f32 %v1332, %v179
  %v2856 = vadd.f32 %v1336, %v180
  %v2857 = vadd.f32 %v1340, %v181
  %v2858 = vadd.f32 %v1347, %v178
  %v2859 = vadd.f32 %v1351, %v179
  %v2860 = vadd.f32 %v1355, %v180
  %v2861 = vadd.f32 %v1359, %v181
  %v2862 = vadd.f32 %v1366, %v178
  %v2863 = vadd.f32 %v1370, %v179
  %v2864 = vadd.f32 %v1374, %v180
  %v2865 = vadd.f32 %v1378, %v181
  %v2866 = vadd.f32 %v1385, %v178
  %v2867 = vadd.f32 %v1389, %v179
  %v2868 = vadd.f32 %v1393, %v180
  %v2869 = vadd.f32 %v1397, %v181
  %v2870 = vadd.f32 %v1404, %v178
  %v2871 = vadd.f32 %v1408, %v179
  %v2872 = vadd.f32 %v1412, %v180
  %v2873 = vadd.f32 %v1416, %v181
  %v2874 = vadd.f32 %v1423, %v178
  %v2875 = vadd.f32 %v1427, %v179
  %v2876 = vadd.f32 %v1431, %v180
  %v2877 = vadd.f32 %v1435, %v181
  %v2878 = vadd.f32 %v1442, %v178
  %v2879 = vadd.f32 %v1446, %v179
  %v2880 = vadd.f32 %v1450, %v180
  %v2881 = vadd.f32 %v1454, %v181
  %v2882 = vadd.f32 %v1461, %v178
  %v2883 = vadd.f32 %v1465, %v179
  %v2884 = vadd.f32 %v1469, %v180
  %v2885 = vadd.f32 %v1473, %v181
  %v2886 = vadd.f32 %v1480, %v178
  %v2887 = vadd.f32 %v1484, %v179
  %v2888 = vadd.f32 %v1488, %v180
  %v2889 = vadd.f32 %v1492, %v181
  %v2890 = vadd.f32 %v1499, %v178
  %v2891 = vadd.f32 %v1503, %v179
  %v2892 = vadd.f32 %v1507, %v180
  %v2893 = vadd.f32 %v1511, %v181
  %v2894 = vadd.f32 %v1518, %v178
  %v2895 = vadd.f32 %v1522, %v179
  %v2896 = vadd.f32 %v1526, %v180
  %v2897 = vadd.f32 %v1530, %v181
  %v2898 = vadd.f32 %v1537, %v178
  %v2899 = vadd.f32 %v1541, %v179
  %v2900 = vadd.f32 %v1545, %v180
  %v2901 = vadd.f32 %v1549, %v181
  %v2902 = vadd.f32 %v1556, %v178
  %v2903 = vadd.f32 %v1560, %v179
  %v2904 = vadd.f32 %v1564, %v180
  %v2905 = vadd.f32 %v1568, %v181
  %v2906 = vadd.f32 %v1575, %v178
  %v2907 = vadd.f32 %v1579, %v179
  %v2908 = vadd.f32 %v1583, %v180
  %v2909 = vadd.f32 %v1587, %v181
  %v2910 = vadd.f32 %v1594, %v178
  %v2911 = vadd.f32 %v1598, %v179
  %v2912 = vadd.f32 %v1602, %v180
  %v2913 = vadd.f32 %v1606, %v181
  %v2914 = vadd.f32 %v1613, %v178
  %v2915 = vadd.f32 %v1617, %v179
  %v2916 = vadd.f32 %v1621, %v180
  %v2917 = vadd.f32 %v1625, %v181
  %v2918 = vadd.f32 %v1632, %v178
  %v2919 = vadd.f32 %v1636, %v179
  %v2920 = vadd.f32 %v1640, %v180
  %v2921 = vadd.f32 %v1644, %v181
  %v2922 = vadd.f32 %v1651, %v178
  %v2923 = vadd.f32 %v1655, %v179
  %v2924 = vadd.f32 %v1659, %v180
  %v2925 = vadd.f32 %v1663, %v181
  %v2926 = vadd.f32 %v1670, %v178
  %v2927 = vadd.f32 %v1674, %v179
  %v2928 = vadd.f32 %v1678, %v180
  %v2929 = vadd.f32 %v1682, %v181
  %v2930 = vadd.f32 %v1689, %v178
  %v2931 = vadd.f32 %v1693, %v179
  %v2932 = vadd.f32 %v1697, %v180
  %v2933 = vadd.f32 %v1701, %v181
  %v2934 = vadd.f32 %v1708, %v178
  %v2935 = vadd.f32 %v1712, %v179
  %v2936 = vadd.f32 %v1716, %v180
  %v2937 = vadd.f32 %v1720, %v181
  %v2938 = vadd.f32 %v1727, %v178
  %v2939 = vadd.f32 %v1731, %v179
  %v2940 = vadd.f32 %v1735, %v180
  %v2941 = vadd.f32 %v1739, %v181
  %v2942 = vadd.f32 %v1746, %v178
  %v2943 = vadd.f32 %v1750, %v179
  %v2944 = vadd.f32 %v1754, %v180
  %v2945 = vadd.f32 %v1758, %v181
  %v2946 = vadd.f32 %v1765, %v178
  %v2947 = vadd.f32 %v1769, %v179
  %v2948 = vadd.f32 %v1773, %v180
  %v2949 = vadd.f32 %v1777, %v181
  %v2950 = vadd.f32 %v1784, %v178
  %v2951 = vadd.f32 %v1788, %v179
  %v2952 = vadd.f32 %v1792, %v180
  %v2953 = vadd.f32 %v1796, %v181
  %v2954 = vadd.f32 %v1803, %v178
  %v2955 = vadd.f32 %v1807, %v179
  %v2956 = vadd.f32 %v1811, %v180
  %v2957 = vadd.f32 %v1815, %v181
  %v2958 = vadd.f32 %v1822, %v178
  %v2959 = vadd.f32 %v1826, %v179
  %v2960 = vadd.f32 %v1830, %v180
  %v2961 = vadd.f32 %v1834, %v181
  %v2962 = vadd.f32 %v1841, %v178
  %v2963 = vadd.f32 %v1845, %v179
  %v2964 = vadd.f32 %v1849, %v180
  %v2965 = vadd.f32 %v1853, %v181
  %v2966 = vadd.f32 %v1860, %v178
  %v2967 = vadd.f32 %v1864, %v179
  %v2968 = vadd.f32 %v1868, %v180
  %v2969 = vadd.f32 %v1872, %v181
  %v2970 = vadd.f32 %v1879, %v178
  %v2971 = vadd.f32 %v1883, %v179
  %v2972 = vadd.f32 %v1887, %v180
  %v2973 = vadd.f32 %v1891, %v181
  %v2974 = vadd.f32 %v1898, %v178
  %v2975 = vadd.f32 %v1902, %v179
  %v2976 = vadd.f32 %v1906, %v180
  %v2977 = vadd.f32 %v1910, %v181
  %v2978 = vadd.f32 %v1917, %v178
  %v2979 = vadd.f32 %v1921, %v179
  %v2980 = vadd.f32 %v1925, %v180
  %v2981 = vadd.f32 %v1929, %v181
  %v2982 = vadd.f32 %v1936, %v178
  %v2983 = vadd.f32 %v1940, %v179
  %v2984 = vadd.f32 %v1944, %v180
  %v2985 = vadd.f32 %v1948, %v181
  %v2986 = vadd.f32 %v1955, %v178
  %v2987 = vadd.f32 %v1959, %v179
  %v2988 = vadd.f32 %v1963, %v180
  %v2989 = vadd.f32 %v1967, %v181
  %v2990 = vadd.f32 %v1974, %v178
  %v2991 = vadd.f32 %v1978, %v179
  %v2992 = vadd.f32 %v1982, %v180
  %v2993 = vadd.f32 %v1986, %v181
  %v2994 = vadd.f32 %v1993, %v178
  %v2995 = vadd.f32 %v1997, %v179
  %v2996 = vadd.f32 %v2001, %v180
  %v2997 = vadd.f32 %v2005, %v181
  %v2998 = vadd.f32 %v2012, %v178
  %v2999 = vadd.f32 %v2016, %v179
  %v3000 = vadd.f32 %v2020, %v180
  %v3001 = vadd.f32 %v2024, %v181
  %v3002 = vadd.f32 %v2031, %v178
  %v3003 = vadd.f32 %v2035, %v179
  %v3004 = vadd.f32 %v2039, %v180
  %v3005 = vadd.f32 %v2043, %v181
  %v3006 = vadd.f32 %v2050, %v178
  %v3007 = vadd.f32 %v2054, %v179
  %v3008 = vadd.f32 %v2058, %v180
  %v3009 = vadd.f32 %v2062, %v181
  %v3010 = vadd.f32 %v2069, %v178
  %v3011 = vadd.f32 %v2073, %v179
  %v3012 = vadd.f32 %v2077, %v180
  %v3013 = vadd.f32 %v2081, %v181
  %v3014 = vadd.f32 %v2088, %v178
  %v3015 = vadd.f32 %v2092, %v179
  %v3016 = vadd.f32 %v2096, %v180
  %v3017 = vadd.f32 %v2100, %v181
  %v3018 = vadd.f32 %v2107, %v178
  %v3019 = vadd.f32 %v2111, %v179
  %v3020 = vadd.f32 %v2115, %v180
  %v3021 = vadd.f32 %v2119, %v181
  %v3022 = vadd.f32 %v2126, %v178
  %v3023 = vadd.f32 %v2130, %v179
  %v3024 = vadd.f32 %v2134, %v180
  %v3025 = vadd.f32 %v2138, %v181
  %v3026 = vadd.f32 %v2145, %v178
  %v3027 = vadd.f32 %v2149, %v179
  %v3028 = vadd.f32 %v2153, %v180
  %v3029 = vadd.f32 %v2157, %v181
  %v3030 = vadd.f32 %v2164, %v178
  %v3031 = vadd.f32 %v2168, %v179
  %v3032 = vadd.f32 %v2172, %v180
  %v3033 = vadd.f32 %v2176, %v181
  %v3034 = vadd.f32 %v2183, %v178
  %v3035 = vadd.f32 %v2187, %v179
  %v3036 = vadd.f32 %v2191, %v180
  %v3037 = vadd.f32 %v2195, %v181
  %v3038 = vadd.f32 %v2202, %v178
  %v3039 = vadd.f32 %v2206, %v179
  %v3040 = vadd.f32 %v2210, %v180
  %v3041 = vadd.f32 %v2214, %v181
  %v3042 = vadd.f32 %v2221, %v178
  %v3043 = vadd.f32 %v2225, %v179
  %v3044 = vadd.f32 %v2229, %v180
  %v3045 = vadd.f32 %v2233, %v181
  %v3046 = vadd.f32 %v2240, %v178
  %v3047 = vadd.f32 %v2244, %v179
  %v3048 = vadd.f32 %v2248, %v180
  %v3049 = vadd.f32 %v2252, %v181
  %v3050 = vadd.f32 %v2259, %v178
  %v3051 = vadd.f32 %v2263, %v179
  %v3052 = vadd.f32 %v2267, %v180
  %v3053 = vadd.f32 %v2271, %v181
  %v3054 = vadd.f32 %v2278, %v178
  %v3055 = vadd.f32 %v2282, %v179
  %v3056 = vadd.f32 %v2286, %v180
  %v3057 = vadd.f32 %v2290, %v181
  %v3058 = vadd.f32 %v2297, %v178
  %v3059 = vadd.f32 %v2301, %v179
  %v3060 = vadd.f32 %v2305, %v180
  %v3061 = vadd.f32 %v2309, %v181
  %v3062 = vadd.f32 %v2316, %v178
  %v3063 = vadd.f32 %v2320, %v179
  %v3064 = vadd.f32 %v2324, %v180
  %v3065 = vadd.f32 %v2328, %v181
  %v3066 = vadd.f32 %v2335, %v178
  %v3067 = vadd.f32 %v2339, %v179
  %v3068 = vadd.f32 %v2343, %v180
  %v3069 = vadd.f32 %v2347, %v181
  %v3070 = vadd.f32 %v2354, %v178
  %v3071 = vadd.f32 %v2358, %v179
  %v3072 = vadd.f32 %v2362, %v180
  %v3073 = vadd.f32 %v2366, %v181
  %v3074 = vadd.f32 %v2373, %v178
  %v3075 = vadd.f32 %v2377, %v179
  %v3076 = vadd.f32 %v2381, %v180
  %v3077 = vadd.f32 %v2385, %v181
  %v3078 = vadd.f32 %v2392, %v178
  %v3079 = vadd.f32 %v2396, %v179
  %v3080 = vadd.f32 %v2400, %v180
  %v3081 = vadd.f32 %v2404, %v181
  %v3082 = vadd.f32 %v2411, %v178
  %v3083 = vadd.f32 %v2415, %v179
  %v3084 = vadd.f32 %v2419, %v180
  %v3085 = vadd.f32 %v2423, %v181
  %v3086 = vadd.f32 %v2430, %v178
  %v3087 = vadd.f32 %v2434, %v179
  %v3088 = vadd.f32 %v2438, %v180
  %v3089 = vadd.f32 %v2442, %v181
  %v3090 = vadd.f32 %v2449, %v178
  %v3091 = vadd.f32 %v2453, %v179
  %v3092 = vadd.f32 %v2457, %v180
  %v3093 = vadd.f32 %v2461, %v181
  %v3094 = vadd.f32 %v2468, %v178
  %v3095 = vadd.f32 %v2472, %v179
  %v3096 = vadd.f32 %v2476, %v180
  %v3097 = vadd.f32 %v2480, %v181
  %v3098 = vadd.f32 %v2487, %v178
  %v3099 = vadd.f32 %v2491, %v179
  %v3100 = vadd.f32 %v2495, %v180
  %v3101 = vadd.f32 %v2499, %v181
  %v3102 = vadd.f32 %v2506, %v178
  %v3103 = vadd.f32 %v2510, %v179
  %v3104 = vadd.f32 %v2514, %v180
  %v3105 = vadd.f32 %v2518, %v181
  %v3106 = vadd.f32 %v2525, %v178
  %v3107 = vadd.f32 %v2529, %v179
  %v3108 = vadd.f32 %v2533, %v180
  %v3109 = vadd.f32 %v2537, %v181
  %v3110 = vadd.f32 %v2544, %v178
  %v3111 = vadd.f32 %v2548, %v179
  %v3112 = vadd.f32 %v2552, %v180
  %v3113 = vadd.f32 %v2556, %v181
  %v3114 = vadd.f32 %v2563, %v178
  %v3115 = vadd.f32 %v2567, %v179
  %v3116 = vadd.f32 %v2571, %v180
  %v3117 = vadd.f32 %v2575, %v181
  %v3118 = vadd.f32 %v2582, %v178
  %v3119 = vadd.f32 %v2586, %v179
  %v3120 = vadd.f32 %v2590, %v180
  %v3121 = vadd.f32 %v2594, %v181
  %v3122 = vadd.f32 %v2601, %v178
  %v3123 = vadd.f32 %v2605, %v179
  %v3124 = vadd.f32 %v2609, %v180
  %v3125 = vadd.f32 %v2613, %v181
  %v3126 = vrcp.pop %v2614
  %v3127 = vrcp.pop %v2615
  %v3128 = vrcp.pop %v2616
  %v3129 = vrcp.pop %v2617
  %v3130 = vrcp.pop %v2618
  %v3131 = vrcp.pop %v2619
  %v3132 = vrcp.pop %v2620
  %v3133 = vrcp.pop %v2621
  %v3134 = vrcp.pop %v2622
  %v3135 = vrcp.pop %v2623
  %v3136 = vrcp.pop %v2624
  %v3137 = vrcp.pop %v2625
  %v3138 = vrcp.pop %v2626
  %v3139 = vrcp.pop %v2627
  %v3140 = vrcp.pop %v2628
  %v3141 = vrcp.pop %v2629
  %v3142 = vrcp.pop %v2630
  %v3143 = vrcp.pop %v2631
  %v3144 = vrcp.pop %v2632
  %v3145 = vrcp.pop %v2633
  %v3146 = vrcp.pop %v2634
  %v3147 = vrcp.pop %v2635
  %v3148 = vrcp.pop %v2636
  %v3149 = vrcp.pop %v2637
  %v3150 = vrcp.pop %v2638
  %v3151 = vrcp.pop %v2639
  %v3152 = vrcp.pop %v2640
  %v3153 = vrcp.pop %v2641
  %v3154 = vrcp.pop %v2642
  %v3155 = vrcp.pop %v2643
  %v3156 = vrcp.pop %v2644
  %v3157 = vrcp.pop %v2645
  %v3158 = vrcp.pop %v2646
  %v3159 = vrcp.pop %v2647
  %v3160 = vrcp.pop %v2648
  %v3161 = vrcp.pop %v2649
  %v3162 = vrcp.pop %v2650
  %v3163 = vrcp.pop %v2651
  %v3164 = vrcp.pop %v2652
  %v3165 = vrcp.pop %v2653
  %v3166 = vrcp.pop %v2654
  %v3167 = vrcp.pop %v2655
  %v3168 = vrcp.pop %v2656
  %v3169 = vrcp.pop %v2657
  %v3170 = vrcp.pop %v2658
  %v3171 = vrcp.pop %v2659
  %v3172 = vrcp.pop %v2660
  %v3173 = vrcp.pop %v2661
  %v3174 = vrcp.pop %v2662
  %v3175 = vrcp.pop %v2663
  %v3176 = vrcp.pop %v2664
  %v3177 = vrcp.pop %v2665
  %v3178 = vrcp.pop %v2666
  %v3179 = vrcp.pop %v2667
  %v3180 = vrcp.pop %v2668
  %v3181 = vrcp.pop %v2669
  %v3182 = vrcp.pop %v2670
  %v3183 = vrcp.pop %v2671
  %v3184 = vrcp.pop %v2672
  %v3185 = vrcp.pop %v2673
  %v3186 = vrcp.pop %v2674
  %v3187 = vrcp.pop %v2675
  %v3188 = vrcp.pop %v2676
  %v3189 = vrcp.pop %v2677
  %v3190 = vrcp.pop %v2678
  %v3191 = vrcp.pop %v2679
  %v3192 = vrcp.pop %v2680
  %v3193 = vrcp.pop %v2681
  %v3194 = vrcp.pop %v2682
  %v3195 = vrcp.pop %v2683
  %v3196 = vrcp.pop %v2684
  %v3197 = vrcp.pop %v2685
  %v3198 = vrcp.pop %v2686
  %v3199 = vrcp.pop %v2687
  %v3200 = vrcp.pop %v2688
  %v3201 = vrcp.pop %v2689
  %v3202 = vrcp.pop %v2690
  %v3203 = vrcp.pop %v2691
  %v3204 = vrcp.pop %v2692
  %v3205 = vrcp.pop %v2693
  %v3206 = vrcp.pop %v2694
  %v3207 = vrcp.pop %v2695
  %v3208 = vrcp.pop %v2696
  %v3209 = vrcp.pop %v2697
  %v3210 = vrcp.pop %v2698
  %v3211 = vrcp.pop %v2699
  %v3212 = vrcp.pop %v2700
  %v3213 = vrcp.pop %v2701
  %v3214 = vrcp.pop %v2702
  %v3215 = vrcp.pop %v2703
  %v3216 = vrcp.pop %v2704
  %v3217 = vrcp.pop %v2705
  %v3218 = vrcp.pop %v2706
  %v3219 = vrcp.pop %v2707
  %v3220 = vrcp.pop %v2708
  %v3221 = vrcp.pop %v2709
  %v3222 = vrcp.pop %v2710
  %v3223 = vrcp.pop %v2711
  %v3224 = vrcp.pop %v2712
  %v3225 = vrcp.pop %v2713
  %v3226 = vrcp.pop %v2714
  %v3227 = vrcp.pop %v2715
  %v3228 = vrcp.pop %v2716
  %v3229 = vrcp.pop %v2717
  %v3230 = vrcp.pop %v2718
  %v3231 = vrcp.pop %v2719
  %v3232 = vrcp.pop %v2720
  %v3233 = vrcp.pop %v2721
  %v3234 = vrcp.pop %v2722
  %v3235 = vrcp.pop %v2723
  %v3236 = vrcp.pop %v2724
  %v3237 = vrcp.pop %v2725
  %v3238 = vrcp.pop %v2726
  %v3239 = vrcp.pop %v2727
  %v3240 = vrcp.pop %v2728
  %v3241 = vrcp.pop %v2729
  %v3242 = vrcp.pop %v2730
  %v3243 = vrcp.pop %v2731
  %v3244 = vrcp.pop %v2732
  %v3245 = vrcp.pop %v2733
  %v3246 = vrcp.pop %v2734
  %v3247 = vrcp.pop %v2735
  %v3248 = vrcp.pop %v2736
  %v3249 = vrcp.pop %v2737
  %v3250 = vrcp.pop %v2738
  %v3251 = vrcp.pop %v2739
  %v3252 = vrcp.pop %v2740
  %v3253 = vrcp.pop %v2741
  %v3254 = vrcp.pop %v2742
  %v3255 = vrcp.pop %v2743
  %v3256 = vrcp.pop %v2744
  %v3257 = vrcp.pop %v2745
  %v3258 = vrcp.pop %v2746
  %v3259 = vrcp.pop %v2747
  %v3260 = vrcp.pop %v2748
  %v3261 = vrcp.pop %v2749
  %v3262 = vrcp.pop %v2750
  %v3263 = vrcp.pop %v2751
  %v3264 = vrcp.pop %v2752
  %v3265 = vrcp.pop %v2753
  %v3266 = vrcp.pop %v2754
  %v3267 = vrcp.pop %v2755
  %v3268 = vrcp.pop %v2756
  %v3269 = vrcp.pop %v2757
  %v3270 = vrcp.pop %v2758
  %v3271 = vrcp.pop %v2759
  %v3272 = vrcp.pop %v2760
  %v3273 = vrcp.pop %v2761
  %v3274 = vrcp.pop %v2762
  %v3275 = vrcp.pop %v2763
  %v3276 = vrcp.pop %v2764
  %v3277 = vrcp.pop %v2765
  %v3278 = vrcp.pop %v2766
  %v3279 = vrcp.pop %v2767
  %v3280 = vrcp.pop %v2768
  %v3281 = vrcp.pop %v2769
  %v3282 = vrcp.pop %v2770
  %v3283 = vrcp.pop %v2771
  %v3284 = vrcp.pop %v2772
  %v3285 = vrcp.pop %v2773
  %v3286 = vrcp.pop %v2774
  %v3287 = vrcp.pop %v2775
  %v3288 = vrcp.pop %v2776
  %v3289 = vrcp.pop %v2777
  %v3290 = vrcp.pop %v2778
  %v3291 = vrcp.pop %v2779
  %v3292 = vrcp.pop %v2780
  %v3293 = vrcp.pop %v2781
  %v3294 = vrcp.pop %v2782
  %v3295 = vrcp.pop %v2783
  %v3296 = vrcp.pop %v2784
  %v3297 = vrcp.pop %v2785
  %v3298 = vrcp.pop %v2786
  %v3299 = vrcp.pop %v2787
  %v3300 = vrcp.pop %v2788
  %v3301 = vrcp.pop %v2789
  %v3302 = vrcp.pop %v2790
  %v3303 = vrcp.pop %v2791
  %v3304 = vrcp.pop %v2792
  %v3305 = vrcp.pop %v2793
  %v3306 = vrcp.pop %v2794
  %v3307 = vrcp.pop %v2795
  %v3308 = vrcp.pop %v2796
  %v3309 = vrcp.pop %v2797
  %v3310 = vrcp.pop %v2798
  %v3311 = vrcp.pop %v2799
  %v3312 = vrcp.pop %v2800
  %v3313 = vrcp.pop %v2801
  %v3314 = vrcp.pop %v2802
  %v3315 = vrcp.pop %v2803
  %v3316 = vrcp.pop %v2804
  %v3317 = vrcp.pop %v2805
  %v3318 = vrcp.pop %v2806
  %v3319 = vrcp.pop %v2807
  %v3320 = vrcp.pop %v2808
  %v3321 = vrcp.pop %v2809
  %v3322 = vrcp.pop %v2810
  %v3323 = vrcp.pop %v2811
  %v3324 = vrcp.pop %v2812
  %v3325 = vrcp.pop %v2813
  %v3326 = vrcp.pop %v2814
  %v3327 = vrcp.pop %v2815
  %v3328 = vrcp.pop %v2816
  %v3329 = vrcp.pop %v2817
  %v3330 = vrcp.pop %v2818
  %v3331 = vrcp.pop %v2819
  %v3332 = vrcp.pop %v2820
  %v3333 = vrcp.pop %v2821
  %v3334 = vrcp.pop %v2822
  %v3335 = vrcp.pop %v2823
  %v3336 = vrcp.pop %v2824
  %v3337 = vrcp.pop %v2825
  %v3338 = vrcp.pop %v2826
  %v3339 = vrcp.pop %v2827
  %v3340 = vrcp.pop %v2828
  %v3341 = vrcp.pop %v2829
  %v3342 = vrcp.pop %v2830
  %v3343 = vrcp.pop %v2831
  %v3344 = vrcp.pop %v2832
  %v3345 = vrcp.pop %v2833
  %v3346 = vrcp.pop %v2834
  %v3347 = vrcp.pop %v2835
  %v3348 = vrcp.pop %v2836
  %v3349 = vrcp.pop %v2837
  %v3350 = vrcp.pop %v2838
  %v3351 = vrcp.pop %v2839
  %v3352 = vrcp.pop %v2840
  %v3353 = vrcp.pop %v2841
  %v3354 = vrcp.pop %v2842
  %v3355 = vrcp.pop %v2843
  %v3356 = vrcp.pop %v2844
  %v3357 = vrcp.pop %v2845
  %v3358 = vrcp.pop %v2846
  %v3359 = vrcp.pop %v2847
  %v3360 = vrcp.pop %v2848
  %v3361 = vrcp.pop %v2849
  %v3362 = vrcp.pop %v2850
  %v3363 = vrcp.pop %v2851
  %v3364 = vrcp.pop %v2852
  %v3365 = vrcp.pop %v2853
  %v3366 = vrcp.pop %v2854
  %v3367 = vrcp.pop %v2855
  %v3368 = vrcp.pop %v2856
  %v3369 = vrcp.pop %v2857
  %v3370 = vrcp.pop %v2858
  %v3371 = vrcp.pop %v2859
  %v3372 = vrcp.pop %v2860
  %v3373 = vrcp.pop %v2861
  %v3374 = vrcp.pop %v2862
  %v3375 = vrcp.pop %v2863
  %v3376 = vrcp.pop %v2864
  %v3377 = vrcp.pop %v2865
  %v3378 = vrcp.pop %v2866
  %v3379 = vrcp.pop %v2867
  %v3380 = vrcp.pop %v2868
  %v3381 = vrcp.pop %v2869
  %v3382 = vrcp.pop %v2870
  %v3383 = vrcp.pop %v2871
  %v3384 = vrcp.pop %v2872
  %v3385 = vrcp.pop %v2873
  %v3386 = vrcp.pop %v2874
  %v3387 = vrcp.pop %v2875
  %v3388 = vrcp.pop %v2876
  %v3389 = vrcp.pop %v2877
  %v3390 = vrcp.pop %v2878
  %v3391 = vrcp.pop %v2879
  %v3392 = vrcp.pop %v2880
  %v3393 = vrcp.pop %v2881
  %v3394 = vrcp.pop %v2882
  %v3395 = vrcp.pop %v2883
  %v3396 = vrcp.pop %v2884
  %v3397 = vrcp.pop %v2885
  %v3398 = vrcp.pop %v2886
  %v3399 = vrcp.pop %v2887
  %v3400 = vrcp.pop %v2888
  %v3401 = vrcp.pop %v2889
  %v3402 = vrcp.pop %v2890
  %v3403 = vrcp.pop %v2891
  %v3404 = vrcp.pop %v2892
  %v3405 = vrcp.pop %v2893
  %v3406 = vrcp.pop %v2894
  %v3407 = vrcp.pop %v2895
  %v3408 = vrcp.pop %v2896
  %v3409 = vrcp.pop %v2897
  %v3410 = vrcp.pop %v2898
  %v3411 = vrcp.pop %v2899
  %v3412 = vrcp.pop %v2900
  %v3413 = vrcp.pop %v2901
  %v3414 = vrcp.pop %v2902
  %v3415 = vrcp.pop %v2903
  %v3416 = vrcp.pop %v2904
  %v3417 = vrcp.pop %v2905
  %v3418 = vrcp.pop %v2906
  %v3419 = vrcp.pop %v2907
  %v3420 = vrcp.pop %v2908
  %v3421 = vrcp.pop %v2909
  %v3422 = vrcp.pop %v2910
  %v3423 = vrcp.pop %v2911
  %v3424 = vrcp.pop %v2912
  %v3425 = vrcp.pop %v2913
  %v3426 = vrcp.pop %v2914
  %v3427 = vrcp.pop %v2915
  %v3428 = vrcp.pop %v2916
  %v3429 = vrcp.pop %v2917
  %v3430 = vrcp.pop %v2918
  %v3431 = vrcp.pop %v2919
  %v3432 = vrcp.pop %v2920
  %v3433 = vrcp.pop %v2921
  %v3434 = vrcp.pop %v2922
  %v3435 = vrcp.pop %v2923
  %v3436 = vrcp.pop %v2924
  %v3437 = vrcp.pop %v2925
  %v3438 = vrcp.pop %v2926
  %v3439 = vrcp.pop %v2927
  %v3440 = vrcp.pop %v2928
  %v3441 = vrcp.pop %v2929
  %v3442 = vrcp.pop %v2930
  %v3443 = vrcp.pop %v2931
  %v3444 = vrcp.pop %v2932
  %v3445 = vrcp.pop %v2933
  %v3446 = vrcp.pop %v2934
  %v3447 = vrcp.pop %v2935
  %v3448 = vrcp.pop %v2936
  %v3449 = vrcp.pop %v2937
  %v3450 = vrcp.pop %v2938
  %v3451 = vrcp.pop %v2939
  %v3452 = vrcp.pop %v2940
  %v3453 = vrcp.pop %v2941
  %v3454 = vrcp.pop %v2942
  %v3455 = vrcp.pop %v2943
  %v3456 = vrcp.pop %v2944
  %v3457 = vrcp.pop %v2945
  %v3458 = vrcp.pop %v2946
  %v3459 = vrcp.pop %v2947
  %v3460 = vrcp.pop %v2948
  %v3461 = vrcp.pop %v2949
  %v3462 = vrcp.pop %v2950
  %v3463 = vrcp.pop %v2951
  %v3464 = vrcp.pop %v2952
  %v3465 = vrcp.pop %v2953
  %v3466 = vrcp.pop %v2954
  %v3467 = vrcp.pop %v2955
  %v3468 = vrcp.pop %v2956
  %v3469 = vrcp.pop %v2957
  %v3470 = vrcp.pop %v2958
  %v3471 = vrcp.pop %v2959
  %v3472 = vrcp.pop %v2960
  %v3473 = vrcp.pop %v2961
  %v3474 = vrcp.pop %v2962
  %v3475 = vrcp.pop %v2963
  %v3476 = vrcp.pop %v2964
  %v3477 = vrcp.pop %v2965
  %v3478 = vrcp.pop %v2966
  %v3479 = vrcp.pop %v2967
  %v3480 = vrcp.pop %v2968
  %v3481 = vrcp.pop %v2969
  %v3482 = vrcp.pop %v2970
  %v3483 = vrcp.pop %v2971
  %v3484 = vrcp.pop %v2972
  %v3485 = vrcp.pop %v2973
  %v3486 = vrcp.pop %v2974
  %v3487 = vrcp.pop %v2975
  %v3488 = vrcp.pop %v2976
  %v3489 = vrcp.pop %v2977
  %v3490 = vrcp.pop %v2978
  %v3491 = vrcp.pop %v2979
  %v3492 = vrcp.pop %v2980
  %v3493 = vrcp.pop %v2981
  %v3494 = vrcp.pop %v2982
  %v3495 = vrcp.pop %v2983
  %v3496 = vrcp.pop %v2984
  %v3497 = vrcp.pop %v2985
  %v3498 = vrcp.pop %v2986
  %v3499 = vrcp.pop %v2987
  %v3500 = vrcp.pop %v2988
  %v3501 = vrcp.pop %v2989
  %v3502 = vrcp.pop %v2990
  %v3503 = vrcp.pop %v2991
  %v3504 = vrcp.pop %v2992
  %v3505 = vrcp.pop %v2993
  %v3506 = vrcp.pop %v2994
  %v3507 = vrcp.pop %v2995
  %v3508 = vrcp.pop %v2996
  %v3509 = vrcp.pop %v2997
  %v3510 = vrcp.pop %v2998
  %v3511 = vrcp.pop %v2999
  %v3512 = vrcp.pop %v3000
  %v3513 = vrcp.pop %v3001
  %v3514 = vrcp.pop %v3002
  %v3515 = vrcp.pop %v3003
  %v3516 = vrcp.pop %v3004
  %v3517 = vrcp.pop %v3005
  %v3518 = vrcp.pop %v3006
  %v3519 = vrcp.pop %v3007
  %v3520 = vrcp.pop %v3008
  %v3521 = vrcp.pop %v3009
  %v3522 = vrcp.pop %v3010
  %v3523 = vrcp.pop %v3011
  %v3524 = vrcp.pop %v3012
  %v3525 = vrcp.pop %v3013
  %v3526 = vrcp.pop %v3014
  %v3527 = vrcp.pop %v3015
  %v3528 = vrcp.pop %v3016
  %v3529 = vrcp.pop %v3017
  %v3530 = vrcp.pop %v3018
  %v3531 = vrcp.pop %v3019
  %v3532 = vrcp.pop %v3020
  %v3533 = vrcp.pop %v3021
  %v3534 = vrcp.pop %v3022
  %v3535 = vrcp.pop %v3023
  %v3536 = vrcp.pop %v3024
  %v3537 = vrcp.pop %v3025
  %v3538 = vrcp.pop %v3026
  %v3539 = vrcp.pop %v3027
  %v3540 = vrcp.pop %v3028
  %v3541 = vrcp.pop %v3029
  %v3542 = vrcp.pop %v3030
  %v3543 = vrcp.pop %v3031
  %v3544 = vrcp.pop %v3032
  %v3545 = vrcp.pop %v3033
  %v3546 = vrcp.pop %v3034
  %v3547 = vrcp.pop %v3035
  %v3548 = vrcp.pop %v3036
  %v3549 = vrcp.pop %v3037
  %v3550 = vrcp.pop %v3038
  %v3551 = vrcp.pop %v3039
  %v3552 = vrcp.pop %v3040
  %v3553 = vrcp.pop %v3041
  %v3554 = vrcp.pop %v3042
  %v3555 = vrcp.pop %v3043
  %v3556 = vrcp.pop %v3044
  %v3557 = vrcp.pop %v3045
  %v3558 = vrcp.pop %v3046
  %v3559 = vrcp.pop %v3047
  %v3560 = vrcp.pop %v3048
  %v3561 = vrcp.pop %v3049
  %v3562 = vrcp.pop %v3050
  %v3563 = vrcp.pop %v3051
  %v3564 = vrcp.pop %v3052
  %v3565 = vrcp.pop %v3053
  %v3566 = vrcp.pop %v3054
  %v3567 = vrcp.pop %v3055
  %v3568 = vrcp.pop %v3056
  %v3569 = vrcp.pop %v3057
  %v3570 = vrcp.pop %v3058
  %v3571 = vrcp.pop %v3059
  %v3572 = vrcp.pop %v3060
  %v3573 = vrcp.pop %v3061
  %v3574 = vrcp.pop %v3062
  %v3575 = vrcp.pop %v3063
  %v3576 = vrcp.pop %v3064
  %v3577 = vrcp.pop %v3065
  %v3578 = vrcp.pop %v3066
  %v3579 = vrcp.pop %v3067
  %v3580 = vrcp.pop %v3068
  %v3581 = vrcp.pop %v3069
  %v3582 = vrcp.pop %v3070
  %v3583 = vrcp.pop %v3071
  %v3584 = vrcp.pop %v3072
  %v3585 = vrcp.pop %v3073
  %v3586 = vrcp.pop %v3074
  %v3587 = vrcp.pop %v3075
  %v3588 = vrcp.pop %v3076
  %v3589 = vrcp.pop %v3077
  %v3590 = vrcp.pop %v3078
  %v3591 = vrcp.pop %v3079
  %v3592 = vrcp.pop %v3080
  %v3593 = vrcp.pop %v3081
  %v3594 = vrcp.pop %v3082
  %v3595 = vrcp.pop %v3083
  %v3596 = vrcp.pop %v3084
  %v3597 = vrcp.pop %v3085
  %v3598 = vrcp.pop %v3086
  %v3599 = vrcp.pop %v3087
  %v3600 = vrcp.pop %v3088
  %v3601 = vrcp.pop %v3089
  %v3602 = vrcp.pop %v3090
  %v3603 = vrcp.pop %v3091
  %v3604 = vrcp.pop %v3092
  %v3605 = vrcp.pop %v3093
  %v3606 = vrcp.pop %v3094
  %v3607 = vrcp.pop %v3095
  %v3608 = vrcp.pop %v3096
  %v3609 = vrcp.pop %v3097
  %v3610 = vrcp.pop %v3098
  %v3611 = vrcp.pop %v3099
  %v3612 = vrcp.pop %v3100
  %v3613 = vrcp.pop %v3101
  %v3614 = vrcp.pop %v3102
  %v3615 = vrcp.pop %v3103
  %v3616 = vrcp.pop %v3104
  %v3617 = vrcp.pop %v3105
  %v3618 = vrcp.pop %v3106
  %v3619 = vrcp.pop %v3107
  %v3620 = vrcp.pop %v3108
  %v3621 = vrcp.pop %v3109
  %v3622 = vrcp.pop %v3110
  %v3623 = vrcp.pop %v3111
  %v3624 = vrcp.pop %v3112
  %v3625 = vrcp.pop %v3113
  %v3626 = vrcp.pop %v3114
  %v3627 = vrcp.pop %v3115
  %v3628 = vrcp.pop %v3116
  %v3629 = vrcp.pop %v3117
  %v3630 = vrcp.pop %v3118
  %v3631 = vrcp.pop %v3119
  %v3632 = vrcp.pop %v3120
  %v3633 = vrcp.pop %v3121
  %v3634 = vrcp.pop %v3122
  %v3635 = vrcp.pop %v3123
  %v3636 = vrcp.pop %v3124
  %v3637 = vrcp.pop %v3125
  %v3638 = vmul.f32 %v2614, %v3126
  %v3639 = vmul.f32 %v2615, %v3127
  %v3640 = vmul.f32 %v2616, %v3128
  %v3641 = vmul.f32 %v2617, %v3129
  %v3642 = vmul.f32 %v2618, %v3130
  %v3643 = vmul.f32 %v2619, %v3131
  %v3644 = vmul.f32 %v2620, %v3132
  %v3645 = vmul.f32 %v2621, %v3133
  %v3646 = vmul.f32 %v2622, %v3134
  %v3647 = vmul.f32 %v2623, %v3135
  %v3648 = vmul.f32 %v2624, %v3136
  %v3649 = vmul.f32 %v2625, %v3137
  %v3650 = vmul.f32 %v2626, %v3138
  %v3651 = vmul.f32 %v2627, %v3139
  %v3652 = vmul.f32 %v2628, %v3140
  %v3653 = vmul.f32 %v2629, %v3141
  %v3654 = vmul.f32 %v2630, %v3142
  %v3655 = vmul.f32 %v2631, %v3143
  %v3656 = vmul.f32 %v2632, %v3144
  %v3657 = vmul.f32 %v2633, %v3145
  %v3658 = vmul.f32 %v2634, %v3146
  %v3659 = vmul.f32 %v2635, %v3147
  %v3660 = vmul.f32 %v2636, %v3148
  %v3661 = vmul.f32 %v2637, %v3149
  %v3662 = vmul.f32 %v2638, %v3150
  %v3663 = vmul.f32 %v2639, %v3151
  %v3664 = vmul.f32 %v2640, %v3152
  %v3665 = vmul.f32 %v2641, %v3153
  %v3666 = vmul.f32 %v2642, %v3154
  %v3667 = vmul.f32 %v2643, %v3155
  %v3668 = vmul.f32 %v2644, %v3156
  %v3669 = vmul.f32 %v2645, %v3157
  %v3670 = vmul.f32 %v2646, %v3158
  %v3671 = vmul.f32 %v2647, %v3159
  %v3672 = vmul.f32 %v2648, %v3160
  %v3673 = vmul.f32 %v2649, %v3161
  %v3674 = vmul.f32 %v2650, %v3162
  %v3675 = vmul.f32 %v2651, %v3163
  %v3676 = vmul.f32 %v2652, %v3164
  %v3677 = vmul.f32 %v2653, %v3165
  %v3678 = vmul.f32 %v2654, %v3166
  %v3679 = vmul.f32 %v2655, %v3167
  %v3680 = vmul.f32 %v2656, %v3168
  %v3681 = vmul.f32 %v2657, %v3169
  %v3682 = vmul.f32 %v2658, %v3170
  %v3683 = vmul.f32 %v2659, %v3171
  %v3684 = vmul.f32 %v2660, %v3172
  %v3685 = vmul.f32 %v2661, %v3173
  %v3686 = vmul.f32 %v2662, %v3174
  %v3687 = vmul.f32 %v2663, %v3175
  %v3688 = vmul.f32 %v2664, %v3176
  %v3689 = vmul.f32 %v2665, %v3177
  %v3690 = vmul.f32 %v2666, %v3178
  %v3691 = vmul.f32 %v2667, %v3179
  %v3692 = vmul.f32 %v2668, %v3180
  %v3693 = vmul.f32 %v2669, %v3181
  %v3694 = vmul.f32 %v2670, %v3182
  %v3695 = vmul.f32 %v2671, %v3183
  %v3696 = vmul.f32 %v2672, %v3184
  %v3697 = vmul.f32 %v2673, %v3185
  %v3698 = vmul.f32 %v2674, %v3186
  %v3699 = vmul.f32 %v2675, %v3187
  %v3700 = vmul.f32 %v2676, %v3188
  %v3701 = vmul.f32 %v2677, %v3189
  %v3702 = vmul.f32 %v2678, %v3190
  %v3703 = vmul.f32 %v2679, %v3191
  %v3704 = vmul.f32 %v2680, %v3192
  %v3705 = vmul.f32 %v2681, %v3193
  %v3706 = vmul.f32 %v2682, %v3194
  %v3707 = vmul.f32 %v2683, %v3195
  %v3708 = vmul.f32 %v2684, %v3196
  %v3709 = vmul.f32 %v2685, %v3197
  %v3710 = vmul.f32 %v2686, %v3198
  %v3711 = vmul.f32 %v2687, %v3199
  %v3712 = vmul.f32 %v2688, %v3200
  %v3713 = vmul.f32 %v2689, %v3201
  %v3714 = vmul.f32 %v2690, %v3202
  %v3715 = vmul.f32 %v2691, %v3203
  %v3716 = vmul.f32 %v2692, %v3204
  %v3717 = vmul.f32 %v2693, %v3205
  %v3718 = vmul.f32 %v2694, %v3206
  %v3719 = vmul.f32 %v2695, %v3207
  %v3720 = vmul.f32 %v2696, %v3208
  %v3721 = vmul.f32 %v2697, %v3209
  %v3722 = vmul.f32 %v2698, %v3210
  %v3723 = vmul.f32 %v2699, %v3211
  %v3724 = vmul.f32 %v2700, %v3212
  %v3725 = vmul.f32 %v2701, %v3213
  %v3726 = vmul.f32 %v2702, %v3214
  %v3727 = vmul.f32 %v2703, %v3215
  %v3728 = vmul.f32 %v2704, %v3216
  %v3729 = vmul.f32 %v2705, %v3217
  %v3730 = vmul.f32 %v2706, %v3218
  %v3731 = vmul.f32 %v2707, %v3219
  %v3732 = vmul.f32 %v2708, %v3220
  %v3733 = vmul.f32 %v2709, %v3221
  %v3734 = vmul.f32 %v2710, %v3222
  %v3735 = vmul.f32 %v2711, %v3223
  %v3736 = vmul.f32 %v2712, %v3224
  %v3737 = vmul.f32 %v2713, %v3225
  %v3738 = vmul.f32 %v2714, %v3226
  %v3739 = vmul.f32 %v2715, %v3227
  %v3740 = vmul.f32 %v2716, %v3228
  %v3741 = vmul.f32 %v2717, %v3229
  %v3742 = vmul.f32 %v2718, %v3230
  %v3743 = vmul.f32 %v2719, %v3231
  %v3744 = vmul.f32 %v2720, %v3232
  %v3745 = vmul.f32 %v2721, %v3233
  %v3746 = vmul.f32 %v2722, %v3234
  %v3747 = vmul.f32 %v2723, %v3235
  %v3748 = vmul.f32 %v2724, %v3236
  %v3749 = vmul.f32 %v2725, %v3237
  %v3750 = vmul.f32 %v2726, %v3238
  %v3751 = vmul.f32 %v2727, %v3239
  %v3752 = vmul.f32 %v2728, %v3240
  %v3753 = vmul.f32 %v2729, %v3241
  %v3754 = vmul.f32 %v2730, %v3242
  %v3755 = vmul.f32 %v2731, %v3243
  %v3756 = vmul.f32 %v2732, %v3244
  %v3757 = vmul.f32 %v2733, %v3245
  %v3758 = vmul.f32 %v2734, %v3246
  %v3759 = vmul.f32 %v2735, %v3247
  %v3760 = vmul.f32 %v2736, %v3248
  %v3761 = vmul.f32 %v2737, %v3249
  %v3762 = vmul.f32 %v2738, %v3250
  %v3763 = vmul.f32 %v2739, %v3251
  %v3764 = vmul.f32 %v2740, %v3252
  %v3765 = vmul.f32 %v2741, %v3253
  %v3766 = vmul.f32 %v2742, %v3254
  %v3767 = vmul.f32 %v2743, %v3255
  %v3768 = vmul.f32 %v2744, %v3256
  %v3769 = vmul.f32 %v2745, %v3257
  %v3770 = vmul.f32 %v2746, %v3258
  %v3771 = vmul.f32 %v2747, %v3259
  %v3772 = vmul.f32 %v2748, %v3260
  %v3773 = vmul.f32 %v2749, %v3261
  %v3774 = vmul.f32 %v2750, %v3262
  %v3775 = vmul.f32 %v2751, %v3263
  %v3776 = vmul.f32 %v2752, %v3264
  %v3777 = vmul.f32 %v2753, %v3265
  %v3778 = vmul.f32 %v2754, %v3266
  %v3779 = vmul.f32 %v2755, %v3267
  %v3780 = vmul.f32 %v2756, %v3268
  %v3781 = vmul.f32 %v2757, %v3269
  %v3782 = vmul.f32 %v2758, %v3270
  %v3783 = vmul.f32 %v2759, %v3271
  %v3784 = vmul.f32 %v2760, %v3272
  %v3785 = vmul.f32 %v2761, %v3273
  %v3786 = vmul.f32 %v2762, %v3274
  %v3787 = vmul.f32 %v2763, %v3275
  %v3788 = vmul.f32 %v2764, %v3276
  %v3789 = vmul.f32 %v2765, %v3277
  %v3790 = vmul.f32 %v2766, %v3278
  %v3791 = vmul.f32 %v2767, %v3279
  %v3792 = vmul.f32 %v2768, %v3280
  %v3793 = vmul.f32 %v2769, %v3281
  %v3794 = vmul.f32 %v2770, %v3282
  %v3795 = vmul.f32 %v2771, %v3283
  %v3796 = vmul.f32 %v2772, %v3284
  %v3797 = vmul.f32 %v2773, %v3285
  %v3798 = vmul.f32 %v2774, %v3286
  %v3799 = vmul.f32 %v2775, %v3287
  %v3800 = vmul.f32 %v2776, %v3288
  %v3801 = vmul.f32 %v2777, %v3289
  %v3802 = vmul.f32 %v2778, %v3290
  %v3803 = vmul.f32 %v2779, %v3291
  %v3804 = vmul.f32 %v2780, %v3292
  %v3805 = vmul.f32 %v2781, %v3293
  %v3806 = vmul.f32 %v2782, %v3294
  %v3807 = vmul.f32 %v2783, %v3295
  %v3808 = vmul.f32 %v2784, %v3296
  %v3809 = vmul.f32 %v2785, %v3297
  %v3810 = vmul.f32 %v2786, %v3298
  %v3811 = vmul.f32 %v2787, %v3299
  %v3812 = vmul.f32 %v2788, %v3300
  %v3813 = vmul.f32 %v2789, %v3301
  %v3814 = vmul.f32 %v2790, %v3302
  %v3815 = vmul.f32 %v2791, %v3303
  %v3816 = vmul.f32 %v2792, %v3304
  %v3817 = vmul.f32 %v2793, %v3305
  %v3818 = vmul.f32 %v2794, %v3306
  %v3819 = vmul.f32 %v2795, %v3307
  %v3820 = vmul.f32 %v2796, %v3308
  %v3821 = vmul.f32 %v2797, %v3309
  %v3822 = vmul.f32 %v2798, %v3310
  %v3823 = vmul.f32 %v2799, %v3311
  %v3824 = vmul.f32 %v2800, %v3312
  %v3825 = vmul.f32 %v2801, %v3313
  %v3826 = vmul.f32 %v2802, %v3314
  %v3827 = vmul.f32 %v2803, %v3315
  %v3828 = vmul.f32 %v2804, %v3316
  %v3829 = vmul.f32 %v2805, %v3317
  %v3830 = vmul.f32 %v2806, %v3318
  %v3831 = vmul.f32 %v2807, %v3319
  %v3832 = vmul.f32 %v2808, %v3320
  %v3833 = vmul.f32 %v2809, %v3321
  %v3834 = vmul.f32 %v2810, %v3322
  %v3835 = vmul.f32 %v2811, %v3323
  %v3836 = vmul.f32 %v2812, %v3324
  %v3837 = vmul.f32 %v2813, %v3325
  %v3838 = vmul.f32 %v2814, %v3326
  %v3839 = vmul.f32 %v2815, %v3327
  %v3840 = vmul.f32 %v2816, %v3328
  %v3841 = vmul.f32 %v2817, %v3329
  %v3842 = vmul.f32 %v2818, %v3330
  %v3843 = vmul.f32 %v2819, %v3331
  %v3844 = vmul.f32 %v2820, %v3332
  %v3845 = vmul.f32 %v2821, %v3333
  %v3846 = vmul.f32 %v2822, %v3334
  %v3847 = vmul.f32 %v2823, %v3335
  %v3848 = vmul.f32 %v2824, %v3336
  %v3849 = vmul.f32 %v2825, %v3337
  %v3850 = vmul.f32 %v2826, %v3338
  %v3851 = vmul.f32 %v2827, %v3339
  %v3852 = vmul.f32 %v2828, %v3340
  %v3853 = vmul.f32 %v2829, %v3341
  %v3854 = vmul.f32 %v2830, %v3342
  %v3855 = vmul.f32 %v2831, %v3343
  %v3856 = vmul.f32 %v2832, %v3344
  %v3857 = vmul.f32 %v2833, %v3345
  %v3858 = vmul.f32 %v2834, %v3346
  %v3859 = vmul.f32 %v2835, %v3347
  %v3860 = vmul.f32 %v2836, %v3348
  %v3861 = vmul.f32 %v2837, %v3349
  %v3862 = vmul.f32 %v2838, %v3350
  %v3863 = vmul.f32 %v2839, %v3351
  %v3864 = vmul.f32 %v2840, %v3352
  %v3865 = vmul.f32 %v2841, %v3353
  %v3866 = vmul.f32 %v2842, %v3354
  %v3867 = vmul.f32 %v2843, %v3355
  %v3868 = vmul.f32 %v2844, %v3356
  %v3869 = vmul.f32 %v2845, %v3357
  %v3870 = vmul.f32 %v2846, %v3358
  %v3871 = vmul.f32 %v2847, %v3359
  %v3872 = vmul.f32 %v2848, %v3360
  %v3873 = vmul.f32 %v2849, %v3361
  %v3874 = vmul.f32 %v2850, %v3362
  %v3875 = vmul.f32 %v2851, %v3363
  %v3876 = vmul.f32 %v2852, %v3364
  %v3877 = vmul.f32 %v2853, %v3365
  %v3878 = vmul.f32 %v2854, %v3366
  %v3879 = vmul.f32 %v2855, %v3367
  %v3880 = vmul.f32 %v2856, %v3368
  %v3881 = vmul.f32 %v2857, %v3369
  %v3882 = vmul.f32 %v2858, %v3370
  %v3883 = vmul.f32 %v2859, %v3371
  %v3884 = vmul.f32 %v2860, %v3372
  %v3885 = vmul.f32 %v2861, %v3373
  %v3886 = vmul.f32 %v2862, %v3374
  %v3887 = vmul.f32 %v2863, %v3375
  %v3888 = vmul.f32 %v2864, %v3376
  %v3889 = vmul.f32 %v2865, %v3377
  %v3890 = vmul.f32 %v2866, %v3378
  %v3891 = vmul.f32 %v2867, %v3379
  %v3892 = vmul.f32 %v2868, %v3380
  %v3893 = vmul.f32 %v2869, %v3381
  %v3894 = vmul.f32 %v2870, %v3382
  %v3895 = vmul.f32 %v2871, %v3383
  %v3896 = vmul.f32 %v2872, %v3384
  %v3897 = vmul.f32 %v2873, %v3385
  %v3898 = vmul.f32 %v2874, %v3386
  %v3899 = vmul.f32 %v2875, %v3387
  %v3900 = vmul.f32 %v2876, %v3388
  %v3901 = vmul.f32 %v2877, %v3389
  %v3902 = vmul.f32 %v2878, %v3390
  %v3903 = vmul.f32 %v2879, %v3391
  %v3904 = vmul.f32 %v2880, %v3392
  %v3905 = vmul.f32 %v2881, %v3393
  %v3906 = vmul.f32 %v2882, %v3394
  %v3907 = vmul.f32 %v2883, %v3395
  %v3908 = vmul.f32 %v2884, %v3396
  %v3909 = vmul.f32 %v2885, %v3397
  %v3910 = vmul.f32 %v2886, %v3398
  %v3911 = vmul.f32 %v2887, %v3399
  %v3912 = vmul.f32 %v2888, %v3400
  %v3913 = vmul.f32 %v2889, %v3401
  %v3914 = vmul.f32 %v2890, %v3402
  %v3915 = vmul.f32 %v2891, %v3403
  %v3916 = vmul.f32 %v2892, %v3404
  %v3917 = vmul.f32 %v2893, %v3405
  %v3918 = vmul.f32 %v2894, %v3406
  %v3919 = vmul.f32 %v2895, %v3407
  %v3920 = vmul.f32 %v2896, %v3408
  %v3921 = vmul.f32 %v2897, %v3409
  %v3922 = vmul.f32 %v2898, %v3410
  %v3923 = vmul.f32 %v2899, %v3411
  %v3924 = vmul.f32 %v2900, %v3412
  %v3925 = vmul.f32 %v2901, %v3413
  %v3926 = vmul.f32 %v2902, %v3414
  %v3927 = vmul.f32 %v2903, %v3415
  %v3928 = vmul.f32 %v2904, %v3416
  %v3929 = vmul.f32 %v2905, %v3417
  %v3930 = vmul.f32 %v2906, %v3418
  %v3931 = vmul.f32 %v2907, %v3419
  %v3932 = vmul.f32 %v2908, %v3420
  %v3933 = vmul.f32 %v2909, %v3421
  %v3934 = vmul.f32 %v2910, %v3422
  %v3935 = vmul.f32 %v2911, %v3423
  %v3936 = vmul.f32 %v2912, %v3424
  %v3937 = vmul.f32 %v2913, %v3425
  %v3938 = vmul.f32 %v2914, %v3426
  %v3939 = vmul.f32 %v2915, %v3427
  %v3940 = vmul.f32 %v2916, %v3428
  %v3941 = vmul.f32 %v2917, %v3429
  %v3942 = vmul.f32 %v2918, %v3430
  %v3943 = vmul.f32 %v2919, %v3431
  %v3944 = vmul.f32 %v2920, %v3432
  %v3945 = vmul.f32 %v2921, %v3433
  %v3946 = vmul.f32 %v2922, %v3434
  %v3947 = vmul.f32 %v2923, %v3435
  %v3948 = vmul.f32 %v2924, %v3436
  %v3949 = vmul.f32 %v2925, %v3437
  %v3950 = vmul.f32 %v2926, %v3438
  %v3951 = vmul.f32 %v2927, %v3439
  %v3952 = vmul.f32 %v2928, %v3440
  %v3953 = vmul.f32 %v2929, %v3441
  %v3954 = vmul.f32 %v2930, %v3442
  %v3955 = vmul.f32 %v2931, %v3443
  %v3956 = vmul.f32 %v2932, %v3444
  %v3957 = vmul.f32 %v2933, %v3445
  %v3958 = vmul.f32 %v2934, %v3446
  %v3959 = vmul.f32 %v2935, %v3447
  %v3960 = vmul.f32 %v2936, %v3448
  %v3961 = vmul.f32 %v2937, %v3449
  %v3962 = vmul.f32 %v2938, %v3450
  %v3963 = vmul.f32 %v2939, %v3451
  %v3964 = vmul.f32 %v2940, %v3452
  %v3965 = vmul.f32 %v2941, %v3453
  %v3966 = vmul.f32 %v2942, %v3454
  %v3967 = vmul.f32 %v2943, %v3455
  %v3968 = vmul.f32 %v2944, %v3456
  %v3969 = vmul.f32 %v2945, %v3457
  %v3970 = vmul.f32 %v2946, %v3458
  %v3971 = vmul.f32 %v2947, %v3459
  %v3972 = vmul.f32 %v2948, %v3460
  %v3973 = vmul.f32 %v2949, %v3461
  %v3974 = vmul.f32 %v2950, %v3462
  %v3975 = vmul.f32 %v2951, %v3463
  %v3976 = vmul.f32 %v2952, %v3464
  %v3977 = vmul.f32 %v2953, %v3465
  %v3978 = vmul.f32 %v2954, %v3466
  %v3979 = vmul.f32 %v2955, %v3467
  %v3980 = vmul.f32 %v2956, %v3468
  %v3981 = vmul.f32 %v2957, %v3469
  %v3982 = vmul.f32 %v2958, %v3470
  %v3983 = vmul.f32 %v2959, %v3471
  %v3984 = vmul.f32 %v2960, %v3472
  %v3985 = vmul.f32 %v2961, %v3473
  %v3986 = vmul.f32 %v2962, %v3474
  %v3987 = vmul.f32 %v2963, %v3475
  %v3988 = vmul.f32 %v2964, %v3476
  %v3989 = vmul.f32 %v2965, %v3477
  %v3990 = vmul.f32 %v2966, %v3478
  %v3991 = vmul.f32 %v2967, %v3479
  %v3992 = vmul.f32 %v2968, %v3480
  %v3993 = vmul.f32 %v2969, %v3481
  %v3994 = vmul.f32 %v2970, %v3482
  %v3995 = vmul.f32 %v2971, %v3483
  %v3996 = vmul.f32 %v2972, %v3484
  %v3997 = vmul.f32 %v2973, %v3485
  %v3998 = vmul.f32 %v2974, %v3486
  %v3999 = vmul.f32 %v2975, %v3487
  %v4000 = vmul.f32 %v2976, %v3488
  %v4001 = vmul.f32 %v2977, %v3489
  %v4002 = vmul.f32 %v2978, %v3490
  %v4003 = vmul.f32 %v2979, %v3491
  %v4004 = vmul.f32 %v2980, %v3492
  %v4005 = vmul.f32 %v2981, %v3493
  %v4006 = vmul.f32 %v2982, %v3494
  %v4007 = vmul.f32 %v2983, %v3495
  %v4008 = vmul.f32 %v2984, %v3496
  %v4009 = vmul.f32 %v2985, %v3497
  %v4010 = vmul.f32 %v2986, %v3498
  %v4011 = vmul.f32 %v2987, %v3499
  %v4012 = vmul.f32 %v2988, %v3500
  %v4013 = vmul.f32 %v2989, %v3501
  %v4014 = vmul.f32 %v2990, %v3502
  %v4015 = vmul.f32 %v2991, %v3503
  %v4016 = vmul.f32 %v2992, %v3504
  %v4017 = vmul.f32 %v2993, %v3505
  %v4018 = vmul.f32 %v2994, %v3506
  %v4019 = vmul.f32 %v2995, %v3507
  %v4020 = vmul.f32 %v2996, %v3508
  %v4021 = vmul.f32 %v2997, %v3509
  %v4022 = vmul.f32 %v2998, %v3510
  %v4023 = vmul.f32 %v2999, %v3511
  %v4024 = vmul.f32 %v3000, %v3512
  %v4025 = vmul.f32 %v3001, %v3513
  %v4026 = vmul.f32 %v3002, %v3514
  %v4027 = vmul.f32 %v3003, %v3515
  %v4028 = vmul.f32 %v3004, %v3516
  %v4029 = vmul.f32 %v3005, %v3517
  %v4030 = vmul.f32 %v3006, %v3518
  %v4031 = vmul.f32 %v3007, %v3519
  %v4032 = vmul.f32 %v3008, %v3520
  %v4033 = vmul.f32 %v3009, %v3521
  %v4034 = vmul.f32 %v3010, %v3522
  %v4035 = vmul.f32 %v3011, %v3523
  %v4036 = vmul.f32 %v3012, %v3524
  %v4037 = vmul.f32 %v3013, %v3525
  %v4038 = vmul.f32 %v3014, %v3526
  %v4039 = vmul.f32 %v3015, %v3527
  %v4040 = vmul.f32 %v3016, %v3528
  %v4041 = vmul.f32 %v3017, %v3529
  %v4042 = vmul.f32 %v3018, %v3530
  %v4043 = vmul.f32 %v3019, %v3531
  %v4044 = vmul.f32 %v3020, %v3532
  %v4045 = vmul.f32 %v3021, %v3533
  %v4046 = vmul.f32 %v3022, %v3534
  %v4047 = vmul.f32 %v3023, %v3535
  %v4048 = vmul.f32 %v3024, %v3536
  %v4049 = vmul.f32 %v3025, %v3537
  %v4050 = vmul.f32 %v3026, %v3538
  %v4051 = vmul.f32 %v3027, %v3539
  %v4052 = vmul.f32 %v3028, %v3540
  %v4053 = vmul.f32 %v3029, %v3541
  %v4054 = vmul.f32 %v3030, %v3542
  %v4055 = vmul.f32 %v3031, %v3543
  %v4056 = vmul.f32 %v3032, %v3544
  %v4057 = vmul.f32 %v3033, %v3545
  %v4058 = vmul.f32 %v3034, %v3546
  %v4059 = vmul.f32 %v3035, %v3547
  %v4060 = vmul.f32 %v3036, %v3548
  %v4061 = vmul.f32 %v3037, %v3549
  %v4062 = vmul.f32 %v3038, %v3550
  %v4063 = vmul.f32 %v3039, %v3551
  %v4064 = vmul.f32 %v3040, %v3552
  %v4065 = vmul.f32 %v3041, %v3553
  %v4066 = vmul.f32 %v3042, %v3554
  %v4067 = vmul.f32 %v3043, %v3555
  %v4068 = vmul.f32 %v3044, %v3556
  %v4069 = vmul.f32 %v3045, %v3557
  %v4070 = vmul.f32 %v3046, %v3558
  %v4071 = vmul.f32 %v3047, %v3559
  %v4072 = vmul.f32 %v3048, %v3560
  %v4073 = vmul.f32 %v3049, %v3561
  %v4074 = vmul.f32 %v3050, %v3562
  %v4075 = vmul.f32 %v3051, %v3563
  %v4076 = vmul.f32 %v3052, %v3564
  %v4077 = vmul.f32 %v3053, %v3565
  %v4078 = vmul.f32 %v3054, %v3566
  %v4079 = vmul.f32 %v3055, %v3567
  %v4080 = vmul.f32 %v3056, %v3568
  %v4081 = vmul.f32 %v3057, %v3569
  %v4082 = vmul.f32 %v3058, %v3570
  %v4083 = vmul.f32 %v3059, %v3571
  %v4084 = vmul.f32 %v3060, %v3572
  %v4085 = vmul.f32 %v3061, %v3573
  %v4086 = vmul.f32 %v3062, %v3574
  %v4087 = vmul.f32 %v3063, %v3575
  %v4088 = vmul.f32 %v3064, %v3576
  %v4089 = vmul.f32 %v3065, %v3577
  %v4090 = vmul.f32 %v3066, %v3578
  %v4091 = vmul.f32 %v3067, %v3579
  %v4092 = vmul.f32 %v3068, %v3580
  %v4093 = vmul.f32 %v3069, %v3581
  %v4094 = vmul.f32 %v3070, %v3582
  %v4095 = vmul.f32 %v3071, %v3583
  %v4096 = vmul.f32 %v3072, %v3584
  %v4097 = vmul.f32 %v3073, %v3585
  %v4098 = vmul.f32 %v3074, %v3586
  %v4099 = vmul.f32 %v3075, %v3587
  %v4100 = vmul.f32 %v3076, %v3588
  %v4101 = vmul.f32 %v3077, %v3589
  %v4102 = vmul.f32 %v3078, %v3590
  %v4103 = vmul.f32 %v3079, %v3591
  %v4104 = vmul.f32 %v3080, %v3592
  %v4105 = vmul.f32 %v3081, %v3593
  %v4106 = vmul.f32 %v3082, %v3594
  %v4107 = vmul.f32 %v3083, %v3595
  %v4108 = vmul.f32 %v3084, %v3596
  %v4109 = vmul.f32 %v3085, %v3597
  %v4110 = vmul.f32 %v3086, %v3598
  %v4111 = vmul.f32 %v3087, %v3599
  %v4112 = vmul.f32 %v3088, %v3600
  %v4113 = vmul.f32 %v3089, %v3601
  %v4114 = vmul.f32 %v3090, %v3602
  %v4115 = vmul.f32 %v3091, %v3603
  %v4116 = vmul.f32 %v3092, %v3604
  %v4117 = vmul.f32 %v3093, %v3605
  %v4118 = vmul.f32 %v3094, %v3606
  %v4119 = vmul.f32 %v3095, %v3607
  %v4120 = vmul.f32 %v3096, %v3608
  %v4121 = vmul.f32 %v3097, %v3609
  %v4122 = vmul.f32 %v3098, %v3610
  %v4123 = vmul.f32 %v3099, %v3611
  %v4124 = vmul.f32 %v3100, %v3612
  %v4125 = vmul.f32 %v3101, %v3613
  %v4126 = vmul.f32 %v3102, %v3614
  %v4127 = vmul.f32 %v3103, %v3615
  %v4128 = vmul.f32 %v3104, %v3616
  %v4129 = vmul.f32 %v3105, %v3617
  %v4130 = vmul.f32 %v3106, %v3618
  %v4131 = vmul.f32 %v3107, %v3619
  %v4132 = vmul.f32 %v3108, %v3620
  %v4133 = vmul.f32 %v3109, %v3621
  %v4134 = vmul.f32 %v3110, %v3622
  %v4135 = vmul.f32 %v3111, %v3623
  %v4136 = vmul.f32 %v3112, %v3624
  %v4137 = vmul.f32 %v3113, %v3625
  %v4138 = vmul.f32 %v3114, %v3626
  %v4139 = vmul.f32 %v3115, %v3627
  %v4140 = vmul.f32 %v3116, %v3628
  %v4141 = vmul.f32 %v3117, %v3629
  %v4142 = vmul.f32 %v3118, %v3630
  %v4143 = vmul.f32 %v3119, %v3631
  %v4144 = vmul.f32 %v3120, %v3632
  %v4145 = vmul.f32 %v3121, %v3633
  %v4146 = vmul.f32 %v3122, %v3634
  %v4147 = vmul.f32 %v3123, %v3635
  %v4148 = vmul.f32 %v3124, %v3636
  %v4149 = vmul.f32 %v3125, %v3637
  %v4150 = vsub.f32 2.0, %v3638
  %v4151 = vsub.f32 2.0, %v3639
  %v4152 = vsub.f32 2.0, %v3640
  %v4153 = vsub.f32 2.0, %v3641
  %v4154 = vsub.f32 2.0, %v3642
  %v4155 = vsub.f32 2.0, %v3643
  %v4156 = vsub.f32 2.0, %v3644
  %v4157 = vsub.f32 2.0, %v3645
  %v4158 = vsub.f32 2.0, %v3646
  %v4159 = vsub.f32 2.0, %v3647
  %v4160 = vsub.f32 2.0, %v3648
  %v4161 = vsub.f32 2.0, %v3649
  %v4162 = vsub.f32 2.0, %v3650
  %v4163 = vsub.f32 2.0, %v3651
  %v4164 = vsub.f32 2.0, %v3652
  %v4165 = vsub.f32 2.0, %v3653
  %v4166 = vsub.f32 2.0, %v3654
  %v4167 = vsub.f32 2.0, %v3655
  %v4168 = vsub.f32 2.0, %v3656
  %v4169 = vsub.f32 2.0, %v3657
  %v4170 = vsub.f32 2.0, %v3658
  %v4171 = vsub.f32 2.0, %v3659
  %v4172 = vsub.f32 2.0, %v3660
  %v4173 = vsub.f32 2.0, %v3661
  %v4174 = vsub.f32 2.0, %v3662
  %v4175 = vsub.f32 2.0, %v3663
  %v4176 = vsub.f32 2.0, %v3664
  %v4177 = vsub.f32 2.0, %v3665
  %v4178 = vsub.f32 2.0, %v3666
  %v4179 = vsub.f32 2.0, %v3667
  %v4180 = vsub.f32 2.0, %v3668
  %v4181 = vsub.f32 2.0, %v3669
  %v4182 = vsub.f32 2.0, %v3670
  %v4183 = vsub.f32 2.0, %v3671
  %v4184 = vsub.f32 2.0, %v3672
  %v4185 = vsub.f32 2.0, %v3673
  %v4186 = vsub.f32 2.0, %v3674
  %v4187 = vsub.f32 2.0, %v3675
  %v4188 = vsub.f32 2.0, %v3676
  %v4189 = vsub.f32 2.0, %v3677
  %v4190 = vsub.f32 2.0, %v3678
  %v4191 = vsub.f32 2.0, %v3679
  %v4192 = vsub.f32 2.0, %v3680
  %v4193 = vsub.f32 2.0, %v3681
  %v4194 = vsub.f32 2.0, %v3682
  %v4195 = vsub.f32 2.0, %v3683
  %v4196 = vsub.f32 2.0, %v3684
  %v4197 = vsub.f32 2.0, %v3685
  %v4198 = vsub.f32 2.0, %v3686
  %v4199 = vsub.f32 2.0, %v3687
  %v4200 = vsub.f32 2.0, %v3688
  %v4201 = vsub.f32 2.0, %v3689
  %v4202 = vsub.f32 2.0, %v3690
  %v4203 = vsub.f32 2.0, %v3691
  %v4204 = vsub.f32 2.0, %v3692
  %v4205 = vsub.f32 2.0, %v3693
  %v4206 = vsub.f32 2.0, %v3694
  %v4207 = vsub.f32 2.0, %v3695
  %v4208 = vsub.f32 2.0, %v3696
  %v4209 = vsub.f32 2.0, %v3697
  %v4210 = vsub.f32 2.0, %v3698
  %v4211 = vsub.f32 2.0, %v3699
  %v4212 = vsub.f32 2.0, %v3700
  %v4213 = vsub.f32 2.0, %v3701
  %v4214 = vsub.f32 2.0, %v3702
  %v4215 = vsub.f32 2.0, %v3703
  %v4216 = vsub.f32 2.0, %v3704
  %v4217 = vsub.f32 2.0, %v3705
  %v4218 = vsub.f32 2.0, %v3706
  %v4219 = vsub.f32 2.0, %v3707
  %v4220 = vsub.f32 2.0, %v3708
  %v4221 = vsub.f32 2.0, %v3709
  %v4222 = vsub.f32 2.0, %v3710
  %v4223 = vsub.f32 2.0, %v3711
  %v4224 = vsub.f32 2.0, %v3712
  %v4225 = vsub.f32 2.0, %v3713
  %v4226 = vsub.f32 2.0, %v3714
  %v4227 = vsub.f32 2.0, %v3715
  %v4228 = vsub.f32 2.0, %v3716
  %v4229 = vsub.f32 2.0, %v3717
  %v4230 = vsub.f32 2.0, %v3718
  %v4231 = vsub.f32 2.0, %v3719
  %v4232 = vsub.f32 2.0, %v3720
  %v4233 = vsub.f32 2.0, %v3721
  %v4234 = vsub.f32 2.0, %v3722
  %v4235 = vsub.f32 2.0, %v3723
  %v4236 = vsub.f32 2.0, %v3724
  %v4237 = vsub.f32 2.0, %v3725
  %v4238 = vsub.f32 2.0, %v3726
  %v4239 = vsub.f32 2.0, %v3727
  %v4240 = vsub.f32 2.0, %v3728
  %v4241 = vsub.f32 2.0, %v3729
  %v4242 = vsub.f32 2.0, %v3730
  %v4243 = vsub.f32 2.0, %v3731
  %v4244 = vsub.f32 2.0, %v3732
  %v4245 = vsub.f32 2.0, %v3733
  %v4246 = vsub.f32 2.0, %v3734
  %v4247 = vsub.f32 2.0, %v3735
  %v4248 = vsub.f32 2.0, %v3736
  %v4249 = vsub.f32 2.0, %v3737
  %v4250 = vsub.f32 2.0, %v3738
  %v4251 = vsub.f32 2.0, %v3739
  %v4252 = vsub.f32 2.0, %v3740
  %v4253 = vsub.f32 2.0, %v3741
  %v4254 = vsub.f32 2.0, %v3742
  %v4255 = vsub.f32 2.0, %v3743
  %v4256 = vsub.f32 2.0, %v3744
  %v4257 = vsub.f32 2.0, %v3745
  %v4258 = vsub.f32 2.0, %v3746
  %v4259 = vsub.f32 2.0, %v3747
  %v4260 = vsub.f32 2.0, %v3748
  %v4261 = vsub.f32 2.0, %v3749
  %v4262 = vsub.f32 2.0, %v3750
  %v4263 = vsub.f32 2.0, %v3751
  %v4264 = vsub.f32 2.0, %v3752
  %v4265 = vsub.f32 2.0, %v3753
  %v4266 = vsub.f32 2.0, %v3754
  %v4267 = vsub.f32 2.0, %v3755
  %v4268 = vsub.f32 2.0, %v3756
  %v4269 = vsub.f32 2.0, %v3757
  %v4270 = vsub.f32 2.0, %v3758
  %v4271 = vsub.f32 2.0, %v3759
  %v4272 = vsub.f32 2.0, %v3760
  %v4273 = vsub.f32 2.0, %v3761
  %v4274 = vsub.f32 2.0, %v3762
  %v4275 = vsub.f32 2.0, %v3763
  %v4276 = vsub.f32 2.0, %v3764
  %v4277 = vsub.f32 2.0, %v3765
  %v4278 = vsub.f32 2.0, %v3766
  %v4279 = vsub.f32 2.0, %v3767
  %v4280 = vsub.f32 2.0, %v3768
  %v4281 = vsub.f32 2.0, %v3769
  %v4282 = vsub.f32 2.0, %v3770
  %v4283 = vsub.f32 2.0, %v3771
  %v4284 = vsub.f32 2.0, %v3772
  %v4285 = vsub.f32 2.0, %v3773
  %v4286 = vsub.f32 2.0, %v3774
  %v4287 = vsub.f32 2.0, %v3775
  %v4288 = vsub.f32 2.0, %v3776
  %v4289 = vsub.f32 2.0, %v3777
  %v4290 = vsub.f32 2.0, %v3778
  %v4291 = vsub.f32 2.0, %v3779
  %v4292 = vsub.f32 2.0, %v3780
  %v4293 = vsub.f32 2.0, %v3781
  %v4294 = vsub.f32 2.0, %v3782
  %v4295 = vsub.f32 2.0, %v3783
  %v4296 = vsub.f32 2.0, %v3784
  %v4297 = vsub.f32 2.0, %v3785
  %v4298 = vsub.f32 2.0, %v3786
  %v4299 = vsub.f32 2.0, %v3787
  %v4300 = vsub.f32 2.0, %v3788
  %v4301 = vsub.f32 2.0, %v3789
  %v4302 = vsub.f32 2.0, %v3790
  %v4303 = vsub.f32 2.0, %v3791
  %v4304 = vsub.f32 2.0, %v3792
  %v4305 = vsub.f32 2.0, %v3793
  %v4306 = vsub.f32 2.0, %v3794
  %v4307 = vsub.f32 2.0, %v3795
  %v4308 = vsub.f32 2.0, %v3796
  %v4309 = vsub.f32 2.0, %v3797
  %v4310 = vsub.f32 2.0, %v3798
  %v4311 = vsub.f32 2.0, %v3799
  %v4312 = vsub.f32 2.0, %v3800
  %v4313 = vsub.f32 2.0, %v3801
  %v4314 = vsub.f32 2.0, %v3802
  %v4315 = vsub.f32 2.0, %v3803
  %v4316 = vsub.f32 2.0, %v3804
  %v4317 = vsub.f32 2.0, %v3805
  %v4318 = vsub.f32 2.0, %v3806
  %v4319 = vsub.f32 2.0, %v3807
  %v4320 = vsub.f32 2.0, %v3808
  %v4321 = vsub.f32 2.0, %v3809
  %v4322 = vsub.f32 2.0, %v3810
  %v4323 = vsub.f32 2.0, %v3811
  %v4324 = vsub.f32 2.0, %v3812
  %v4325 = vsub.f32 2.0, %v3813
  %v4326 = vsub.f32 2.0, %v3814
  %v4327 = vsub.f32 2.0, %v3815
  %v4328 = vsub.f32 2.0, %v3816
  %v4329 = vsub.f32 2.0, %v3817
  %v4330 = vsub.f32 2.0, %v3818
  %v4331 = vsub.f32 2.0, %v3819
  %v4332 = vsub.f32 2.0, %v3820
  %v4333 = vsub.f32 2.0, %v3821
  %v4334 = vsub.f32 2.0, %v3822
  %v4335 = vsub.f32 2.0, %v3823
  %v4336 = vsub.f32 2.0, %v3824
  %v4337 = vsub.f32 2.0, %v3825
  %v4338 = vsub.f32 2.0, %v3826
  %v4339 = vsub.f32 2.0, %v3827
  %v4340 = vsub.f32 2.0, %v3828
  %v4341 = vsub.f32 2.0, %v3829
  %v4342 = vsub.f32 2.0, %v3830
  %v4343 = vsub.f32 2.0, %v3831
  %v4344 = vsub.f32 2.0, %v3832
  %v4345 = vsub.f32 2.0, %v3833
  %v4346 = vsub.f32 2.0, %v3834
  %v4347 = vsub.f32 2.0, %v3835
  %v4348 = vsub.f32 2.0, %v3836
  %v4349 = vsub.f32 2.0, %v3837
  %v4350 = vsub.f32 2.0, %v3838
  %v4351 = vsub.f32 2.0, %v3839
  %v4352 = vsub.f32 2.0, %v3840
  %v4353 = vsub.f32 2.0, %v3841
  %v4354 = vsub.f32 2.0, %v3842
  %v4355 = vsub.f32 2.0, %v3843
  %v4356 = vsub.f32 2.0, %v3844
  %v4357 = vsub.f32 2.0, %v3845
  %v4358 = vsub.f32 2.0, %v3846
  %v4359 = vsub.f32 2.0, %v3847
  %v4360 = vsub.f32 2.0, %v3848
  %v4361 = vsub.f32 2.0, %v3849
  %v4362 = vsub.f32 2.0, %v3850
  %v4363 = vsub.f32 2.0, %v3851
  %v4364 = vsub.f32 2.0, %v3852
  %v4365 = vsub.f32 2.0, %v3853
  %v4366 = vsub.f32 2.0, %v3854
  %v4367 = vsub.f32 2.0, %v3855
  %v4368 = vsub.f32 2.0, %v3856
  %v4369 = vsub.f32 2.0, %v3857
  %v4370 = vsub.f32 2.0, %v3858
  %v4371 = vsub.f32 2.0, %v3859
  %v4372 = vsub.f32 2.0, %v3860
  %v4373 = vsub.f32 2.0, %v3861
  %v4374 = vsub.f32 2.0, %v3862
  %v4375 = vsub.f32 2.0, %v3863
  %v4376 = vsub.f32 2.0, %v3864
  %v4377 = vsub.f32 2.0, %v3865
  %v4378 = vsub.f32 2.0, %v3866
  %v4379 = vsub.f32 2.0, %v3867
  %v4380 = vsub.f32 2.0, %v3868
  %v4381 = vsub.f32 2.0, %v3869
  %v4382 = vsub.f32 2.0, %v3870
  %v4383 = vsub.f32 2.0, %v3871
  %v4384 = vsub.f32 2.0, %v3872
  %v4385 = vsub.f32 2.0, %v3873
  %v4386 = vsub.f32 2.0, %v3874
  %v4387 = vsub.f32 2.0, %v3875
  %v4388 = vsub.f32 2.0, %v3876
  %v4389 = vsub.f32 2.0, %v3877
  %v4390 = vsub.f32 2.0, %v3878
  %v4391 = vsub.f32 2.0, %v3879
  %v4392 = vsub.f32 2.0, %v3880
  %v4393 = vsub.f32 2.0, %v3881
  %v4394 = vsub.f32 2.0, %v3882
  %v4395 = vsub.f32 2.0, %v3883
  %v4396 = vsub.f32 2.0, %v3884
  %v4397 = vsub.f32 2.0, %v3885
  %v4398 = vsub.f32 2.0, %v3886
  %v4399 = vsub.f32 2.0, %v3887
  %v4400 = vsub.f32 2.0, %v3888
  %v4401 = vsub.f32 2.0, %v3889
  %v4402 = vsub.f32 2.0, %v3890
  %v4403 = vsub.f32 2.0, %v3891
  %v4404 = vsub.f32 2.0, %v3892
  %v4405 = vsub.f32 2.0, %v3893
  %v4406 = vsub.f32 2.0, %v3894
  %v4407 = vsub.f32 2.0, %v3895
  %v4408 = vsub.f32 2.0, %v3896
  %v4409 = vsub.f32 2.0, %v3897
  %v4410 = vsub.f32 2.0, %v3898
  %v4411 = vsub.f32 2.0, %v3899
  %v4412 = vsub.f32 2.0, %v3900
  %v4413 = vsub.f32 2.0, %v3901
  %v4414 = vsub.f32 2.0, %v3902
  %v4415 = vsub.f32 2.0, %v3903
  %v4416 = vsub.f32 2.0, %v3904
  %v4417 = vsub.f32 2.0, %v3905
  %v4418 = vsub.f32 2.0, %v3906
  %v4419 = vsub.f32 2.0, %v3907
  %v4420 = vsub.f32 2.0, %v3908
  %v4421 = vsub.f32 2.0, %v3909
  %v4422 = vsub.f32 2.0, %v3910
  %v4423 = vsub.f32 2.0, %v3911
  %v4424 = vsub.f32 2.0, %v3912
  %v4425 = vsub.f32 2.0, %v3913
  %v4426 = vsub.f32 2.0, %v3914
  %v4427 = vsub.f32 2.0, %v3915
  %v4428 = vsub.f32 2.0, %v3916
  %v4429 = vsub.f32 2.0, %v3917
  %v4430 = vsub.f32 2.0, %v3918
  %v4431 = vsub.f32 2.0, %v3919
  %v4432 = vsub.f32 2.0, %v3920
  %v4433 = vsub.f32 2.0, %v3921
  %v4434 = vsub.f32 2.0, %v3922
  %v4435 = vsub.f32 2.0, %v3923
  %v4436 = vsub.f32 2.0, %v3924
  %v4437 = vsub.f32 2.0, %v3925
  %v4438 = vsub.f32 2.0, %v3926
  %v4439 = vsub.f32 2.0, %v3927
  %v4440 = vsub.f32 2.0, %v3928
  %v4441 = vsub.f32 2.0, %v3929
  %v4442 = vsub.f32 2.0, %v3930
  %v4443 = vsub.f32 2.0, %v3931
  %v4444 = vsub.f32 2.0, %v3932
  %v4445 = vsub.f32 2.0, %v3933
  %v4446 = vsub.f32 2.0, %v3934
  %v4447 = vsub.f32 2.0, %v3935
  %v4448 = vsub.f32 2.0, %v3936
  %v4449 = vsub.f32 2.0, %v3937
  %v4450 = vsub.f32 2.0, %v3938
  %v4451 = vsub.f32 2.0, %v3939
  %v4452 = vsub.f32 2.0, %v3940
  %v4453 = vsub.f32 2.0, %v3941
  %v4454 = vsub.f32 2.0, %v3942
  %v4455 = vsub.f32 2.0, %v3943
  %v4456 = vsub.f32 2.0, %v3944
  %v4457 = vsub.f32 2.0, %v3945
  %v4458 = vsub.f32 2.0, %v3946
  %v4459 = vsub.f32 2.0, %v3947
  %v4460 = vsub.f32 2.0, %v3948
  %v4461 = vsub.f32 2.0, %v3949
  %v4462 = vsub.f32 2.0, %v3950
  %v4463 = vsub.f32 2.0, %v3951
  %v4464 = vsub.f32 2.0, %v3952
  %v4465 = vsub.f32 2.0, %v3953
  %v4466 = vsub.f32 2.0, %v3954
  %v4467 = vsub.f32 2.0, %v3955
  %v4468 = vsub.f32 2.0, %v3956
  %v4469 = vsub.f32 2.0, %v3957
  %v4470 = vsub.f32 2.0, %v3958
  %v4471 = vsub.f32 2.0, %v3959
  %v4472 = vsub.f32 2.0, %v3960
  %v4473 = vsub.f32 2.0, %v3961
  %v4474 = vsub.f32 2.0, %v3962
  %v4475 = vsub.f32 2.0, %v3963
  %v4476 = vsub.f32 2.0, %v3964
  %v4477 = vsub.f32 2.0, %v3965
  %v4478 = vsub.f32 2.0, %v3966
  %v4479 = vsub.f32 2.0, %v3967
  %v4480 = vsub.f32 2.0, %v3968
  %v4481 = vsub.f32 2.0, %v3969
  %v4482 = vsub.f32 2.0, %v3970
  %v4483 = vsub.f32 2.0, %v3971
  %v4484 = vsub.f32 2.0, %v3972
  %v4485 = vsub.f32 2.0, %v3973
  %v4486 = vsub.f32 2.0, %v3974
  %v4487 = vsub.f32 2.0, %v3975
  %v4488 = vsub.f32 2.0, %v3976
  %v4489 = vsub.f32 2.0, %v3977
  %v4490 = vsub.f32 2.0, %v3978
  %v4491 = vsub.f32 2.0, %v3979
  %v4492 = vsub.f32 2.0, %v3980
  %v4493 = vsub.f32 2.0, %v3981
  %v4494 = vsub.f32 2.0, %v3982
  %v4495 = vsub.f32 2.0, %v3983
  %v4496 = vsub.f32 2.0, %v3984
  %v4497 = vsub.f32 2.0, %v3985
  %v4498 = vsub.f32 2.0, %v3986
  %v4499 = vsub.f32 2.0, %v3987
  %v4500 = vsub.f32 2.0, %v3988
  %v4501 = vsub.f32 2.0, %v3989
  %v4502 = vsub.f32 2.0, %v3990
  %v4503 = vsub.f32 2.0, %v3991
  %v4504 = vsub.f32 2.0, %v3992
  %v4505 = vsub.f32 2.0, %v3993
  %v4506 = vsub.f32 2.0, %v3994
  %v4507 = vsub.f32 2.0, %v3995
  %v4508 = vsub.f32 2.0, %v3996
  %v4509 = vsub.f32 2.0, %v3997
  %v4510 = vsub.f32 2.0, %v3998
  %v4511 = vsub.f32 2.0, %v3999
  %v4512 = vsub.f32 2.0, %v4000
  %v4513 = vsub.f32 2.0, %v4001
  %v4514 = vsub.f32 2.0, %v4002
  %v4515 = vsub.f32 2.0, %v4003
  %v4516 = vsub.f32 2.0, %v4004
  %v4517 = vsub.f32 2.0, %v4005
  %v4518 = vsub.f32 2.0, %v4006
  %v4519 = vsub.f32 2.0, %v4007
  %v4520 = vsub.f32 2.0, %v4008
  %v4521 = vsub.f32 2.0, %v4009
  %v4522 = vsub.f32 2.0, %v4010
  %v4523 = vsub.f32 2.0, %v4011
  %v4524 = vsub.f32 2.0, %v4012
  %v4525 = vsub.f32 2.0, %v4013
  %v4526 = vsub.f32 2.0, %v4014
  %v4527 = vsub.f32 2.0, %v4015
  %v4528 = vsub.f32 2.0, %v4016
  %v4529 = vsub.f32 2.0, %v4017
  %v4530 = vsub.f32 2.0, %v4018
  %v4531 = vsub.f32 2.0, %v4019
  %v4532 = vsub.f32 2.0, %v4020
  %v4533 = vsub.f32 2.0, %v4021
  %v4534 = vsub.f32 2.0, %v4022
  %v4535 = vsub.f32 2.0, %v4023
  %v4536 = vsub.f32 2.0, %v4024
  %v4537 = vsub.f32 2.0, %v4025
  %v4538 = vsub.f32 2.0, %v4026
  %v4539 = vsub.f32 2.0, %v4027
  %v4540 = vsub.f32 2.0, %v4028
  %v4541 = vsub.f32 2.0, %v4029
  %v4542 = vsub.f32 2.0, %v4030
  %v4543 = vsub.f32 2.0, %v4031
  %v4544 = vsub.f32 2.0, %v4032
  %v4545 = vsub.f32 2.0, %v4033
  %v4546 = vsub.f32 2.0, %v4034
  %v4547 = vsub.f32 2.0, %v4035
  %v4548 = vsub.f32 2.0, %v4036
  %v4549 = vsub.f32 2.0, %v4037
  %v4550 = vsub.f32 2.0, %v4038
  %v4551 = vsub.f32 2.0, %v4039
  %v4552 = vsub.f32 2.0, %v4040
  %v4553 = vsub.f32 2.0, %v4041
  %v4554 = vsub.f32 2.0, %v4042
  %v4555 = vsub.f32 2.0, %v4043
  %v4556 = vsub.f32 2.0, %v4044
  %v4557 = vsub.f32 2.0, %v4045
  %v4558 = vsub.f32 2.0, %v4046
  %v4559 = vsub.f32 2.0, %v4047
  %v4560 = vsub.f32 2.0, %v4048
  %v4561 = vsub.f32 2.0, %v4049
  %v4562 = vsub.f32 2.0, %v4050
  %v4563 = vsub.f32 2.0, %v4051
  %v4564 = vsub.f32 2.0, %v4052
  %v4565 = vsub.f32 2.0, %v4053
  %v4566 = vsub.f32 2.0, %v4054
  %v4567 = vsub.f32 2.0, %v4055
  %v4568 = vsub.f32 2.0, %v4056
  %v4569 = vsub.f32 2.0, %v4057
  %v4570 = vsub.f32 2.0, %v4058
  %v4571 = vsub.f32 2.0, %v4059
  %v4572 = vsub.f32 2.0, %v4060
  %v4573 = vsub.f32 2.0, %v4061
  %v4574 = vsub.f32 2.0, %v4062
  %v4575 = vsub.f32 2.0, %v4063
  %v4576 = vsub.f32 2.0, %v4064
  %v4577 = vsub.f32 2.0, %v4065
  %v4578 = vsub.f32 2.0, %v4066
  %v4579 = vsub.f32 2.0, %v4067
  %v4580 = vsub.f32 2.0, %v4068
  %v4581 = vsub.f32 2.0, %v4069
  %v4582 = vsub.f32 2.0, %v4070
  %v4583 = vsub.f32 2.0, %v4071
  %v4584 = vsub.f32 2.0, %v4072
  %v4585 = vsub.f32 2.0, %v4073
  %v4586 = vsub.f32 2.0, %v4074
  %v4587 = vsub.f32 2.0, %v4075
  %v4588 = vsub.f32 2.0, %v4076
  %v4589 = vsub.f32 2.0, %v4077
  %v4590 = vsub.f32 2.0, %v4078
  %v4591 = vsub.f32 2.0, %v4079
  %v4592 = vsub.f32 2.0, %v4080
  %v4593 = vsub.f32 2.0, %v4081
  %v4594 = vsub.f32 2.0, %v4082
  %v4595 = vsub.f32 2.0, %v4083
  %v4596 = vsub.f32 2.0, %v4084
  %v4597 = vsub.f32 2.0, %v4085
  %v4598 = vsub.f32 2.0, %v4086
  %v4599 = vsub.f32 2.0, %v4087
  %v4600 = vsub.f32 2.0, %v4088
  %v4601 = vsub.f32 2.0, %v4089
  %v4602 = vsub.f32 2.0, %v4090
  %v4603 = vsub.f32 2.0, %v4091
  %v4604 = vsub.f32 2.0, %v4092
  %v4605 = vsub.f32 2.0, %v4093
  %v4606 = vsub.f32 2.0, %v4094
  %v4607 = vsub.f32 2.0, %v4095
  %v4608 = vsub.f32 2.0, %v4096
  %v4609 = vsub.f32 2.0, %v4097
  %v4610 = vsub.f32 2.0, %v4098
  %v4611 = vsub.f32 2.0, %v4099
  %v4612 = vsub.f32 2.0, %v4100
  %v4613 = vsub.f32 2.0, %v4101
  %v4614 = vsub.f32 2.0, %v4102
  %v4615 = vsub.f32 2.0, %v4103
  %v4616 = vsub.f32 2.0, %v4104
  %v4617 = vsub.f32 2.0, %v4105
  %v4618 = vsub.f32 2.0, %v4106
  %v4619 = vsub.f32 2.0, %v4107
  %v4620 = vsub.f32 2.0, %v4108
  %v4621 = vsub.f32 2.0, %v4109
  %v4622 = vsub.f32 2.0, %v4110
  %v4623 = vsub.f32 2.0, %v4111
  %v4624 = vsub.f32 2.0, %v4112
  %v4625 = vsub.f32 2.0, %v4113
  %v4626 = vsub.f32 2.0, %v4114
  %v4627 = vsub.f32 2.0, %v4115
  %v4628 = vsub.f32 2.0, %v4116
  %v4629 = vsub.f32 2.0, %v4117
  %v4630 = vsub.f32 2.0, %v4118
  %v4631 = vsub.f32 2.0, %v4119
  %v4632 = vsub.f32 2.0, %v4120
  %v4633 = vsub.f32 2.0, %v4121
  %v4634 = vsub.f32 2.0, %v4122
  %v4635 = vsub.f32 2.0, %v4123
  %v4636 = vsub.f32 2.0, %v4124
  %v4637 = vsub.f32 2.0, %v4125
  %v4638 = vsub.f32 2.0, %v4126
  %v4639 = vsub.f32 2.0, %v4127
  %v4640 = vsub.f32 2.0, %v4128
  %v4641 = vsub.f32 2.0, %v4129
  %v4642 = vsub.f32 2.0, %v4130
  %v4643 = vsub.f32 2.0, %v4131
  %v4644 = vsub.f32 2.0, %v4132
  %v4645 = vsub.f32 2.0, %v4133
  %v4646 = vsub.f32 2.0, %v4134
  %v4647 = vsub.f32 2.0, %v4135
  %v4648 = vsub.f32 2.0, %v4136
  %v4649 = vsub.f32 2.0, %v4137
  %v4650 = vsub.f32 2.0, %v4138
  %v4651 = vsub.f32 2.0, %v4139
  %v4652 = vsub.f32 2.0, %v4140
  %v4653 = vsub.f32 2.0, %v4141
  %v4654 = vsub.f32 2.0, %v4142
  %v4655 = vsub.f32 2.0, %v4143
  %v4656 = vsub.f32 2.0, %v4144
  %v4657 = vsub.f32 2.0, %v4145
  %v4658 = vsub.f32 2.0, %v4146
  %v4659 = vsub.f32 2.0, %v4147
  %v4660 = vsub.f32 2.0, %v4148
  %v4661 = vsub.f32 2.0, %v4149
  %v4662 = vmul.f32 %v3126, %v4150
  %v4663 = vmul.f32 %v3127, %v4151
  %v4664 = vmul.f32 %v3128, %v4152
  %v4665 = vmul.f32 %v3129, %v4153
  %v4666 = vmul.f32 %v3130, %v4154
  %v4667 = vmul.f32 %v3131, %v4155
  %v4668 = vmul.f32 %v3132, %v4156
  %v4669 = vmul.f32 %v3133, %v4157
  %v4670 = vmul.f32 %v3134, %v4158
  %v4671 = vmul.f32 %v3135, %v4159
  %v4672 = vmul.f32 %v3136, %v4160
  %v4673 = vmul.f32 %v3137, %v4161
  %v4674 = vmul.f32 %v3138, %v4162
  %v4675 = vmul.f32 %v3139, %v4163
  %v4676 = vmul.f32 %v3140, %v4164
  %v4677 = vmul.f32 %v3141, %v4165
  %v4678 = vmul.f32 %v3142, %v4166
  %v4679 = vmul.f32 %v3143, %v4167
  %v4680 = vmul.f32 %v3144, %v4168
  %v4681 = vmul.f32 %v3145, %v4169
  %v4682 = vmul.f32 %v3146, %v4170
  %v4683 = vmul.f32 %v3147, %v4171
  %v4684 = vmul.f32 %v3148, %v4172
  %v4685 = vmul.f32 %v3149, %v4173
  %v4686 = vmul.f32 %v3150, %v4174
  %v4687 = vmul.f32 %v3151, %v4175
  %v4688 = vmul.f32 %v3152, %v4176
  %v4689 = vmul.f32 %v3153, %v4177
  %v4690 = vmul.f32 %v3154, %v4178
  %v4691 = vmul.f32 %v3155, %v4179
  %v4692 = vmul.f32 %v3156, %v4180
  %v4693 = vmul.f32 %v3157, %v4181
  %v4694 = vmul.f32 %v3158, %v4182
  %v4695 = vmul.f32 %v3159, %v4183
  %v4696 = vmul.f32 %v3160, %v4184
  %v4697 = vmul.f32 %v3161, %v4185
  %v4698 = vmul.f32 %v3162, %v4186
  %v4699 = vmul.f32 %v3163, %v4187
  %v4700 = vmul.f32 %v3164, %v4188
  %v4701 = vmul.f32 %v3165, %v4189
  %v4702 = vmul.f32 %v3166, %v4190
  %v4703 = vmul.f32 %v3167, %v4191
  %v4704 = vmul.f32 %v3168, %v4192
  %v4705 = vmul.f32 %v3169, %v4193
  %v4706 = vmul.f32 %v3170, %v4194
  %v4707 = vmul.f32 %v3171, %v4195
  %v4708 = vmul.f32 %v3172, %v4196
  %v4709 = vmul.f32 %v3173, %v4197
  %v4710 = vmul.f32 %v3174, %v4198
  %v4711 = vmul.f32 %v3175, %v4199
  %v4712 = vmul.f32 %v3176, %v4200
  %v4713 = vmul.f32 %v3177, %v4201
  %v4714 = vmul.f32 %v3178, %v4202
  %v4715 = vmul.f32 %v3179, %v4203
  %v4716 = vmul.f32 %v3180, %v4204
  %v4717 = vmul.f32 %v3181, %v4205
  %v4718 = vmul.f32 %v3182, %v4206
  %v4719 = vmul.f32 %v3183, %v4207
  %v4720 = vmul.f32 %v3184, %v4208
  %v4721 = vmul.f32 %v3185, %v4209
  %v4722 = vmul.f32 %v3186, %v4210
  %v4723 = vmul.f32 %v3187, %v4211
  %v4724 = vmul.f32 %v3188, %v4212
  %v4725 = vmul.f32 %v3189, %v4213
  %v4726 = vmul.f32 %v3190, %v4214
  %v4727 = vmul.f32 %v3191, %v4215
  %v4728 = vmul.f32 %v3192, %v4216
  %v4729 = vmul.f32 %v3193, %v4217
  %v4730 = vmul.f32 %v3194, %v4218
  %v4731 = vmul.f32 %v3195, %v4219
  %v4732 = vmul.f32 %v3196, %v4220
  %v4733 = vmul.f32 %v3197, %v4221
  %v4734 = vmul.f32 %v3198, %v4222
  %v4735 = vmul.f32 %v3199, %v4223
  %v4736 = vmul.f32 %v3200, %v4224
  %v4737 = vmul.f32 %v3201, %v4225
  %v4738 = vmul.f32 %v3202, %v4226
  %v4739 = vmul.f32 %v3203, %v4227
  %v4740 = vmul.f32 %v3204, %v4228
  %v4741 = vmul.f32 %v3205, %v4229
  %v4742 = vmul.f32 %v3206, %v4230
  %v4743 = vmul.f32 %v3207, %v4231
  %v4744 = vmul.f32 %v3208, %v4232
  %v4745 = vmul.f32 %v3209, %v4233
  %v4746 = vmul.f32 %v3210, %v4234
  %v4747 = vmul.f32 %v3211, %v4235
  %v4748 = vmul.f32 %v3212, %v4236
  %v4749 = vmul.f32 %v3213, %v4237
  %v4750 = vmul.f32 %v3214, %v4238
  %v4751 = vmul.f32 %v3215, %v4239
  %v4752 = vmul.f32 %v3216, %v4240
  %v4753 = vmul.f32 %v3217, %v4241
  %v4754 = vmul.f32 %v3218, %v4242
  %v4755 = vmul.f32 %v3219, %v4243
  %v4756 = vmul.f32 %v3220, %v4244
  %v4757 = vmul.f32 %v3221, %v4245
  %v4758 = vmul.f32 %v3222, %v4246
  %v4759 = vmul.f32 %v3223, %v4247
  %v4760 = vmul.f32 %v3224, %v4248
  %v4761 = vmul.f32 %v3225, %v4249
  %v4762 = vmul.f32 %v3226, %v4250
  %v4763 = vmul.f32 %v3227, %v4251
  %v4764 = vmul.f32 %v3228, %v4252
  %v4765 = vmul.f32 %v3229, %v4253
  %v4766 = vmul.f32 %v3230, %v4254
  %v4767 = vmul.f32 %v3231, %v4255
  %v4768 = vmul.f32 %v3232, %v4256
  %v4769 = vmul.f32 %v3233, %v4257
  %v4770 = vmul.f32 %v3234, %v4258
  %v4771 = vmul.f32 %v3235, %v4259
  %v4772 = vmul.f32 %v3236, %v4260
  %v4773 = vmul.f32 %v3237, %v4261
  %v4774 = vmul.f32 %v3238, %v4262
  %v4775 = vmul.f32 %v3239, %v4263
  %v4776 = vmul.f32 %v3240, %v4264
  %v4777 = vmul.f32 %v3241, %v4265
  %v4778 = vmul.f32 %v3242, %v4266
  %v4779 = vmul.f32 %v3243, %v4267
  %v4780 = vmul.f32 %v3244, %v4268
  %v4781 = vmul.f32 %v3245, %v4269
  %v4782 = vmul.f32 %v3246, %v4270
  %v4783 = vmul.f32 %v3247, %v4271
  %v4784 = vmul.f32 %v3248, %v4272
  %v4785 = vmul.f32 %v3249, %v4273
  %v4786 = vmul.f32 %v3250, %v4274
  %v4787 = vmul.f32 %v3251, %v4275
  %v4788 = vmul.f32 %v3252, %v4276
  %v4789 = vmul.f32 %v3253, %v4277
  %v4790 = vmul.f32 %v3254, %v4278
  %v4791 = vmul.f32 %v3255, %v4279
  %v4792 = vmul.f32 %v3256, %v4280
  %v4793 = vmul.f32 %v3257, %v4281
  %v4794 = vmul.f32 %v3258, %v4282
  %v4795 = vmul.f32 %v3259, %v4283
  %v4796 = vmul.f32 %v3260, %v4284
  %v4797 = vmul.f32 %v3261, %v4285
  %v4798 = vmul.f32 %v3262, %v4286
  %v4799 = vmul.f32 %v3263, %v4287
  %v4800 = vmul.f32 %v3264, %v4288
  %v4801 = vmul.f32 %v3265, %v4289
  %v4802 = vmul.f32 %v3266, %v4290
  %v4803 = vmul.f32 %v3267, %v4291
  %v4804 = vmul.f32 %v3268, %v4292
  %v4805 = vmul.f32 %v3269, %v4293
  %v4806 = vmul.f32 %v3270, %v4294
  %v4807 = vmul.f32 %v3271, %v4295
  %v4808 = vmul.f32 %v3272, %v4296
  %v4809 = vmul.f32 %v3273, %v4297
  %v4810 = vmul.f32 %v3274, %v4298
  %v4811 = vmul.f32 %v3275, %v4299
  %v4812 = vmul.f32 %v3276, %v4300
  %v4813 = vmul.f32 %v3277, %v4301
  %v4814 = vmul.f32 %v3278, %v4302
  %v4815 = vmul.f32 %v3279, %v4303
  %v4816 = vmul.f32 %v3280, %v4304
  %v4817 = vmul.f32 %v3281, %v4305
  %v4818 = vmul.f32 %v3282, %v4306
  %v4819 = vmul.f32 %v3283, %v4307
  %v4820 = vmul.f32 %v3284, %v4308
  %v4821 = vmul.f32 %v3285, %v4309
  %v4822 = vmul.f32 %v3286, %v4310
  %v4823 = vmul.f32 %v3287, %v4311
  %v4824 = vmul.f32 %v3288, %v4312
  %v4825 = vmul.f32 %v3289, %v4313
  %v4826 = vmul.f32 %v3290, %v4314
  %v4827 = vmul.f32 %v3291, %v4315
  %v4828 = vmul.f32 %v3292, %v4316
  %v4829 = vmul.f32 %v3293, %v4317
  %v4830 = vmul.f32 %v3294, %v4318
  %v4831 = vmul.f32 %v3295, %v4319
  %v4832 = vmul.f32 %v3296, %v4320
  %v4833 = vmul.f32 %v3297, %v4321
  %v4834 = vmul.f32 %v3298, %v4322
  %v4835 = vmul.f32 %v3299, %v4323
  %v4836 = vmul.f32 %v3300, %v4324
  %v4837 = vmul.f32 %v3301, %v4325
  %v4838 = vmul.f32 %v3302, %v4326
  %v4839 = vmul.f32 %v3303, %v4327
  %v4840 = vmul.f32 %v3304, %v4328
  %v4841 = vmul.f32 %v3305, %v4329
  %v4842 = vmul.f32 %v3306, %v4330
  %v4843 = vmul.f32 %v3307, %v4331
  %v4844 = vmul.f32 %v3308, %v4332
  %v4845 = vmul.f32 %v3309, %v4333
  %v4846 = vmul.f32 %v3310, %v4334
  %v4847 = vmul.f32 %v3311, %v4335
  %v4848 = vmul.f32 %v3312, %v4336
  %v4849 = vmul.f32 %v3313, %v4337
  %v4850 = vmul.f32 %v3314, %v4338
  %v4851 = vmul.f32 %v3315, %v4339
  %v4852 = vmul.f32 %v3316, %v4340
  %v4853 = vmul.f32 %v3317, %v4341
  %v4854 = vmul.f32 %v3318, %v4342
  %v4855 = vmul.f32 %v3319, %v4343
  %v4856 = vmul.f32 %v3320, %v4344
  %v4857 = vmul.f32 %v3321, %v4345
  %v4858 = vmul.f32 %v3322, %v4346
  %v4859 = vmul.f32 %v3323, %v4347
  %v4860 = vmul.f32 %v3324, %v4348
  %v4861 = vmul.f32 %v3325, %v4349
  %v4862 = vmul.f32 %v3326, %v4350
  %v4863 = vmul.f32 %v3327, %v4351
  %v4864 = vmul.f32 %v3328, %v4352
  %v4865 = vmul.f32 %v3329, %v4353
  %v4866 = vmul.f32 %v3330, %v4354
  %v4867 = vmul.f32 %v3331, %v4355
  %v4868 = vmul.f32 %v3332, %v4356
  %v4869 = vmul.f32 %v3333, %v4357
  %v4870 = vmul.f32 %v3334, %v4358
  %v4871 = vmul.f32 %v3335, %v4359
  %v4872 = vmul.f32 %v3336, %v4360
  %v4873 = vmul.f32 %v3337, %v4361
  %v4874 = vmul.f32 %v3338, %v4362
  %v4875 = vmul.f32 %v3339, %v4363
  %v4876 = vmul.f32 %v3340, %v4364
  %v4877 = vmul.f32 %v3341, %v4365
  %v4878 = vmul.f32 %v3342, %v4366
  %v4879 = vmul.f32 %v3343, %v4367
  %v4880 = vmul.f32 %v3344, %v4368
  %v4881 = vmul.f32 %v3345, %v4369
  %v4882 = vmul.f32 %v3346, %v4370
  %v4883 = vmul.f32 %v3347, %v4371
  %v4884 = vmul.f32 %v3348, %v4372
  %v4885 = vmul.f32 %v3349, %v4373
  %v4886 = vmul.f32 %v3350, %v4374
  %v4887 = vmul.f32 %v3351, %v4375
  %v4888 = vmul.f32 %v3352, %v4376
  %v4889 = vmul.f32 %v3353, %v4377
  %v4890 = vmul.f32 %v3354, %v4378
  %v4891 = vmul.f32 %v3355, %v4379
  %v4892 = vmul.f32 %v3356, %v4380
  %v4893 = vmul.f32 %v3357, %v4381
  %v4894 = vmul.f32 %v3358, %v4382
  %v4895 = vmul.f32 %v3359, %v4383
  %v4896 = vmul.f32 %v3360, %v4384
  %v4897 = vmul.f32 %v3361, %v4385
  %v4898 = vmul.f32 %v3362, %v4386
  %v4899 = vmul.f32 %v3363, %v4387
  %v4900 = vmul.f32 %v3364, %v4388
  %v4901 = vmul.f32 %v3365, %v4389
  %v4902 = vmul.f32 %v3366, %v4390
  %v4903 = vmul.f32 %v3367, %v4391
  %v4904 = vmul.f32 %v3368, %v4392
  %v4905 = vmul.f32 %v3369, %v4393
  %v4906 = vmul.f32 %v3370, %v4394
  %v4907 = vmul.f32 %v3371, %v4395
  %v4908 = vmul.f32 %v3372, %v4396
  %v4909 = vmul.f32 %v3373, %v4397
  %v4910 = vmul.f32 %v3374, %v4398
  %v4911 = vmul.f32 %v3375, %v4399
  %v4912 = vmul.f32 %v3376, %v4400
  %v4913 = vmul.f32 %v3377, %v4401
  %v4914 = vmul.f32 %v3378, %v4402
  %v4915 = vmul.f32 %v3379, %v4403
  %v4916 = vmul.f32 %v3380, %v4404
  %v4917 = vmul.f32 %v3381, %v4405
  %v4918 = vmul.f32 %v3382, %v4406
  %v4919 = vmul.f32 %v3383, %v4407
  %v4920 = vmul.f32 %v3384, %v4408
  %v4921 = vmul.f32 %v3385, %v4409
  %v4922 = vmul.f32 %v3386, %v4410
  %v4923 = vmul.f32 %v3387, %v4411
  %v4924 = vmul.f32 %v3388, %v4412
  %v4925 = vmul.f32 %v3389, %v4413
  %v4926 = vmul.f32 %v3390, %v4414
  %v4927 = vmul.f32 %v3391, %v4415
  %v4928 = vmul.f32 %v3392, %v4416
  %v4929 = vmul.f32 %v3393, %v4417
  %v4930 = vmul.f32 %v3394, %v4418
  %v4931 = vmul.f32 %v3395, %v4419
  %v4932 = vmul.f32 %v3396, %v4420
  %v4933 = vmul.f32 %v3397, %v4421
  %v4934 = vmul.f32 %v3398, %v4422
  %v4935 = vmul.f32 %v3399, %v4423
  %v4936 = vmul.f32 %v3400, %v4424
  %v4937 = vmul.f32 %v3401, %v4425
  %v4938 = vmul.f32 %v3402, %v4426
  %v4939 = vmul.f32 %v3403, %v4427
  %v4940 = vmul.f32 %v3404, %v4428
  %v4941 = vmul.f32 %v3405, %v4429
  %v4942 = vmul.f32 %v3406, %v4430
  %v4943 = vmul.f32 %v3407, %v4431
  %v4944 = vmul.f32 %v3408, %v4432
  %v4945 = vmul.f32 %v3409, %v4433
  %v4946 = vmul.f32 %v3410, %v4434
  %v4947 = vmul.f32 %v3411, %v4435
  %v4948 = vmul.f32 %v3412, %v4436
  %v4949 = vmul.f32 %v3413, %v4437
  %v4950 = vmul.f32 %v3414, %v4438
  %v4951 = vmul.f32 %v3415, %v4439
  %v4952 = vmul.f32 %v3416, %v4440
  %v4953 = vmul.f32 %v3417, %v4441
  %v4954 = vmul.f32 %v3418, %v4442
  %v4955 = vmul.f32 %v3419, %v4443
  %v4956 = vmul.f32 %v3420, %v4444
  %v4957 = vmul.f32 %v3421, %v4445
  %v4958 = vmul.f32 %v3422, %v4446
  %v4959 = vmul.f32 %v3423, %v4447
  %v4960 = vmul.f32 %v3424, %v4448
  %v4961 = vmul.f32 %v3425, %v4449
  %v4962 = vmul.f32 %v3426, %v4450
  %v4963 = vmul.f32 %v3427, %v4451
  %v4964 = vmul.f32 %v3428, %v4452
  %v4965 = vmul.f32 %v3429, %v4453
  %v4966 = vmul.f32 %v3430, %v4454
  %v4967 = vmul.f32 %v3431, %v4455
  %v4968 = vmul.f32 %v3432, %v4456
  %v4969 = vmul.f32 %v3433, %v4457
  %v4970 = vmul.f32 %v3434, %v4458
  %v4971 = vmul.f32 %v3435, %v4459
  %v4972 = vmul.f32 %v3436, %v4460
  %v4973 = vmul.f32 %v3437, %v4461
  %v4974 = vmul.f32 %v3438, %v4462
  %v4975 = vmul.f32 %v3439, %v4463
  %v4976 = vmul.f32 %v3440, %v4464
  %v4977 = vmul.f32 %v3441, %v4465
  %v4978 = vmul.f32 %v3442, %v4466
  %v4979 = vmul.f32 %v3443, %v4467
  %v4980 = vmul.f32 %v3444, %v4468
  %v4981 = vmul.f32 %v3445, %v4469
  %v4982 = vmul.f32 %v3446, %v4470
  %v4983 = vmul.f32 %v3447, %v4471
  %v4984 = vmul.f32 %v3448, %v4472
  %v4985 = vmul.f32 %v3449, %v4473
  %v4986 = vmul.f32 %v3450, %v4474
  %v4987 = vmul.f32 %v3451, %v4475
  %v4988 = vmul.f32 %v3452, %v4476
  %v4989 = vmul.f32 %v3453, %v4477
  %v4990 = vmul.f32 %v3454, %v4478
  %v4991 = vmul.f32 %v3455, %v4479
  %v4992 = vmul.f32 %v3456, %v4480
  %v4993 = vmul.f32 %v3457, %v4481
  %v4994 = vmul.f32 %v3458, %v4482
  %v4995 = vmul.f32 %v3459, %v4483
  %v4996 = vmul.f32 %v3460, %v4484
  %v4997 = vmul.f32 %v3461, %v4485
  %v4998 = vmul.f32 %v3462, %v4486
  %v4999 = vmul.f32 %v3463, %v4487
  %v5000 = vmul.f32 %v3464, %v4488
  %v5001 = vmul.f32 %v3465, %v4489
  %v5002 = vmul.f32 %v3466, %v4490
  %v5003 = vmul.f32 %v3467, %v4491
  %v5004 = vmul.f32 %v3468, %v4492
  %v5005 = vmul.f32 %v3469, %v4493
  %v5006 = vmul.f32 %v3470, %v4494
  %v5007 = vmul.f32 %v3471, %v4495
  %v5008 = vmul.f32 %v3472, %v4496
  %v5009 = vmul.f32 %v3473, %v4497
  %v5010 = vmul.f32 %v3474, %v4498
  %v5011 = vmul.f32 %v3475, %v4499
  %v5012 = vmul.f32 %v3476, %v4500
  %v5013 = vmul.f32 %v3477, %v4501
  %v5014 = vmul.f32 %v3478, %v4502
  %v5015 = vmul.f32 %v3479, %v4503
  %v5016 = vmul.f32 %v3480, %v4504
  %v5017 = vmul.f32 %v3481, %v4505
  %v5018 = vmul.f32 %v3482, %v4506
  %v5019 = vmul.f32 %v3483, %v4507
  %v5020 = vmul.f32 %v3484, %v4508
  %v5021 = vmul.f32 %v3485, %v4509
  %v5022 = vmul.f32 %v3486, %v4510
  %v5023 = vmul.f32 %v3487, %v4511
  %v5024 = vmul.f32 %v3488, %v4512
  %v5025 = vmul.f32 %v3489, %v4513
  %v5026 = vmul.f32 %v3490, %v4514
  %v5027 = vmul.f32 %v3491, %v4515
  %v5028 = vmul.f32 %v3492, %v4516
  %v5029 = vmul.f32 %v3493, %v4517
  %v5030 = vmul.f32 %v3494, %v4518
  %v5031 = vmul.f32 %v3495, %v4519
  %v5032 = vmul.f32 %v3496, %v4520
  %v5033 = vmul.f32 %v3497, %v4521
  %v5034 = vmul.f32 %v3498, %v4522
  %v5035 = vmul.f32 %v3499, %v4523
  %v5036 = vmul.f32 %v3500, %v4524
  %v5037 = vmul.f32 %v3501, %v4525
  %v5038 = vmul.f32 %v3502, %v4526
  %v5039 = vmul.f32 %v3503, %v4527
  %v5040 = vmul.f32 %v3504, %v4528
  %v5041 = vmul.f32 %v3505, %v4529
  %v5042 = vmul.f32 %v3506, %v4530
  %v5043 = vmul.f32 %v3507, %v4531
  %v5044 = vmul.f32 %v3508, %v4532
  %v5045 = vmul.f32 %v3509, %v4533
  %v5046 = vmul.f32 %v3510, %v4534
  %v5047 = vmul.f32 %v3511, %v4535
  %v5048 = vmul.f32 %v3512, %v4536
  %v5049 = vmul.f32 %v3513, %v4537
  %v5050 = vmul.f32 %v3514, %v4538
  %v5051 = vmul.f32 %v3515, %v4539
  %v5052 = vmul.f32 %v3516, %v4540
  %v5053 = vmul.f32 %v3517, %v4541
  %v5054 = vmul.f32 %v3518, %v4542
  %v5055 = vmul.f32 %v3519, %v4543
  %v5056 = vmul.f32 %v3520, %v4544
  %v5057 = vmul.f32 %v3521, %v4545
  %v5058 = vmul.f32 %v3522, %v4546
  %v5059 = vmul.f32 %v3523, %v4547
  %v5060 = vmul.f32 %v3524, %v4548
  %v5061 = vmul.f32 %v3525, %v4549
  %v5062 = vmul.f32 %v3526, %v4550
  %v5063 = vmul.f32 %v3527, %v4551
  %v5064 = vmul.f32 %v3528, %v4552
  %v5065 = vmul.f32 %v3529, %v4553
  %v5066 = vmul.f32 %v3530, %v4554
  %v5067 = vmul.f32 %v3531, %v4555
  %v5068 = vmul.f32 %v3532, %v4556
  %v5069 = vmul.f32 %v3533, %v4557
  %v5070 = vmul.f32 %v3534, %v4558
  %v5071 = vmul.f32 %v3535, %v4559
  %v5072 = vmul.f32 %v3536, %v4560
  %v5073 = vmul.f32 %v3537, %v4561
  %v5074 = vmul.f32 %v3538, %v4562
  %v5075 = vmul.f32 %v3539, %v4563
  %v5076 = vmul.f32 %v3540, %v4564
  %v5077 = vmul.f32 %v3541, %v4565
  %v5078 = vmul.f32 %v3542, %v4566
  %v5079 = vmul.f32 %v3543, %v4567
  %v5080 = vmul.f32 %v3544, %v4568
  %v5081 = vmul.f32 %v3545, %v4569
  %v5082 = vmul.f32 %v3546, %v4570
  %v5083 = vmul.f32 %v3547, %v4571
  %v5084 = vmul.f32 %v3548, %v4572
  %v5085 = vmul.f32 %v3549, %v4573
  %v5086 = vmul.f32 %v3550, %v4574
  %v5087 = vmul.f32 %v3551, %v4575
  %v5088 = vmul.f32 %v3552, %v4576
  %v5089 = vmul.f32 %v3553, %v4577
  %v5090 = vmul.f32 %v3554, %v4578
  %v5091 = vmul.f32 %v3555, %v4579
  %v5092 = vmul.f32 %v3556, %v4580
  %v5093 = vmul.f32 %v3557, %v4581
  %v5094 = vmul.f32 %v3558, %v4582
  %v5095 = vmul.f32 %v3559, %v4583
  %v5096 = vmul.f32 %v3560, %v4584
  %v5097 = vmul.f32 %v3561, %v4585
  %v5098 = vmul.f32 %v3562, %v4586
  %v5099 = vmul.f32 %v3563, %v4587
  %v5100 = vmul.f32 %v3564, %v4588
  %v5101 = vmul.f32 %v3565, %v4589
  %v5102 = vmul.f32 %v3566, %v4590
  %v5103 = vmul.f32 %v3567, %v4591
  %v5104 = vmul.f32 %v3568, %v4592
  %v5105 = vmul.f32 %v3569, %v4593
  %v5106 = vmul.f32 %v3570, %v4594
  %v5107 = vmul.f32 %v3571, %v4595
  %v5108 = vmul.f32 %v3572, %v4596
  %v5109 = vmul.f32 %v3573, %v4597
  %v5110 = vmul.f32 %v3574, %v4598
  %v5111 = vmul.f32 %v3575, %v4599
  %v5112 = vmul.f32 %v3576, %v4600
  %v5113 = vmul.f32 %v3577, %v4601
  %v5114 = vmul.f32 %v3578, %v4602
  %v5115 = vmul.f32 %v3579, %v4603
  %v5116 = vmul.f32 %v3580, %v4604
  %v5117 = vmul.f32 %v3581, %v4605
  %v5118 = vmul.f32 %v3582, %v4606
  %v5119 = vmul.f32 %v3583, %v4607
  %v5120 = vmul.f32 %v3584, %v4608
  %v5121 = vmul.f32 %v3585, %v4609
  %v5122 = vmul.f32 %v3586, %v4610
  %v5123 = vmul.f32 %v3587, %v4611
  %v5124 = vmul.f32 %v3588, %v4612
  %v5125 = vmul.f32 %v3589, %v4613
  %v5126 = vmul.f32 %v3590, %v4614
  %v5127 = vmul.f32 %v3591, %v4615
  %v5128 = vmul.f32 %v3592, %v4616
  %v5129 = vmul.f32 %v3593, %v4617
  %v5130 = vmul.f32 %v3594, %v4618
  %v5131 = vmul.f32 %v3595, %v4619
  %v5132 = vmul.f32 %v3596, %v4620
  %v5133 = vmul.f32 %v3597, %v4621
  %v5134 = vmul.f32 %v3598, %v4622
  %v5135 = vmul.f32 %v3599, %v4623
  %v5136 = vmul.f32 %v3600, %v4624
  %v5137 = vmul.f32 %v3601, %v4625
  %v5138 = vmul.f32 %v3602, %v4626
  %v5139 = vmul.f32 %v3603, %v4627
  %v5140 = vmul.f32 %v3604, %v4628
  %v5141 = vmul.f32 %v3605, %v4629
  %v5142 = vmul.f32 %v3606, %v4630
  %v5143 = vmul.f32 %v3607, %v4631
  %v5144 = vmul.f32 %v3608, %v4632
  %v5145 = vmul.f32 %v3609, %v4633
  %v5146 = vmul.f32 %v3610, %v4634
  %v5147 = vmul.f32 %v3611, %v4635
  %v5148 = vmul.f32 %v3612, %v4636
  %v5149 = vmul.f32 %v3613, %v4637
  %v5150 = vmul.f32 %v3614, %v4638
  %v5151 = vmul.f32 %v3615, %v4639
  %v5152 = vmul.f32 %v3616, %v4640
  %v5153 = vmul.f32 %v3617, %v4641
  %v5154 = vmul.f32 %v3618, %v4642
  %v5155 = vmul.f32 %v3619, %v4643
  %v5156 = vmul.f32 %v3620, %v4644
  %v5157 = vmul.f32 %v3621, %v4645
  %v5158 = vmul.f32 %v3622, %v4646
  %v5159 = vmul.f32 %v3623, %v4647
  %v5160 = vmul.f32 %v3624, %v4648
  %v5161 = vmul.f32 %v3625, %v4649
  %v5162 = vmul.f32 %v3626, %v4650
  %v5163 = vmul.f32 %v3627, %v4651
  %v5164 = vmul.f32 %v3628, %v4652
  %v5165 = vmul.f32 %v3629, %v4653
  %v5166 = vmul.f32 %v3630, %v4654
  %v5167 = vmul.f32 %v3631, %v4655
  %v5168 = vmul.f32 %v3632, %v4656
  %v5169 = vmul.f32 %v3633, %v4657
  %v5170 = vmul.f32 %v3634, %v4658
  %v5171 = vmul.f32 %v3635, %v4659
  %v5172 = vmul.f32 %v3636, %v4660
  %v5173 = vmul.f32 %v3637, %v4661
  %v5190 = vcombine.high %v30, %v30
  %v5192 = vunpack.c.l.s4 1966171168
  %v5193 = vunpack.c.0.s8 %v5192
  %v5194 = vlaneseq
  %v5195 = vshrl.u32 %v5194, 7
  %v5196 = vsub.s32 %v5193, %v5195
  %v5197 = vrot.slane %v30, %v5196
  %v5199 = vunpack.c.l.s4 1966171168
  %v5200 = vunpack.c.0.s8 %v5199
  %v5201 = vlaneseq
  %v5202 = vshrl.u32 %v5201, 7
  %v5203 = vsub.s32 %v5200, %v5202
  %v5204 = vrot.slane %v5190, %v5203
  %v5205 = vcombine.high %v5197, %v5197
  %v5206 = vcombine.high %v5204, %v5204
  %v5208 = vunpack.c.l.s4 1966171168
  %v5209 = vunpack.c.0.s8 %v5208
  %v5210 = vlaneseq
  %v5211 = vshrl.u32 %v5210, 7
  %v5212 = vsub.s32 %v5209, %v5211
  %v5213 = vrot.slane %v5197, %v5212
  %v5215 = vunpack.c.l.s4 1966171168
  %v5216 = vunpack.c.0.s8 %v5215
  %v5217 = vlaneseq
  %v5218 = vshrl.u32 %v5217, 7
  %v5219 = vsub.s32 %v5216, %v5218
  %v5220 = vrot.slane %v5204, %v5219
  %v5222 = vunpack.c.l.s4 1966171168
  %v5223 = vunpack.c.0.s8 %v5222
  %v5224 = vlaneseq
  %v5225 = vshrl.u32 %v5224, 7
  %v5226 = vsub.s32 %v5223, %v5225
  %v5227 = vrot.slane %v5205, %v5226
  %v5229 = vunpack.c.l.s4 1966171168
  %v5230 = vunpack.c.0.s8 %v5229
  %v5231 = vlaneseq
  %v5232 = vshrl.u32 %v5231, 7
  %v5233 = vsub.s32 %v5230, %v5232
  %v5234 = vrot.slane %v5206, %v5233
  %v5235 = vcombine.high %v5213, %v5213
  %v5236 = vcombine.high %v5220, %v5220
  %v5237 = vcombine.high %v5227, %v5227
  %v5238 = vcombine.high %v5234, %v5234
  %v5239 = vcombine.high %v31, %v31
  %v5241 = vunpack.c.l.s4 1966171168
  %v5242 = vunpack.c.0.s8 %v5241
  %v5243 = vlaneseq
  %v5244 = vshrl.u32 %v5243, 7
  %v5245 = vsub.s32 %v5242, %v5244
  %v5246 = vrot.slane %v31, %v5245
  %v5248 = vunpack.c.l.s4 1966171168
  %v5249 = vunpack.c.0.s8 %v5248
  %v5250 = vlaneseq
  %v5251 = vshrl.u32 %v5250, 7
  %v5252 = vsub.s32 %v5249, %v5251
  %v5253 = vrot.slane %v5239, %v5252
  %v5254 = vcombine.high %v5246, %v5246
  %v5255 = vcombine.high %v5253, %v5253
  %v5257 = vunpack.c.l.s4 1966171168
  %v5258 = vunpack.c.0.s8 %v5257
  %v5259 = vlaneseq
  %v5260 = vshrl.u32 %v5259, 7
  %v5261 = vsub.s32 %v5258, %v5260
  %v5262 = vrot.slane %v5246, %v5261
  %v5264 = vunpack.c.l.s4 1966171168
  %v5265 = vunpack.c.0.s8 %v5264
  %v5266 = vlaneseq
  %v5267 = vshrl.u32 %v5266, 7
  %v5268 = vsub.s32 %v5265, %v5267
  %v5269 = vrot.slane %v5253, %v5268
  %v5271 = vunpack.c.l.s4 1966171168
  %v5272 = vunpack.c.0.s8 %v5271
  %v5273 = vlaneseq
  %v5274 = vshrl.u32 %v5273, 7
  %v5275 = vsub.s32 %v5272, %v5274
  %v5276 = vrot.slane %v5254, %v5275
  %v5278 = vunpack.c.l.s4 1966171168
  %v5279 = vunpack.c.0.s8 %v5278
  %v5280 = vlaneseq
  %v5281 = vshrl.u32 %v5280, 7
  %v5282 = vsub.s32 %v5279, %v5281
  %v5283 = vrot.slane %v5255, %v5282
  %v5284 = vcombine.high %v5262, %v5262
  %v5285 = vcombine.high %v5269, %v5269
  %v5286 = vcombine.high %v5276, %v5276
  %v5287 = vcombine.high %v5283, %v5283
  %v5288 = vcombine.high %v32, %v32
  %v5290 = vunpack.c.l.s4 1966171168
  %v5291 = vunpack.c.0.s8 %v5290
  %v5292 = vlaneseq
  %v5293 = vshrl.u32 %v5292, 7
  %v5294 = vsub.s32 %v5291, %v5293
  %v5295 = vrot.slane %v32, %v5294
  %v5297 = vunpack.c.l.s4 1966171168
  %v5298 = vunpack.c.0.s8 %v5297
  %v5299 = vlaneseq
  %v5300 = vshrl.u32 %v5299, 7
  %v5301 = vsub.s32 %v5298, %v5300
  %v5302 = vrot.slane %v5288, %v5301
  %v5303 = vcombine.high %v5295, %v5295
  %v5304 = vcombine.high %v5302, %v5302
  %v5306 = vunpack.c.l.s4 1966171168
  %v5307 = vunpack.c.0.s8 %v5306
  %v5308 = vlaneseq
  %v5309 = vshrl.u32 %v5308, 7
  %v5310 = vsub.s32 %v5307, %v5309
  %v5311 = vrot.slane %v5295, %v5310
  %v5313 = vunpack.c.l.s4 1966171168
  %v5314 = vunpack.c.0.s8 %v5313
  %v5315 = vlaneseq
  %v5316 = vshrl.u32 %v5315, 7
  %v5317 = vsub.s32 %v5314, %v5316
  %v5318 = vrot.slane %v5302, %v5317
  %v5320 = vunpack.c.l.s4 1966171168
  %v5321 = vunpack.c.0.s8 %v5320
  %v5322 = vlaneseq
  %v5323 = vshrl.u32 %v5322, 7
  %v5324 = vsub.s32 %v5321, %v5323
  %v5325 = vrot.slane %v5303, %v5324
  %v5327 = vunpack.c.l.s4 1966171168
  %v5328 = vunpack.c.0.s8 %v5327
  %v5329 = vlaneseq
  %v5330 = vshrl.u32 %v5329, 7
  %v5331 = vsub.s32 %v5328, %v5330
  %v5332 = vrot.slane %v5304, %v5331
  %v5333 = vcombine.high %v5311, %v5311
  %v5334 = vcombine.high %v5318, %v5318
  %v5335 = vcombine.high %v5325, %v5325
  %v5336 = vcombine.high %v5332, %v5332
  %v5337 = vcombine.high %v33, %v33
  %v5339 = vunpack.c.l.s4 1966171168
  %v5340 = vunpack.c.0.s8 %v5339
  %v5341 = vlaneseq
  %v5342 = vshrl.u32 %v5341, 7
  %v5343 = vsub.s32 %v5340, %v5342
  %v5344 = vrot.slane %v33, %v5343
  %v5346 = vunpack.c.l.s4 1966171168
  %v5347 = vunpack.c.0.s8 %v5346
  %v5348 = vlaneseq
  %v5349 = vshrl.u32 %v5348, 7
  %v5350 = vsub.s32 %v5347, %v5349
  %v5351 = vrot.slane %v5337, %v5350
  %v5352 = vcombine.high %v5344, %v5344
  %v5353 = vcombine.high %v5351, %v5351
  %v5355 = vunpack.c.l.s4 1966171168
  %v5356 = vunpack.c.0.s8 %v5355
  %v5357 = vlaneseq
  %v5358 = vshrl.u32 %v5357, 7
  %v5359 = vsub.s32 %v5356, %v5358
  %v5360 = vrot.slane %v5344, %v5359
  %v5362 = vunpack.c.l.s4 1966171168
  %v5363 = vunpack.c.0.s8 %v5362
  %v5364 = vlaneseq
  %v5365 = vshrl.u32 %v5364, 7
  %v5366 = vsub.s32 %v5363, %v5365
  %v5367 = vrot.slane %v5351, %v5366
  %v5369 = vunpack.c.l.s4 1966171168
  %v5370 = vunpack.c.0.s8 %v5369
  %v5371 = vlaneseq
  %v5372 = vshrl.u32 %v5371, 7
  %v5373 = vsub.s32 %v5370, %v5372
  %v5374 = vrot.slane %v5352, %v5373
  %v5376 = vunpack.c.l.s4 1966171168
  %v5377 = vunpack.c.0.s8 %v5376
  %v5378 = vlaneseq
  %v5379 = vshrl.u32 %v5378, 7
  %v5380 = vsub.s32 %v5377, %v5379
  %v5381 = vrot.slane %v5353, %v5380
  %v5382 = vcombine.high %v5360, %v5360
  %v5383 = vcombine.high %v5367, %v5367
  %v5384 = vcombine.high %v5374, %v5374
  %v5385 = vcombine.high %v5381, %v5381
  %v5386 = vcombine.high %v34, %v34
  %v5388 = vunpack.c.l.s4 1966171168
  %v5389 = vunpack.c.0.s8 %v5388
  %v5390 = vlaneseq
  %v5391 = vshrl.u32 %v5390, 7
  %v5392 = vsub.s32 %v5389, %v5391
  %v5393 = vrot.slane %v34, %v5392
  %v5395 = vunpack.c.l.s4 1966171168
  %v5396 = vunpack.c.0.s8 %v5395
  %v5397 = vlaneseq
  %v5398 = vshrl.u32 %v5397, 7
  %v5399 = vsub.s32 %v5396, %v5398
  %v5400 = vrot.slane %v5386, %v5399
  %v5401 = vcombine.high %v5393, %v5393
  %v5402 = vcombine.high %v5400, %v5400
  %v5404 = vunpack.c.l.s4 1966171168
  %v5405 = vunpack.c.0.s8 %v5404
  %v5406 = vlaneseq
  %v5407 = vshrl.u32 %v5406, 7
  %v5408 = vsub.s32 %v5405, %v5407
  %v5409 = vrot.slane %v5393, %v5408
  %v5411 = vunpack.c.l.s4 1966171168
  %v5412 = vunpack.c.0.s8 %v5411
  %v5413 = vlaneseq
  %v5414 = vshrl.u32 %v5413, 7
  %v5415 = vsub.s32 %v5412, %v5414
  %v5416 = vrot.slane %v5400, %v5415
  %v5418 = vunpack.c.l.s4 1966171168
  %v5419 = vunpack.c.0.s8 %v5418
  %v5420 = vlaneseq
  %v5421 = vshrl.u32 %v5420, 7
  %v5422 = vsub.s32 %v5419, %v5421
  %v5423 = vrot.slane %v5401, %v5422
  %v5425 = vunpack.c.l.s4 1966171168
  %v5426 = vunpack.c.0.s8 %v5425
  %v5427 = vlaneseq
  %v5428 = vshrl.u32 %v5427, 7
  %v5429 = vsub.s32 %v5426, %v5428
  %v5430 = vrot.slane %v5402, %v5429
  %v5431 = vcombine.high %v5409, %v5409
  %v5432 = vcombine.high %v5416, %v5416
  %v5433 = vcombine.high %v5423, %v5423
  %v5434 = vcombine.high %v5430, %v5430
  %v5435 = vcombine.high %v35, %v35
  %v5437 = vunpack.c.l.s4 1966171168
  %v5438 = vunpack.c.0.s8 %v5437
  %v5439 = vlaneseq
  %v5440 = vshrl.u32 %v5439, 7
  %v5441 = vsub.s32 %v5438, %v5440
  %v5442 = vrot.slane %v35, %v5441
  %v5444 = vunpack.c.l.s4 1966171168
  %v5445 = vunpack.c.0.s8 %v5444
  %v5446 = vlaneseq
  %v5447 = vshrl.u32 %v5446, 7
  %v5448 = vsub.s32 %v5445, %v5447
  %v5449 = vrot.slane %v5435, %v5448
  %v5450 = vcombine.high %v5442, %v5442
  %v5451 = vcombine.high %v5449, %v5449
  %v5453 = vunpack.c.l.s4 1966171168
  %v5454 = vunpack.c.0.s8 %v5453
  %v5455 = vlaneseq
  %v5456 = vshrl.u32 %v5455, 7
  %v5457 = vsub.s32 %v5454, %v5456
  %v5458 = vrot.slane %v5442, %v5457
  %v5460 = vunpack.c.l.s4 1966171168
  %v5461 = vunpack.c.0.s8 %v5460
  %v5462 = vlaneseq
  %v5463 = vshrl.u32 %v5462, 7
  %v5464 = vsub.s32 %v5461, %v5463
  %v5465 = vrot.slane %v5449, %v5464
  %v5467 = vunpack.c.l.s4 1966171168
  %v5468 = vunpack.c.0.s8 %v5467
  %v5469 = vlaneseq
  %v5470 = vshrl.u32 %v5469, 7
  %v5471 = vsub.s32 %v5468, %v5470
  %v5472 = vrot.slane %v5450, %v5471
  %v5474 = vunpack.c.l.s4 1966171168
  %v5475 = vunpack.c.0.s8 %v5474
  %v5476 = vlaneseq
  %v5477 = vshrl.u32 %v5476, 7
  %v5478 = vsub.s32 %v5475, %v5477
  %v5479 = vrot.slane %v5451, %v5478
  %v5480 = vcombine.high %v5458, %v5458
  %v5481 = vcombine.high %v5465, %v5465
  %v5482 = vcombine.high %v5472, %v5472
  %v5483 = vcombine.high %v5479, %v5479
  %v5484 = vcombine.high %v36, %v36
  %v5486 = vunpack.c.l.s4 1966171168
  %v5487 = vunpack.c.0.s8 %v5486
  %v5488 = vlaneseq
  %v5489 = vshrl.u32 %v5488, 7
  %v5490 = vsub.s32 %v5487, %v5489
  %v5491 = vrot.slane %v36, %v5490
  %v5493 = vunpack.c.l.s4 1966171168
  %v5494 = vunpack.c.0.s8 %v5493
  %v5495 = vlaneseq
  %v5496 = vshrl.u32 %v5495, 7
  %v5497 = vsub.s32 %v5494, %v5496
  %v5498 = vrot.slane %v5484, %v5497
  %v5499 = vcombine.high %v5491, %v5491
  %v5500 = vcombine.high %v5498, %v5498
  %v5502 = vunpack.c.l.s4 1966171168
  %v5503 = vunpack.c.0.s8 %v5502
  %v5504 = vlaneseq
  %v5505 = vshrl.u32 %v5504, 7
  %v5506 = vsub.s32 %v5503, %v5505
  %v5507 = vrot.slane %v5491, %v5506
  %v5509 = vunpack.c.l.s4 1966171168
  %v5510 = vunpack.c.0.s8 %v5509
  %v5511 = vlaneseq
  %v5512 = vshrl.u32 %v5511, 7
  %v5513 = vsub.s32 %v5510, %v5512
  %v5514 = vrot.slane %v5498, %v5513
  %v5516 = vunpack.c.l.s4 1966171168
  %v5517 = vunpack.c.0.s8 %v5516
  %v5518 = vlaneseq
  %v5519 = vshrl.u32 %v5518, 7
  %v5520 = vsub.s32 %v5517, %v5519
  %v5521 = vrot.slane %v5499, %v5520
  %v5523 = vunpack.c.l.s4 1966171168
  %v5524 = vunpack.c.0.s8 %v5523
  %v5525 = vlaneseq
  %v5526 = vshrl.u32 %v5525, 7
  %v5527 = vsub.s32 %v5524, %v5526
  %v5528 = vrot.slane %v5500, %v5527
  %v5529 = vcombine.high %v5507, %v5507
  %v5530 = vcombine.high %v5514, %v5514
  %v5531 = vcombine.high %v5521, %v5521
  %v5532 = vcombine.high %v5528, %v5528
  %v5533 = vcombine.high %v37, %v37
  %v5535 = vunpack.c.l.s4 1966171168
  %v5536 = vunpack.c.0.s8 %v5535
  %v5537 = vlaneseq
  %v5538 = vshrl.u32 %v5537, 7
  %v5539 = vsub.s32 %v5536, %v5538
  %v5540 = vrot.slane %v37, %v5539
  %v5542 = vunpack.c.l.s4 1966171168
  %v5543 = vunpack.c.0.s8 %v5542
  %v5544 = vlaneseq
  %v5545 = vshrl.u32 %v5544, 7
  %v5546 = vsub.s32 %v5543, %v5545
  %v5547 = vrot.slane %v5533, %v5546
  %v5548 = vcombine.high %v5540, %v5540
  %v5549 = vcombine.high %v5547, %v5547
  %v5551 = vunpack.c.l.s4 1966171168
  %v5552 = vunpack.c.0.s8 %v5551
  %v5553 = vlaneseq
  %v5554 = vshrl.u32 %v5553, 7
  %v5555 = vsub.s32 %v5552, %v5554
  %v5556 = vrot.slane %v5540, %v5555
  %v5558 = vunpack.c.l.s4 1966171168
  %v5559 = vunpack.c.0.s8 %v5558
  %v5560 = vlaneseq
  %v5561 = vshrl.u32 %v5560, 7
  %v5562 = vsub.s32 %v5559, %v5561
  %v5563 = vrot.slane %v5547, %v5562
  %v5565 = vunpack.c.l.s4 1966171168
  %v5566 = vunpack.c.0.s8 %v5565
  %v5567 = vlaneseq
  %v5568 = vshrl.u32 %v5567, 7
  %v5569 = vsub.s32 %v5566, %v5568
  %v5570 = vrot.slane %v5548, %v5569
  %v5572 = vunpack.c.l.s4 1966171168
  %v5573 = vunpack.c.0.s8 %v5572
  %v5574 = vlaneseq
  %v5575 = vshrl.u32 %v5574, 7
  %v5576 = vsub.s32 %v5573, %v5575
  %v5577 = vrot.slane %v5549, %v5576
  %v5578 = vcombine.high %v5556, %v5556
  %v5579 = vcombine.high %v5563, %v5563
  %v5580 = vcombine.high %v5570, %v5570
  %v5581 = vcombine.high %v5577, %v5577
  %v5582 = vcombine.high %v38, %v38
  %v5584 = vunpack.c.l.s4 1966171168
  %v5585 = vunpack.c.0.s8 %v5584
  %v5586 = vlaneseq
  %v5587 = vshrl.u32 %v5586, 7
  %v5588 = vsub.s32 %v5585, %v5587
  %v5589 = vrot.slane %v38, %v5588
  %v5591 = vunpack.c.l.s4 1966171168
  %v5592 = vunpack.c.0.s8 %v5591
  %v5593 = vlaneseq
  %v5594 = vshrl.u32 %v5593, 7
  %v5595 = vsub.s32 %v5592, %v5594
  %v5596 = vrot.slane %v5582, %v5595
  %v5597 = vcombine.high %v5589, %v5589
  %v5598 = vcombine.high %v5596, %v5596
  %v5600 = vunpack.c.l.s4 1966171168
  %v5601 = vunpack.c.0.s8 %v5600
  %v5602 = vlaneseq
  %v5603 = vshrl.u32 %v5602, 7
  %v5604 = vsub.s32 %v5601, %v5603
  %v5605 = vrot.slane %v5589, %v5604
  %v5607 = vunpack.c.l.s4 1966171168
  %v5608 = vunpack.c.0.s8 %v5607
  %v5609 = vlaneseq
  %v5610 = vshrl.u32 %v5609, 7
  %v5611 = vsub.s32 %v5608, %v5610
  %v5612 = vrot.slane %v5596, %v5611
  %v5614 = vunpack.c.l.s4 1966171168
  %v5615 = vunpack.c.0.s8 %v5614
  %v5616 = vlaneseq
  %v5617 = vshrl.u32 %v5616, 7
  %v5618 = vsub.s32 %v5615, %v5617
  %v5619 = vrot.slane %v5597, %v5618
  %v5621 = vunpack.c.l.s4 1966171168
  %v5622 = vunpack.c.0.s8 %v5621
  %v5623 = vlaneseq
  %v5624 = vshrl.u32 %v5623, 7
  %v5625 = vsub.s32 %v5622, %v5624
  %v5626 = vrot.slane %v5598, %v5625
  %v5627 = vcombine.high %v5605, %v5605
  %v5628 = vcombine.high %v5612, %v5612
  %v5629 = vcombine.high %v5619, %v5619
  %v5630 = vcombine.high %v5626, %v5626
  %v5631 = vcombine.high %v39, %v39
  %v5633 = vunpack.c.l.s4 1966171168
  %v5634 = vunpack.c.0.s8 %v5633
  %v5635 = vlaneseq
  %v5636 = vshrl.u32 %v5635, 7
  %v5637 = vsub.s32 %v5634, %v5636
  %v5638 = vrot.slane %v39, %v5637
  %v5640 = vunpack.c.l.s4 1966171168
  %v5641 = vunpack.c.0.s8 %v5640
  %v5642 = vlaneseq
  %v5643 = vshrl.u32 %v5642, 7
  %v5644 = vsub.s32 %v5641, %v5643
  %v5645 = vrot.slane %v5631, %v5644
  %v5646 = vcombine.high %v5638, %v5638
  %v5647 = vcombine.high %v5645, %v5645
  %v5649 = vunpack.c.l.s4 1966171168
  %v5650 = vunpack.c.0.s8 %v5649
  %v5651 = vlaneseq
  %v5652 = vshrl.u32 %v5651, 7
  %v5653 = vsub.s32 %v5650, %v5652
  %v5654 = vrot.slane %v5638, %v5653
  %v5656 = vunpack.c.l.s4 1966171168
  %v5657 = vunpack.c.0.s8 %v5656
  %v5658 = vlaneseq
  %v5659 = vshrl.u32 %v5658, 7
  %v5660 = vsub.s32 %v5657, %v5659
  %v5661 = vrot.slane %v5645, %v5660
  %v5663 = vunpack.c.l.s4 1966171168
  %v5664 = vunpack.c.0.s8 %v5663
  %v5665 = vlaneseq
  %v5666 = vshrl.u32 %v5665, 7
  %v5667 = vsub.s32 %v5664, %v5666
  %v5668 = vrot.slane %v5646, %v5667
  %v5670 = vunpack.c.l.s4 1966171168
  %v5671 = vunpack.c.0.s8 %v5670
  %v5672 = vlaneseq
  %v5673 = vshrl.u32 %v5672, 7
  %v5674 = vsub.s32 %v5671, %v5673
  %v5675 = vrot.slane %v5647, %v5674
  %v5676 = vcombine.high %v5654, %v5654
  %v5677 = vcombine.high %v5661, %v5661
  %v5678 = vcombine.high %v5668, %v5668
  %v5679 = vcombine.high %v5675, %v5675
  %v5680 = vcombine.high %v40, %v40
  %v5682 = vunpack.c.l.s4 1966171168
  %v5683 = vunpack.c.0.s8 %v5682
  %v5684 = vlaneseq
  %v5685 = vshrl.u32 %v5684, 7
  %v5686 = vsub.s32 %v5683, %v5685
  %v5687 = vrot.slane %v40, %v5686
  %v5689 = vunpack.c.l.s4 1966171168
  %v5690 = vunpack.c.0.s8 %v5689
  %v5691 = vlaneseq
  %v5692 = vshrl.u32 %v5691, 7
  %v5693 = vsub.s32 %v5690, %v5692
  %v5694 = vrot.slane %v5680, %v5693
  %v5695 = vcombine.high %v5687, %v5687
  %v5696 = vcombine.high %v5694, %v5694
  %v5698 = vunpack.c.l.s4 1966171168
  %v5699 = vunpack.c.0.s8 %v5698
  %v5700 = vlaneseq
  %v5701 = vshrl.u32 %v5700, 7
  %v5702 = vsub.s32 %v5699, %v5701
  %v5703 = vrot.slane %v5687, %v5702
  %v5705 = vunpack.c.l.s4 1966171168
  %v5706 = vunpack.c.0.s8 %v5705
  %v5707 = vlaneseq
  %v5708 = vshrl.u32 %v5707, 7
  %v5709 = vsub.s32 %v5706, %v5708
  %v5710 = vrot.slane %v5694, %v5709
  %v5712 = vunpack.c.l.s4 1966171168
  %v5713 = vunpack.c.0.s8 %v5712
  %v5714 = vlaneseq
  %v5715 = vshrl.u32 %v5714, 7
  %v5716 = vsub.s32 %v5713, %v5715
  %v5717 = vrot.slane %v5695, %v5716
  %v5719 = vunpack.c.l.s4 1966171168
  %v5720 = vunpack.c.0.s8 %v5719
  %v5721 = vlaneseq
  %v5722 = vshrl.u32 %v5721, 7
  %v5723 = vsub.s32 %v5720, %v5722
  %v5724 = vrot.slane %v5696, %v5723
  %v5725 = vcombine.high %v5703, %v5703
  %v5726 = vcombine.high %v5710, %v5710
  %v5727 = vcombine.high %v5717, %v5717
  %v5728 = vcombine.high %v5724, %v5724
  %v5729 = vcombine.high %v41, %v41
  %v5731 = vunpack.c.l.s4 1966171168
  %v5732 = vunpack.c.0.s8 %v5731
  %v5733 = vlaneseq
  %v5734 = vshrl.u32 %v5733, 7
  %v5735 = vsub.s32 %v5732, %v5734
  %v5736 = vrot.slane %v41, %v5735
  %v5738 = vunpack.c.l.s4 1966171168
  %v5739 = vunpack.c.0.s8 %v5738
  %v5740 = vlaneseq
  %v5741 = vshrl.u32 %v5740, 7
  %v5742 = vsub.s32 %v5739, %v5741
  %v5743 = vrot.slane %v5729, %v5742
  %v5744 = vcombine.high %v5736, %v5736
  %v5745 = vcombine.high %v5743, %v5743
  %v5747 = vunpack.c.l.s4 1966171168
  %v5748 = vunpack.c.0.s8 %v5747
  %v5749 = vlaneseq
  %v5750 = vshrl.u32 %v5749, 7
  %v5751 = vsub.s32 %v5748, %v5750
  %v5752 = vrot.slane %v5736, %v5751
  %v5754 = vunpack.c.l.s4 1966171168
  %v5755 = vunpack.c.0.s8 %v5754
  %v5756 = vlaneseq
  %v5757 = vshrl.u32 %v5756, 7
  %v5758 = vsub.s32 %v5755, %v5757
  %v5759 = vrot.slane %v5743, %v5758
  %v5761 = vunpack.c.l.s4 1966171168
  %v5762 = vunpack.c.0.s8 %v5761
  %v5763 = vlaneseq
  %v5764 = vshrl.u32 %v5763, 7
  %v5765 = vsub.s32 %v5762, %v5764
  %v5766 = vrot.slane %v5744, %v5765
  %v5768 = vunpack.c.l.s4 1966171168
  %v5769 = vunpack.c.0.s8 %v5768
  %v5770 = vlaneseq
  %v5771 = vshrl.u32 %v5770, 7
  %v5772 = vsub.s32 %v5769, %v5771
  %v5773 = vrot.slane %v5745, %v5772
  %v5774 = vcombine.high %v5752, %v5752
  %v5775 = vcombine.high %v5759, %v5759
  %v5776 = vcombine.high %v5766, %v5766
  %v5777 = vcombine.high %v5773, %v5773
  %v5778 = vcombine.high %v42, %v42
  %v5780 = vunpack.c.l.s4 1966171168
  %v5781 = vunpack.c.0.s8 %v5780
  %v5782 = vlaneseq
  %v5783 = vshrl.u32 %v5782, 7
  %v5784 = vsub.s32 %v5781, %v5783
  %v5785 = vrot.slane %v42, %v5784
  %v5787 = vunpack.c.l.s4 1966171168
  %v5788 = vunpack.c.0.s8 %v5787
  %v5789 = vlaneseq
  %v5790 = vshrl.u32 %v5789, 7
  %v5791 = vsub.s32 %v5788, %v5790
  %v5792 = vrot.slane %v5778, %v5791
  %v5793 = vcombine.high %v5785, %v5785
  %v5794 = vcombine.high %v5792, %v5792
  %v5796 = vunpack.c.l.s4 1966171168
  %v5797 = vunpack.c.0.s8 %v5796
  %v5798 = vlaneseq
  %v5799 = vshrl.u32 %v5798, 7
  %v5800 = vsub.s32 %v5797, %v5799
  %v5801 = vrot.slane %v5785, %v5800
  %v5803 = vunpack.c.l.s4 1966171168
  %v5804 = vunpack.c.0.s8 %v5803
  %v5805 = vlaneseq
  %v5806 = vshrl.u32 %v5805, 7
  %v5807 = vsub.s32 %v5804, %v5806
  %v5808 = vrot.slane %v5792, %v5807
  %v5810 = vunpack.c.l.s4 1966171168
  %v5811 = vunpack.c.0.s8 %v5810
  %v5812 = vlaneseq
  %v5813 = vshrl.u32 %v5812, 7
  %v5814 = vsub.s32 %v5811, %v5813
  %v5815 = vrot.slane %v5793, %v5814
  %v5817 = vunpack.c.l.s4 1966171168
  %v5818 = vunpack.c.0.s8 %v5817
  %v5819 = vlaneseq
  %v5820 = vshrl.u32 %v5819, 7
  %v5821 = vsub.s32 %v5818, %v5820
  %v5822 = vrot.slane %v5794, %v5821
  %v5823 = vcombine.high %v5801, %v5801
  %v5824 = vcombine.high %v5808, %v5808
  %v5825 = vcombine.high %v5815, %v5815
  %v5826 = vcombine.high %v5822, %v5822
  %v5827 = vcombine.high %v43, %v43
  %v5829 = vunpack.c.l.s4 1966171168
  %v5830 = vunpack.c.0.s8 %v5829
  %v5831 = vlaneseq
  %v5832 = vshrl.u32 %v5831, 7
  %v5833 = vsub.s32 %v5830, %v5832
  %v5834 = vrot.slane %v43, %v5833
  %v5836 = vunpack.c.l.s4 1966171168
  %v5837 = vunpack.c.0.s8 %v5836
  %v5838 = vlaneseq
  %v5839 = vshrl.u32 %v5838, 7
  %v5840 = vsub.s32 %v5837, %v5839
  %v5841 = vrot.slane %v5827, %v5840
  %v5842 = vcombine.high %v5834, %v5834
  %v5843 = vcombine.high %v5841, %v5841
  %v5845 = vunpack.c.l.s4 1966171168
  %v5846 = vunpack.c.0.s8 %v5845
  %v5847 = vlaneseq
  %v5848 = vshrl.u32 %v5847, 7
  %v5849 = vsub.s32 %v5846, %v5848
  %v5850 = vrot.slane %v5834, %v5849
  %v5852 = vunpack.c.l.s4 1966171168
  %v5853 = vunpack.c.0.s8 %v5852
  %v5854 = vlaneseq
  %v5855 = vshrl.u32 %v5854, 7
  %v5856 = vsub.s32 %v5853, %v5855
  %v5857 = vrot.slane %v5841, %v5856
  %v5859 = vunpack.c.l.s4 1966171168
  %v5860 = vunpack.c.0.s8 %v5859
  %v5861 = vlaneseq
  %v5862 = vshrl.u32 %v5861, 7
  %v5863 = vsub.s32 %v5860, %v5862
  %v5864 = vrot.slane %v5842, %v5863
  %v5866 = vunpack.c.l.s4 1966171168
  %v5867 = vunpack.c.0.s8 %v5866
  %v5868 = vlaneseq
  %v5869 = vshrl.u32 %v5868, 7
  %v5870 = vsub.s32 %v5867, %v5869
  %v5871 = vrot.slane %v5843, %v5870
  %v5872 = vcombine.high %v5850, %v5850
  %v5873 = vcombine.high %v5857, %v5857
  %v5874 = vcombine.high %v5864, %v5864
  %v5875 = vcombine.high %v5871, %v5871
  %v5876 = vcombine.high %v44, %v44
  %v5878 = vunpack.c.l.s4 1966171168
  %v5879 = vunpack.c.0.s8 %v5878
  %v5880 = vlaneseq
  %v5881 = vshrl.u32 %v5880, 7
  %v5882 = vsub.s32 %v5879, %v5881
  %v5883 = vrot.slane %v44, %v5882
  %v5885 = vunpack.c.l.s4 1966171168
  %v5886 = vunpack.c.0.s8 %v5885
  %v5887 = vlaneseq
  %v5888 = vshrl.u32 %v5887, 7
  %v5889 = vsub.s32 %v5886, %v5888
  %v5890 = vrot.slane %v5876, %v5889
  %v5891 = vcombine.high %v5883, %v5883
  %v5892 = vcombine.high %v5890, %v5890
  %v5894 = vunpack.c.l.s4 1966171168
  %v5895 = vunpack.c.0.s8 %v5894
  %v5896 = vlaneseq
  %v5897 = vshrl.u32 %v5896, 7
  %v5898 = vsub.s32 %v5895, %v5897
  %v5899 = vrot.slane %v5883, %v5898
  %v5901 = vunpack.c.l.s4 1966171168
  %v5902 = vunpack.c.0.s8 %v5901
  %v5903 = vlaneseq
  %v5904 = vshrl.u32 %v5903, 7
  %v5905 = vsub.s32 %v5902, %v5904
  %v5906 = vrot.slane %v5890, %v5905
  %v5908 = vunpack.c.l.s4 1966171168
  %v5909 = vunpack.c.0.s8 %v5908
  %v5910 = vlaneseq
  %v5911 = vshrl.u32 %v5910, 7
  %v5912 = vsub.s32 %v5909, %v5911
  %v5913 = vrot.slane %v5891, %v5912
  %v5915 = vunpack.c.l.s4 1966171168
  %v5916 = vunpack.c.0.s8 %v5915
  %v5917 = vlaneseq
  %v5918 = vshrl.u32 %v5917, 7
  %v5919 = vsub.s32 %v5916, %v5918
  %v5920 = vrot.slane %v5892, %v5919
  %v5921 = vcombine.high %v5899, %v5899
  %v5922 = vcombine.high %v5906, %v5906
  %v5923 = vcombine.high %v5913, %v5913
  %v5924 = vcombine.high %v5920, %v5920
  %v5925 = vcombine.high %v45, %v45
  %v5927 = vunpack.c.l.s4 1966171168
  %v5928 = vunpack.c.0.s8 %v5927
  %v5929 = vlaneseq
  %v5930 = vshrl.u32 %v5929, 7
  %v5931 = vsub.s32 %v5928, %v5930
  %v5932 = vrot.slane %v45, %v5931
  %v5934 = vunpack.c.l.s4 1966171168
  %v5935 = vunpack.c.0.s8 %v5934
  %v5936 = vlaneseq
  %v5937 = vshrl.u32 %v5936, 7
  %v5938 = vsub.s32 %v5935, %v5937
  %v5939 = vrot.slane %v5925, %v5938
  %v5940 = vcombine.high %v5932, %v5932
  %v5941 = vcombine.high %v5939, %v5939
  %v5943 = vunpack.c.l.s4 1966171168
  %v5944 = vunpack.c.0.s8 %v5943
  %v5945 = vlaneseq
  %v5946 = vshrl.u32 %v5945, 7
  %v5947 = vsub.s32 %v5944, %v5946
  %v5948 = vrot.slane %v5932, %v5947
  %v5950 = vunpack.c.l.s4 1966171168
  %v5951 = vunpack.c.0.s8 %v5950
  %v5952 = vlaneseq
  %v5953 = vshrl.u32 %v5952, 7
  %v5954 = vsub.s32 %v5951, %v5953
  %v5955 = vrot.slane %v5939, %v5954
  %v5957 = vunpack.c.l.s4 1966171168
  %v5958 = vunpack.c.0.s8 %v5957
  %v5959 = vlaneseq
  %v5960 = vshrl.u32 %v5959, 7
  %v5961 = vsub.s32 %v5958, %v5960
  %v5962 = vrot.slane %v5940, %v5961
  %v5964 = vunpack.c.l.s4 1966171168
  %v5965 = vunpack.c.0.s8 %v5964
  %v5966 = vlaneseq
  %v5967 = vshrl.u32 %v5966, 7
  %v5968 = vsub.s32 %v5965, %v5967
  %v5969 = vrot.slane %v5941, %v5968
  %v5970 = vcombine.high %v5948, %v5948
  %v5971 = vcombine.high %v5955, %v5955
  %v5972 = vcombine.high %v5962, %v5962
  %v5973 = vcombine.high %v5969, %v5969
  %v5974 = vlaneseq
  %v5975 = vshrl.u32 %v5974, 7
  %v5976 = vsub.s32 0, %v5975
  %v5977 = vrot.slane %v5213, %v5976
  %v5978 = vlaneseq
  %v5979 = vshrl.u32 %v5978, 7
  %v5980 = vsub.s32 0, %v5979
  %v5981 = vrot.slane %v5227, %v5980
  %v5982 = vlaneseq
  %v5983 = vshrl.u32 %v5982, 7
  %v5984 = vsub.s32 0, %v5983
  %v5985 = vrot.slane %v5235, %v5984
  %v5986 = vlaneseq
  %v5987 = vshrl.u32 %v5986, 7
  %v5988 = vsub.s32 0, %v5987
  %v5989 = vrot.slane %v5237, %v5988
  %v5990 = vlaneseq
  %v5991 = vshrl.u32 %v5990, 7
  %v5992 = vsub.s32 0, %v5991
  %v5993 = vrot.slane %v5220, %v5992
  %v5994 = vlaneseq
  %v5995 = vshrl.u32 %v5994, 7
  %v5996 = vsub.s32 0, %v5995
  %v5997 = vrot.slane %v5234, %v5996
  %v5998 = vlaneseq
  %v5999 = vshrl.u32 %v5998, 7
  %v6000 = vsub.s32 0, %v5999
  %v6001 = vrot.slane %v5236, %v6000
  %v6002 = vlaneseq
  %v6003 = vshrl.u32 %v6002, 7
  %v6004 = vsub.s32 0, %v6003
  %v6005 = vrot.slane %v5238, %v6004
  %v6006 = vlaneseq
  %v6007 = vshrl.u32 %v6006, 7
  %v6008 = vsub.s32 0, %v6007
  %v6009 = vrot.slane %v5262, %v6008
  %v6010 = vlaneseq
  %v6011 = vshrl.u32 %v6010, 7
  %v6012 = vsub.s32 0, %v6011
  %v6013 = vrot.slane %v5276, %v6012
  %v6014 = vlaneseq
  %v6015 = vshrl.u32 %v6014, 7
  %v6016 = vsub.s32 0, %v6015
  %v6017 = vrot.slane %v5284, %v6016
  %v6018 = vlaneseq
  %v6019 = vshrl.u32 %v6018, 7
  %v6020 = vsub.s32 0, %v6019
  %v6021 = vrot.slane %v5286, %v6020
  %v6022 = vlaneseq
  %v6023 = vshrl.u32 %v6022, 7
  %v6024 = vsub.s32 0, %v6023
  %v6025 = vrot.slane %v5269, %v6024
  %v6026 = vlaneseq
  %v6027 = vshrl.u32 %v6026, 7
  %v6028 = vsub.s32 0, %v6027
  %v6029 = vrot.slane %v5283, %v6028
  %v6030 = vlaneseq
  %v6031 = vshrl.u32 %v6030, 7
  %v6032 = vsub.s32 0, %v6031
  %v6033 = vrot.slane %v5285, %v6032
  %v6034 = vlaneseq
  %v6035 = vshrl.u32 %v6034, 7
  %v6036 = vsub.s32 0, %v6035
  %v6037 = vrot.slane %v5287, %v6036
  %v6038 = vlaneseq
  %v6039 = vshrl.u32 %v6038, 7
  %v6040 = vsub.s32 0, %v6039
  %v6041 = vrot.slane %v5311, %v6040
  %v6042 = vlaneseq
  %v6043 = vshrl.u32 %v6042, 7
  %v6044 = vsub.s32 0, %v6043
  %v6045 = vrot.slane %v5325, %v6044
  %v6046 = vlaneseq
  %v6047 = vshrl.u32 %v6046, 7
  %v6048 = vsub.s32 0, %v6047
  %v6049 = vrot.slane %v5333, %v6048
  %v6050 = vlaneseq
  %v6051 = vshrl.u32 %v6050, 7
  %v6052 = vsub.s32 0, %v6051
  %v6053 = vrot.slane %v5335, %v6052
  %v6054 = vlaneseq
  %v6055 = vshrl.u32 %v6054, 7
  %v6056 = vsub.s32 0, %v6055
  %v6057 = vrot.slane %v5318, %v6056
  %v6058 = vlaneseq
  %v6059 = vshrl.u32 %v6058, 7
  %v6060 = vsub.s32 0, %v6059
  %v6061 = vrot.slane %v5332, %v6060
  %v6062 = vlaneseq
  %v6063 = vshrl.u32 %v6062, 7
  %v6064 = vsub.s32 0, %v6063
  %v6065 = vrot.slane %v5334, %v6064
  %v6066 = vlaneseq
  %v6067 = vshrl.u32 %v6066, 7
  %v6068 = vsub.s32 0, %v6067
  %v6069 = vrot.slane %v5336, %v6068
  %v6070 = vlaneseq
  %v6071 = vshrl.u32 %v6070, 7
  %v6072 = vsub.s32 0, %v6071
  %v6073 = vrot.slane %v5360, %v6072
  %v6074 = vlaneseq
  %v6075 = vshrl.u32 %v6074, 7
  %v6076 = vsub.s32 0, %v6075
  %v6077 = vrot.slane %v5374, %v6076
  %v6078 = vlaneseq
  %v6079 = vshrl.u32 %v6078, 7
  %v6080 = vsub.s32 0, %v6079
  %v6081 = vrot.slane %v5382, %v6080
  %v6082 = vlaneseq
  %v6083 = vshrl.u32 %v6082, 7
  %v6084 = vsub.s32 0, %v6083
  %v6085 = vrot.slane %v5384, %v6084
  %v6086 = vlaneseq
  %v6087 = vshrl.u32 %v6086, 7
  %v6088 = vsub.s32 0, %v6087
  %v6089 = vrot.slane %v5367, %v6088
  %v6090 = vlaneseq
  %v6091 = vshrl.u32 %v6090, 7
  %v6092 = vsub.s32 0, %v6091
  %v6093 = vrot.slane %v5381, %v6092
  %v6094 = vlaneseq
  %v6095 = vshrl.u32 %v6094, 7
  %v6096 = vsub.s32 0, %v6095
  %v6097 = vrot.slane %v5383, %v6096
  %v6098 = vlaneseq
  %v6099 = vshrl.u32 %v6098, 7
  %v6100 = vsub.s32 0, %v6099
  %v6101 = vrot.slane %v5385, %v6100
  %v6102 = vlaneseq
  %v6103 = vshrl.u32 %v6102, 7
  %v6104 = vsub.s32 0, %v6103
  %v6105 = vrot.slane %v5409, %v6104
  %v6106 = vlaneseq
  %v6107 = vshrl.u32 %v6106, 7
  %v6108 = vsub.s32 0, %v6107
  %v6109 = vrot.slane %v5423, %v6108
  %v6110 = vlaneseq
  %v6111 = vshrl.u32 %v6110, 7
  %v6112 = vsub.s32 0, %v6111
  %v6113 = vrot.slane %v5431, %v6112
  %v6114 = vlaneseq
  %v6115 = vshrl.u32 %v6114, 7
  %v6116 = vsub.s32 0, %v6115
  %v6117 = vrot.slane %v5433, %v6116
  %v6118 = vlaneseq
  %v6119 = vshrl.u32 %v6118, 7
  %v6120 = vsub.s32 0, %v6119
  %v6121 = vrot.slane %v5416, %v6120
  %v6122 = vlaneseq
  %v6123 = vshrl.u32 %v6122, 7
  %v6124 = vsub.s32 0, %v6123
  %v6125 = vrot.slane %v5430, %v6124
  %v6126 = vlaneseq
  %v6127 = vshrl.u32 %v6126, 7
  %v6128 = vsub.s32 0, %v6127
  %v6129 = vrot.slane %v5432, %v6128
  %v6130 = vlaneseq
  %v6131 = vshrl.u32 %v6130, 7
  %v6132 = vsub.s32 0, %v6131
  %v6133 = vrot.slane %v5434, %v6132
  %v6134 = vlaneseq
  %v6135 = vshrl.u32 %v6134, 7
  %v6136 = vsub.s32 0, %v6135
  %v6137 = vrot.slane %v5458, %v6136
  %v6138 = vlaneseq
  %v6139 = vshrl.u32 %v6138, 7
  %v6140 = vsub.s32 0, %v6139
  %v6141 = vrot.slane %v5472, %v6140
  %v6142 = vlaneseq
  %v6143 = vshrl.u32 %v6142, 7
  %v6144 = vsub.s32 0, %v6143
  %v6145 = vrot.slane %v5480, %v6144
  %v6146 = vlaneseq
  %v6147 = vshrl.u32 %v6146, 7
  %v6148 = vsub.s32 0, %v6147
  %v6149 = vrot.slane %v5482, %v6148
  %v6150 = vlaneseq
  %v6151 = vshrl.u32 %v6150, 7
  %v6152 = vsub.s32 0, %v6151
  %v6153 = vrot.slane %v5465, %v6152
  %v6154 = vlaneseq
  %v6155 = vshrl.u32 %v6154, 7
  %v6156 = vsub.s32 0, %v6155
  %v6157 = vrot.slane %v5479, %v6156
  %v6158 = vlaneseq
  %v6159 = vshrl.u32 %v6158, 7
  %v6160 = vsub.s32 0, %v6159
  %v6161 = vrot.slane %v5481, %v6160
  %v6162 = vlaneseq
  %v6163 = vshrl.u32 %v6162, 7
  %v6164 = vsub.s32 0, %v6163
  %v6165 = vrot.slane %v5483, %v6164
  %v6166 = vlaneseq
  %v6167 = vshrl.u32 %v6166, 7
  %v6168 = vsub.s32 0, %v6167
  %v6169 = vrot.slane %v5507, %v6168
  %v6170 = vlaneseq
  %v6171 = vshrl.u32 %v6170, 7
  %v6172 = vsub.s32 0, %v6171
  %v6173 = vrot.slane %v5521, %v6172
  %v6174 = vlaneseq
  %v6175 = vshrl.u32 %v6174, 7
  %v6176 = vsub.s32 0, %v6175
  %v6177 = vrot.slane %v5529, %v6176
  %v6178 = vlaneseq
  %v6179 = vshrl.u32 %v6178, 7
  %v6180 = vsub.s32 0, %v6179
  %v6181 = vrot.slane %v5531, %v6180
  %v6182 = vlaneseq
  %v6183 = vshrl.u32 %v6182, 7
  %v6184 = vsub.s32 0, %v6183
  %v6185 = vrot.slane %v5514, %v6184
  %v6186 = vlaneseq
  %v6187 = vshrl.u32 %v6186, 7
  %v6188 = vsub.s32 0, %v6187
  %v6189 = vrot.slane %v5528, %v6188
  %v6190 = vlaneseq
  %v6191 = vshrl.u32 %v6190, 7
  %v6192 = vsub.s32 0, %v6191
  %v6193 = vrot.slane %v5530, %v6192
  %v6194 = vlaneseq
  %v6195 = vshrl.u32 %v6194, 7
  %v6196 = vsub.s32 0, %v6195
  %v6197 = vrot.slane %v5532, %v6196
  %v6198 = vlaneseq
  %v6199 = vshrl.u32 %v6198, 7
  %v6200 = vsub.s32 0, %v6199
  %v6201 = vrot.slane %v5556, %v6200
  %v6202 = vlaneseq
  %v6203 = vshrl.u32 %v6202, 7
  %v6204 = vsub.s32 0, %v6203
  %v6205 = vrot.slane %v5570, %v6204
  %v6206 = vlaneseq
  %v6207 = vshrl.u32 %v6206, 7
  %v6208 = vsub.s32 0, %v6207
  %v6209 = vrot.slane %v5578, %v6208
  %v6210 = vlaneseq
  %v6211 = vshrl.u32 %v6210, 7
  %v6212 = vsub.s32 0, %v6211
  %v6213 = vrot.slane %v5580, %v6212
  %v6214 = vlaneseq
  %v6215 = vshrl.u32 %v6214, 7
  %v6216 = vsub.s32 0, %v6215
  %v6217 = vrot.slane %v5563, %v6216
  %v6218 = vlaneseq
  %v6219 = vshrl.u32 %v6218, 7
  %v6220 = vsub.s32 0, %v6219
  %v6221 = vrot.slane %v5577, %v6220
  %v6222 = vlaneseq
  %v6223 = vshrl.u32 %v6222, 7
  %v6224 = vsub.s32 0, %v6223
  %v6225 = vrot.slane %v5579, %v6224
  %v6226 = vlaneseq
  %v6227 = vshrl.u32 %v6226, 7
  %v6228 = vsub.s32 0, %v6227
  %v6229 = vrot.slane %v5581, %v6228
  %v6230 = vlaneseq
  %v6231 = vshrl.u32 %v6230, 7
  %v6232 = vsub.s32 0, %v6231
  %v6233 = vrot.slane %v5605, %v6232
  %v6234 = vlaneseq
  %v6235 = vshrl.u32 %v6234, 7
  %v6236 = vsub.s32 0, %v6235
  %v6237 = vrot.slane %v5619, %v6236
  %v6238 = vlaneseq
  %v6239 = vshrl.u32 %v6238, 7
  %v6240 = vsub.s32 0, %v6239
  %v6241 = vrot.slane %v5627, %v6240
  %v6242 = vlaneseq
  %v6243 = vshrl.u32 %v6242, 7
  %v6244 = vsub.s32 0, %v6243
  %v6245 = vrot.slane %v5629, %v6244
  %v6246 = vlaneseq
  %v6247 = vshrl.u32 %v6246, 7
  %v6248 = vsub.s32 0, %v6247
  %v6249 = vrot.slane %v5612, %v6248
  %v6250 = vlaneseq
  %v6251 = vshrl.u32 %v6250, 7
  %v6252 = vsub.s32 0, %v6251
  %v6253 = vrot.slane %v5626, %v6252
  %v6254 = vlaneseq
  %v6255 = vshrl.u32 %v6254, 7
  %v6256 = vsub.s32 0, %v6255
  %v6257 = vrot.slane %v5628, %v6256
  %v6258 = vlaneseq
  %v6259 = vshrl.u32 %v6258, 7
  %v6260 = vsub.s32 0, %v6259
  %v6261 = vrot.slane %v5630, %v6260
  %v6262 = vlaneseq
  %v6263 = vshrl.u32 %v6262, 7
  %v6264 = vsub.s32 0, %v6263
  %v6265 = vrot.slane %v5654, %v6264
  %v6266 = vlaneseq
  %v6267 = vshrl.u32 %v6266, 7
  %v6268 = vsub.s32 0, %v6267
  %v6269 = vrot.slane %v5668, %v6268
  %v6270 = vlaneseq
  %v6271 = vshrl.u32 %v6270, 7
  %v6272 = vsub.s32 0, %v6271
  %v6273 = vrot.slane %v5676, %v6272
  %v6274 = vlaneseq
  %v6275 = vshrl.u32 %v6274, 7
  %v6276 = vsub.s32 0, %v6275
  %v6277 = vrot.slane %v5678, %v6276
  %v6278 = vlaneseq
  %v6279 = vshrl.u32 %v6278, 7
  %v6280 = vsub.s32 0, %v6279
  %v6281 = vrot.slane %v5661, %v6280
  %v6282 = vlaneseq
  %v6283 = vshrl.u32 %v6282, 7
  %v6284 = vsub.s32 0, %v6283
  %v6285 = vrot.slane %v5675, %v6284
  %v6286 = vlaneseq
  %v6287 = vshrl.u32 %v6286, 7
  %v6288 = vsub.s32 0, %v6287
  %v6289 = vrot.slane %v5677, %v6288
  %v6290 = vlaneseq
  %v6291 = vshrl.u32 %v6290, 7
  %v6292 = vsub.s32 0, %v6291
  %v6293 = vrot.slane %v5679, %v6292
  %v6294 = vlaneseq
  %v6295 = vshrl.u32 %v6294, 7
  %v6296 = vsub.s32 0, %v6295
  %v6297 = vrot.slane %v5703, %v6296
  %v6298 = vlaneseq
  %v6299 = vshrl.u32 %v6298, 7
  %v6300 = vsub.s32 0, %v6299
  %v6301 = vrot.slane %v5717, %v6300
  %v6302 = vlaneseq
  %v6303 = vshrl.u32 %v6302, 7
  %v6304 = vsub.s32 0, %v6303
  %v6305 = vrot.slane %v5725, %v6304
  %v6306 = vlaneseq
  %v6307 = vshrl.u32 %v6306, 7
  %v6308 = vsub.s32 0, %v6307
  %v6309 = vrot.slane %v5727, %v6308
  %v6310 = vlaneseq
  %v6311 = vshrl.u32 %v6310, 7
  %v6312 = vsub.s32 0, %v6311
  %v6313 = vrot.slane %v5710, %v6312
  %v6314 = vlaneseq
  %v6315 = vshrl.u32 %v6314, 7
  %v6316 = vsub.s32 0, %v6315
  %v6317 = vrot.slane %v5724, %v6316
  %v6318 = vlaneseq
  %v6319 = vshrl.u32 %v6318, 7
  %v6320 = vsub.s32 0, %v6319
  %v6321 = vrot.slane %v5726, %v6320
  %v6322 = vlaneseq
  %v6323 = vshrl.u32 %v6322, 7
  %v6324 = vsub.s32 0, %v6323
  %v6325 = vrot.slane %v5728, %v6324
  %v6326 = vlaneseq
  %v6327 = vshrl.u32 %v6326, 7
  %v6328 = vsub.s32 0, %v6327
  %v6329 = vrot.slane %v5752, %v6328
  %v6330 = vlaneseq
  %v6331 = vshrl.u32 %v6330, 7
  %v6332 = vsub.s32 0, %v6331
  %v6333 = vrot.slane %v5766, %v6332
  %v6334 = vlaneseq
  %v6335 = vshrl.u32 %v6334, 7
  %v6336 = vsub.s32 0, %v6335
  %v6337 = vrot.slane %v5774, %v6336
  %v6338 = vlaneseq
  %v6339 = vshrl.u32 %v6338, 7
  %v6340 = vsub.s32 0, %v6339
  %v6341 = vrot.slane %v5776, %v6340
  %v6342 = vlaneseq
  %v6343 = vshrl.u32 %v6342, 7
  %v6344 = vsub.s32 0, %v6343
  %v6345 = vrot.slane %v5759, %v6344
  %v6346 = vlaneseq
  %v6347 = vshrl.u32 %v6346, 7
  %v6348 = vsub.s32 0, %v6347
  %v6349 = vrot.slane %v5773, %v6348
  %v6350 = vlaneseq
  %v6351 = vshrl.u32 %v6350, 7
  %v6352 = vsub.s32 0, %v6351
  %v6353 = vrot.slane %v5775, %v6352
  %v6354 = vlaneseq
  %v6355 = vshrl.u32 %v6354, 7
  %v6356 = vsub.s32 0, %v6355
  %v6357 = vrot.slane %v5777, %v6356
  %v6358 = vlaneseq
  %v6359 = vshrl.u32 %v6358, 7
  %v6360 = vsub.s32 0, %v6359
  %v6361 = vrot.slane %v5801, %v6360
  %v6362 = vlaneseq
  %v6363 = vshrl.u32 %v6362, 7
  %v6364 = vsub.s32 0, %v6363
  %v6365 = vrot.slane %v5815, %v6364
  %v6366 = vlaneseq
  %v6367 = vshrl.u32 %v6366, 7
  %v6368 = vsub.s32 0, %v6367
  %v6369 = vrot.slane %v5823, %v6368
  %v6370 = vlaneseq
  %v6371 = vshrl.u32 %v6370, 7
  %v6372 = vsub.s32 0, %v6371
  %v6373 = vrot.slane %v5825, %v6372
  %v6374 = vlaneseq
  %v6375 = vshrl.u32 %v6374, 7
  %v6376 = vsub.s32 0, %v6375
  %v6377 = vrot.slane %v5808, %v6376
  %v6378 = vlaneseq
  %v6379 = vshrl.u32 %v6378, 7
  %v6380 = vsub.s32 0, %v6379
  %v6381 = vrot.slane %v5822, %v6380
  %v6382 = vlaneseq
  %v6383 = vshrl.u32 %v6382, 7
  %v6384 = vsub.s32 0, %v6383
  %v6385 = vrot.slane %v5824, %v6384
  %v6386 = vlaneseq
  %v6387 = vshrl.u32 %v6386, 7
  %v6388 = vsub.s32 0, %v6387
  %v6389 = vrot.slane %v5826, %v6388
  %v6390 = vlaneseq
  %v6391 = vshrl.u32 %v6390, 7
  %v6392 = vsub.s32 0, %v6391
  %v6393 = vrot.slane %v5850, %v6392
  %v6394 = vlaneseq
  %v6395 = vshrl.u32 %v6394, 7
  %v6396 = vsub.s32 0, %v6395
  %v6397 = vrot.slane %v5864, %v6396
  %v6398 = vlaneseq
  %v6399 = vshrl.u32 %v6398, 7
  %v6400 = vsub.s32 0, %v6399
  %v6401 = vrot.slane %v5872, %v6400
  %v6402 = vlaneseq
  %v6403 = vshrl.u32 %v6402, 7
  %v6404 = vsub.s32 0, %v6403
  %v6405 = vrot.slane %v5874, %v6404
  %v6406 = vlaneseq
  %v6407 = vshrl.u32 %v6406, 7
  %v6408 = vsub.s32 0, %v6407
  %v6409 = vrot.slane %v5857, %v6408
  %v6410 = vlaneseq
  %v6411 = vshrl.u32 %v6410, 7
  %v6412 = vsub.s32 0, %v6411
  %v6413 = vrot.slane %v5871, %v6412
  %v6414 = vlaneseq
  %v6415 = vshrl.u32 %v6414, 7
  %v6416 = vsub.s32 0, %v6415
  %v6417 = vrot.slane %v5873, %v6416
  %v6418 = vlaneseq
  %v6419 = vshrl.u32 %v6418, 7
  %v6420 = vsub.s32 0, %v6419
  %v6421 = vrot.slane %v5875, %v6420
  %v6422 = vlaneseq
  %v6423 = vshrl.u32 %v6422, 7
  %v6424 = vsub.s32 0, %v6423
  %v6425 = vrot.slane %v5899, %v6424
  %v6426 = vlaneseq
  %v6427 = vshrl.u32 %v6426, 7
  %v6428 = vsub.s32 0, %v6427
  %v6429 = vrot.slane %v5913, %v6428
  %v6430 = vlaneseq
  %v6431 = vshrl.u32 %v6430, 7
  %v6432 = vsub.s32 0, %v6431
  %v6433 = vrot.slane %v5921, %v6432
  %v6434 = vlaneseq
  %v6435 = vshrl.u32 %v6434, 7
  %v6436 = vsub.s32 0, %v6435
  %v6437 = vrot.slane %v5923, %v6436
  %v6438 = vlaneseq
  %v6439 = vshrl.u32 %v6438, 7
  %v6440 = vsub.s32 0, %v6439
  %v6441 = vrot.slane %v5906, %v6440
  %v6442 = vlaneseq
  %v6443 = vshrl.u32 %v6442, 7
  %v6444 = vsub.s32 0, %v6443
  %v6445 = vrot.slane %v5920, %v6444
  %v6446 = vlaneseq
  %v6447 = vshrl.u32 %v6446, 7
  %v6448 = vsub.s32 0, %v6447
  %v6449 = vrot.slane %v5922, %v6448
  %v6450 = vlaneseq
  %v6451 = vshrl.u32 %v6450, 7
  %v6452 = vsub.s32 0, %v6451
  %v6453 = vrot.slane %v5924, %v6452
  %v6454 = vlaneseq
  %v6455 = vshrl.u32 %v6454, 7
  %v6456 = vsub.s32 0, %v6455
  %v6457 = vrot.slane %v5948, %v6456
  %v6458 = vlaneseq
  %v6459 = vshrl.u32 %v6458, 7
  %v6460 = vsub.s32 0, %v6459
  %v6461 = vrot.slane %v5962, %v6460
  %v6462 = vlaneseq
  %v6463 = vshrl.u32 %v6462, 7
  %v6464 = vsub.s32 0, %v6463
  %v6465 = vrot.slane %v5970, %v6464
  %v6466 = vlaneseq
  %v6467 = vshrl.u32 %v6466, 7
  %v6468 = vsub.s32 0, %v6467
  %v6469 = vrot.slane %v5972, %v6468
  %v6470 = vlaneseq
  %v6471 = vshrl.u32 %v6470, 7
  %v6472 = vsub.s32 0, %v6471
  %v6473 = vrot.slane %v5955, %v6472
  %v6474 = vlaneseq
  %v6475 = vshrl.u32 %v6474, 7
  %v6476 = vsub.s32 0, %v6475
  %v6477 = vrot.slane %v5969, %v6476
  %v6478 = vlaneseq
  %v6479 = vshrl.u32 %v6478, 7
  %v6480 = vsub.s32 0, %v6479
  %v6481 = vrot.slane %v5971, %v6480
  %v6482 = vlaneseq
  %v6483 = vshrl.u32 %v6482, 7
  %v6484 = vsub.s32 0, %v6483
  %v6485 = vrot.slane %v5973, %v6484
  %v6614 = vmul.f32 %v5977, %v46
  %v6615 = vmul.f32 %v5977, %v47
  %v6616 = vmul.f32 %v5977, %v48
  %v6617 = vmul.f32 %v5977, %v49
  %v6618 = vmul.f32 %v5981, %v46
  %v6619 = vmul.f32 %v5981, %v47
  %v6620 = vmul.f32 %v5981, %v48
  %v6621 = vmul.f32 %v5981, %v49
  %v6622 = vmul.f32 %v5985, %v46
  %v6623 = vmul.f32 %v5985, %v47
  %v6624 = vmul.f32 %v5985, %v48
  %v6625 = vmul.f32 %v5985, %v49
  %v6626 = vmul.f32 %v5989, %v46
  %v6627 = vmul.f32 %v5989, %v47
  %v6628 = vmul.f32 %v5989, %v48
  %v6629 = vmul.f32 %v5989, %v49
  %v6630 = vmul.f32 %v5993, %v46
  %v6631 = vmul.f32 %v5993, %v47
  %v6632 = vmul.f32 %v5993, %v48
  %v6633 = vmul.f32 %v5993, %v49
  %v6634 = vmul.f32 %v5997, %v46
  %v6635 = vmul.f32 %v5997, %v47
  %v6636 = vmul.f32 %v5997, %v48
  %v6637 = vmul.f32 %v5997, %v49
  %v6638 = vmul.f32 %v6001, %v46
  %v6639 = vmul.f32 %v6001, %v47
  %v6640 = vmul.f32 %v6001, %v48
  %v6641 = vmul.f32 %v6001, %v49
  %v6642 = vmul.f32 %v6005, %v46
  %v6643 = vmul.f32 %v6005, %v47
  %v6644 = vmul.f32 %v6005, %v48
  %v6645 = vmul.f32 %v6005, %v49
  %v6646 = vmul.f32 %v6009, %v46
  %v6647 = vmul.f32 %v6009, %v47
  %v6648 = vmul.f32 %v6009, %v48
  %v6649 = vmul.f32 %v6009, %v49
  %v6650 = vmul.f32 %v6013, %v46
  %v6651 = vmul.f32 %v6013, %v47
  %v6652 = vmul.f32 %v6013, %v48
  %v6653 = vmul.f32 %v6013, %v49
  %v6654 = vmul.f32 %v6017, %v46
  %v6655 = vmul.f32 %v6017, %v47
  %v6656 = vmul.f32 %v6017, %v48
  %v6657 = vmul.f32 %v6017, %v49
  %v6658 = vmul.f32 %v6021, %v46
  %v6659 = vmul.f32 %v6021, %v47
  %v6660 = vmul.f32 %v6021, %v48
  %v6661 = vmul.f32 %v6021, %v49
  %v6662 = vmul.f32 %v6025, %v46
  %v6663 = vmul.f32 %v6025, %v47
  %v6664 = vmul.f32 %v6025, %v48
  %v6665 = vmul.f32 %v6025, %v49
  %v6666 = vmul.f32 %v6029, %v46
  %v6667 = vmul.f32 %v6029, %v47
  %v6668 = vmul.f32 %v6029, %v48
  %v6669 = vmul.f32 %v6029, %v49
  %v6670 = vmul.f32 %v6033, %v46
  %v6671 = vmul.f32 %v6033, %v47
  %v6672 = vmul.f32 %v6033, %v48
  %v6673 = vmul.f32 %v6033, %v49
  %v6674 = vmul.f32 %v6037, %v46
  %v6675 = vmul.f32 %v6037, %v47
  %v6676 = vmul.f32 %v6037, %v48
  %v6677 = vmul.f32 %v6037, %v49
  %v6678 = vmul.f32 %v6041, %v46
  %v6679 = vmul.f32 %v6041, %v47
  %v6680 = vmul.f32 %v6041, %v48
  %v6681 = vmul.f32 %v6041, %v49
  %v6682 = vmul.f32 %v6045, %v46
  %v6683 = vmul.f32 %v6045, %v47
  %v6684 = vmul.f32 %v6045, %v48
  %v6685 = vmul.f32 %v6045, %v49
  %v6686 = vmul.f32 %v6049, %v46
  %v6687 = vmul.f32 %v6049, %v47
  %v6688 = vmul.f32 %v6049, %v48
  %v6689 = vmul.f32 %v6049, %v49
  %v6690 = vmul.f32 %v6053, %v46
  %v6691 = vmul.f32 %v6053, %v47
  %v6692 = vmul.f32 %v6053, %v48
  %v6693 = vmul.f32 %v6053, %v49
  %v6694 = vmul.f32 %v6057, %v46
  %v6695 = vmul.f32 %v6057, %v47
  %v6696 = vmul.f32 %v6057, %v48
  %v6697 = vmul.f32 %v6057, %v49
  %v6698 = vmul.f32 %v6061, %v46
  %v6699 = vmul.f32 %v6061, %v47
  %v6700 = vmul.f32 %v6061, %v48
  %v6701 = vmul.f32 %v6061, %v49
  %v6702 = vmul.f32 %v6065, %v46
  %v6703 = vmul.f32 %v6065, %v47
  %v6704 = vmul.f32 %v6065, %v48
  %v6705 = vmul.f32 %v6065, %v49
  %v6706 = vmul.f32 %v6069, %v46
  %v6707 = vmul.f32 %v6069, %v47
  %v6708 = vmul.f32 %v6069, %v48
  %v6709 = vmul.f32 %v6069, %v49
  %v6710 = vmul.f32 %v6073, %v46
  %v6711 = vmul.f32 %v6073, %v47
  %v6712 = vmul.f32 %v6073, %v48
  %v6713 = vmul.f32 %v6073, %v49
  %v6714 = vmul.f32 %v6077, %v46
  %v6715 = vmul.f32 %v6077, %v47
  %v6716 = vmul.f32 %v6077, %v48
  %v6717 = vmul.f32 %v6077, %v49
  %v6718 = vmul.f32 %v6081, %v46
  %v6719 = vmul.f32 %v6081, %v47
  %v6720 = vmul.f32 %v6081, %v48
  %v6721 = vmul.f32 %v6081, %v49
  %v6722 = vmul.f32 %v6085, %v46
  %v6723 = vmul.f32 %v6085, %v47
  %v6724 = vmul.f32 %v6085, %v48
  %v6725 = vmul.f32 %v6085, %v49
  %v6726 = vmul.f32 %v6089, %v46
  %v6727 = vmul.f32 %v6089, %v47
  %v6728 = vmul.f32 %v6089, %v48
  %v6729 = vmul.f32 %v6089, %v49
  %v6730 = vmul.f32 %v6093, %v46
  %v6731 = vmul.f32 %v6093, %v47
  %v6732 = vmul.f32 %v6093, %v48
  %v6733 = vmul.f32 %v6093, %v49
  %v6734 = vmul.f32 %v6097, %v46
  %v6735 = vmul.f32 %v6097, %v47
  %v6736 = vmul.f32 %v6097, %v48
  %v6737 = vmul.f32 %v6097, %v49
  %v6738 = vmul.f32 %v6101, %v46
  %v6739 = vmul.f32 %v6101, %v47
  %v6740 = vmul.f32 %v6101, %v48
  %v6741 = vmul.f32 %v6101, %v49
  %v6742 = vmul.f32 %v6105, %v46
  %v6743 = vmul.f32 %v6105, %v47
  %v6744 = vmul.f32 %v6105, %v48
  %v6745 = vmul.f32 %v6105, %v49
  %v6746 = vmul.f32 %v6109, %v46
  %v6747 = vmul.f32 %v6109, %v47
  %v6748 = vmul.f32 %v6109, %v48
  %v6749 = vmul.f32 %v6109, %v49
  %v6750 = vmul.f32 %v6113, %v46
  %v6751 = vmul.f32 %v6113, %v47
  %v6752 = vmul.f32 %v6113, %v48
  %v6753 = vmul.f32 %v6113, %v49
  %v6754 = vmul.f32 %v6117, %v46
  %v6755 = vmul.f32 %v6117, %v47
  %v6756 = vmul.f32 %v6117, %v48
  %v6757 = vmul.f32 %v6117, %v49
  %v6758 = vmul.f32 %v6121, %v46
  %v6759 = vmul.f32 %v6121, %v47
  %v6760 = vmul.f32 %v6121, %v48
  %v6761 = vmul.f32 %v6121, %v49
  %v6762 = vmul.f32 %v6125, %v46
  %v6763 = vmul.f32 %v6125, %v47
  %v6764 = vmul.f32 %v6125, %v48
  %v6765 = vmul.f32 %v6125, %v49
  %v6766 = vmul.f32 %v6129, %v46
  %v6767 = vmul.f32 %v6129, %v47
  %v6768 = vmul.f32 %v6129, %v48
  %v6769 = vmul.f32 %v6129, %v49
  %v6770 = vmul.f32 %v6133, %v46
  %v6771 = vmul.f32 %v6133, %v47
  %v6772 = vmul.f32 %v6133, %v48
  %v6773 = vmul.f32 %v6133, %v49
  %v6774 = vmul.f32 %v6137, %v46
  %v6775 = vmul.f32 %v6137, %v47
  %v6776 = vmul.f32 %v6137, %v48
  %v6777 = vmul.f32 %v6137, %v49
  %v6778 = vmul.f32 %v6141, %v46
  %v6779 = vmul.f32 %v6141, %v47
  %v6780 = vmul.f32 %v6141, %v48
  %v6781 = vmul.f32 %v6141, %v49
  %v6782 = vmul.f32 %v6145, %v46
  %v6783 = vmul.f32 %v6145, %v47
  %v6784 = vmul.f32 %v6145, %v48
  %v6785 = vmul.f32 %v6145, %v49
  %v6786 = vmul.f32 %v6149, %v46
  %v6787 = vmul.f32 %v6149, %v47
  %v6788 = vmul.f32 %v6149, %v48
  %v6789 = vmul.f32 %v6149, %v49
  %v6790 = vmul.f32 %v6153, %v46
  %v6791 = vmul.f32 %v6153, %v47
  %v6792 = vmul.f32 %v6153, %v48
  %v6793 = vmul.f32 %v6153, %v49
  %v6794 = vmul.f32 %v6157, %v46
  %v6795 = vmul.f32 %v6157, %v47
  %v6796 = vmul.f32 %v6157, %v48
  %v6797 = vmul.f32 %v6157, %v49
  %v6798 = vmul.f32 %v6161, %v46
  %v6799 = vmul.f32 %v6161, %v47
  %v6800 = vmul.f32 %v6161, %v48
  %v6801 = vmul.f32 %v6161, %v49
  %v6802 = vmul.f32 %v6165, %v46
  %v6803 = vmul.f32 %v6165, %v47
  %v6804 = vmul.f32 %v6165, %v48
  %v6805 = vmul.f32 %v6165, %v49
  %v6806 = vmul.f32 %v6169, %v46
  %v6807 = vmul.f32 %v6169, %v47
  %v6808 = vmul.f32 %v6169, %v48
  %v6809 = vmul.f32 %v6169, %v49
  %v6810 = vmul.f32 %v6173, %v46
  %v6811 = vmul.f32 %v6173, %v47
  %v6812 = vmul.f32 %v6173, %v48
  %v6813 = vmul.f32 %v6173, %v49
  %v6814 = vmul.f32 %v6177, %v46
  %v6815 = vmul.f32 %v6177, %v47
  %v6816 = vmul.f32 %v6177, %v48
  %v6817 = vmul.f32 %v6177, %v49
  %v6818 = vmul.f32 %v6181, %v46
  %v6819 = vmul.f32 %v6181, %v47
  %v6820 = vmul.f32 %v6181, %v48
  %v6821 = vmul.f32 %v6181, %v49
  %v6822 = vmul.f32 %v6185, %v46
  %v6823 = vmul.f32 %v6185, %v47
  %v6824 = vmul.f32 %v6185, %v48
  %v6825 = vmul.f32 %v6185, %v49
  %v6826 = vmul.f32 %v6189, %v46
  %v6827 = vmul.f32 %v6189, %v47
  %v6828 = vmul.f32 %v6189, %v48
  %v6829 = vmul.f32 %v6189, %v49
  %v6830 = vmul.f32 %v6193, %v46
  %v6831 = vmul.f32 %v6193, %v47
  %v6832 = vmul.f32 %v6193, %v48
  %v6833 = vmul.f32 %v6193, %v49
  %v6834 = vmul.f32 %v6197, %v46
  %v6835 = vmul.f32 %v6197, %v47
  %v6836 = vmul.f32 %v6197, %v48
  %v6837 = vmul.f32 %v6197, %v49
  %v6838 = vmul.f32 %v6201, %v46
  %v6839 = vmul.f32 %v6201, %v47
  %v6840 = vmul.f32 %v6201, %v48
  %v6841 = vmul.f32 %v6201, %v49
  %v6842 = vmul.f32 %v6205, %v46
  %v6843 = vmul.f32 %v6205, %v47
  %v6844 = vmul.f32 %v6205, %v48
  %v6845 = vmul.f32 %v6205, %v49
  %v6846 = vmul.f32 %v6209, %v46
  %v6847 = vmul.f32 %v6209, %v47
  %v6848 = vmul.f32 %v6209, %v48
  %v6849 = vmul.f32 %v6209, %v49
  %v6850 = vmul.f32 %v6213, %v46
  %v6851 = vmul.f32 %v6213, %v47
  %v6852 = vmul.f32 %v6213, %v48
  %v6853 = vmul.f32 %v6213, %v49
  %v6854 = vmul.f32 %v6217, %v46
  %v6855 = vmul.f32 %v6217, %v47
  %v6856 = vmul.f32 %v6217, %v48
  %v6857 = vmul.f32 %v6217, %v49
  %v6858 = vmul.f32 %v6221, %v46
  %v6859 = vmul.f32 %v6221, %v47
  %v6860 = vmul.f32 %v6221, %v48
  %v6861 = vmul.f32 %v6221, %v49
  %v6862 = vmul.f32 %v6225, %v46
  %v6863 = vmul.f32 %v6225, %v47
  %v6864 = vmul.f32 %v6225, %v48
  %v6865 = vmul.f32 %v6225, %v49
  %v6866 = vmul.f32 %v6229, %v46
  %v6867 = vmul.f32 %v6229, %v47
  %v6868 = vmul.f32 %v6229, %v48
  %v6869 = vmul.f32 %v6229, %v49
  %v6870 = vmul.f32 %v6233, %v46
  %v6871 = vmul.f32 %v6233, %v47
  %v6872 = vmul.f32 %v6233, %v48
  %v6873 = vmul.f32 %v6233, %v49
  %v6874 = vmul.f32 %v6237, %v46
  %v6875 = vmul.f32 %v6237, %v47
  %v6876 = vmul.f32 %v6237, %v48
  %v6877 = vmul.f32 %v6237, %v49
  %v6878 = vmul.f32 %v6241, %v46
  %v6879 = vmul.f32 %v6241, %v47
  %v6880 = vmul.f32 %v6241, %v48
  %v6881 = vmul.f32 %v6241, %v49
  %v6882 = vmul.f32 %v6245, %v46
  %v6883 = vmul.f32 %v6245, %v47
  %v6884 = vmul.f32 %v6245, %v48
  %v6885 = vmul.f32 %v6245, %v49
  %v6886 = vmul.f32 %v6249, %v46
  %v6887 = vmul.f32 %v6249, %v47
  %v6888 = vmul.f32 %v6249, %v48
  %v6889 = vmul.f32 %v6249, %v49
  %v6890 = vmul.f32 %v6253, %v46
  %v6891 = vmul.f32 %v6253, %v47
  %v6892 = vmul.f32 %v6253, %v48
  %v6893 = vmul.f32 %v6253, %v49
  %v6894 = vmul.f32 %v6257, %v46
  %v6895 = vmul.f32 %v6257, %v47
  %v6896 = vmul.f32 %v6257, %v48
  %v6897 = vmul.f32 %v6257, %v49
  %v6898 = vmul.f32 %v6261, %v46
  %v6899 = vmul.f32 %v6261, %v47
  %v6900 = vmul.f32 %v6261, %v48
  %v6901 = vmul.f32 %v6261, %v49
  %v6902 = vmul.f32 %v6265, %v46
  %v6903 = vmul.f32 %v6265, %v47
  %v6904 = vmul.f32 %v6265, %v48
  %v6905 = vmul.f32 %v6265, %v49
  %v6906 = vmul.f32 %v6269, %v46
  %v6907 = vmul.f32 %v6269, %v47
  %v6908 = vmul.f32 %v6269, %v48
  %v6909 = vmul.f32 %v6269, %v49
  %v6910 = vmul.f32 %v6273, %v46
  %v6911 = vmul.f32 %v6273, %v47
  %v6912 = vmul.f32 %v6273, %v48
  %v6913 = vmul.f32 %v6273, %v49
  %v6914 = vmul.f32 %v6277, %v46
  %v6915 = vmul.f32 %v6277, %v47
  %v6916 = vmul.f32 %v6277, %v48
  %v6917 = vmul.f32 %v6277, %v49
  %v6918 = vmul.f32 %v6281, %v46
  %v6919 = vmul.f32 %v6281, %v47
  %v6920 = vmul.f32 %v6281, %v48
  %v6921 = vmul.f32 %v6281, %v49
  %v6922 = vmul.f32 %v6285, %v46
  %v6923 = vmul.f32 %v6285, %v47
  %v6924 = vmul.f32 %v6285, %v48
  %v6925 = vmul.f32 %v6285, %v49
  %v6926 = vmul.f32 %v6289, %v46
  %v6927 = vmul.f32 %v6289, %v47
  %v6928 = vmul.f32 %v6289, %v48
  %v6929 = vmul.f32 %v6289, %v49
  %v6930 = vmul.f32 %v6293, %v46
  %v6931 = vmul.f32 %v6293, %v47
  %v6932 = vmul.f32 %v6293, %v48
  %v6933 = vmul.f32 %v6293, %v49
  %v6934 = vmul.f32 %v6297, %v46
  %v6935 = vmul.f32 %v6297, %v47
  %v6936 = vmul.f32 %v6297, %v48
  %v6937 = vmul.f32 %v6297, %v49
  %v6938 = vmul.f32 %v6301, %v46
  %v6939 = vmul.f32 %v6301, %v47
  %v6940 = vmul.f32 %v6301, %v48
  %v6941 = vmul.f32 %v6301, %v49
  %v6942 = vmul.f32 %v6305, %v46
  %v6943 = vmul.f32 %v6305, %v47
  %v6944 = vmul.f32 %v6305, %v48
  %v6945 = vmul.f32 %v6305, %v49
  %v6946 = vmul.f32 %v6309, %v46
  %v6947 = vmul.f32 %v6309, %v47
  %v6948 = vmul.f32 %v6309, %v48
  %v6949 = vmul.f32 %v6309, %v49
  %v6950 = vmul.f32 %v6313, %v46
  %v6951 = vmul.f32 %v6313, %v47
  %v6952 = vmul.f32 %v6313, %v48
  %v6953 = vmul.f32 %v6313, %v49
  %v6954 = vmul.f32 %v6317, %v46
  %v6955 = vmul.f32 %v6317, %v47
  %v6956 = vmul.f32 %v6317, %v48
  %v6957 = vmul.f32 %v6317, %v49
  %v6958 = vmul.f32 %v6321, %v46
  %v6959 = vmul.f32 %v6321, %v47
  %v6960 = vmul.f32 %v6321, %v48
  %v6961 = vmul.f32 %v6321, %v49
  %v6962 = vmul.f32 %v6325, %v46
  %v6963 = vmul.f32 %v6325, %v47
  %v6964 = vmul.f32 %v6325, %v48
  %v6965 = vmul.f32 %v6325, %v49
  %v6966 = vmul.f32 %v6329, %v46
  %v6967 = vmul.f32 %v6329, %v47
  %v6968 = vmul.f32 %v6329, %v48
  %v6969 = vmul.f32 %v6329, %v49
  %v6970 = vmul.f32 %v6333, %v46
  %v6971 = vmul.f32 %v6333, %v47
  %v6972 = vmul.f32 %v6333, %v48
  %v6973 = vmul.f32 %v6333, %v49
  %v6974 = vmul.f32 %v6337, %v46
  %v6975 = vmul.f32 %v6337, %v47
  %v6976 = vmul.f32 %v6337, %v48
  %v6977 = vmul.f32 %v6337, %v49
  %v6978 = vmul.f32 %v6341, %v46
  %v6979 = vmul.f32 %v6341, %v47
  %v6980 = vmul.f32 %v6341, %v48
  %v6981 = vmul.f32 %v6341, %v49
  %v6982 = vmul.f32 %v6345, %v46
  %v6983 = vmul.f32 %v6345, %v47
  %v6984 = vmul.f32 %v6345, %v48
  %v6985 = vmul.f32 %v6345, %v49
  %v6986 = vmul.f32 %v6349, %v46
  %v6987 = vmul.f32 %v6349, %v47
  %v6988 = vmul.f32 %v6349, %v48
  %v6989 = vmul.f32 %v6349, %v49
  %v6990 = vmul.f32 %v6353, %v46
  %v6991 = vmul.f32 %v6353, %v47
  %v6992 = vmul.f32 %v6353, %v48
  %v6993 = vmul.f32 %v6353, %v49
  %v6994 = vmul.f32 %v6357, %v46
  %v6995 = vmul.f32 %v6357, %v47
  %v6996 = vmul.f32 %v6357, %v48
  %v6997 = vmul.f32 %v6357, %v49
  %v6998 = vmul.f32 %v6361, %v46
  %v6999 = vmul.f32 %v6361, %v47
  %v7000 = vmul.f32 %v6361, %v48
  %v7001 = vmul.f32 %v6361, %v49
  %v7002 = vmul.f32 %v6365, %v46
  %v7003 = vmul.f32 %v6365, %v47
  %v7004 = vmul.f32 %v6365, %v48
  %v7005 = vmul.f32 %v6365, %v49
  %v7006 = vmul.f32 %v6369, %v46
  %v7007 = vmul.f32 %v6369, %v47
  %v7008 = vmul.f32 %v6369, %v48
  %v7009 = vmul.f32 %v6369, %v49
  %v7010 = vmul.f32 %v6373, %v46
  %v7011 = vmul.f32 %v6373, %v47
  %v7012 = vmul.f32 %v6373, %v48
  %v7013 = vmul.f32 %v6373, %v49
  %v7014 = vmul.f32 %v6377, %v46
  %v7015 = vmul.f32 %v6377, %v47
  %v7016 = vmul.f32 %v6377, %v48
  %v7017 = vmul.f32 %v6377, %v49
  %v7018 = vmul.f32 %v6381, %v46
  %v7019 = vmul.f32 %v6381, %v47
  %v7020 = vmul.f32 %v6381, %v48
  %v7021 = vmul.f32 %v6381, %v49
  %v7022 = vmul.f32 %v6385, %v46
  %v7023 = vmul.f32 %v6385, %v47
  %v7024 = vmul.f32 %v6385, %v48
  %v7025 = vmul.f32 %v6385, %v49
  %v7026 = vmul.f32 %v6389, %v46
  %v7027 = vmul.f32 %v6389, %v47
  %v7028 = vmul.f32 %v6389, %v48
  %v7029 = vmul.f32 %v6389, %v49
  %v7030 = vmul.f32 %v6393, %v46
  %v7031 = vmul.f32 %v6393, %v47
  %v7032 = vmul.f32 %v6393, %v48
  %v7033 = vmul.f32 %v6393, %v49
  %v7034 = vmul.f32 %v6397, %v46
  %v7035 = vmul.f32 %v6397, %v47
  %v7036 = vmul.f32 %v6397, %v48
  %v7037 = vmul.f32 %v6397, %v49
  %v7038 = vmul.f32 %v6401, %v46
  %v7039 = vmul.f32 %v6401, %v47
  %v7040 = vmul.f32 %v6401, %v48
  %v7041 = vmul.f32 %v6401, %v49
  %v7042 = vmul.f32 %v6405, %v46
  %v7043 = vmul.f32 %v6405, %v47
  %v7044 = vmul.f32 %v6405, %v48
  %v7045 = vmul.f32 %v6405, %v49
  %v7046 = vmul.f32 %v6409, %v46
  %v7047 = vmul.f32 %v6409, %v47
  %v7048 = vmul.f32 %v6409, %v48
  %v7049 = vmul.f32 %v6409, %v49
  %v7050 = vmul.f32 %v6413, %v46
  %v7051 = vmul.f32 %v6413, %v47
  %v7052 = vmul.f32 %v6413, %v48
  %v7053 = vmul.f32 %v6413, %v49
  %v7054 = vmul.f32 %v6417, %v46
  %v7055 = vmul.f32 %v6417, %v47
  %v7056 = vmul.f32 %v6417, %v48
  %v7057 = vmul.f32 %v6417, %v49
  %v7058 = vmul.f32 %v6421, %v46
  %v7059 = vmul.f32 %v6421, %v47
  %v7060 = vmul.f32 %v6421, %v48
  %v7061 = vmul.f32 %v6421, %v49
  %v7062 = vmul.f32 %v6425, %v46
  %v7063 = vmul.f32 %v6425, %v47
  %v7064 = vmul.f32 %v6425, %v48
  %v7065 = vmul.f32 %v6425, %v49
  %v7066 = vmul.f32 %v6429, %v46
  %v7067 = vmul.f32 %v6429, %v47
  %v7068 = vmul.f32 %v6429, %v48
  %v7069 = vmul.f32 %v6429, %v49
  %v7070 = vmul.f32 %v6433, %v46
  %v7071 = vmul.f32 %v6433, %v47
  %v7072 = vmul.f32 %v6433, %v48
  %v7073 = vmul.f32 %v6433, %v49
  %v7074 = vmul.f32 %v6437, %v46
  %v7075 = vmul.f32 %v6437, %v47
  %v7076 = vmul.f32 %v6437, %v48
  %v7077 = vmul.f32 %v6437, %v49
  %v7078 = vmul.f32 %v6441, %v46
  %v7079 = vmul.f32 %v6441, %v47
  %v7080 = vmul.f32 %v6441, %v48
  %v7081 = vmul.f32 %v6441, %v49
  %v7082 = vmul.f32 %v6445, %v46
  %v7083 = vmul.f32 %v6445, %v47
  %v7084 = vmul.f32 %v6445, %v48
  %v7085 = vmul.f32 %v6445, %v49
  %v7086 = vmul.f32 %v6449, %v46
  %v7087 = vmul.f32 %v6449, %v47
  %v7088 = vmul.f32 %v6449, %v48
  %v7089 = vmul.f32 %v6449, %v49
  %v7090 = vmul.f32 %v6453, %v46
  %v7091 = vmul.f32 %v6453, %v47
  %v7092 = vmul.f32 %v6453, %v48
  %v7093 = vmul.f32 %v6453, %v49
  %v7094 = vmul.f32 %v6457, %v46
  %v7095 = vmul.f32 %v6457, %v47
  %v7096 = vmul.f32 %v6457, %v48
  %v7097 = vmul.f32 %v6457, %v49
  %v7098 = vmul.f32 %v6461, %v46
  %v7099 = vmul.f32 %v6461, %v47
  %v7100 = vmul.f32 %v6461, %v48
  %v7101 = vmul.f32 %v6461, %v49
  %v7102 = vmul.f32 %v6465, %v46
  %v7103 = vmul.f32 %v6465, %v47
  %v7104 = vmul.f32 %v6465, %v48
  %v7105 = vmul.f32 %v6465, %v49
  %v7106 = vmul.f32 %v6469, %v46
  %v7107 = vmul.f32 %v6469, %v47
  %v7108 = vmul.f32 %v6469, %v48
  %v7109 = vmul.f32 %v6469, %v49
  %v7110 = vmul.f32 %v6473, %v46
  %v7111 = vmul.f32 %v6473, %v47
  %v7112 = vmul.f32 %v6473, %v48
  %v7113 = vmul.f32 %v6473, %v49
  %v7114 = vmul.f32 %v6477, %v46
  %v7115 = vmul.f32 %v6477, %v47
  %v7116 = vmul.f32 %v6477, %v48
  %v7117 = vmul.f32 %v6477, %v49
  %v7118 = vmul.f32 %v6481, %v46
  %v7119 = vmul.f32 %v6481, %v47
  %v7120 = vmul.f32 %v6481, %v48
  %v7121 = vmul.f32 %v6481, %v49
  %v7122 = vmul.f32 %v6485, %v46
  %v7123 = vmul.f32 %v6485, %v47
  %v7124 = vmul.f32 %v6485, %v48
  %v7125 = vmul.f32 %v6485, %v49
  %v7126 = vmul.f32 %v6614, %v4662
  %v7127 = vmul.f32 %v6615, %v4663
  %v7128 = vmul.f32 %v6616, %v4664
  %v7129 = vmul.f32 %v6617, %v4665
  %v7130 = vmul.f32 %v6618, %v4666
  %v7131 = vmul.f32 %v6619, %v4667
  %v7132 = vmul.f32 %v6620, %v4668
  %v7133 = vmul.f32 %v6621, %v4669
  %v7134 = vmul.f32 %v6622, %v4670
  %v7135 = vmul.f32 %v6623, %v4671
  %v7136 = vmul.f32 %v6624, %v4672
  %v7137 = vmul.f32 %v6625, %v4673
  %v7138 = vmul.f32 %v6626, %v4674
  %v7139 = vmul.f32 %v6627, %v4675
  %v7140 = vmul.f32 %v6628, %v4676
  %v7141 = vmul.f32 %v6629, %v4677
  %v7142 = vmul.f32 %v6630, %v4678
  %v7143 = vmul.f32 %v6631, %v4679
  %v7144 = vmul.f32 %v6632, %v4680
  %v7145 = vmul.f32 %v6633, %v4681
  %v7146 = vmul.f32 %v6634, %v4682
  %v7147 = vmul.f32 %v6635, %v4683
  %v7148 = vmul.f32 %v6636, %v4684
  %v7149 = vmul.f32 %v6637, %v4685
  %v7150 = vmul.f32 %v6638, %v4686
  %v7151 = vmul.f32 %v6639, %v4687
  %v7152 = vmul.f32 %v6640, %v4688
  %v7153 = vmul.f32 %v6641, %v4689
  %v7154 = vmul.f32 %v6642, %v4690
  %v7155 = vmul.f32 %v6643, %v4691
  %v7156 = vmul.f32 %v6644, %v4692
  %v7157 = vmul.f32 %v6645, %v4693
  %v7158 = vmul.f32 %v6646, %v4694
  %v7159 = vmul.f32 %v6647, %v4695
  %v7160 = vmul.f32 %v6648, %v4696
  %v7161 = vmul.f32 %v6649, %v4697
  %v7162 = vmul.f32 %v6650, %v4698
  %v7163 = vmul.f32 %v6651, %v4699
  %v7164 = vmul.f32 %v6652, %v4700
  %v7165 = vmul.f32 %v6653, %v4701
  %v7166 = vmul.f32 %v6654, %v4702
  %v7167 = vmul.f32 %v6655, %v4703
  %v7168 = vmul.f32 %v6656, %v4704
  %v7169 = vmul.f32 %v6657, %v4705
  %v7170 = vmul.f32 %v6658, %v4706
  %v7171 = vmul.f32 %v6659, %v4707
  %v7172 = vmul.f32 %v6660, %v4708
  %v7173 = vmul.f32 %v6661, %v4709
  %v7174 = vmul.f32 %v6662, %v4710
  %v7175 = vmul.f32 %v6663, %v4711
  %v7176 = vmul.f32 %v6664, %v4712
  %v7177 = vmul.f32 %v6665, %v4713
  %v7178 = vmul.f32 %v6666, %v4714
  %v7179 = vmul.f32 %v6667, %v4715
  %v7180 = vmul.f32 %v6668, %v4716
  %v7181 = vmul.f32 %v6669, %v4717
  %v7182 = vmul.f32 %v6670, %v4718
  %v7183 = vmul.f32 %v6671, %v4719
  %v7184 = vmul.f32 %v6672, %v4720
  %v7185 = vmul.f32 %v6673, %v4721
  %v7186 = vmul.f32 %v6674, %v4722
  %v7187 = vmul.f32 %v6675, %v4723
  %v7188 = vmul.f32 %v6676, %v4724
  %v7189 = vmul.f32 %v6677, %v4725
  %v7190 = vmul.f32 %v6678, %v4726
  %v7191 = vmul.f32 %v6679, %v4727
  %v7192 = vmul.f32 %v6680, %v4728
  %v7193 = vmul.f32 %v6681, %v4729
  %v7194 = vmul.f32 %v6682, %v4730
  %v7195 = vmul.f32 %v6683, %v4731
  %v7196 = vmul.f32 %v6684, %v4732
  %v7197 = vmul.f32 %v6685, %v4733
  %v7198 = vmul.f32 %v6686, %v4734
  %v7199 = vmul.f32 %v6687, %v4735
  %v7200 = vmul.f32 %v6688, %v4736
  %v7201 = vmul.f32 %v6689, %v4737
  %v7202 = vmul.f32 %v6690, %v4738
  %v7203 = vmul.f32 %v6691, %v4739
  %v7204 = vmul.f32 %v6692, %v4740
  %v7205 = vmul.f32 %v6693, %v4741
  %v7206 = vmul.f32 %v6694, %v4742
  %v7207 = vmul.f32 %v6695, %v4743
  %v7208 = vmul.f32 %v6696, %v4744
  %v7209 = vmul.f32 %v6697, %v4745
  %v7210 = vmul.f32 %v6698, %v4746
  %v7211 = vmul.f32 %v6699, %v4747
  %v7212 = vmul.f32 %v6700, %v4748
  %v7213 = vmul.f32 %v6701, %v4749
  %v7214 = vmul.f32 %v6702, %v4750
  %v7215 = vmul.f32 %v6703, %v4751
  %v7216 = vmul.f32 %v6704, %v4752
  %v7217 = vmul.f32 %v6705, %v4753
  %v7218 = vmul.f32 %v6706, %v4754
  %v7219 = vmul.f32 %v6707, %v4755
  %v7220 = vmul.f32 %v6708, %v4756
  %v7221 = vmul.f32 %v6709, %v4757
  %v7222 = vmul.f32 %v6710, %v4758
  %v7223 = vmul.f32 %v6711, %v4759
  %v7224 = vmul.f32 %v6712, %v4760
  %v7225 = vmul.f32 %v6713, %v4761
  %v7226 = vmul.f32 %v6714, %v4762
  %v7227 = vmul.f32 %v6715, %v4763
  %v7228 = vmul.f32 %v6716, %v4764
  %v7229 = vmul.f32 %v6717, %v4765
  %v7230 = vmul.f32 %v6718, %v4766
  %v7231 = vmul.f32 %v6719, %v4767
  %v7232 = vmul.f32 %v6720, %v4768
  %v7233 = vmul.f32 %v6721, %v4769
  %v7234 = vmul.f32 %v6722, %v4770
  %v7235 = vmul.f32 %v6723, %v4771
  %v7236 = vmul.f32 %v6724, %v4772
  %v7237 = vmul.f32 %v6725, %v4773
  %v7238 = vmul.f32 %v6726, %v4774
  %v7239 = vmul.f32 %v6727, %v4775
  %v7240 = vmul.f32 %v6728, %v4776
  %v7241 = vmul.f32 %v6729, %v4777
  %v7242 = vmul.f32 %v6730, %v4778
  %v7243 = vmul.f32 %v6731, %v4779
  %v7244 = vmul.f32 %v6732, %v4780
  %v7245 = vmul.f32 %v6733, %v4781
  %v7246 = vmul.f32 %v6734, %v4782
  %v7247 = vmul.f32 %v6735, %v4783
  %v7248 = vmul.f32 %v6736, %v4784
  %v7249 = vmul.f32 %v6737, %v4785
  %v7250 = vmul.f32 %v6738, %v4786
  %v7251 = vmul.f32 %v6739, %v4787
  %v7252 = vmul.f32 %v6740, %v4788
  %v7253 = vmul.f32 %v6741, %v4789
  %v7254 = vmul.f32 %v6742, %v4790
  %v7255 = vmul.f32 %v6743, %v4791
  %v7256 = vmul.f32 %v6744, %v4792
  %v7257 = vmul.f32 %v6745, %v4793
  %v7258 = vmul.f32 %v6746, %v4794
  %v7259 = vmul.f32 %v6747, %v4795
  %v7260 = vmul.f32 %v6748, %v4796
  %v7261 = vmul.f32 %v6749, %v4797
  %v7262 = vmul.f32 %v6750, %v4798
  %v7263 = vmul.f32 %v6751, %v4799
  %v7264 = vmul.f32 %v6752, %v4800
  %v7265 = vmul.f32 %v6753, %v4801
  %v7266 = vmul.f32 %v6754, %v4802
  %v7267 = vmul.f32 %v6755, %v4803
  %v7268 = vmul.f32 %v6756, %v4804
  %v7269 = vmul.f32 %v6757, %v4805
  %v7270 = vmul.f32 %v6758, %v4806
  %v7271 = vmul.f32 %v6759, %v4807
  %v7272 = vmul.f32 %v6760, %v4808
  %v7273 = vmul.f32 %v6761, %v4809
  %v7274 = vmul.f32 %v6762, %v4810
  %v7275 = vmul.f32 %v6763, %v4811
  %v7276 = vmul.f32 %v6764, %v4812
  %v7277 = vmul.f32 %v6765, %v4813
  %v7278 = vmul.f32 %v6766, %v4814
  %v7279 = vmul.f32 %v6767, %v4815
  %v7280 = vmul.f32 %v6768, %v4816
  %v7281 = vmul.f32 %v6769, %v4817
  %v7282 = vmul.f32 %v6770, %v4818
  %v7283 = vmul.f32 %v6771, %v4819
  %v7284 = vmul.f32 %v6772, %v4820
  %v7285 = vmul.f32 %v6773, %v4821
  %v7286 = vmul.f32 %v6774, %v4822
  %v7287 = vmul.f32 %v6775, %v4823
  %v7288 = vmul.f32 %v6776, %v4824
  %v7289 = vmul.f32 %v6777, %v4825
  %v7290 = vmul.f32 %v6778, %v4826
  %v7291 = vmul.f32 %v6779, %v4827
  %v7292 = vmul.f32 %v6780, %v4828
  %v7293 = vmul.f32 %v6781, %v4829
  %v7294 = vmul.f32 %v6782, %v4830
  %v7295 = vmul.f32 %v6783, %v4831
  %v7296 = vmul.f32 %v6784, %v4832
  %v7297 = vmul.f32 %v6785, %v4833
  %v7298 = vmul.f32 %v6786, %v4834
  %v7299 = vmul.f32 %v6787, %v4835
  %v7300 = vmul.f32 %v6788, %v4836
  %v7301 = vmul.f32 %v6789, %v4837
  %v7302 = vmul.f32 %v6790, %v4838
  %v7303 = vmul.f32 %v6791, %v4839
  %v7304 = vmul.f32 %v6792, %v4840
  %v7305 = vmul.f32 %v6793, %v4841
  %v7306 = vmul.f32 %v6794, %v4842
  %v7307 = vmul.f32 %v6795, %v4843
  %v7308 = vmul.f32 %v6796, %v4844
  %v7309 = vmul.f32 %v6797, %v4845
  %v7310 = vmul.f32 %v6798, %v4846
  %v7311 = vmul.f32 %v6799, %v4847
  %v7312 = vmul.f32 %v6800, %v4848
  %v7313 = vmul.f32 %v6801, %v4849
  %v7314 = vmul.f32 %v6802, %v4850
  %v7315 = vmul.f32 %v6803, %v4851
  %v7316 = vmul.f32 %v6804, %v4852
  %v7317 = vmul.f32 %v6805, %v4853
  %v7318 = vmul.f32 %v6806, %v4854
  %v7319 = vmul.f32 %v6807, %v4855
  %v7320 = vmul.f32 %v6808, %v4856
  %v7321 = vmul.f32 %v6809, %v4857
  %v7322 = vmul.f32 %v6810, %v4858
  %v7323 = vmul.f32 %v6811, %v4859
  %v7324 = vmul.f32 %v6812, %v4860
  %v7325 = vmul.f32 %v6813, %v4861
  %v7326 = vmul.f32 %v6814, %v4862
  %v7327 = vmul.f32 %v6815, %v4863
  %v7328 = vmul.f32 %v6816, %v4864
  %v7329 = vmul.f32 %v6817, %v4865
  %v7330 = vmul.f32 %v6818, %v4866
  %v7331 = vmul.f32 %v6819, %v4867
  %v7332 = vmul.f32 %v6820, %v4868
  %v7333 = vmul.f32 %v6821, %v4869
  %v7334 = vmul.f32 %v6822, %v4870
  %v7335 = vmul.f32 %v6823, %v4871
  %v7336 = vmul.f32 %v6824, %v4872
  %v7337 = vmul.f32 %v6825, %v4873
  %v7338 = vmul.f32 %v6826, %v4874
  %v7339 = vmul.f32 %v6827, %v4875
  %v7340 = vmul.f32 %v6828, %v4876
  %v7341 = vmul.f32 %v6829, %v4877
  %v7342 = vmul.f32 %v6830, %v4878
  %v7343 = vmul.f32 %v6831, %v4879
  %v7344 = vmul.f32 %v6832, %v4880
  %v7345 = vmul.f32 %v6833, %v4881
  %v7346 = vmul.f32 %v6834, %v4882
  %v7347 = vmul.f32 %v6835, %v4883
  %v7348 = vmul.f32 %v6836, %v4884
  %v7349 = vmul.f32 %v6837, %v4885
  %v7350 = vmul.f32 %v6838, %v4886
  %v7351 = vmul.f32 %v6839, %v4887
  %v7352 = vmul.f32 %v6840, %v4888
  %v7353 = vmul.f32 %v6841, %v4889
  %v7354 = vmul.f32 %v6842, %v4890
  %v7355 = vmul.f32 %v6843, %v4891
  %v7356 = vmul.f32 %v6844, %v4892
  %v7357 = vmul.f32 %v6845, %v4893
  %v7358 = vmul.f32 %v6846, %v4894
  %v7359 = vmul.f32 %v6847, %v4895
  %v7360 = vmul.f32 %v6848, %v4896
  %v7361 = vmul.f32 %v6849, %v4897
  %v7362 = vmul.f32 %v6850, %v4898
  %v7363 = vmul.f32 %v6851, %v4899
  %v7364 = vmul.f32 %v6852, %v4900
  %v7365 = vmul.f32 %v6853, %v4901
  %v7366 = vmul.f32 %v6854, %v4902
  %v7367 = vmul.f32 %v6855, %v4903
  %v7368 = vmul.f32 %v6856, %v4904
  %v7369 = vmul.f32 %v6857, %v4905
  %v7370 = vmul.f32 %v6858, %v4906
  %v7371 = vmul.f32 %v6859, %v4907
  %v7372 = vmul.f32 %v6860, %v4908
  %v7373 = vmul.f32 %v6861, %v4909
  %v7374 = vmul.f32 %v6862, %v4910
  %v7375 = vmul.f32 %v6863, %v4911
  %v7376 = vmul.f32 %v6864, %v4912
  %v7377 = vmul.f32 %v6865, %v4913
  %v7378 = vmul.f32 %v6866, %v4914
  %v7379 = vmul.f32 %v6867, %v4915
  %v7380 = vmul.f32 %v6868, %v4916
  %v7381 = vmul.f32 %v6869, %v4917
  %v7382 = vmul.f32 %v6870, %v4918
  %v7383 = vmul.f32 %v6871, %v4919
  %v7384 = vmul.f32 %v6872, %v4920
  %v7385 = vmul.f32 %v6873, %v4921
  %v7386 = vmul.f32 %v6874, %v4922
  %v7387 = vmul.f32 %v6875, %v4923
  %v7388 = vmul.f32 %v6876, %v4924
  %v7389 = vmul.f32 %v6877, %v4925
  %v7390 = vmul.f32 %v6878, %v4926
  %v7391 = vmul.f32 %v6879, %v4927
  %v7392 = vmul.f32 %v6880, %v4928
  %v7393 = vmul.f32 %v6881, %v4929
  %v7394 = vmul.f32 %v6882, %v4930
  %v7395 = vmul.f32 %v6883, %v4931
  %v7396 = vmul.f32 %v6884, %v4932
  %v7397 = vmul.f32 %v6885, %v4933
  %v7398 = vmul.f32 %v6886, %v4934
  %v7399 = vmul.f32 %v6887, %v4935
  %v7400 = vmul.f32 %v6888, %v4936
  %v7401 = vmul.f32 %v6889, %v4937
  %v7402 = vmul.f32 %v6890, %v4938
  %v7403 = vmul.f32 %v6891, %v4939
  %v7404 = vmul.f32 %v6892, %v4940
  %v7405 = vmul.f32 %v6893, %v4941
  %v7406 = vmul.f32 %v6894, %v4942
  %v7407 = vmul.f32 %v6895, %v4943
  %v7408 = vmul.f32 %v6896, %v4944
  %v7409 = vmul.f32 %v6897, %v4945
  %v7410 = vmul.f32 %v6898, %v4946
  %v7411 = vmul.f32 %v6899, %v4947
  %v7412 = vmul.f32 %v6900, %v4948
  %v7413 = vmul.f32 %v6901, %v4949
  %v7414 = vmul.f32 %v6902, %v4950
  %v7415 = vmul.f32 %v6903, %v4951
  %v7416 = vmul.f32 %v6904, %v4952
  %v7417 = vmul.f32 %v6905, %v4953
  %v7418 = vmul.f32 %v6906, %v4954
  %v7419 = vmul.f32 %v6907, %v4955
  %v7420 = vmul.f32 %v6908, %v4956
  %v7421 = vmul.f32 %v6909, %v4957
  %v7422 = vmul.f32 %v6910, %v4958
  %v7423 = vmul.f32 %v6911, %v4959
  %v7424 = vmul.f32 %v6912, %v4960
  %v7425 = vmul.f32 %v6913, %v4961
  %v7426 = vmul.f32 %v6914, %v4962
  %v7427 = vmul.f32 %v6915, %v4963
  %v7428 = vmul.f32 %v6916, %v4964
  %v7429 = vmul.f32 %v6917, %v4965
  %v7430 = vmul.f32 %v6918, %v4966
  %v7431 = vmul.f32 %v6919, %v4967
  %v7432 = vmul.f32 %v6920, %v4968
  %v7433 = vmul.f32 %v6921, %v4969
  %v7434 = vmul.f32 %v6922, %v4970
  %v7435 = vmul.f32 %v6923, %v4971
  %v7436 = vmul.f32 %v6924, %v4972
  %v7437 = vmul.f32 %v6925, %v4973
  %v7438 = vmul.f32 %v6926, %v4974
  %v7439 = vmul.f32 %v6927, %v4975
  %v7440 = vmul.f32 %v6928, %v4976
  %v7441 = vmul.f32 %v6929, %v4977
  %v7442 = vmul.f32 %v6930, %v4978
  %v7443 = vmul.f32 %v6931, %v4979
  %v7444 = vmul.f32 %v6932, %v4980
  %v7445 = vmul.f32 %v6933, %v4981
  %v7446 = vmul.f32 %v6934, %v4982
  %v7447 = vmul.f32 %v6935, %v4983
  %v7448 = vmul.f32 %v6936, %v4984
  %v7449 = vmul.f32 %v6937, %v4985
  %v7450 = vmul.f32 %v6938, %v4986
  %v7451 = vmul.f32 %v6939, %v4987
  %v7452 = vmul.f32 %v6940, %v4988
  %v7453 = vmul.f32 %v6941, %v4989
  %v7454 = vmul.f32 %v6942, %v4990
  %v7455 = vmul.f32 %v6943, %v4991
  %v7456 = vmul.f32 %v6944, %v4992
  %v7457 = vmul.f32 %v6945, %v4993
  %v7458 = vmul.f32 %v6946, %v4994
  %v7459 = vmul.f32 %v6947, %v4995
  %v7460 = vmul.f32 %v6948, %v4996
  %v7461 = vmul.f32 %v6949, %v4997
  %v7462 = vmul.f32 %v6950, %v4998
  %v7463 = vmul.f32 %v6951, %v4999
  %v7464 = vmul.f32 %v6952, %v5000
  %v7465 = vmul.f32 %v6953, %v5001
  %v7466 = vmul.f32 %v6954, %v5002
  %v7467 = vmul.f32 %v6955, %v5003
  %v7468 = vmul.f32 %v6956, %v5004
  %v7469 = vmul.f32 %v6957, %v5005
  %v7470 = vmul.f32 %v6958, %v5006
  %v7471 = vmul.f32 %v6959, %v5007
  %v7472 = vmul.f32 %v6960, %v5008
  %v7473 = vmul.f32 %v6961, %v5009
  %v7474 = vmul.f32 %v6962, %v5010
  %v7475 = vmul.f32 %v6963, %v5011
  %v7476 = vmul.f32 %v6964, %v5012
  %v7477 = vmul.f32 %v6965, %v5013
  %v7478 = vmul.f32 %v6966, %v5014
  %v7479 = vmul.f32 %v6967, %v5015
  %v7480 = vmul.f32 %v6968, %v5016
  %v7481 = vmul.f32 %v6969, %v5017
  %v7482 = vmul.f32 %v6970, %v5018
  %v7483 = vmul.f32 %v6971, %v5019
  %v7484 = vmul.f32 %v6972, %v5020
  %v7485 = vmul.f32 %v6973, %v5021
  %v7486 = vmul.f32 %v6974, %v5022
  %v7487 = vmul.f32 %v6975, %v5023
  %v7488 = vmul.f32 %v6976, %v5024
  %v7489 = vmul.f32 %v6977, %v5025
  %v7490 = vmul.f32 %v6978, %v5026
  %v7491 = vmul.f32 %v6979, %v5027
  %v7492 = vmul.f32 %v6980, %v5028
  %v7493 = vmul.f32 %v6981, %v5029
  %v7494 = vmul.f32 %v6982, %v5030
  %v7495 = vmul.f32 %v6983, %v5031
  %v7496 = vmul.f32 %v6984, %v5032
  %v7497 = vmul.f32 %v6985, %v5033
  %v7498 = vmul.f32 %v6986, %v5034
  %v7499 = vmul.f32 %v6987, %v5035
  %v7500 = vmul.f32 %v6988, %v5036
  %v7501 = vmul.f32 %v6989, %v5037
  %v7502 = vmul.f32 %v6990, %v5038
  %v7503 = vmul.f32 %v6991, %v5039
  %v7504 = vmul.f32 %v6992, %v5040
  %v7505 = vmul.f32 %v6993, %v5041
  %v7506 = vmul.f32 %v6994, %v5042
  %v7507 = vmul.f32 %v6995, %v5043
  %v7508 = vmul.f32 %v6996, %v5044
  %v7509 = vmul.f32 %v6997, %v5045
  %v7510 = vmul.f32 %v6998, %v5046
  %v7511 = vmul.f32 %v6999, %v5047
  %v7512 = vmul.f32 %v7000, %v5048
  %v7513 = vmul.f32 %v7001, %v5049
  %v7514 = vmul.f32 %v7002, %v5050
  %v7515 = vmul.f32 %v7003, %v5051
  %v7516 = vmul.f32 %v7004, %v5052
  %v7517 = vmul.f32 %v7005, %v5053
  %v7518 = vmul.f32 %v7006, %v5054
  %v7519 = vmul.f32 %v7007, %v5055
  %v7520 = vmul.f32 %v7008, %v5056
  %v7521 = vmul.f32 %v7009, %v5057
  %v7522 = vmul.f32 %v7010, %v5058
  %v7523 = vmul.f32 %v7011, %v5059
  %v7524 = vmul.f32 %v7012, %v5060
  %v7525 = vmul.f32 %v7013, %v5061
  %v7526 = vmul.f32 %v7014, %v5062
  %v7527 = vmul.f32 %v7015, %v5063
  %v7528 = vmul.f32 %v7016, %v5064
  %v7529 = vmul.f32 %v7017, %v5065
  %v7530 = vmul.f32 %v7018, %v5066
  %v7531 = vmul.f32 %v7019, %v5067
  %v7532 = vmul.f32 %v7020, %v5068
  %v7533 = vmul.f32 %v7021, %v5069
  %v7534 = vmul.f32 %v7022, %v5070
  %v7535 = vmul.f32 %v7023, %v5071
  %v7536 = vmul.f32 %v7024, %v5072
  %v7537 = vmul.f32 %v7025, %v5073
  %v7538 = vmul.f32 %v7026, %v5074
  %v7539 = vmul.f32 %v7027, %v5075
  %v7540 = vmul.f32 %v7028, %v5076
  %v7541 = vmul.f32 %v7029, %v5077
  %v7542 = vmul.f32 %v7030, %v5078
  %v7543 = vmul.f32 %v7031, %v5079
  %v7544 = vmul.f32 %v7032, %v5080
  %v7545 = vmul.f32 %v7033, %v5081
  %v7546 = vmul.f32 %v7034, %v5082
  %v7547 = vmul.f32 %v7035, %v5083
  %v7548 = vmul.f32 %v7036, %v5084
  %v7549 = vmul.f32 %v7037, %v5085
  %v7550 = vmul.f32 %v7038, %v5086
  %v7551 = vmul.f32 %v7039, %v5087
  %v7552 = vmul.f32 %v7040, %v5088
  %v7553 = vmul.f32 %v7041, %v5089
  %v7554 = vmul.f32 %v7042, %v5090
  %v7555 = vmul.f32 %v7043, %v5091
  %v7556 = vmul.f32 %v7044, %v5092
  %v7557 = vmul.f32 %v7045, %v5093
  %v7558 = vmul.f32 %v7046, %v5094
  %v7559 = vmul.f32 %v7047, %v5095
  %v7560 = vmul.f32 %v7048, %v5096
  %v7561 = vmul.f32 %v7049, %v5097
  %v7562 = vmul.f32 %v7050, %v5098
  %v7563 = vmul.f32 %v7051, %v5099
  %v7564 = vmul.f32 %v7052, %v5100
  %v7565 = vmul.f32 %v7053, %v5101
  %v7566 = vmul.f32 %v7054, %v5102
  %v7567 = vmul.f32 %v7055, %v5103
  %v7568 = vmul.f32 %v7056, %v5104
  %v7569 = vmul.f32 %v7057, %v5105
  %v7570 = vmul.f32 %v7058, %v5106
  %v7571 = vmul.f32 %v7059, %v5107
  %v7572 = vmul.f32 %v7060, %v5108
  %v7573 = vmul.f32 %v7061, %v5109
  %v7574 = vmul.f32 %v7062, %v5110
  %v7575 = vmul.f32 %v7063, %v5111
  %v7576 = vmul.f32 %v7064, %v5112
  %v7577 = vmul.f32 %v7065, %v5113
  %v7578 = vmul.f32 %v7066, %v5114
  %v7579 = vmul.f32 %v7067, %v5115
  %v7580 = vmul.f32 %v7068, %v5116
  %v7581 = vmul.f32 %v7069, %v5117
  %v7582 = vmul.f32 %v7070, %v5118
  %v7583 = vmul.f32 %v7071, %v5119
  %v7584 = vmul.f32 %v7072, %v5120
  %v7585 = vmul.f32 %v7073, %v5121
  %v7586 = vmul.f32 %v7074, %v5122
  %v7587 = vmul.f32 %v7075, %v5123
  %v7588 = vmul.f32 %v7076, %v5124
  %v7589 = vmul.f32 %v7077, %v5125
  %v7590 = vmul.f32 %v7078, %v5126
  %v7591 = vmul.f32 %v7079, %v5127
  %v7592 = vmul.f32 %v7080, %v5128
  %v7593 = vmul.f32 %v7081, %v5129
  %v7594 = vmul.f32 %v7082, %v5130
  %v7595 = vmul.f32 %v7083, %v5131
  %v7596 = vmul.f32 %v7084, %v5132
  %v7597 = vmul.f32 %v7085, %v5133
  %v7598 = vmul.f32 %v7086, %v5134
  %v7599 = vmul.f32 %v7087, %v5135
  %v7600 = vmul.f32 %v7088, %v5136
  %v7601 = vmul.f32 %v7089, %v5137
  %v7602 = vmul.f32 %v7090, %v5138
  %v7603 = vmul.f32 %v7091, %v5139
  %v7604 = vmul.f32 %v7092, %v5140
  %v7605 = vmul.f32 %v7093, %v5141
  %v7606 = vmul.f32 %v7094, %v5142
  %v7607 = vmul.f32 %v7095, %v5143
  %v7608 = vmul.f32 %v7096, %v5144
  %v7609 = vmul.f32 %v7097, %v5145
  %v7610 = vmul.f32 %v7098, %v5146
  %v7611 = vmul.f32 %v7099, %v5147
  %v7612 = vmul.f32 %v7100, %v5148
  %v7613 = vmul.f32 %v7101, %v5149
  %v7614 = vmul.f32 %v7102, %v5150
  %v7615 = vmul.f32 %v7103, %v5151
  %v7616 = vmul.f32 %v7104, %v5152
  %v7617 = vmul.f32 %v7105, %v5153
  %v7618 = vmul.f32 %v7106, %v5154
  %v7619 = vmul.f32 %v7107, %v5155
  %v7620 = vmul.f32 %v7108, %v5156
  %v7621 = vmul.f32 %v7109, %v5157
  %v7622 = vmul.f32 %v7110, %v5158
  %v7623 = vmul.f32 %v7111, %v5159
  %v7624 = vmul.f32 %v7112, %v5160
  %v7625 = vmul.f32 %v7113, %v5161
  %v7626 = vmul.f32 %v7114, %v5162
  %v7627 = vmul.f32 %v7115, %v5163
  %v7628 = vmul.f32 %v7116, %v5164
  %v7629 = vmul.f32 %v7117, %v5165
  %v7630 = vmul.f32 %v7118, %v5166
  %v7631 = vmul.f32 %v7119, %v5167
  %v7632 = vmul.f32 %v7120, %v5168
  %v7633 = vmul.f32 %v7121, %v5169
  %v7634 = vmul.f32 %v7122, %v5170
  %v7635 = vmul.f32 %v7123, %v5171
  %v7636 = vmul.f32 %v7124, %v5172
  %v7637 = vmul.f32 %v7125, %v5173
  %7638 = vadd.xlane.f32.xlu0 %v7126
  %v7639 = vpop.xlane.xlu0 %7638
  %7640 = vadd.xlane.f32.xlu0 %v7127
  %v7641 = vpop.xlane.xlu0 %7640
  %7642 = vadd.xlane.f32.xlu0 %v7128
  %v7643 = vpop.xlane.xlu0 %7642
  %7644 = vadd.xlane.f32.xlu0 %v7129
  %v7645 = vpop.xlane.xlu0 %7644
  %7646 = vadd.xlane.f32.xlu0 %v7130
  %v7647 = vpop.xlane.xlu0 %7646
  %7648 = vadd.xlane.f32.xlu0 %v7131
  %v7649 = vpop.xlane.xlu0 %7648
  %7650 = vadd.xlane.f32.xlu0 %v7132
  %v7651 = vpop.xlane.xlu0 %7650
  %7652 = vadd.xlane.f32.xlu0 %v7133
  %v7653 = vpop.xlane.xlu0 %7652
  %7654 = vadd.xlane.f32.xlu0 %v7134
  %v7655 = vpop.xlane.xlu0 %7654
  %7656 = vadd.xlane.f32.xlu0 %v7135
  %v7657 = vpop.xlane.xlu0 %7656
  %7658 = vadd.xlane.f32.xlu0 %v7136
  %v7659 = vpop.xlane.xlu0 %7658
  %7660 = vadd.xlane.f32.xlu0 %v7137
  %v7661 = vpop.xlane.xlu0 %7660
  %7662 = vadd.xlane.f32.xlu0 %v7138
  %v7663 = vpop.xlane.xlu0 %7662
  %7664 = vadd.xlane.f32.xlu0 %v7139
  %v7665 = vpop.xlane.xlu0 %7664
  %7666 = vadd.xlane.f32.xlu0 %v7140
  %v7667 = vpop.xlane.xlu0 %7666
  %7668 = vadd.xlane.f32.xlu0 %v7141
  %v7669 = vpop.xlane.xlu0 %7668
  %7670 = vadd.xlane.f32.xlu0 %v7142
  %v7671 = vpop.xlane.xlu0 %7670
  %7672 = vadd.xlane.f32.xlu0 %v7143
  %v7673 = vpop.xlane.xlu0 %7672
  %7674 = vadd.xlane.f32.xlu0 %v7144
  %v7675 = vpop.xlane.xlu0 %7674
  %7676 = vadd.xlane.f32.xlu0 %v7145
  %v7677 = vpop.xlane.xlu0 %7676
  %7678 = vadd.xlane.f32.xlu0 %v7146
  %v7679 = vpop.xlane.xlu0 %7678
  %7680 = vadd.xlane.f32.xlu0 %v7147
  %v7681 = vpop.xlane.xlu0 %7680
  %7682 = vadd.xlane.f32.xlu0 %v7148
  %v7683 = vpop.xlane.xlu0 %7682
  %7684 = vadd.xlane.f32.xlu0 %v7149
  %v7685 = vpop.xlane.xlu0 %7684
  %7686 = vadd.xlane.f32.xlu0 %v7150
  %v7687 = vpop.xlane.xlu0 %7686
  %7688 = vadd.xlane.f32.xlu0 %v7151
  %v7689 = vpop.xlane.xlu0 %7688
  %7690 = vadd.xlane.f32.xlu0 %v7152
  %v7691 = vpop.xlane.xlu0 %7690
  %7692 = vadd.xlane.f32.xlu0 %v7153
  %v7693 = vpop.xlane.xlu0 %7692
  %7694 = vadd.xlane.f32.xlu0 %v7154
  %v7695 = vpop.xlane.xlu0 %7694
  %7696 = vadd.xlane.f32.xlu0 %v7155
  %v7697 = vpop.xlane.xlu0 %7696
  %7698 = vadd.xlane.f32.xlu0 %v7156
  %v7699 = vpop.xlane.xlu0 %7698
  %7700 = vadd.xlane.f32.xlu0 %v7157
  %v7701 = vpop.xlane.xlu0 %7700
  %7702 = vadd.xlane.f32.xlu0 %v7158
  %v7703 = vpop.xlane.xlu0 %7702
  %7704 = vadd.xlane.f32.xlu0 %v7159
  %v7705 = vpop.xlane.xlu0 %7704
  %7706 = vadd.xlane.f32.xlu0 %v7160
  %v7707 = vpop.xlane.xlu0 %7706
  %7708 = vadd.xlane.f32.xlu0 %v7161
  %v7709 = vpop.xlane.xlu0 %7708
  %7710 = vadd.xlane.f32.xlu0 %v7162
  %v7711 = vpop.xlane.xlu0 %7710
  %7712 = vadd.xlane.f32.xlu0 %v7163
  %v7713 = vpop.xlane.xlu0 %7712
  %7714 = vadd.xlane.f32.xlu0 %v7164
  %v7715 = vpop.xlane.xlu0 %7714
  %7716 = vadd.xlane.f32.xlu0 %v7165
  %v7717 = vpop.xlane.xlu0 %7716
  %7718 = vadd.xlane.f32.xlu0 %v7166
  %v7719 = vpop.xlane.xlu0 %7718
  %7720 = vadd.xlane.f32.xlu0 %v7167
  %v7721 = vpop.xlane.xlu0 %7720
  %7722 = vadd.xlane.f32.xlu0 %v7168
  %v7723 = vpop.xlane.xlu0 %7722
  %7724 = vadd.xlane.f32.xlu0 %v7169
  %v7725 = vpop.xlane.xlu0 %7724
  %7726 = vadd.xlane.f32.xlu0 %v7170
  %v7727 = vpop.xlane.xlu0 %7726
  %7728 = vadd.xlane.f32.xlu0 %v7171
  %v7729 = vpop.xlane.xlu0 %7728
  %7730 = vadd.xlane.f32.xlu0 %v7172
  %v7731 = vpop.xlane.xlu0 %7730
  %7732 = vadd.xlane.f32.xlu0 %v7173
  %v7733 = vpop.xlane.xlu0 %7732
  %7734 = vadd.xlane.f32.xlu0 %v7174
  %v7735 = vpop.xlane.xlu0 %7734
  %7736 = vadd.xlane.f32.xlu0 %v7175
  %v7737 = vpop.xlane.xlu0 %7736
  %7738 = vadd.xlane.f32.xlu0 %v7176
  %v7739 = vpop.xlane.xlu0 %7738
  %7740 = vadd.xlane.f32.xlu0 %v7177
  %v7741 = vpop.xlane.xlu0 %7740
  %7742 = vadd.xlane.f32.xlu0 %v7178
  %v7743 = vpop.xlane.xlu0 %7742
  %7744 = vadd.xlane.f32.xlu0 %v7179
  %v7745 = vpop.xlane.xlu0 %7744
  %7746 = vadd.xlane.f32.xlu0 %v7180
  %v7747 = vpop.xlane.xlu0 %7746
  %7748 = vadd.xlane.f32.xlu0 %v7181
  %v7749 = vpop.xlane.xlu0 %7748
  %7750 = vadd.xlane.f32.xlu0 %v7182
  %v7751 = vpop.xlane.xlu0 %7750
  %7752 = vadd.xlane.f32.xlu0 %v7183
  %v7753 = vpop.xlane.xlu0 %7752
  %7754 = vadd.xlane.f32.xlu0 %v7184
  %v7755 = vpop.xlane.xlu0 %7754
  %7756 = vadd.xlane.f32.xlu0 %v7185
  %v7757 = vpop.xlane.xlu0 %7756
  %7758 = vadd.xlane.f32.xlu0 %v7186
  %v7759 = vpop.xlane.xlu0 %7758
  %7760 = vadd.xlane.f32.xlu0 %v7187
  %v7761 = vpop.xlane.xlu0 %7760
  %7762 = vadd.xlane.f32.xlu0 %v7188
  %v7763 = vpop.xlane.xlu0 %7762
  %7764 = vadd.xlane.f32.xlu0 %v7189
  %v7765 = vpop.xlane.xlu0 %7764
  %7766 = vadd.xlane.f32.xlu0 %v7190
  %v7767 = vpop.xlane.xlu0 %7766
  %7768 = vadd.xlane.f32.xlu0 %v7191
  %v7769 = vpop.xlane.xlu0 %7768
  %7770 = vadd.xlane.f32.xlu0 %v7192
  %v7771 = vpop.xlane.xlu0 %7770
  %7772 = vadd.xlane.f32.xlu0 %v7193
  %v7773 = vpop.xlane.xlu0 %7772
  %7774 = vadd.xlane.f32.xlu0 %v7194
  %v7775 = vpop.xlane.xlu0 %7774
  %7776 = vadd.xlane.f32.xlu0 %v7195
  %v7777 = vpop.xlane.xlu0 %7776
  %7778 = vadd.xlane.f32.xlu0 %v7196
  %v7779 = vpop.xlane.xlu0 %7778
  %7780 = vadd.xlane.f32.xlu0 %v7197
  %v7781 = vpop.xlane.xlu0 %7780
  %7782 = vadd.xlane.f32.xlu0 %v7198
  %v7783 = vpop.xlane.xlu0 %7782
  %7784 = vadd.xlane.f32.xlu0 %v7199
  %v7785 = vpop.xlane.xlu0 %7784
  %7786 = vadd.xlane.f32.xlu0 %v7200
  %v7787 = vpop.xlane.xlu0 %7786
  %7788 = vadd.xlane.f32.xlu0 %v7201
  %v7789 = vpop.xlane.xlu0 %7788
  %7790 = vadd.xlane.f32.xlu0 %v7202
  %v7791 = vpop.xlane.xlu0 %7790
  %7792 = vadd.xlane.f32.xlu0 %v7203
  %v7793 = vpop.xlane.xlu0 %7792
  %7794 = vadd.xlane.f32.xlu0 %v7204
  %v7795 = vpop.xlane.xlu0 %7794
  %7796 = vadd.xlane.f32.xlu0 %v7205
  %v7797 = vpop.xlane.xlu0 %7796
  %7798 = vadd.xlane.f32.xlu0 %v7206
  %v7799 = vpop.xlane.xlu0 %7798
  %7800 = vadd.xlane.f32.xlu0 %v7207
  %v7801 = vpop.xlane.xlu0 %7800
  %7802 = vadd.xlane.f32.xlu0 %v7208
  %v7803 = vpop.xlane.xlu0 %7802
  %7804 = vadd.xlane.f32.xlu0 %v7209
  %v7805 = vpop.xlane.xlu0 %7804
  %7806 = vadd.xlane.f32.xlu0 %v7210
  %v7807 = vpop.xlane.xlu0 %7806
  %7808 = vadd.xlane.f32.xlu0 %v7211
  %v7809 = vpop.xlane.xlu0 %7808
  %7810 = vadd.xlane.f32.xlu0 %v7212
  %v7811 = vpop.xlane.xlu0 %7810
  %7812 = vadd.xlane.f32.xlu0 %v7213
  %v7813 = vpop.xlane.xlu0 %7812
  %7814 = vadd.xlane.f32.xlu0 %v7214
  %v7815 = vpop.xlane.xlu0 %7814
  %7816 = vadd.xlane.f32.xlu0 %v7215
  %v7817 = vpop.xlane.xlu0 %7816
  %7818 = vadd.xlane.f32.xlu0 %v7216
  %v7819 = vpop.xlane.xlu0 %7818
  %7820 = vadd.xlane.f32.xlu0 %v7217
  %v7821 = vpop.xlane.xlu0 %7820
  %7822 = vadd.xlane.f32.xlu0 %v7218
  %v7823 = vpop.xlane.xlu0 %7822
  %7824 = vadd.xlane.f32.xlu0 %v7219
  %v7825 = vpop.xlane.xlu0 %7824
  %7826 = vadd.xlane.f32.xlu0 %v7220
  %v7827 = vpop.xlane.xlu0 %7826
  %7828 = vadd.xlane.f32.xlu0 %v7221
  %v7829 = vpop.xlane.xlu0 %7828
  %7830 = vadd.xlane.f32.xlu0 %v7222
  %v7831 = vpop.xlane.xlu0 %7830
  %7832 = vadd.xlane.f32.xlu0 %v7223
  %v7833 = vpop.xlane.xlu0 %7832
  %7834 = vadd.xlane.f32.xlu0 %v7224
  %v7835 = vpop.xlane.xlu0 %7834
  %7836 = vadd.xlane.f32.xlu0 %v7225
  %v7837 = vpop.xlane.xlu0 %7836
  %7838 = vadd.xlane.f32.xlu0 %v7226
  %v7839 = vpop.xlane.xlu0 %7838
  %7840 = vadd.xlane.f32.xlu0 %v7227
  %v7841 = vpop.xlane.xlu0 %7840
  %7842 = vadd.xlane.f32.xlu0 %v7228
  %v7843 = vpop.xlane.xlu0 %7842
  %7844 = vadd.xlane.f32.xlu0 %v7229
  %v7845 = vpop.xlane.xlu0 %7844
  %7846 = vadd.xlane.f32.xlu0 %v7230
  %v7847 = vpop.xlane.xlu0 %7846
  %7848 = vadd.xlane.f32.xlu0 %v7231
  %v7849 = vpop.xlane.xlu0 %7848
  %7850 = vadd.xlane.f32.xlu0 %v7232
  %v7851 = vpop.xlane.xlu0 %7850
  %7852 = vadd.xlane.f32.xlu0 %v7233
  %v7853 = vpop.xlane.xlu0 %7852
  %7854 = vadd.xlane.f32.xlu0 %v7234
  %v7855 = vpop.xlane.xlu0 %7854
  %7856 = vadd.xlane.f32.xlu0 %v7235
  %v7857 = vpop.xlane.xlu0 %7856
  %7858 = vadd.xlane.f32.xlu0 %v7236
  %v7859 = vpop.xlane.xlu0 %7858
  %7860 = vadd.xlane.f32.xlu0 %v7237
  %v7861 = vpop.xlane.xlu0 %7860
  %7862 = vadd.xlane.f32.xlu0 %v7238
  %v7863 = vpop.xlane.xlu0 %7862
  %7864 = vadd.xlane.f32.xlu0 %v7239
  %v7865 = vpop.xlane.xlu0 %7864
  %7866 = vadd.xlane.f32.xlu0 %v7240
  %v7867 = vpop.xlane.xlu0 %7866
  %7868 = vadd.xlane.f32.xlu0 %v7241
  %v7869 = vpop.xlane.xlu0 %7868
  %7870 = vadd.xlane.f32.xlu0 %v7242
  %v7871 = vpop.xlane.xlu0 %7870
  %7872 = vadd.xlane.f32.xlu0 %v7243
  %v7873 = vpop.xlane.xlu0 %7872
  %7874 = vadd.xlane.f32.xlu0 %v7244
  %v7875 = vpop.xlane.xlu0 %7874
  %7876 = vadd.xlane.f32.xlu0 %v7245
  %v7877 = vpop.xlane.xlu0 %7876
  %7878 = vadd.xlane.f32.xlu0 %v7246
  %v7879 = vpop.xlane.xlu0 %7878
  %7880 = vadd.xlane.f32.xlu0 %v7247
  %v7881 = vpop.xlane.xlu0 %7880
  %7882 = vadd.xlane.f32.xlu0 %v7248
  %v7883 = vpop.xlane.xlu0 %7882
  %7884 = vadd.xlane.f32.xlu0 %v7249
  %v7885 = vpop.xlane.xlu0 %7884
  %7886 = vadd.xlane.f32.xlu0 %v7250
  %v7887 = vpop.xlane.xlu0 %7886
  %7888 = vadd.xlane.f32.xlu0 %v7251
  %v7889 = vpop.xlane.xlu0 %7888
  %7890 = vadd.xlane.f32.xlu0 %v7252
  %v7891 = vpop.xlane.xlu0 %7890
  %7892 = vadd.xlane.f32.xlu0 %v7253
  %v7893 = vpop.xlane.xlu0 %7892
  %7894 = vadd.xlane.f32.xlu0 %v7254
  %v7895 = vpop.xlane.xlu0 %7894
  %7896 = vadd.xlane.f32.xlu0 %v7255
  %v7897 = vpop.xlane.xlu0 %7896
  %7898 = vadd.xlane.f32.xlu0 %v7256
  %v7899 = vpop.xlane.xlu0 %7898
  %7900 = vadd.xlane.f32.xlu0 %v7257
  %v7901 = vpop.xlane.xlu0 %7900
  %7902 = vadd.xlane.f32.xlu0 %v7258
  %v7903 = vpop.xlane.xlu0 %7902
  %7904 = vadd.xlane.f32.xlu0 %v7259
  %v7905 = vpop.xlane.xlu0 %7904
  %7906 = vadd.xlane.f32.xlu0 %v7260
  %v7907 = vpop.xlane.xlu0 %7906
  %7908 = vadd.xlane.f32.xlu0 %v7261
  %v7909 = vpop.xlane.xlu0 %7908
  %7910 = vadd.xlane.f32.xlu0 %v7262
  %v7911 = vpop.xlane.xlu0 %7910
  %7912 = vadd.xlane.f32.xlu0 %v7263
  %v7913 = vpop.xlane.xlu0 %7912
  %7914 = vadd.xlane.f32.xlu0 %v7264
  %v7915 = vpop.xlane.xlu0 %7914
  %7916 = vadd.xlane.f32.xlu0 %v7265
  %v7917 = vpop.xlane.xlu0 %7916
  %7918 = vadd.xlane.f32.xlu0 %v7266
  %v7919 = vpop.xlane.xlu0 %7918
  %7920 = vadd.xlane.f32.xlu0 %v7267
  %v7921 = vpop.xlane.xlu0 %7920
  %7922 = vadd.xlane.f32.xlu0 %v7268
  %v7923 = vpop.xlane.xlu0 %7922
  %7924 = vadd.xlane.f32.xlu0 %v7269
  %v7925 = vpop.xlane.xlu0 %7924
  %7926 = vadd.xlane.f32.xlu0 %v7270
  %v7927 = vpop.xlane.xlu0 %7926
  %7928 = vadd.xlane.f32.xlu0 %v7271
  %v7929 = vpop.xlane.xlu0 %7928
  %7930 = vadd.xlane.f32.xlu0 %v7272
  %v7931 = vpop.xlane.xlu0 %7930
  %7932 = vadd.xlane.f32.xlu0 %v7273
  %v7933 = vpop.xlane.xlu0 %7932
  %7934 = vadd.xlane.f32.xlu0 %v7274
  %v7935 = vpop.xlane.xlu0 %7934
  %7936 = vadd.xlane.f32.xlu0 %v7275
  %v7937 = vpop.xlane.xlu0 %7936
  %7938 = vadd.xlane.f32.xlu0 %v7276
  %v7939 = vpop.xlane.xlu0 %7938
  %7940 = vadd.xlane.f32.xlu0 %v7277
  %v7941 = vpop.xlane.xlu0 %7940
  %7942 = vadd.xlane.f32.xlu0 %v7278
  %v7943 = vpop.xlane.xlu0 %7942
  %7944 = vadd.xlane.f32.xlu0 %v7279
  %v7945 = vpop.xlane.xlu0 %7944
  %7946 = vadd.xlane.f32.xlu0 %v7280
  %v7947 = vpop.xlane.xlu0 %7946
  %7948 = vadd.xlane.f32.xlu0 %v7281
  %v7949 = vpop.xlane.xlu0 %7948
  %7950 = vadd.xlane.f32.xlu0 %v7282
  %v7951 = vpop.xlane.xlu0 %7950
  %7952 = vadd.xlane.f32.xlu0 %v7283
  %v7953 = vpop.xlane.xlu0 %7952
  %7954 = vadd.xlane.f32.xlu0 %v7284
  %v7955 = vpop.xlane.xlu0 %7954
  %7956 = vadd.xlane.f32.xlu0 %v7285
  %v7957 = vpop.xlane.xlu0 %7956
  %7958 = vadd.xlane.f32.xlu0 %v7286
  %v7959 = vpop.xlane.xlu0 %7958
  %7960 = vadd.xlane.f32.xlu0 %v7287
  %v7961 = vpop.xlane.xlu0 %7960
  %7962 = vadd.xlane.f32.xlu0 %v7288
  %v7963 = vpop.xlane.xlu0 %7962
  %7964 = vadd.xlane.f32.xlu0 %v7289
  %v7965 = vpop.xlane.xlu0 %7964
  %7966 = vadd.xlane.f32.xlu0 %v7290
  %v7967 = vpop.xlane.xlu0 %7966
  %7968 = vadd.xlane.f32.xlu0 %v7291
  %v7969 = vpop.xlane.xlu0 %7968
  %7970 = vadd.xlane.f32.xlu0 %v7292
  %v7971 = vpop.xlane.xlu0 %7970
  %7972 = vadd.xlane.f32.xlu0 %v7293
  %v7973 = vpop.xlane.xlu0 %7972
  %7974 = vadd.xlane.f32.xlu0 %v7294
  %v7975 = vpop.xlane.xlu0 %7974
  %7976 = vadd.xlane.f32.xlu0 %v7295
  %v7977 = vpop.xlane.xlu0 %7976
  %7978 = vadd.xlane.f32.xlu0 %v7296
  %v7979 = vpop.xlane.xlu0 %7978
  %7980 = vadd.xlane.f32.xlu0 %v7297
  %v7981 = vpop.xlane.xlu0 %7980
  %7982 = vadd.xlane.f32.xlu0 %v7298
  %v7983 = vpop.xlane.xlu0 %7982
  %7984 = vadd.xlane.f32.xlu0 %v7299
  %v7985 = vpop.xlane.xlu0 %7984
  %7986 = vadd.xlane.f32.xlu0 %v7300
  %v7987 = vpop.xlane.xlu0 %7986
  %7988 = vadd.xlane.f32.xlu0 %v7301
  %v7989 = vpop.xlane.xlu0 %7988
  %7990 = vadd.xlane.f32.xlu0 %v7302
  %v7991 = vpop.xlane.xlu0 %7990
  %7992 = vadd.xlane.f32.xlu0 %v7303
  %v7993 = vpop.xlane.xlu0 %7992
  %7994 = vadd.xlane.f32.xlu0 %v7304
  %v7995 = vpop.xlane.xlu0 %7994
  %7996 = vadd.xlane.f32.xlu0 %v7305
  %v7997 = vpop.xlane.xlu0 %7996
  %7998 = vadd.xlane.f32.xlu0 %v7306
  %v7999 = vpop.xlane.xlu0 %7998
  %8000 = vadd.xlane.f32.xlu0 %v7307
  %v8001 = vpop.xlane.xlu0 %8000
  %8002 = vadd.xlane.f32.xlu0 %v7308
  %v8003 = vpop.xlane.xlu0 %8002
  %8004 = vadd.xlane.f32.xlu0 %v7309
  %v8005 = vpop.xlane.xlu0 %8004
  %8006 = vadd.xlane.f32.xlu0 %v7310
  %v8007 = vpop.xlane.xlu0 %8006
  %8008 = vadd.xlane.f32.xlu0 %v7311
  %v8009 = vpop.xlane.xlu0 %8008
  %8010 = vadd.xlane.f32.xlu0 %v7312
  %v8011 = vpop.xlane.xlu0 %8010
  %8012 = vadd.xlane.f32.xlu0 %v7313
  %v8013 = vpop.xlane.xlu0 %8012
  %8014 = vadd.xlane.f32.xlu0 %v7314
  %v8015 = vpop.xlane.xlu0 %8014
  %8016 = vadd.xlane.f32.xlu0 %v7315
  %v8017 = vpop.xlane.xlu0 %8016
  %8018 = vadd.xlane.f32.xlu0 %v7316
  %v8019 = vpop.xlane.xlu0 %8018
  %8020 = vadd.xlane.f32.xlu0 %v7317
  %v8021 = vpop.xlane.xlu0 %8020
  %8022 = vadd.xlane.f32.xlu0 %v7318
  %v8023 = vpop.xlane.xlu0 %8022
  %8024 = vadd.xlane.f32.xlu0 %v7319
  %v8025 = vpop.xlane.xlu0 %8024
  %8026 = vadd.xlane.f32.xlu0 %v7320
  %v8027 = vpop.xlane.xlu0 %8026
  %8028 = vadd.xlane.f32.xlu0 %v7321
  %v8029 = vpop.xlane.xlu0 %8028
  %8030 = vadd.xlane.f32.xlu0 %v7322
  %v8031 = vpop.xlane.xlu0 %8030
  %8032 = vadd.xlane.f32.xlu0 %v7323
  %v8033 = vpop.xlane.xlu0 %8032
  %8034 = vadd.xlane.f32.xlu0 %v7324
  %v8035 = vpop.xlane.xlu0 %8034
  %8036 = vadd.xlane.f32.xlu0 %v7325
  %v8037 = vpop.xlane.xlu0 %8036
  %8038 = vadd.xlane.f32.xlu0 %v7326
  %v8039 = vpop.xlane.xlu0 %8038
  %8040 = vadd.xlane.f32.xlu0 %v7327
  %v8041 = vpop.xlane.xlu0 %8040
  %8042 = vadd.xlane.f32.xlu0 %v7328
  %v8043 = vpop.xlane.xlu0 %8042
  %8044 = vadd.xlane.f32.xlu0 %v7329
  %v8045 = vpop.xlane.xlu0 %8044
  %8046 = vadd.xlane.f32.xlu0 %v7330
  %v8047 = vpop.xlane.xlu0 %8046
  %8048 = vadd.xlane.f32.xlu0 %v7331
  %v8049 = vpop.xlane.xlu0 %8048
  %8050 = vadd.xlane.f32.xlu0 %v7332
  %v8051 = vpop.xlane.xlu0 %8050
  %8052 = vadd.xlane.f32.xlu0 %v7333
  %v8053 = vpop.xlane.xlu0 %8052
  %8054 = vadd.xlane.f32.xlu0 %v7334
  %v8055 = vpop.xlane.xlu0 %8054
  %8056 = vadd.xlane.f32.xlu0 %v7335
  %v8057 = vpop.xlane.xlu0 %8056
  %8058 = vadd.xlane.f32.xlu0 %v7336
  %v8059 = vpop.xlane.xlu0 %8058
  %8060 = vadd.xlane.f32.xlu0 %v7337
  %v8061 = vpop.xlane.xlu0 %8060
  %8062 = vadd.xlane.f32.xlu0 %v7338
  %v8063 = vpop.xlane.xlu0 %8062
  %8064 = vadd.xlane.f32.xlu0 %v7339
  %v8065 = vpop.xlane.xlu0 %8064
  %8066 = vadd.xlane.f32.xlu0 %v7340
  %v8067 = vpop.xlane.xlu0 %8066
  %8068 = vadd.xlane.f32.xlu0 %v7341
  %v8069 = vpop.xlane.xlu0 %8068
  %8070 = vadd.xlane.f32.xlu0 %v7342
  %v8071 = vpop.xlane.xlu0 %8070
  %8072 = vadd.xlane.f32.xlu0 %v7343
  %v8073 = vpop.xlane.xlu0 %8072
  %8074 = vadd.xlane.f32.xlu0 %v7344
  %v8075 = vpop.xlane.xlu0 %8074
  %8076 = vadd.xlane.f32.xlu0 %v7345
  %v8077 = vpop.xlane.xlu0 %8076
  %8078 = vadd.xlane.f32.xlu0 %v7346
  %v8079 = vpop.xlane.xlu0 %8078
  %8080 = vadd.xlane.f32.xlu0 %v7347
  %v8081 = vpop.xlane.xlu0 %8080
  %8082 = vadd.xlane.f32.xlu0 %v7348
  %v8083 = vpop.xlane.xlu0 %8082
  %8084 = vadd.xlane.f32.xlu0 %v7349
  %v8085 = vpop.xlane.xlu0 %8084
  %8086 = vadd.xlane.f32.xlu0 %v7350
  %v8087 = vpop.xlane.xlu0 %8086
  %8088 = vadd.xlane.f32.xlu0 %v7351
  %v8089 = vpop.xlane.xlu0 %8088
  %8090 = vadd.xlane.f32.xlu0 %v7352
  %v8091 = vpop.xlane.xlu0 %8090
  %8092 = vadd.xlane.f32.xlu0 %v7353
  %v8093 = vpop.xlane.xlu0 %8092
  %8094 = vadd.xlane.f32.xlu0 %v7354
  %v8095 = vpop.xlane.xlu0 %8094
  %8096 = vadd.xlane.f32.xlu0 %v7355
  %v8097 = vpop.xlane.xlu0 %8096
  %8098 = vadd.xlane.f32.xlu0 %v7356
  %v8099 = vpop.xlane.xlu0 %8098
  %8100 = vadd.xlane.f32.xlu0 %v7357
  %v8101 = vpop.xlane.xlu0 %8100
  %8102 = vadd.xlane.f32.xlu0 %v7358
  %v8103 = vpop.xlane.xlu0 %8102
  %8104 = vadd.xlane.f32.xlu0 %v7359
  %v8105 = vpop.xlane.xlu0 %8104
  %8106 = vadd.xlane.f32.xlu0 %v7360
  %v8107 = vpop.xlane.xlu0 %8106
  %8108 = vadd.xlane.f32.xlu0 %v7361
  %v8109 = vpop.xlane.xlu0 %8108
  %8110 = vadd.xlane.f32.xlu0 %v7362
  %v8111 = vpop.xlane.xlu0 %8110
  %8112 = vadd.xlane.f32.xlu0 %v7363
  %v8113 = vpop.xlane.xlu0 %8112
  %8114 = vadd.xlane.f32.xlu0 %v7364
  %v8115 = vpop.xlane.xlu0 %8114
  %8116 = vadd.xlane.f32.xlu0 %v7365
  %v8117 = vpop.xlane.xlu0 %8116
  %8118 = vadd.xlane.f32.xlu0 %v7366
  %v8119 = vpop.xlane.xlu0 %8118
  %8120 = vadd.xlane.f32.xlu0 %v7367
  %v8121 = vpop.xlane.xlu0 %8120
  %8122 = vadd.xlane.f32.xlu0 %v7368
  %v8123 = vpop.xlane.xlu0 %8122
  %8124 = vadd.xlane.f32.xlu0 %v7369
  %v8125 = vpop.xlane.xlu0 %8124
  %8126 = vadd.xlane.f32.xlu0 %v7370
  %v8127 = vpop.xlane.xlu0 %8126
  %8128 = vadd.xlane.f32.xlu0 %v7371
  %v8129 = vpop.xlane.xlu0 %8128
  %8130 = vadd.xlane.f32.xlu0 %v7372
  %v8131 = vpop.xlane.xlu0 %8130
  %8132 = vadd.xlane.f32.xlu0 %v7373
  %v8133 = vpop.xlane.xlu0 %8132
  %8134 = vadd.xlane.f32.xlu0 %v7374
  %v8135 = vpop.xlane.xlu0 %8134
  %8136 = vadd.xlane.f32.xlu0 %v7375
  %v8137 = vpop.xlane.xlu0 %8136
  %8138 = vadd.xlane.f32.xlu0 %v7376
  %v8139 = vpop.xlane.xlu0 %8138
  %8140 = vadd.xlane.f32.xlu0 %v7377
  %v8141 = vpop.xlane.xlu0 %8140
  %8142 = vadd.xlane.f32.xlu0 %v7378
  %v8143 = vpop.xlane.xlu0 %8142
  %8144 = vadd.xlane.f32.xlu0 %v7379
  %v8145 = vpop.xlane.xlu0 %8144
  %8146 = vadd.xlane.f32.xlu0 %v7380
  %v8147 = vpop.xlane.xlu0 %8146
  %8148 = vadd.xlane.f32.xlu0 %v7381
  %v8149 = vpop.xlane.xlu0 %8148
  %8150 = vadd.xlane.f32.xlu0 %v7382
  %v8151 = vpop.xlane.xlu0 %8150
  %8152 = vadd.xlane.f32.xlu0 %v7383
  %v8153 = vpop.xlane.xlu0 %8152
  %8154 = vadd.xlane.f32.xlu0 %v7384
  %v8155 = vpop.xlane.xlu0 %8154
  %8156 = vadd.xlane.f32.xlu0 %v7385
  %v8157 = vpop.xlane.xlu0 %8156
  %8158 = vadd.xlane.f32.xlu0 %v7386
  %v8159 = vpop.xlane.xlu0 %8158
  %8160 = vadd.xlane.f32.xlu0 %v7387
  %v8161 = vpop.xlane.xlu0 %8160
  %8162 = vadd.xlane.f32.xlu0 %v7388
  %v8163 = vpop.xlane.xlu0 %8162
  %8164 = vadd.xlane.f32.xlu0 %v7389
  %v8165 = vpop.xlane.xlu0 %8164
  %8166 = vadd.xlane.f32.xlu0 %v7390
  %v8167 = vpop.xlane.xlu0 %8166
  %8168 = vadd.xlane.f32.xlu0 %v7391
  %v8169 = vpop.xlane.xlu0 %8168
  %8170 = vadd.xlane.f32.xlu0 %v7392
  %v8171 = vpop.xlane.xlu0 %8170
  %8172 = vadd.xlane.f32.xlu0 %v7393
  %v8173 = vpop.xlane.xlu0 %8172
  %8174 = vadd.xlane.f32.xlu0 %v7394
  %v8175 = vpop.xlane.xlu0 %8174
  %8176 = vadd.xlane.f32.xlu0 %v7395
  %v8177 = vpop.xlane.xlu0 %8176
  %8178 = vadd.xlane.f32.xlu0 %v7396
  %v8179 = vpop.xlane.xlu0 %8178
  %8180 = vadd.xlane.f32.xlu0 %v7397
  %v8181 = vpop.xlane.xlu0 %8180
  %8182 = vadd.xlane.f32.xlu0 %v7398
  %v8183 = vpop.xlane.xlu0 %8182
  %8184 = vadd.xlane.f32.xlu0 %v7399
  %v8185 = vpop.xlane.xlu0 %8184
  %8186 = vadd.xlane.f32.xlu0 %v7400
  %v8187 = vpop.xlane.xlu0 %8186
  %8188 = vadd.xlane.f32.xlu0 %v7401
  %v8189 = vpop.xlane.xlu0 %8188
  %8190 = vadd.xlane.f32.xlu0 %v7402
  %v8191 = vpop.xlane.xlu0 %8190
  %8192 = vadd.xlane.f32.xlu0 %v7403
  %v8193 = vpop.xlane.xlu0 %8192
  %8194 = vadd.xlane.f32.xlu0 %v7404
  %v8195 = vpop.xlane.xlu0 %8194
  %8196 = vadd.xlane.f32.xlu0 %v7405
  %v8197 = vpop.xlane.xlu0 %8196
  %8198 = vadd.xlane.f32.xlu0 %v7406
  %v8199 = vpop.xlane.xlu0 %8198
  %8200 = vadd.xlane.f32.xlu0 %v7407
  %v8201 = vpop.xlane.xlu0 %8200
  %8202 = vadd.xlane.f32.xlu0 %v7408
  %v8203 = vpop.xlane.xlu0 %8202
  %8204 = vadd.xlane.f32.xlu0 %v7409
  %v8205 = vpop.xlane.xlu0 %8204
  %8206 = vadd.xlane.f32.xlu0 %v7410
  %v8207 = vpop.xlane.xlu0 %8206
  %8208 = vadd.xlane.f32.xlu0 %v7411
  %v8209 = vpop.xlane.xlu0 %8208
  %8210 = vadd.xlane.f32.xlu0 %v7412
  %v8211 = vpop.xlane.xlu0 %8210
  %8212 = vadd.xlane.f32.xlu0 %v7413
  %v8213 = vpop.xlane.xlu0 %8212
  %8214 = vadd.xlane.f32.xlu0 %v7414
  %v8215 = vpop.xlane.xlu0 %8214
  %8216 = vadd.xlane.f32.xlu0 %v7415
  %v8217 = vpop.xlane.xlu0 %8216
  %8218 = vadd.xlane.f32.xlu0 %v7416
  %v8219 = vpop.xlane.xlu0 %8218
  %8220 = vadd.xlane.f32.xlu0 %v7417
  %v8221 = vpop.xlane.xlu0 %8220
  %8222 = vadd.xlane.f32.xlu0 %v7418
  %v8223 = vpop.xlane.xlu0 %8222
  %8224 = vadd.xlane.f32.xlu0 %v7419
  %v8225 = vpop.xlane.xlu0 %8224
  %8226 = vadd.xlane.f32.xlu0 %v7420
  %v8227 = vpop.xlane.xlu0 %8226
  %8228 = vadd.xlane.f32.xlu0 %v7421
  %v8229 = vpop.xlane.xlu0 %8228
  %8230 = vadd.xlane.f32.xlu0 %v7422
  %v8231 = vpop.xlane.xlu0 %8230
  %8232 = vadd.xlane.f32.xlu0 %v7423
  %v8233 = vpop.xlane.xlu0 %8232
  %8234 = vadd.xlane.f32.xlu0 %v7424
  %v8235 = vpop.xlane.xlu0 %8234
  %8236 = vadd.xlane.f32.xlu0 %v7425
  %v8237 = vpop.xlane.xlu0 %8236
  %8238 = vadd.xlane.f32.xlu0 %v7426
  %v8239 = vpop.xlane.xlu0 %8238
  %8240 = vadd.xlane.f32.xlu0 %v7427
  %v8241 = vpop.xlane.xlu0 %8240
  %8242 = vadd.xlane.f32.xlu0 %v7428
  %v8243 = vpop.xlane.xlu0 %8242
  %8244 = vadd.xlane.f32.xlu0 %v7429
  %v8245 = vpop.xlane.xlu0 %8244
  %8246 = vadd.xlane.f32.xlu0 %v7430
  %v8247 = vpop.xlane.xlu0 %8246
  %8248 = vadd.xlane.f32.xlu0 %v7431
  %v8249 = vpop.xlane.xlu0 %8248
  %8250 = vadd.xlane.f32.xlu0 %v7432
  %v8251 = vpop.xlane.xlu0 %8250
  %8252 = vadd.xlane.f32.xlu0 %v7433
  %v8253 = vpop.xlane.xlu0 %8252
  %8254 = vadd.xlane.f32.xlu0 %v7434
  %v8255 = vpop.xlane.xlu0 %8254
  %8256 = vadd.xlane.f32.xlu0 %v7435
  %v8257 = vpop.xlane.xlu0 %8256
  %8258 = vadd.xlane.f32.xlu0 %v7436
  %v8259 = vpop.xlane.xlu0 %8258
  %8260 = vadd.xlane.f32.xlu0 %v7437
  %v8261 = vpop.xlane.xlu0 %8260
  %8262 = vadd.xlane.f32.xlu0 %v7438
  %v8263 = vpop.xlane.xlu0 %8262
  %8264 = vadd.xlane.f32.xlu0 %v7439
  %v8265 = vpop.xlane.xlu0 %8264
  %8266 = vadd.xlane.f32.xlu0 %v7440
  %v8267 = vpop.xlane.xlu0 %8266
  %8268 = vadd.xlane.f32.xlu0 %v7441
  %v8269 = vpop.xlane.xlu0 %8268
  %8270 = vadd.xlane.f32.xlu0 %v7442
  %v8271 = vpop.xlane.xlu0 %8270
  %8272 = vadd.xlane.f32.xlu0 %v7443
  %v8273 = vpop.xlane.xlu0 %8272
  %8274 = vadd.xlane.f32.xlu0 %v7444
  %v8275 = vpop.xlane.xlu0 %8274
  %8276 = vadd.xlane.f32.xlu0 %v7445
  %v8277 = vpop.xlane.xlu0 %8276
  %8278 = vadd.xlane.f32.xlu0 %v7446
  %v8279 = vpop.xlane.xlu0 %8278
  %8280 = vadd.xlane.f32.xlu0 %v7447
  %v8281 = vpop.xlane.xlu0 %8280
  %8282 = vadd.xlane.f32.xlu0 %v7448
  %v8283 = vpop.xlane.xlu0 %8282
  %8284 = vadd.xlane.f32.xlu0 %v7449
  %v8285 = vpop.xlane.xlu0 %8284
  %8286 = vadd.xlane.f32.xlu0 %v7450
  %v8287 = vpop.xlane.xlu0 %8286
  %8288 = vadd.xlane.f32.xlu0 %v7451
  %v8289 = vpop.xlane.xlu0 %8288
  %8290 = vadd.xlane.f32.xlu0 %v7452
  %v8291 = vpop.xlane.xlu0 %8290
  %8292 = vadd.xlane.f32.xlu0 %v7453
  %v8293 = vpop.xlane.xlu0 %8292
  %8294 = vadd.xlane.f32.xlu0 %v7454
  %v8295 = vpop.xlane.xlu0 %8294
  %8296 = vadd.xlane.f32.xlu0 %v7455
  %v8297 = vpop.xlane.xlu0 %8296
  %8298 = vadd.xlane.f32.xlu0 %v7456
  %v8299 = vpop.xlane.xlu0 %8298
  %8300 = vadd.xlane.f32.xlu0 %v7457
  %v8301 = vpop.xlane.xlu0 %8300
  %8302 = vadd.xlane.f32.xlu0 %v7458
  %v8303 = vpop.xlane.xlu0 %8302
  %8304 = vadd.xlane.f32.xlu0 %v7459
  %v8305 = vpop.xlane.xlu0 %8304
  %8306 = vadd.xlane.f32.xlu0 %v7460
  %v8307 = vpop.xlane.xlu0 %8306
  %8308 = vadd.xlane.f32.xlu0 %v7461
  %v8309 = vpop.xlane.xlu0 %8308
  %8310 = vadd.xlane.f32.xlu0 %v7462
  %v8311 = vpop.xlane.xlu0 %8310
  %8312 = vadd.xlane.f32.xlu0 %v7463
  %v8313 = vpop.xlane.xlu0 %8312
  %8314 = vadd.xlane.f32.xlu0 %v7464
  %v8315 = vpop.xlane.xlu0 %8314
  %8316 = vadd.xlane.f32.xlu0 %v7465
  %v8317 = vpop.xlane.xlu0 %8316
  %8318 = vadd.xlane.f32.xlu0 %v7466
  %v8319 = vpop.xlane.xlu0 %8318
  %8320 = vadd.xlane.f32.xlu0 %v7467
  %v8321 = vpop.xlane.xlu0 %8320
  %8322 = vadd.xlane.f32.xlu0 %v7468
  %v8323 = vpop.xlane.xlu0 %8322
  %8324 = vadd.xlane.f32.xlu0 %v7469
  %v8325 = vpop.xlane.xlu0 %8324
  %8326 = vadd.xlane.f32.xlu0 %v7470
  %v8327 = vpop.xlane.xlu0 %8326
  %8328 = vadd.xlane.f32.xlu0 %v7471
  %v8329 = vpop.xlane.xlu0 %8328
  %8330 = vadd.xlane.f32.xlu0 %v7472
  %v8331 = vpop.xlane.xlu0 %8330
  %8332 = vadd.xlane.f32.xlu0 %v7473
  %v8333 = vpop.xlane.xlu0 %8332
  %8334 = vadd.xlane.f32.xlu0 %v7474
  %v8335 = vpop.xlane.xlu0 %8334
  %8336 = vadd.xlane.f32.xlu0 %v7475
  %v8337 = vpop.xlane.xlu0 %8336
  %8338 = vadd.xlane.f32.xlu0 %v7476
  %v8339 = vpop.xlane.xlu0 %8338
  %8340 = vadd.xlane.f32.xlu0 %v7477
  %v8341 = vpop.xlane.xlu0 %8340
  %8342 = vadd.xlane.f32.xlu0 %v7478
  %v8343 = vpop.xlane.xlu0 %8342
  %8344 = vadd.xlane.f32.xlu0 %v7479
  %v8345 = vpop.xlane.xlu0 %8344
  %8346 = vadd.xlane.f32.xlu0 %v7480
  %v8347 = vpop.xlane.xlu0 %8346
  %8348 = vadd.xlane.f32.xlu0 %v7481
  %v8349 = vpop.xlane.xlu0 %8348
  %8350 = vadd.xlane.f32.xlu0 %v7482
  %v8351 = vpop.xlane.xlu0 %8350
  %8352 = vadd.xlane.f32.xlu0 %v7483
  %v8353 = vpop.xlane.xlu0 %8352
  %8354 = vadd.xlane.f32.xlu0 %v7484
  %v8355 = vpop.xlane.xlu0 %8354
  %8356 = vadd.xlane.f32.xlu0 %v7485
  %v8357 = vpop.xlane.xlu0 %8356
  %8358 = vadd.xlane.f32.xlu0 %v7486
  %v8359 = vpop.xlane.xlu0 %8358
  %8360 = vadd.xlane.f32.xlu0 %v7487
  %v8361 = vpop.xlane.xlu0 %8360
  %8362 = vadd.xlane.f32.xlu0 %v7488
  %v8363 = vpop.xlane.xlu0 %8362
  %8364 = vadd.xlane.f32.xlu0 %v7489
  %v8365 = vpop.xlane.xlu0 %8364
  %8366 = vadd.xlane.f32.xlu0 %v7490
  %v8367 = vpop.xlane.xlu0 %8366
  %8368 = vadd.xlane.f32.xlu0 %v7491
  %v8369 = vpop.xlane.xlu0 %8368
  %8370 = vadd.xlane.f32.xlu0 %v7492
  %v8371 = vpop.xlane.xlu0 %8370
  %8372 = vadd.xlane.f32.xlu0 %v7493
  %v8373 = vpop.xlane.xlu0 %8372
  %8374 = vadd.xlane.f32.xlu0 %v7494
  %v8375 = vpop.xlane.xlu0 %8374
  %8376 = vadd.xlane.f32.xlu0 %v7495
  %v8377 = vpop.xlane.xlu0 %8376
  %8378 = vadd.xlane.f32.xlu0 %v7496
  %v8379 = vpop.xlane.xlu0 %8378
  %8380 = vadd.xlane.f32.xlu0 %v7497
  %v8381 = vpop.xlane.xlu0 %8380
  %8382 = vadd.xlane.f32.xlu0 %v7498
  %v8383 = vpop.xlane.xlu0 %8382
  %8384 = vadd.xlane.f32.xlu0 %v7499
  %v8385 = vpop.xlane.xlu0 %8384
  %8386 = vadd.xlane.f32.xlu0 %v7500
  %v8387 = vpop.xlane.xlu0 %8386
  %8388 = vadd.xlane.f32.xlu0 %v7501
  %v8389 = vpop.xlane.xlu0 %8388
  %8390 = vadd.xlane.f32.xlu0 %v7502
  %v8391 = vpop.xlane.xlu0 %8390
  %8392 = vadd.xlane.f32.xlu0 %v7503
  %v8393 = vpop.xlane.xlu0 %8392
  %8394 = vadd.xlane.f32.xlu0 %v7504
  %v8395 = vpop.xlane.xlu0 %8394
  %8396 = vadd.xlane.f32.xlu0 %v7505
  %v8397 = vpop.xlane.xlu0 %8396
  %8398 = vadd.xlane.f32.xlu0 %v7506
  %v8399 = vpop.xlane.xlu0 %8398
  %8400 = vadd.xlane.f32.xlu0 %v7507
  %v8401 = vpop.xlane.xlu0 %8400
  %8402 = vadd.xlane.f32.xlu0 %v7508
  %v8403 = vpop.xlane.xlu0 %8402
  %8404 = vadd.xlane.f32.xlu0 %v7509
  %v8405 = vpop.xlane.xlu0 %8404
  %8406 = vadd.xlane.f32.xlu0 %v7510
  %v8407 = vpop.xlane.xlu0 %8406
  %8408 = vadd.xlane.f32.xlu0 %v7511
  %v8409 = vpop.xlane.xlu0 %8408
  %8410 = vadd.xlane.f32.xlu0 %v7512
  %v8411 = vpop.xlane.xlu0 %8410
  %8412 = vadd.xlane.f32.xlu0 %v7513
  %v8413 = vpop.xlane.xlu0 %8412
  %8414 = vadd.xlane.f32.xlu0 %v7514
  %v8415 = vpop.xlane.xlu0 %8414
  %8416 = vadd.xlane.f32.xlu0 %v7515
  %v8417 = vpop.xlane.xlu0 %8416
  %8418 = vadd.xlane.f32.xlu0 %v7516
  %v8419 = vpop.xlane.xlu0 %8418
  %8420 = vadd.xlane.f32.xlu0 %v7517
  %v8421 = vpop.xlane.xlu0 %8420
  %8422 = vadd.xlane.f32.xlu0 %v7518
  %v8423 = vpop.xlane.xlu0 %8422
  %8424 = vadd.xlane.f32.xlu0 %v7519
  %v8425 = vpop.xlane.xlu0 %8424
  %8426 = vadd.xlane.f32.xlu0 %v7520
  %v8427 = vpop.xlane.xlu0 %8426
  %8428 = vadd.xlane.f32.xlu0 %v7521
  %v8429 = vpop.xlane.xlu0 %8428
  %8430 = vadd.xlane.f32.xlu0 %v7522
  %v8431 = vpop.xlane.xlu0 %8430
  %8432 = vadd.xlane.f32.xlu0 %v7523
  %v8433 = vpop.xlane.xlu0 %8432
  %8434 = vadd.xlane.f32.xlu0 %v7524
  %v8435 = vpop.xlane.xlu0 %8434
  %8436 = vadd.xlane.f32.xlu0 %v7525
  %v8437 = vpop.xlane.xlu0 %8436
  %8438 = vadd.xlane.f32.xlu0 %v7526
  %v8439 = vpop.xlane.xlu0 %8438
  %8440 = vadd.xlane.f32.xlu0 %v7527
  %v8441 = vpop.xlane.xlu0 %8440
  %8442 = vadd.xlane.f32.xlu0 %v7528
  %v8443 = vpop.xlane.xlu0 %8442
  %8444 = vadd.xlane.f32.xlu0 %v7529
  %v8445 = vpop.xlane.xlu0 %8444
  %8446 = vadd.xlane.f32.xlu0 %v7530
  %v8447 = vpop.xlane.xlu0 %8446
  %8448 = vadd.xlane.f32.xlu0 %v7531
  %v8449 = vpop.xlane.xlu0 %8448
  %8450 = vadd.xlane.f32.xlu0 %v7532
  %v8451 = vpop.xlane.xlu0 %8450
  %8452 = vadd.xlane.f32.xlu0 %v7533
  %v8453 = vpop.xlane.xlu0 %8452
  %8454 = vadd.xlane.f32.xlu0 %v7534
  %v8455 = vpop.xlane.xlu0 %8454
  %8456 = vadd.xlane.f32.xlu0 %v7535
  %v8457 = vpop.xlane.xlu0 %8456
  %8458 = vadd.xlane.f32.xlu0 %v7536
  %v8459 = vpop.xlane.xlu0 %8458
  %8460 = vadd.xlane.f32.xlu0 %v7537
  %v8461 = vpop.xlane.xlu0 %8460
  %8462 = vadd.xlane.f32.xlu0 %v7538
  %v8463 = vpop.xlane.xlu0 %8462
  %8464 = vadd.xlane.f32.xlu0 %v7539
  %v8465 = vpop.xlane.xlu0 %8464
  %8466 = vadd.xlane.f32.xlu0 %v7540
  %v8467 = vpop.xlane.xlu0 %8466
  %8468 = vadd.xlane.f32.xlu0 %v7541
  %v8469 = vpop.xlane.xlu0 %8468
  %8470 = vadd.xlane.f32.xlu0 %v7542
  %v8471 = vpop.xlane.xlu0 %8470
  %8472 = vadd.xlane.f32.xlu0 %v7543
  %v8473 = vpop.xlane.xlu0 %8472
  %8474 = vadd.xlane.f32.xlu0 %v7544
  %v8475 = vpop.xlane.xlu0 %8474
  %8476 = vadd.xlane.f32.xlu0 %v7545
  %v8477 = vpop.xlane.xlu0 %8476
  %8478 = vadd.xlane.f32.xlu0 %v7546
  %v8479 = vpop.xlane.xlu0 %8478
  %8480 = vadd.xlane.f32.xlu0 %v7547
  %v8481 = vpop.xlane.xlu0 %8480
  %8482 = vadd.xlane.f32.xlu0 %v7548
  %v8483 = vpop.xlane.xlu0 %8482
  %8484 = vadd.xlane.f32.xlu0 %v7549
  %v8485 = vpop.xlane.xlu0 %8484
  %8486 = vadd.xlane.f32.xlu0 %v7550
  %v8487 = vpop.xlane.xlu0 %8486
  %8488 = vadd.xlane.f32.xlu0 %v7551
  %v8489 = vpop.xlane.xlu0 %8488
  %8490 = vadd.xlane.f32.xlu0 %v7552
  %v8491 = vpop.xlane.xlu0 %8490
  %8492 = vadd.xlane.f32.xlu0 %v7553
  %v8493 = vpop.xlane.xlu0 %8492
  %8494 = vadd.xlane.f32.xlu0 %v7554
  %v8495 = vpop.xlane.xlu0 %8494
  %8496 = vadd.xlane.f32.xlu0 %v7555
  %v8497 = vpop.xlane.xlu0 %8496
  %8498 = vadd.xlane.f32.xlu0 %v7556
  %v8499 = vpop.xlane.xlu0 %8498
  %8500 = vadd.xlane.f32.xlu0 %v7557
  %v8501 = vpop.xlane.xlu0 %8500
  %8502 = vadd.xlane.f32.xlu0 %v7558
  %v8503 = vpop.xlane.xlu0 %8502
  %8504 = vadd.xlane.f32.xlu0 %v7559
  %v8505 = vpop.xlane.xlu0 %8504
  %8506 = vadd.xlane.f32.xlu0 %v7560
  %v8507 = vpop.xlane.xlu0 %8506
  %8508 = vadd.xlane.f32.xlu0 %v7561
  %v8509 = vpop.xlane.xlu0 %8508
  %8510 = vadd.xlane.f32.xlu0 %v7562
  %v8511 = vpop.xlane.xlu0 %8510
  %8512 = vadd.xlane.f32.xlu0 %v7563
  %v8513 = vpop.xlane.xlu0 %8512
  %8514 = vadd.xlane.f32.xlu0 %v7564
  %v8515 = vpop.xlane.xlu0 %8514
  %8516 = vadd.xlane.f32.xlu0 %v7565
  %v8517 = vpop.xlane.xlu0 %8516
  %8518 = vadd.xlane.f32.xlu0 %v7566
  %v8519 = vpop.xlane.xlu0 %8518
  %8520 = vadd.xlane.f32.xlu0 %v7567
  %v8521 = vpop.xlane.xlu0 %8520
  %8522 = vadd.xlane.f32.xlu0 %v7568
  %v8523 = vpop.xlane.xlu0 %8522
  %8524 = vadd.xlane.f32.xlu0 %v7569
  %v8525 = vpop.xlane.xlu0 %8524
  %8526 = vadd.xlane.f32.xlu0 %v7570
  %v8527 = vpop.xlane.xlu0 %8526
  %8528 = vadd.xlane.f32.xlu0 %v7571
  %v8529 = vpop.xlane.xlu0 %8528
  %8530 = vadd.xlane.f32.xlu0 %v7572
  %v8531 = vpop.xlane.xlu0 %8530
  %8532 = vadd.xlane.f32.xlu0 %v7573
  %v8533 = vpop.xlane.xlu0 %8532
  %8534 = vadd.xlane.f32.xlu0 %v7574
  %v8535 = vpop.xlane.xlu0 %8534
  %8536 = vadd.xlane.f32.xlu0 %v7575
  %v8537 = vpop.xlane.xlu0 %8536
  %8538 = vadd.xlane.f32.xlu0 %v7576
  %v8539 = vpop.xlane.xlu0 %8538
  %8540 = vadd.xlane.f32.xlu0 %v7577
  %v8541 = vpop.xlane.xlu0 %8540
  %8542 = vadd.xlane.f32.xlu0 %v7578
  %v8543 = vpop.xlane.xlu0 %8542
  %8544 = vadd.xlane.f32.xlu0 %v7579
  %v8545 = vpop.xlane.xlu0 %8544
  %8546 = vadd.xlane.f32.xlu0 %v7580
  %v8547 = vpop.xlane.xlu0 %8546
  %8548 = vadd.xlane.f32.xlu0 %v7581
  %v8549 = vpop.xlane.xlu0 %8548
  %8550 = vadd.xlane.f32.xlu0 %v7582
  %v8551 = vpop.xlane.xlu0 %8550
  %8552 = vadd.xlane.f32.xlu0 %v7583
  %v8553 = vpop.xlane.xlu0 %8552
  %8554 = vadd.xlane.f32.xlu0 %v7584
  %v8555 = vpop.xlane.xlu0 %8554
  %8556 = vadd.xlane.f32.xlu0 %v7585
  %v8557 = vpop.xlane.xlu0 %8556
  %8558 = vadd.xlane.f32.xlu0 %v7586
  %v8559 = vpop.xlane.xlu0 %8558
  %8560 = vadd.xlane.f32.xlu0 %v7587
  %v8561 = vpop.xlane.xlu0 %8560
  %8562 = vadd.xlane.f32.xlu0 %v7588
  %v8563 = vpop.xlane.xlu0 %8562
  %8564 = vadd.xlane.f32.xlu0 %v7589
  %v8565 = vpop.xlane.xlu0 %8564
  %8566 = vadd.xlane.f32.xlu0 %v7590
  %v8567 = vpop.xlane.xlu0 %8566
  %8568 = vadd.xlane.f32.xlu0 %v7591
  %v8569 = vpop.xlane.xlu0 %8568
  %8570 = vadd.xlane.f32.xlu0 %v7592
  %v8571 = vpop.xlane.xlu0 %8570
  %8572 = vadd.xlane.f32.xlu0 %v7593
  %v8573 = vpop.xlane.xlu0 %8572
  %8574 = vadd.xlane.f32.xlu0 %v7594
  %v8575 = vpop.xlane.xlu0 %8574
  %8576 = vadd.xlane.f32.xlu0 %v7595
  %v8577 = vpop.xlane.xlu0 %8576
  %8578 = vadd.xlane.f32.xlu0 %v7596
  %v8579 = vpop.xlane.xlu0 %8578
  %8580 = vadd.xlane.f32.xlu0 %v7597
  %v8581 = vpop.xlane.xlu0 %8580
  %8582 = vadd.xlane.f32.xlu0 %v7598
  %v8583 = vpop.xlane.xlu0 %8582
  %8584 = vadd.xlane.f32.xlu0 %v7599
  %v8585 = vpop.xlane.xlu0 %8584
  %8586 = vadd.xlane.f32.xlu0 %v7600
  %v8587 = vpop.xlane.xlu0 %8586
  %8588 = vadd.xlane.f32.xlu0 %v7601
  %v8589 = vpop.xlane.xlu0 %8588
  %8590 = vadd.xlane.f32.xlu0 %v7602
  %v8591 = vpop.xlane.xlu0 %8590
  %8592 = vadd.xlane.f32.xlu0 %v7603
  %v8593 = vpop.xlane.xlu0 %8592
  %8594 = vadd.xlane.f32.xlu0 %v7604
  %v8595 = vpop.xlane.xlu0 %8594
  %8596 = vadd.xlane.f32.xlu0 %v7605
  %v8597 = vpop.xlane.xlu0 %8596
  %8598 = vadd.xlane.f32.xlu0 %v7606
  %v8599 = vpop.xlane.xlu0 %8598
  %8600 = vadd.xlane.f32.xlu0 %v7607
  %v8601 = vpop.xlane.xlu0 %8600
  %8602 = vadd.xlane.f32.xlu0 %v7608
  %v8603 = vpop.xlane.xlu0 %8602
  %8604 = vadd.xlane.f32.xlu0 %v7609
  %v8605 = vpop.xlane.xlu0 %8604
  %8606 = vadd.xlane.f32.xlu0 %v7610
  %v8607 = vpop.xlane.xlu0 %8606
  %8608 = vadd.xlane.f32.xlu0 %v7611
  %v8609 = vpop.xlane.xlu0 %8608
  %8610 = vadd.xlane.f32.xlu0 %v7612
  %v8611 = vpop.xlane.xlu0 %8610
  %8612 = vadd.xlane.f32.xlu0 %v7613
  %v8613 = vpop.xlane.xlu0 %8612
  %8614 = vadd.xlane.f32.xlu0 %v7614
  %v8615 = vpop.xlane.xlu0 %8614
  %8616 = vadd.xlane.f32.xlu0 %v7615
  %v8617 = vpop.xlane.xlu0 %8616
  %8618 = vadd.xlane.f32.xlu0 %v7616
  %v8619 = vpop.xlane.xlu0 %8618
  %8620 = vadd.xlane.f32.xlu0 %v7617
  %v8621 = vpop.xlane.xlu0 %8620
  %8622 = vadd.xlane.f32.xlu0 %v7618
  %v8623 = vpop.xlane.xlu0 %8622
  %8624 = vadd.xlane.f32.xlu0 %v7619
  %v8625 = vpop.xlane.xlu0 %8624
  %8626 = vadd.xlane.f32.xlu0 %v7620
  %v8627 = vpop.xlane.xlu0 %8626
  %8628 = vadd.xlane.f32.xlu0 %v7621
  %v8629 = vpop.xlane.xlu0 %8628
  %8630 = vadd.xlane.f32.xlu0 %v7622
  %v8631 = vpop.xlane.xlu0 %8630
  %8632 = vadd.xlane.f32.xlu0 %v7623
  %v8633 = vpop.xlane.xlu0 %8632
  %8634 = vadd.xlane.f32.xlu0 %v7624
  %v8635 = vpop.xlane.xlu0 %8634
  %8636 = vadd.xlane.f32.xlu0 %v7625
  %v8637 = vpop.xlane.xlu0 %8636
  %8638 = vadd.xlane.f32.xlu0 %v7626
  %v8639 = vpop.xlane.xlu0 %8638
  %8640 = vadd.xlane.f32.xlu0 %v7627
  %v8641 = vpop.xlane.xlu0 %8640
  %8642 = vadd.xlane.f32.xlu0 %v7628
  %v8643 = vpop.xlane.xlu0 %8642
  %8644 = vadd.xlane.f32.xlu0 %v7629
  %v8645 = vpop.xlane.xlu0 %8644
  %8646 = vadd.xlane.f32.xlu0 %v7630
  %v8647 = vpop.xlane.xlu0 %8646
  %8648 = vadd.xlane.f32.xlu0 %v7631
  %v8649 = vpop.xlane.xlu0 %8648
  %8650 = vadd.xlane.f32.xlu0 %v7632
  %v8651 = vpop.xlane.xlu0 %8650
  %8652 = vadd.xlane.f32.xlu0 %v7633
  %v8653 = vpop.xlane.xlu0 %8652
  %8654 = vadd.xlane.f32.xlu0 %v7634
  %v8655 = vpop.xlane.xlu0 %8654
  %8656 = vadd.xlane.f32.xlu0 %v7635
  %v8657 = vpop.xlane.xlu0 %8656
  %8658 = vadd.xlane.f32.xlu0 %v7636
  %v8659 = vpop.xlane.xlu0 %8658
  %8660 = vadd.xlane.f32.xlu0 %v7637
  %v8661 = vpop.xlane.xlu0 %8660
  %v9174 = vlaneseq
  %v9175 = vand.u32 %v9174, 127
  %v9176 = vlaneseq
  %v9177 = vshrl.u32 %v9176, 7
  %v9178 = vsub.s32 %v9175, %v9177
  %v9179 = vrot.slane %v7639, %v9178
  %v9180 = vadd.s32 %v9175, 4294967288
  %v9181 = vlaneseq
  %v9182 = vshrl.u32 %v9181, 7
  %v9183 = vsub.s32 %v9180, %v9182
  %v9184 = vrot.slane %v7641, %v9183
  %vm9185 = vcmask 130112
  %v9186 = vsel %vm9185, %v9184, %v9179
  %v9187 = vadd.s32 %v9175, 4294967280
  %v9188 = vlaneseq
  %v9189 = vshrl.u32 %v9188, 7
  %v9190 = vsub.s32 %v9187, %v9189
  %v9191 = vrot.slane %v7643, %v9190
  %vm9192 = vcmask 195712
  %v9193 = vsel %vm9192, %v9191, %v9186
  %v9194 = vadd.s32 %v9175, 4294967272
  %v9195 = vlaneseq
  %v9196 = vshrl.u32 %v9195, 7
  %v9197 = vsub.s32 %v9194, %v9196
  %v9198 = vrot.slane %v7645, %v9197
  %vm9199 = vcmask 261312
  %v9200 = vsel %vm9199, %v9198, %v9193
  %v9201 = vlaneseq
  %v9202 = vshrl.u32 %v9201, 7
  %v9203 = vsub.s32 %v9175, %v9202
  %v9204 = vrot.slane %v7647, %v9203
  %v9205 = vlaneseq
  %v9206 = vshrl.u32 %v9205, 7
  %v9207 = vsub.s32 %v9180, %v9206
  %v9208 = vrot.slane %v7649, %v9207
  %v9209 = vsel %vm9185, %v9208, %v9204
  %v9210 = vlaneseq
  %v9211 = vshrl.u32 %v9210, 7
  %v9212 = vsub.s32 %v9187, %v9211
  %v9213 = vrot.slane %v7651, %v9212
  %v9214 = vsel %vm9192, %v9213, %v9209
  %v9215 = vlaneseq
  %v9216 = vshrl.u32 %v9215, 7
  %v9217 = vsub.s32 %v9194, %v9216
  %v9218 = vrot.slane %v7653, %v9217
  %v9219 = vsel %vm9199, %v9218, %v9214
  %v9220 = vlaneseq
  %v9221 = vshrl.u32 %v9220, 7
  %v9222 = vsub.s32 %v9175, %v9221
  %v9223 = vrot.slane %v7655, %v9222
  %v9224 = vlaneseq
  %v9225 = vshrl.u32 %v9224, 7
  %v9226 = vsub.s32 %v9180, %v9225
  %v9227 = vrot.slane %v7657, %v9226
  %v9228 = vsel %vm9185, %v9227, %v9223
  %v9229 = vlaneseq
  %v9230 = vshrl.u32 %v9229, 7
  %v9231 = vsub.s32 %v9187, %v9230
  %v9232 = vrot.slane %v7659, %v9231
  %v9233 = vsel %vm9192, %v9232, %v9228
  %v9234 = vlaneseq
  %v9235 = vshrl.u32 %v9234, 7
  %v9236 = vsub.s32 %v9194, %v9235
  %v9237 = vrot.slane %v7661, %v9236
  %v9238 = vsel %vm9199, %v9237, %v9233
  %v9239 = vlaneseq
  %v9240 = vshrl.u32 %v9239, 7
  %v9241 = vsub.s32 %v9175, %v9240
  %v9242 = vrot.slane %v7663, %v9241
  %v9243 = vlaneseq
  %v9244 = vshrl.u32 %v9243, 7
  %v9245 = vsub.s32 %v9180, %v9244
  %v9246 = vrot.slane %v7665, %v9245
  %v9247 = vsel %vm9185, %v9246, %v9242
  %v9248 = vlaneseq
  %v9249 = vshrl.u32 %v9248, 7
  %v9250 = vsub.s32 %v9187, %v9249
  %v9251 = vrot.slane %v7667, %v9250
  %v9252 = vsel %vm9192, %v9251, %v9247
  %v9253 = vlaneseq
  %v9254 = vshrl.u32 %v9253, 7
  %v9255 = vsub.s32 %v9194, %v9254
  %v9256 = vrot.slane %v7669, %v9255
  %v9257 = vsel %vm9199, %v9256, %v9252
  %v9258 = vlaneseq
  %v9259 = vshrl.u32 %v9258, 7
  %v9260 = vsub.s32 %v9175, %v9259
  %v9261 = vrot.slane %v7671, %v9260
  %v9262 = vlaneseq
  %v9263 = vshrl.u32 %v9262, 7
  %v9264 = vsub.s32 %v9180, %v9263
  %v9265 = vrot.slane %v7673, %v9264
  %v9266 = vsel %vm9185, %v9265, %v9261
  %v9267 = vlaneseq
  %v9268 = vshrl.u32 %v9267, 7
  %v9269 = vsub.s32 %v9187, %v9268
  %v9270 = vrot.slane %v7675, %v9269
  %v9271 = vsel %vm9192, %v9270, %v9266
  %v9272 = vlaneseq
  %v9273 = vshrl.u32 %v9272, 7
  %v9274 = vsub.s32 %v9194, %v9273
  %v9275 = vrot.slane %v7677, %v9274
  %v9276 = vsel %vm9199, %v9275, %v9271
  %v9277 = vlaneseq
  %v9278 = vshrl.u32 %v9277, 7
  %v9279 = vsub.s32 %v9175, %v9278
  %v9280 = vrot.slane %v7679, %v9279
  %v9281 = vlaneseq
  %v9282 = vshrl.u32 %v9281, 7
  %v9283 = vsub.s32 %v9180, %v9282
  %v9284 = vrot.slane %v7681, %v9283
  %v9285 = vsel %vm9185, %v9284, %v9280
  %v9286 = vlaneseq
  %v9287 = vshrl.u32 %v9286, 7
  %v9288 = vsub.s32 %v9187, %v9287
  %v9289 = vrot.slane %v7683, %v9288
  %v9290 = vsel %vm9192, %v9289, %v9285
  %v9291 = vlaneseq
  %v9292 = vshrl.u32 %v9291, 7
  %v9293 = vsub.s32 %v9194, %v9292
  %v9294 = vrot.slane %v7685, %v9293
  %v9295 = vsel %vm9199, %v9294, %v9290
  %v9296 = vlaneseq
  %v9297 = vshrl.u32 %v9296, 7
  %v9298 = vsub.s32 %v9175, %v9297
  %v9299 = vrot.slane %v7687, %v9298
  %v9300 = vlaneseq
  %v9301 = vshrl.u32 %v9300, 7
  %v9302 = vsub.s32 %v9180, %v9301
  %v9303 = vrot.slane %v7689, %v9302
  %v9304 = vsel %vm9185, %v9303, %v9299
  %v9305 = vlaneseq
  %v9306 = vshrl.u32 %v9305, 7
  %v9307 = vsub.s32 %v9187, %v9306
  %v9308 = vrot.slane %v7691, %v9307
  %v9309 = vsel %vm9192, %v9308, %v9304
  %v9310 = vlaneseq
  %v9311 = vshrl.u32 %v9310, 7
  %v9312 = vsub.s32 %v9194, %v9311
  %v9313 = vrot.slane %v7693, %v9312
  %v9314 = vsel %vm9199, %v9313, %v9309
  %v9315 = vlaneseq
  %v9316 = vshrl.u32 %v9315, 7
  %v9317 = vsub.s32 %v9175, %v9316
  %v9318 = vrot.slane %v7695, %v9317
  %v9319 = vlaneseq
  %v9320 = vshrl.u32 %v9319, 7
  %v9321 = vsub.s32 %v9180, %v9320
  %v9322 = vrot.slane %v7697, %v9321
  %v9323 = vsel %vm9185, %v9322, %v9318
  %v9324 = vlaneseq
  %v9325 = vshrl.u32 %v9324, 7
  %v9326 = vsub.s32 %v9187, %v9325
  %v9327 = vrot.slane %v7699, %v9326
  %v9328 = vsel %vm9192, %v9327, %v9323
  %v9329 = vlaneseq
  %v9330 = vshrl.u32 %v9329, 7
  %v9331 = vsub.s32 %v9194, %v9330
  %v9332 = vrot.slane %v7701, %v9331
  %v9333 = vsel %vm9199, %v9332, %v9328
  %v9334 = vlaneseq
  %v9335 = vshrl.u32 %v9334, 7
  %v9336 = vsub.s32 %v9175, %v9335
  %v9337 = vrot.slane %v7703, %v9336
  %v9338 = vlaneseq
  %v9339 = vshrl.u32 %v9338, 7
  %v9340 = vsub.s32 %v9180, %v9339
  %v9341 = vrot.slane %v7705, %v9340
  %v9342 = vsel %vm9185, %v9341, %v9337
  %v9343 = vlaneseq
  %v9344 = vshrl.u32 %v9343, 7
  %v9345 = vsub.s32 %v9187, %v9344
  %v9346 = vrot.slane %v7707, %v9345
  %v9347 = vsel %vm9192, %v9346, %v9342
  %v9348 = vlaneseq
  %v9349 = vshrl.u32 %v9348, 7
  %v9350 = vsub.s32 %v9194, %v9349
  %v9351 = vrot.slane %v7709, %v9350
  %v9352 = vsel %vm9199, %v9351, %v9347
  %v9353 = vlaneseq
  %v9354 = vshrl.u32 %v9353, 7
  %v9355 = vsub.s32 %v9175, %v9354
  %v9356 = vrot.slane %v7711, %v9355
  %v9357 = vlaneseq
  %v9358 = vshrl.u32 %v9357, 7
  %v9359 = vsub.s32 %v9180, %v9358
  %v9360 = vrot.slane %v7713, %v9359
  %v9361 = vsel %vm9185, %v9360, %v9356
  %v9362 = vlaneseq
  %v9363 = vshrl.u32 %v9362, 7
  %v9364 = vsub.s32 %v9187, %v9363
  %v9365 = vrot.slane %v7715, %v9364
  %v9366 = vsel %vm9192, %v9365, %v9361
  %v9367 = vlaneseq
  %v9368 = vshrl.u32 %v9367, 7
  %v9369 = vsub.s32 %v9194, %v9368
  %v9370 = vrot.slane %v7717, %v9369
  %v9371 = vsel %vm9199, %v9370, %v9366
  %v9372 = vlaneseq
  %v9373 = vshrl.u32 %v9372, 7
  %v9374 = vsub.s32 %v9175, %v9373
  %v9375 = vrot.slane %v7719, %v9374
  %v9376 = vlaneseq
  %v9377 = vshrl.u32 %v9376, 7
  %v9378 = vsub.s32 %v9180, %v9377
  %v9379 = vrot.slane %v7721, %v9378
  %v9380 = vsel %vm9185, %v9379, %v9375
  %v9381 = vlaneseq
  %v9382 = vshrl.u32 %v9381, 7
  %v9383 = vsub.s32 %v9187, %v9382
  %v9384 = vrot.slane %v7723, %v9383
  %v9385 = vsel %vm9192, %v9384, %v9380
  %v9386 = vlaneseq
  %v9387 = vshrl.u32 %v9386, 7
  %v9388 = vsub.s32 %v9194, %v9387
  %v9389 = vrot.slane %v7725, %v9388
  %v9390 = vsel %vm9199, %v9389, %v9385
  %v9391 = vlaneseq
  %v9392 = vshrl.u32 %v9391, 7
  %v9393 = vsub.s32 %v9175, %v9392
  %v9394 = vrot.slane %v7727, %v9393
  %v9395 = vlaneseq
  %v9396 = vshrl.u32 %v9395, 7
  %v9397 = vsub.s32 %v9180, %v9396
  %v9398 = vrot.slane %v7729, %v9397
  %v9399 = vsel %vm9185, %v9398, %v9394
  %v9400 = vlaneseq
  %v9401 = vshrl.u32 %v9400, 7
  %v9402 = vsub.s32 %v9187, %v9401
  %v9403 = vrot.slane %v7731, %v9402
  %v9404 = vsel %vm9192, %v9403, %v9399
  %v9405 = vlaneseq
  %v9406 = vshrl.u32 %v9405, 7
  %v9407 = vsub.s32 %v9194, %v9406
  %v9408 = vrot.slane %v7733, %v9407
  %v9409 = vsel %vm9199, %v9408, %v9404
  %v9410 = vlaneseq
  %v9411 = vshrl.u32 %v9410, 7
  %v9412 = vsub.s32 %v9175, %v9411
  %v9413 = vrot.slane %v7735, %v9412
  %v9414 = vlaneseq
  %v9415 = vshrl.u32 %v9414, 7
  %v9416 = vsub.s32 %v9180, %v9415
  %v9417 = vrot.slane %v7737, %v9416
  %v9418 = vsel %vm9185, %v9417, %v9413
  %v9419 = vlaneseq
  %v9420 = vshrl.u32 %v9419, 7
  %v9421 = vsub.s32 %v9187, %v9420
  %v9422 = vrot.slane %v7739, %v9421
  %v9423 = vsel %vm9192, %v9422, %v9418
  %v9424 = vlaneseq
  %v9425 = vshrl.u32 %v9424, 7
  %v9426 = vsub.s32 %v9194, %v9425
  %v9427 = vrot.slane %v7741, %v9426
  %v9428 = vsel %vm9199, %v9427, %v9423
  %v9429 = vlaneseq
  %v9430 = vshrl.u32 %v9429, 7
  %v9431 = vsub.s32 %v9175, %v9430
  %v9432 = vrot.slane %v7743, %v9431
  %v9433 = vlaneseq
  %v9434 = vshrl.u32 %v9433, 7
  %v9435 = vsub.s32 %v9180, %v9434
  %v9436 = vrot.slane %v7745, %v9435
  %v9437 = vsel %vm9185, %v9436, %v9432
  %v9438 = vlaneseq
  %v9439 = vshrl.u32 %v9438, 7
  %v9440 = vsub.s32 %v9187, %v9439
  %v9441 = vrot.slane %v7747, %v9440
  %v9442 = vsel %vm9192, %v9441, %v9437
  %v9443 = vlaneseq
  %v9444 = vshrl.u32 %v9443, 7
  %v9445 = vsub.s32 %v9194, %v9444
  %v9446 = vrot.slane %v7749, %v9445
  %v9447 = vsel %vm9199, %v9446, %v9442
  %v9448 = vlaneseq
  %v9449 = vshrl.u32 %v9448, 7
  %v9450 = vsub.s32 %v9175, %v9449
  %v9451 = vrot.slane %v7751, %v9450
  %v9452 = vlaneseq
  %v9453 = vshrl.u32 %v9452, 7
  %v9454 = vsub.s32 %v9180, %v9453
  %v9455 = vrot.slane %v7753, %v9454
  %v9456 = vsel %vm9185, %v9455, %v9451
  %v9457 = vlaneseq
  %v9458 = vshrl.u32 %v9457, 7
  %v9459 = vsub.s32 %v9187, %v9458
  %v9460 = vrot.slane %v7755, %v9459
  %v9461 = vsel %vm9192, %v9460, %v9456
  %v9462 = vlaneseq
  %v9463 = vshrl.u32 %v9462, 7
  %v9464 = vsub.s32 %v9194, %v9463
  %v9465 = vrot.slane %v7757, %v9464
  %v9466 = vsel %vm9199, %v9465, %v9461
  %v9467 = vlaneseq
  %v9468 = vshrl.u32 %v9467, 7
  %v9469 = vsub.s32 %v9175, %v9468
  %v9470 = vrot.slane %v7759, %v9469
  %v9471 = vlaneseq
  %v9472 = vshrl.u32 %v9471, 7
  %v9473 = vsub.s32 %v9180, %v9472
  %v9474 = vrot.slane %v7761, %v9473
  %v9475 = vsel %vm9185, %v9474, %v9470
  %v9476 = vlaneseq
  %v9477 = vshrl.u32 %v9476, 7
  %v9478 = vsub.s32 %v9187, %v9477
  %v9479 = vrot.slane %v7763, %v9478
  %v9480 = vsel %vm9192, %v9479, %v9475
  %v9481 = vlaneseq
  %v9482 = vshrl.u32 %v9481, 7
  %v9483 = vsub.s32 %v9194, %v9482
  %v9484 = vrot.slane %v7765, %v9483
  %v9485 = vsel %vm9199, %v9484, %v9480
  %v9486 = vlaneseq
  %v9487 = vshrl.u32 %v9486, 7
  %v9488 = vsub.s32 %v9175, %v9487
  %v9489 = vrot.slane %v7767, %v9488
  %v9490 = vlaneseq
  %v9491 = vshrl.u32 %v9490, 7
  %v9492 = vsub.s32 %v9180, %v9491
  %v9493 = vrot.slane %v7769, %v9492
  %v9494 = vsel %vm9185, %v9493, %v9489
  %v9495 = vlaneseq
  %v9496 = vshrl.u32 %v9495, 7
  %v9497 = vsub.s32 %v9187, %v9496
  %v9498 = vrot.slane %v7771, %v9497
  %v9499 = vsel %vm9192, %v9498, %v9494
  %v9500 = vlaneseq
  %v9501 = vshrl.u32 %v9500, 7
  %v9502 = vsub.s32 %v9194, %v9501
  %v9503 = vrot.slane %v7773, %v9502
  %v9504 = vsel %vm9199, %v9503, %v9499
  %v9505 = vlaneseq
  %v9506 = vshrl.u32 %v9505, 7
  %v9507 = vsub.s32 %v9175, %v9506
  %v9508 = vrot.slane %v7775, %v9507
  %v9509 = vlaneseq
  %v9510 = vshrl.u32 %v9509, 7
  %v9511 = vsub.s32 %v9180, %v9510
  %v9512 = vrot.slane %v7777, %v9511
  %v9513 = vsel %vm9185, %v9512, %v9508
  %v9514 = vlaneseq
  %v9515 = vshrl.u32 %v9514, 7
  %v9516 = vsub.s32 %v9187, %v9515
  %v9517 = vrot.slane %v7779, %v9516
  %v9518 = vsel %vm9192, %v9517, %v9513
  %v9519 = vlaneseq
  %v9520 = vshrl.u32 %v9519, 7
  %v9521 = vsub.s32 %v9194, %v9520
  %v9522 = vrot.slane %v7781, %v9521
  %v9523 = vsel %vm9199, %v9522, %v9518
  %v9524 = vlaneseq
  %v9525 = vshrl.u32 %v9524, 7
  %v9526 = vsub.s32 %v9175, %v9525
  %v9527 = vrot.slane %v7783, %v9526
  %v9528 = vlaneseq
  %v9529 = vshrl.u32 %v9528, 7
  %v9530 = vsub.s32 %v9180, %v9529
  %v9531 = vrot.slane %v7785, %v9530
  %v9532 = vsel %vm9185, %v9531, %v9527
  %v9533 = vlaneseq
  %v9534 = vshrl.u32 %v9533, 7
  %v9535 = vsub.s32 %v9187, %v9534
  %v9536 = vrot.slane %v7787, %v9535
  %v9537 = vsel %vm9192, %v9536, %v9532
  %v9538 = vlaneseq
  %v9539 = vshrl.u32 %v9538, 7
  %v9540 = vsub.s32 %v9194, %v9539
  %v9541 = vrot.slane %v7789, %v9540
  %v9542 = vsel %vm9199, %v9541, %v9537
  %v9543 = vlaneseq
  %v9544 = vshrl.u32 %v9543, 7
  %v9545 = vsub.s32 %v9175, %v9544
  %v9546 = vrot.slane %v7791, %v9545
  %v9547 = vlaneseq
  %v9548 = vshrl.u32 %v9547, 7
  %v9549 = vsub.s32 %v9180, %v9548
  %v9550 = vrot.slane %v7793, %v9549
  %v9551 = vsel %vm9185, %v9550, %v9546
  %v9552 = vlaneseq
  %v9553 = vshrl.u32 %v9552, 7
  %v9554 = vsub.s32 %v9187, %v9553
  %v9555 = vrot.slane %v7795, %v9554
  %v9556 = vsel %vm9192, %v9555, %v9551
  %v9557 = vlaneseq
  %v9558 = vshrl.u32 %v9557, 7
  %v9559 = vsub.s32 %v9194, %v9558
  %v9560 = vrot.slane %v7797, %v9559
  %v9561 = vsel %vm9199, %v9560, %v9556
  %v9562 = vlaneseq
  %v9563 = vshrl.u32 %v9562, 7
  %v9564 = vsub.s32 %v9175, %v9563
  %v9565 = vrot.slane %v7799, %v9564
  %v9566 = vlaneseq
  %v9567 = vshrl.u32 %v9566, 7
  %v9568 = vsub.s32 %v9180, %v9567
  %v9569 = vrot.slane %v7801, %v9568
  %v9570 = vsel %vm9185, %v9569, %v9565
  %v9571 = vlaneseq
  %v9572 = vshrl.u32 %v9571, 7
  %v9573 = vsub.s32 %v9187, %v9572
  %v9574 = vrot.slane %v7803, %v9573
  %v9575 = vsel %vm9192, %v9574, %v9570
  %v9576 = vlaneseq
  %v9577 = vshrl.u32 %v9576, 7
  %v9578 = vsub.s32 %v9194, %v9577
  %v9579 = vrot.slane %v7805, %v9578
  %v9580 = vsel %vm9199, %v9579, %v9575
  %v9581 = vlaneseq
  %v9582 = vshrl.u32 %v9581, 7
  %v9583 = vsub.s32 %v9175, %v9582
  %v9584 = vrot.slane %v7807, %v9583
  %v9585 = vlaneseq
  %v9586 = vshrl.u32 %v9585, 7
  %v9587 = vsub.s32 %v9180, %v9586
  %v9588 = vrot.slane %v7809, %v9587
  %v9589 = vsel %vm9185, %v9588, %v9584
  %v9590 = vlaneseq
  %v9591 = vshrl.u32 %v9590, 7
  %v9592 = vsub.s32 %v9187, %v9591
  %v9593 = vrot.slane %v7811, %v9592
  %v9594 = vsel %vm9192, %v9593, %v9589
  %v9595 = vlaneseq
  %v9596 = vshrl.u32 %v9595, 7
  %v9597 = vsub.s32 %v9194, %v9596
  %v9598 = vrot.slane %v7813, %v9597
  %v9599 = vsel %vm9199, %v9598, %v9594
  %v9600 = vlaneseq
  %v9601 = vshrl.u32 %v9600, 7
  %v9602 = vsub.s32 %v9175, %v9601
  %v9603 = vrot.slane %v7815, %v9602
  %v9604 = vlaneseq
  %v9605 = vshrl.u32 %v9604, 7
  %v9606 = vsub.s32 %v9180, %v9605
  %v9607 = vrot.slane %v7817, %v9606
  %v9608 = vsel %vm9185, %v9607, %v9603
  %v9609 = vlaneseq
  %v9610 = vshrl.u32 %v9609, 7
  %v9611 = vsub.s32 %v9187, %v9610
  %v9612 = vrot.slane %v7819, %v9611
  %v9613 = vsel %vm9192, %v9612, %v9608
  %v9614 = vlaneseq
  %v9615 = vshrl.u32 %v9614, 7
  %v9616 = vsub.s32 %v9194, %v9615
  %v9617 = vrot.slane %v7821, %v9616
  %v9618 = vsel %vm9199, %v9617, %v9613
  %v9619 = vlaneseq
  %v9620 = vshrl.u32 %v9619, 7
  %v9621 = vsub.s32 %v9175, %v9620
  %v9622 = vrot.slane %v7823, %v9621
  %v9623 = vlaneseq
  %v9624 = vshrl.u32 %v9623, 7
  %v9625 = vsub.s32 %v9180, %v9624
  %v9626 = vrot.slane %v7825, %v9625
  %v9627 = vsel %vm9185, %v9626, %v9622
  %v9628 = vlaneseq
  %v9629 = vshrl.u32 %v9628, 7
  %v9630 = vsub.s32 %v9187, %v9629
  %v9631 = vrot.slane %v7827, %v9630
  %v9632 = vsel %vm9192, %v9631, %v9627
  %v9633 = vlaneseq
  %v9634 = vshrl.u32 %v9633, 7
  %v9635 = vsub.s32 %v9194, %v9634
  %v9636 = vrot.slane %v7829, %v9635
  %v9637 = vsel %vm9199, %v9636, %v9632
  %v9638 = vlaneseq
  %v9639 = vshrl.u32 %v9638, 7
  %v9640 = vsub.s32 %v9175, %v9639
  %v9641 = vrot.slane %v7831, %v9640
  %v9642 = vlaneseq
  %v9643 = vshrl.u32 %v9642, 7
  %v9644 = vsub.s32 %v9180, %v9643
  %v9645 = vrot.slane %v7833, %v9644
  %v9646 = vsel %vm9185, %v9645, %v9641
  %v9647 = vlaneseq
  %v9648 = vshrl.u32 %v9647, 7
  %v9649 = vsub.s32 %v9187, %v9648
  %v9650 = vrot.slane %v7835, %v9649
  %v9651 = vsel %vm9192, %v9650, %v9646
  %v9652 = vlaneseq
  %v9653 = vshrl.u32 %v9652, 7
  %v9654 = vsub.s32 %v9194, %v9653
  %v9655 = vrot.slane %v7837, %v9654
  %v9656 = vsel %vm9199, %v9655, %v9651
  %v9657 = vlaneseq
  %v9658 = vshrl.u32 %v9657, 7
  %v9659 = vsub.s32 %v9175, %v9658
  %v9660 = vrot.slane %v7839, %v9659
  %v9661 = vlaneseq
  %v9662 = vshrl.u32 %v9661, 7
  %v9663 = vsub.s32 %v9180, %v9662
  %v9664 = vrot.slane %v7841, %v9663
  %v9665 = vsel %vm9185, %v9664, %v9660
  %v9666 = vlaneseq
  %v9667 = vshrl.u32 %v9666, 7
  %v9668 = vsub.s32 %v9187, %v9667
  %v9669 = vrot.slane %v7843, %v9668
  %v9670 = vsel %vm9192, %v9669, %v9665
  %v9671 = vlaneseq
  %v9672 = vshrl.u32 %v9671, 7
  %v9673 = vsub.s32 %v9194, %v9672
  %v9674 = vrot.slane %v7845, %v9673
  %v9675 = vsel %vm9199, %v9674, %v9670
  %v9676 = vlaneseq
  %v9677 = vshrl.u32 %v9676, 7
  %v9678 = vsub.s32 %v9175, %v9677
  %v9679 = vrot.slane %v7847, %v9678
  %v9680 = vlaneseq
  %v9681 = vshrl.u32 %v9680, 7
  %v9682 = vsub.s32 %v9180, %v9681
  %v9683 = vrot.slane %v7849, %v9682
  %v9684 = vsel %vm9185, %v9683, %v9679
  %v9685 = vlaneseq
  %v9686 = vshrl.u32 %v9685, 7
  %v9687 = vsub.s32 %v9187, %v9686
  %v9688 = vrot.slane %v7851, %v9687
  %v9689 = vsel %vm9192, %v9688, %v9684
  %v9690 = vlaneseq
  %v9691 = vshrl.u32 %v9690, 7
  %v9692 = vsub.s32 %v9194, %v9691
  %v9693 = vrot.slane %v7853, %v9692
  %v9694 = vsel %vm9199, %v9693, %v9689
  %v9695 = vlaneseq
  %v9696 = vshrl.u32 %v9695, 7
  %v9697 = vsub.s32 %v9175, %v9696
  %v9698 = vrot.slane %v7855, %v9697
  %v9699 = vlaneseq
  %v9700 = vshrl.u32 %v9699, 7
  %v9701 = vsub.s32 %v9180, %v9700
  %v9702 = vrot.slane %v7857, %v9701
  %v9703 = vsel %vm9185, %v9702, %v9698
  %v9704 = vlaneseq
  %v9705 = vshrl.u32 %v9704, 7
  %v9706 = vsub.s32 %v9187, %v9705
  %v9707 = vrot.slane %v7859, %v9706
  %v9708 = vsel %vm9192, %v9707, %v9703
  %v9709 = vlaneseq
  %v9710 = vshrl.u32 %v9709, 7
  %v9711 = vsub.s32 %v9194, %v9710
  %v9712 = vrot.slane %v7861, %v9711
  %v9713 = vsel %vm9199, %v9712, %v9708
  %v9714 = vlaneseq
  %v9715 = vshrl.u32 %v9714, 7
  %v9716 = vsub.s32 %v9175, %v9715
  %v9717 = vrot.slane %v7863, %v9716
  %v9718 = vlaneseq
  %v9719 = vshrl.u32 %v9718, 7
  %v9720 = vsub.s32 %v9180, %v9719
  %v9721 = vrot.slane %v7865, %v9720
  %v9722 = vsel %vm9185, %v9721, %v9717
  %v9723 = vlaneseq
  %v9724 = vshrl.u32 %v9723, 7
  %v9725 = vsub.s32 %v9187, %v9724
  %v9726 = vrot.slane %v7867, %v9725
  %v9727 = vsel %vm9192, %v9726, %v9722
  %v9728 = vlaneseq
  %v9729 = vshrl.u32 %v9728, 7
  %v9730 = vsub.s32 %v9194, %v9729
  %v9731 = vrot.slane %v7869, %v9730
  %v9732 = vsel %vm9199, %v9731, %v9727
  %v9733 = vlaneseq
  %v9734 = vshrl.u32 %v9733, 7
  %v9735 = vsub.s32 %v9175, %v9734
  %v9736 = vrot.slane %v7871, %v9735
  %v9737 = vlaneseq
  %v9738 = vshrl.u32 %v9737, 7
  %v9739 = vsub.s32 %v9180, %v9738
  %v9740 = vrot.slane %v7873, %v9739
  %v9741 = vsel %vm9185, %v9740, %v9736
  %v9742 = vlaneseq
  %v9743 = vshrl.u32 %v9742, 7
  %v9744 = vsub.s32 %v9187, %v9743
  %v9745 = vrot.slane %v7875, %v9744
  %v9746 = vsel %vm9192, %v9745, %v9741
  %v9747 = vlaneseq
  %v9748 = vshrl.u32 %v9747, 7
  %v9749 = vsub.s32 %v9194, %v9748
  %v9750 = vrot.slane %v7877, %v9749
  %v9751 = vsel %vm9199, %v9750, %v9746
  %v9752 = vlaneseq
  %v9753 = vshrl.u32 %v9752, 7
  %v9754 = vsub.s32 %v9175, %v9753
  %v9755 = vrot.slane %v7879, %v9754
  %v9756 = vlaneseq
  %v9757 = vshrl.u32 %v9756, 7
  %v9758 = vsub.s32 %v9180, %v9757
  %v9759 = vrot.slane %v7881, %v9758
  %v9760 = vsel %vm9185, %v9759, %v9755
  %v9761 = vlaneseq
  %v9762 = vshrl.u32 %v9761, 7
  %v9763 = vsub.s32 %v9187, %v9762
  %v9764 = vrot.slane %v7883, %v9763
  %v9765 = vsel %vm9192, %v9764, %v9760
  %v9766 = vlaneseq
  %v9767 = vshrl.u32 %v9766, 7
  %v9768 = vsub.s32 %v9194, %v9767
  %v9769 = vrot.slane %v7885, %v9768
  %v9770 = vsel %vm9199, %v9769, %v9765
  %v9771 = vlaneseq
  %v9772 = vshrl.u32 %v9771, 7
  %v9773 = vsub.s32 %v9175, %v9772
  %v9774 = vrot.slane %v7887, %v9773
  %v9775 = vlaneseq
  %v9776 = vshrl.u32 %v9775, 7
  %v9777 = vsub.s32 %v9180, %v9776
  %v9778 = vrot.slane %v7889, %v9777
  %v9779 = vsel %vm9185, %v9778, %v9774
  %v9780 = vlaneseq
  %v9781 = vshrl.u32 %v9780, 7
  %v9782 = vsub.s32 %v9187, %v9781
  %v9783 = vrot.slane %v7891, %v9782
  %v9784 = vsel %vm9192, %v9783, %v9779
  %v9785 = vlaneseq
  %v9786 = vshrl.u32 %v9785, 7
  %v9787 = vsub.s32 %v9194, %v9786
  %v9788 = vrot.slane %v7893, %v9787
  %v9789 = vsel %vm9199, %v9788, %v9784
  %v9790 = vlaneseq
  %v9791 = vshrl.u32 %v9790, 7
  %v9792 = vsub.s32 %v9175, %v9791
  %v9793 = vrot.slane %v7895, %v9792
  %v9794 = vlaneseq
  %v9795 = vshrl.u32 %v9794, 7
  %v9796 = vsub.s32 %v9180, %v9795
  %v9797 = vrot.slane %v7897, %v9796
  %v9798 = vsel %vm9185, %v9797, %v9793
  %v9799 = vlaneseq
  %v9800 = vshrl.u32 %v9799, 7
  %v9801 = vsub.s32 %v9187, %v9800
  %v9802 = vrot.slane %v7899, %v9801
  %v9803 = vsel %vm9192, %v9802, %v9798
  %v9804 = vlaneseq
  %v9805 = vshrl.u32 %v9804, 7
  %v9806 = vsub.s32 %v9194, %v9805
  %v9807 = vrot.slane %v7901, %v9806
  %v9808 = vsel %vm9199, %v9807, %v9803
  %v9809 = vlaneseq
  %v9810 = vshrl.u32 %v9809, 7
  %v9811 = vsub.s32 %v9175, %v9810
  %v9812 = vrot.slane %v7903, %v9811
  %v9813 = vlaneseq
  %v9814 = vshrl.u32 %v9813, 7
  %v9815 = vsub.s32 %v9180, %v9814
  %v9816 = vrot.slane %v7905, %v9815
  %v9817 = vsel %vm9185, %v9816, %v9812
  %v9818 = vlaneseq
  %v9819 = vshrl.u32 %v9818, 7
  %v9820 = vsub.s32 %v9187, %v9819
  %v9821 = vrot.slane %v7907, %v9820
  %v9822 = vsel %vm9192, %v9821, %v9817
  %v9823 = vlaneseq
  %v9824 = vshrl.u32 %v9823, 7
  %v9825 = vsub.s32 %v9194, %v9824
  %v9826 = vrot.slane %v7909, %v9825
  %v9827 = vsel %vm9199, %v9826, %v9822
  %v9828 = vlaneseq
  %v9829 = vshrl.u32 %v9828, 7
  %v9830 = vsub.s32 %v9175, %v9829
  %v9831 = vrot.slane %v7911, %v9830
  %v9832 = vlaneseq
  %v9833 = vshrl.u32 %v9832, 7
  %v9834 = vsub.s32 %v9180, %v9833
  %v9835 = vrot.slane %v7913, %v9834
  %v9836 = vsel %vm9185, %v9835, %v9831
  %v9837 = vlaneseq
  %v9838 = vshrl.u32 %v9837, 7
  %v9839 = vsub.s32 %v9187, %v9838
  %v9840 = vrot.slane %v7915, %v9839
  %v9841 = vsel %vm9192, %v9840, %v9836
  %v9842 = vlaneseq
  %v9843 = vshrl.u32 %v9842, 7
  %v9844 = vsub.s32 %v9194, %v9843
  %v9845 = vrot.slane %v7917, %v9844
  %v9846 = vsel %vm9199, %v9845, %v9841
  %v9847 = vlaneseq
  %v9848 = vshrl.u32 %v9847, 7
  %v9849 = vsub.s32 %v9175, %v9848
  %v9850 = vrot.slane %v7919, %v9849
  %v9851 = vlaneseq
  %v9852 = vshrl.u32 %v9851, 7
  %v9853 = vsub.s32 %v9180, %v9852
  %v9854 = vrot.slane %v7921, %v9853
  %v9855 = vsel %vm9185, %v9854, %v9850
  %v9856 = vlaneseq
  %v9857 = vshrl.u32 %v9856, 7
  %v9858 = vsub.s32 %v9187, %v9857
  %v9859 = vrot.slane %v7923, %v9858
  %v9860 = vsel %vm9192, %v9859, %v9855
  %v9861 = vlaneseq
  %v9862 = vshrl.u32 %v9861, 7
  %v9863 = vsub.s32 %v9194, %v9862
  %v9864 = vrot.slane %v7925, %v9863
  %v9865 = vsel %vm9199, %v9864, %v9860
  %v9866 = vlaneseq
  %v9867 = vshrl.u32 %v9866, 7
  %v9868 = vsub.s32 %v9175, %v9867
  %v9869 = vrot.slane %v7927, %v9868
  %v9870 = vlaneseq
  %v9871 = vshrl.u32 %v9870, 7
  %v9872 = vsub.s32 %v9180, %v9871
  %v9873 = vrot.slane %v7929, %v9872
  %v9874 = vsel %vm9185, %v9873, %v9869
  %v9875 = vlaneseq
  %v9876 = vshrl.u32 %v9875, 7
  %v9877 = vsub.s32 %v9187, %v9876
  %v9878 = vrot.slane %v7931, %v9877
  %v9879 = vsel %vm9192, %v9878, %v9874
  %v9880 = vlaneseq
  %v9881 = vshrl.u32 %v9880, 7
  %v9882 = vsub.s32 %v9194, %v9881
  %v9883 = vrot.slane %v7933, %v9882
  %v9884 = vsel %vm9199, %v9883, %v9879
  %v9885 = vlaneseq
  %v9886 = vshrl.u32 %v9885, 7
  %v9887 = vsub.s32 %v9175, %v9886
  %v9888 = vrot.slane %v7935, %v9887
  %v9889 = vlaneseq
  %v9890 = vshrl.u32 %v9889, 7
  %v9891 = vsub.s32 %v9180, %v9890
  %v9892 = vrot.slane %v7937, %v9891
  %v9893 = vsel %vm9185, %v9892, %v9888
  %v9894 = vlaneseq
  %v9895 = vshrl.u32 %v9894, 7
  %v9896 = vsub.s32 %v9187, %v9895
  %v9897 = vrot.slane %v7939, %v9896
  %v9898 = vsel %vm9192, %v9897, %v9893
  %v9899 = vlaneseq
  %v9900 = vshrl.u32 %v9899, 7
  %v9901 = vsub.s32 %v9194, %v9900
  %v9902 = vrot.slane %v7941, %v9901
  %v9903 = vsel %vm9199, %v9902, %v9898
  %v9904 = vlaneseq
  %v9905 = vshrl.u32 %v9904, 7
  %v9906 = vsub.s32 %v9175, %v9905
  %v9907 = vrot.slane %v7943, %v9906
  %v9908 = vlaneseq
  %v9909 = vshrl.u32 %v9908, 7
  %v9910 = vsub.s32 %v9180, %v9909
  %v9911 = vrot.slane %v7945, %v9910
  %v9912 = vsel %vm9185, %v9911, %v9907
  %v9913 = vlaneseq
  %v9914 = vshrl.u32 %v9913, 7
  %v9915 = vsub.s32 %v9187, %v9914
  %v9916 = vrot.slane %v7947, %v9915
  %v9917 = vsel %vm9192, %v9916, %v9912
  %v9918 = vlaneseq
  %v9919 = vshrl.u32 %v9918, 7
  %v9920 = vsub.s32 %v9194, %v9919
  %v9921 = vrot.slane %v7949, %v9920
  %v9922 = vsel %vm9199, %v9921, %v9917
  %v9923 = vlaneseq
  %v9924 = vshrl.u32 %v9923, 7
  %v9925 = vsub.s32 %v9175, %v9924
  %v9926 = vrot.slane %v7951, %v9925
  %v9927 = vlaneseq
  %v9928 = vshrl.u32 %v9927, 7
  %v9929 = vsub.s32 %v9180, %v9928
  %v9930 = vrot.slane %v7953, %v9929
  %v9931 = vsel %vm9185, %v9930, %v9926
  %v9932 = vlaneseq
  %v9933 = vshrl.u32 %v9932, 7
  %v9934 = vsub.s32 %v9187, %v9933
  %v9935 = vrot.slane %v7955, %v9934
  %v9936 = vsel %vm9192, %v9935, %v9931
  %v9937 = vlaneseq
  %v9938 = vshrl.u32 %v9937, 7
  %v9939 = vsub.s32 %v9194, %v9938
  %v9940 = vrot.slane %v7957, %v9939
  %v9941 = vsel %vm9199, %v9940, %v9936
  %v9942 = vlaneseq
  %v9943 = vshrl.u32 %v9942, 7
  %v9944 = vsub.s32 %v9175, %v9943
  %v9945 = vrot.slane %v7959, %v9944
  %v9946 = vlaneseq
  %v9947 = vshrl.u32 %v9946, 7
  %v9948 = vsub.s32 %v9180, %v9947
  %v9949 = vrot.slane %v7961, %v9948
  %v9950 = vsel %vm9185, %v9949, %v9945
  %v9951 = vlaneseq
  %v9952 = vshrl.u32 %v9951, 7
  %v9953 = vsub.s32 %v9187, %v9952
  %v9954 = vrot.slane %v7963, %v9953
  %v9955 = vsel %vm9192, %v9954, %v9950
  %v9956 = vlaneseq
  %v9957 = vshrl.u32 %v9956, 7
  %v9958 = vsub.s32 %v9194, %v9957
  %v9959 = vrot.slane %v7965, %v9958
  %v9960 = vsel %vm9199, %v9959, %v9955
  %v9961 = vlaneseq
  %v9962 = vshrl.u32 %v9961, 7
  %v9963 = vsub.s32 %v9175, %v9962
  %v9964 = vrot.slane %v7967, %v9963
  %v9965 = vlaneseq
  %v9966 = vshrl.u32 %v9965, 7
  %v9967 = vsub.s32 %v9180, %v9966
  %v9968 = vrot.slane %v7969, %v9967
  %v9969 = vsel %vm9185, %v9968, %v9964
  %v9970 = vlaneseq
  %v9971 = vshrl.u32 %v9970, 7
  %v9972 = vsub.s32 %v9187, %v9971
  %v9973 = vrot.slane %v7971, %v9972
  %v9974 = vsel %vm9192, %v9973, %v9969
  %v9975 = vlaneseq
  %v9976 = vshrl.u32 %v9975, 7
  %v9977 = vsub.s32 %v9194, %v9976
  %v9978 = vrot.slane %v7973, %v9977
  %v9979 = vsel %vm9199, %v9978, %v9974
  %v9980 = vlaneseq
  %v9981 = vshrl.u32 %v9980, 7
  %v9982 = vsub.s32 %v9175, %v9981
  %v9983 = vrot.slane %v7975, %v9982
  %v9984 = vlaneseq
  %v9985 = vshrl.u32 %v9984, 7
  %v9986 = vsub.s32 %v9180, %v9985
  %v9987 = vrot.slane %v7977, %v9986
  %v9988 = vsel %vm9185, %v9987, %v9983
  %v9989 = vlaneseq
  %v9990 = vshrl.u32 %v9989, 7
  %v9991 = vsub.s32 %v9187, %v9990
  %v9992 = vrot.slane %v7979, %v9991
  %v9993 = vsel %vm9192, %v9992, %v9988
  %v9994 = vlaneseq
  %v9995 = vshrl.u32 %v9994, 7
  %v9996 = vsub.s32 %v9194, %v9995
  %v9997 = vrot.slane %v7981, %v9996
  %v9998 = vsel %vm9199, %v9997, %v9993
  %v9999 = vlaneseq
  %v10000 = vshrl.u32 %v9999, 7
  %v10001 = vsub.s32 %v9175, %v10000
  %v10002 = vrot.slane %v7983, %v10001
  %v10003 = vlaneseq
  %v10004 = vshrl.u32 %v10003, 7
  %v10005 = vsub.s32 %v9180, %v10004
  %v10006 = vrot.slane %v7985, %v10005
  %v10007 = vsel %vm9185, %v10006, %v10002
  %v10008 = vlaneseq
  %v10009 = vshrl.u32 %v10008, 7
  %v10010 = vsub.s32 %v9187, %v10009
  %v10011 = vrot.slane %v7987, %v10010
  %v10012 = vsel %vm9192, %v10011, %v10007
  %v10013 = vlaneseq
  %v10014 = vshrl.u32 %v10013, 7
  %v10015 = vsub.s32 %v9194, %v10014
  %v10016 = vrot.slane %v7989, %v10015
  %v10017 = vsel %vm9199, %v10016, %v10012
  %v10018 = vlaneseq
  %v10019 = vshrl.u32 %v10018, 7
  %v10020 = vsub.s32 %v9175, %v10019
  %v10021 = vrot.slane %v7991, %v10020
  %v10022 = vlaneseq
  %v10023 = vshrl.u32 %v10022, 7
  %v10024 = vsub.s32 %v9180, %v10023
  %v10025 = vrot.slane %v7993, %v10024
  %v10026 = vsel %vm9185, %v10025, %v10021
  %v10027 = vlaneseq
  %v10028 = vshrl.u32 %v10027, 7
  %v10029 = vsub.s32 %v9187, %v10028
  %v10030 = vrot.slane %v7995, %v10029
  %v10031 = vsel %vm9192, %v10030, %v10026
  %v10032 = vlaneseq
  %v10033 = vshrl.u32 %v10032, 7
  %v10034 = vsub.s32 %v9194, %v10033
  %v10035 = vrot.slane %v7997, %v10034
  %v10036 = vsel %vm9199, %v10035, %v10031
  %v10037 = vlaneseq
  %v10038 = vshrl.u32 %v10037, 7
  %v10039 = vsub.s32 %v9175, %v10038
  %v10040 = vrot.slane %v7999, %v10039
  %v10041 = vlaneseq
  %v10042 = vshrl.u32 %v10041, 7
  %v10043 = vsub.s32 %v9180, %v10042
  %v10044 = vrot.slane %v8001, %v10043
  %v10045 = vsel %vm9185, %v10044, %v10040
  %v10046 = vlaneseq
  %v10047 = vshrl.u32 %v10046, 7
  %v10048 = vsub.s32 %v9187, %v10047
  %v10049 = vrot.slane %v8003, %v10048
  %v10050 = vsel %vm9192, %v10049, %v10045
  %v10051 = vlaneseq
  %v10052 = vshrl.u32 %v10051, 7
  %v10053 = vsub.s32 %v9194, %v10052
  %v10054 = vrot.slane %v8005, %v10053
  %v10055 = vsel %vm9199, %v10054, %v10050
  %v10056 = vlaneseq
  %v10057 = vshrl.u32 %v10056, 7
  %v10058 = vsub.s32 %v9175, %v10057
  %v10059 = vrot.slane %v8007, %v10058
  %v10060 = vlaneseq
  %v10061 = vshrl.u32 %v10060, 7
  %v10062 = vsub.s32 %v9180, %v10061
  %v10063 = vrot.slane %v8009, %v10062
  %v10064 = vsel %vm9185, %v10063, %v10059
  %v10065 = vlaneseq
  %v10066 = vshrl.u32 %v10065, 7
  %v10067 = vsub.s32 %v9187, %v10066
  %v10068 = vrot.slane %v8011, %v10067
  %v10069 = vsel %vm9192, %v10068, %v10064
  %v10070 = vlaneseq
  %v10071 = vshrl.u32 %v10070, 7
  %v10072 = vsub.s32 %v9194, %v10071
  %v10073 = vrot.slane %v8013, %v10072
  %v10074 = vsel %vm9199, %v10073, %v10069
  %v10075 = vlaneseq
  %v10076 = vshrl.u32 %v10075, 7
  %v10077 = vsub.s32 %v9175, %v10076
  %v10078 = vrot.slane %v8015, %v10077
  %v10079 = vlaneseq
  %v10080 = vshrl.u32 %v10079, 7
  %v10081 = vsub.s32 %v9180, %v10080
  %v10082 = vrot.slane %v8017, %v10081
  %v10083 = vsel %vm9185, %v10082, %v10078
  %v10084 = vlaneseq
  %v10085 = vshrl.u32 %v10084, 7
  %v10086 = vsub.s32 %v9187, %v10085
  %v10087 = vrot.slane %v8019, %v10086
  %v10088 = vsel %vm9192, %v10087, %v10083
  %v10089 = vlaneseq
  %v10090 = vshrl.u32 %v10089, 7
  %v10091 = vsub.s32 %v9194, %v10090
  %v10092 = vrot.slane %v8021, %v10091
  %v10093 = vsel %vm9199, %v10092, %v10088
  %v10094 = vlaneseq
  %v10095 = vshrl.u32 %v10094, 7
  %v10096 = vsub.s32 %v9175, %v10095
  %v10097 = vrot.slane %v8023, %v10096
  %v10098 = vlaneseq
  %v10099 = vshrl.u32 %v10098, 7
  %v10100 = vsub.s32 %v9180, %v10099
  %v10101 = vrot.slane %v8025, %v10100
  %v10102 = vsel %vm9185, %v10101, %v10097
  %v10103 = vlaneseq
  %v10104 = vshrl.u32 %v10103, 7
  %v10105 = vsub.s32 %v9187, %v10104
  %v10106 = vrot.slane %v8027, %v10105
  %v10107 = vsel %vm9192, %v10106, %v10102
  %v10108 = vlaneseq
  %v10109 = vshrl.u32 %v10108, 7
  %v10110 = vsub.s32 %v9194, %v10109
  %v10111 = vrot.slane %v8029, %v10110
  %v10112 = vsel %vm9199, %v10111, %v10107
  %v10113 = vlaneseq
  %v10114 = vshrl.u32 %v10113, 7
  %v10115 = vsub.s32 %v9175, %v10114
  %v10116 = vrot.slane %v8031, %v10115
  %v10117 = vlaneseq
  %v10118 = vshrl.u32 %v10117, 7
  %v10119 = vsub.s32 %v9180, %v10118
  %v10120 = vrot.slane %v8033, %v10119
  %v10121 = vsel %vm9185, %v10120, %v10116
  %v10122 = vlaneseq
  %v10123 = vshrl.u32 %v10122, 7
  %v10124 = vsub.s32 %v9187, %v10123
  %v10125 = vrot.slane %v8035, %v10124
  %v10126 = vsel %vm9192, %v10125, %v10121
  %v10127 = vlaneseq
  %v10128 = vshrl.u32 %v10127, 7
  %v10129 = vsub.s32 %v9194, %v10128
  %v10130 = vrot.slane %v8037, %v10129
  %v10131 = vsel %vm9199, %v10130, %v10126
  %v10132 = vlaneseq
  %v10133 = vshrl.u32 %v10132, 7
  %v10134 = vsub.s32 %v9175, %v10133
  %v10135 = vrot.slane %v8039, %v10134
  %v10136 = vlaneseq
  %v10137 = vshrl.u32 %v10136, 7
  %v10138 = vsub.s32 %v9180, %v10137
  %v10139 = vrot.slane %v8041, %v10138
  %v10140 = vsel %vm9185, %v10139, %v10135
  %v10141 = vlaneseq
  %v10142 = vshrl.u32 %v10141, 7
  %v10143 = vsub.s32 %v9187, %v10142
  %v10144 = vrot.slane %v8043, %v10143
  %v10145 = vsel %vm9192, %v10144, %v10140
  %v10146 = vlaneseq
  %v10147 = vshrl.u32 %v10146, 7
  %v10148 = vsub.s32 %v9194, %v10147
  %v10149 = vrot.slane %v8045, %v10148
  %v10150 = vsel %vm9199, %v10149, %v10145
  %v10151 = vlaneseq
  %v10152 = vshrl.u32 %v10151, 7
  %v10153 = vsub.s32 %v9175, %v10152
  %v10154 = vrot.slane %v8047, %v10153
  %v10155 = vlaneseq
  %v10156 = vshrl.u32 %v10155, 7
  %v10157 = vsub.s32 %v9180, %v10156
  %v10158 = vrot.slane %v8049, %v10157
  %v10159 = vsel %vm9185, %v10158, %v10154
  %v10160 = vlaneseq
  %v10161 = vshrl.u32 %v10160, 7
  %v10162 = vsub.s32 %v9187, %v10161
  %v10163 = vrot.slane %v8051, %v10162
  %v10164 = vsel %vm9192, %v10163, %v10159
  %v10165 = vlaneseq
  %v10166 = vshrl.u32 %v10165, 7
  %v10167 = vsub.s32 %v9194, %v10166
  %v10168 = vrot.slane %v8053, %v10167
  %v10169 = vsel %vm9199, %v10168, %v10164
  %v10170 = vlaneseq
  %v10171 = vshrl.u32 %v10170, 7
  %v10172 = vsub.s32 %v9175, %v10171
  %v10173 = vrot.slane %v8055, %v10172
  %v10174 = vlaneseq
  %v10175 = vshrl.u32 %v10174, 7
  %v10176 = vsub.s32 %v9180, %v10175
  %v10177 = vrot.slane %v8057, %v10176
  %v10178 = vsel %vm9185, %v10177, %v10173
  %v10179 = vlaneseq
  %v10180 = vshrl.u32 %v10179, 7
  %v10181 = vsub.s32 %v9187, %v10180
  %v10182 = vrot.slane %v8059, %v10181
  %v10183 = vsel %vm9192, %v10182, %v10178
  %v10184 = vlaneseq
  %v10185 = vshrl.u32 %v10184, 7
  %v10186 = vsub.s32 %v9194, %v10185
  %v10187 = vrot.slane %v8061, %v10186
  %v10188 = vsel %vm9199, %v10187, %v10183
  %v10189 = vlaneseq
  %v10190 = vshrl.u32 %v10189, 7
  %v10191 = vsub.s32 %v9175, %v10190
  %v10192 = vrot.slane %v8063, %v10191
  %v10193 = vlaneseq
  %v10194 = vshrl.u32 %v10193, 7
  %v10195 = vsub.s32 %v9180, %v10194
  %v10196 = vrot.slane %v8065, %v10195
  %v10197 = vsel %vm9185, %v10196, %v10192
  %v10198 = vlaneseq
  %v10199 = vshrl.u32 %v10198, 7
  %v10200 = vsub.s32 %v9187, %v10199
  %v10201 = vrot.slane %v8067, %v10200
  %v10202 = vsel %vm9192, %v10201, %v10197
  %v10203 = vlaneseq
  %v10204 = vshrl.u32 %v10203, 7
  %v10205 = vsub.s32 %v9194, %v10204
  %v10206 = vrot.slane %v8069, %v10205
  %v10207 = vsel %vm9199, %v10206, %v10202
  %v10208 = vlaneseq
  %v10209 = vshrl.u32 %v10208, 7
  %v10210 = vsub.s32 %v9175, %v10209
  %v10211 = vrot.slane %v8071, %v10210
  %v10212 = vlaneseq
  %v10213 = vshrl.u32 %v10212, 7
  %v10214 = vsub.s32 %v9180, %v10213
  %v10215 = vrot.slane %v8073, %v10214
  %v10216 = vsel %vm9185, %v10215, %v10211
  %v10217 = vlaneseq
  %v10218 = vshrl.u32 %v10217, 7
  %v10219 = vsub.s32 %v9187, %v10218
  %v10220 = vrot.slane %v8075, %v10219
  %v10221 = vsel %vm9192, %v10220, %v10216
  %v10222 = vlaneseq
  %v10223 = vshrl.u32 %v10222, 7
  %v10224 = vsub.s32 %v9194, %v10223
  %v10225 = vrot.slane %v8077, %v10224
  %v10226 = vsel %vm9199, %v10225, %v10221
  %v10227 = vlaneseq
  %v10228 = vshrl.u32 %v10227, 7
  %v10229 = vsub.s32 %v9175, %v10228
  %v10230 = vrot.slane %v8079, %v10229
  %v10231 = vlaneseq
  %v10232 = vshrl.u32 %v10231, 7
  %v10233 = vsub.s32 %v9180, %v10232
  %v10234 = vrot.slane %v8081, %v10233
  %v10235 = vsel %vm9185, %v10234, %v10230
  %v10236 = vlaneseq
  %v10237 = vshrl.u32 %v10236, 7
  %v10238 = vsub.s32 %v9187, %v10237
  %v10239 = vrot.slane %v8083, %v10238
  %v10240 = vsel %vm9192, %v10239, %v10235
  %v10241 = vlaneseq
  %v10242 = vshrl.u32 %v10241, 7
  %v10243 = vsub.s32 %v9194, %v10242
  %v10244 = vrot.slane %v8085, %v10243
  %v10245 = vsel %vm9199, %v10244, %v10240
  %v10246 = vlaneseq
  %v10247 = vshrl.u32 %v10246, 7
  %v10248 = vsub.s32 %v9175, %v10247
  %v10249 = vrot.slane %v8087, %v10248
  %v10250 = vlaneseq
  %v10251 = vshrl.u32 %v10250, 7
  %v10252 = vsub.s32 %v9180, %v10251
  %v10253 = vrot.slane %v8089, %v10252
  %v10254 = vsel %vm9185, %v10253, %v10249
  %v10255 = vlaneseq
  %v10256 = vshrl.u32 %v10255, 7
  %v10257 = vsub.s32 %v9187, %v10256
  %v10258 = vrot.slane %v8091, %v10257
  %v10259 = vsel %vm9192, %v10258, %v10254
  %v10260 = vlaneseq
  %v10261 = vshrl.u32 %v10260, 7
  %v10262 = vsub.s32 %v9194, %v10261
  %v10263 = vrot.slane %v8093, %v10262
  %v10264 = vsel %vm9199, %v10263, %v10259
  %v10265 = vlaneseq
  %v10266 = vshrl.u32 %v10265, 7
  %v10267 = vsub.s32 %v9175, %v10266
  %v10268 = vrot.slane %v8095, %v10267
  %v10269 = vlaneseq
  %v10270 = vshrl.u32 %v10269, 7
  %v10271 = vsub.s32 %v9180, %v10270
  %v10272 = vrot.slane %v8097, %v10271
  %v10273 = vsel %vm9185, %v10272, %v10268
  %v10274 = vlaneseq
  %v10275 = vshrl.u32 %v10274, 7
  %v10276 = vsub.s32 %v9187, %v10275
  %v10277 = vrot.slane %v8099, %v10276
  %v10278 = vsel %vm9192, %v10277, %v10273
  %v10279 = vlaneseq
  %v10280 = vshrl.u32 %v10279, 7
  %v10281 = vsub.s32 %v9194, %v10280
  %v10282 = vrot.slane %v8101, %v10281
  %v10283 = vsel %vm9199, %v10282, %v10278
  %v10284 = vlaneseq
  %v10285 = vshrl.u32 %v10284, 7
  %v10286 = vsub.s32 %v9175, %v10285
  %v10287 = vrot.slane %v8103, %v10286
  %v10288 = vlaneseq
  %v10289 = vshrl.u32 %v10288, 7
  %v10290 = vsub.s32 %v9180, %v10289
  %v10291 = vrot.slane %v8105, %v10290
  %v10292 = vsel %vm9185, %v10291, %v10287
  %v10293 = vlaneseq
  %v10294 = vshrl.u32 %v10293, 7
  %v10295 = vsub.s32 %v9187, %v10294
  %v10296 = vrot.slane %v8107, %v10295
  %v10297 = vsel %vm9192, %v10296, %v10292
  %v10298 = vlaneseq
  %v10299 = vshrl.u32 %v10298, 7
  %v10300 = vsub.s32 %v9194, %v10299
  %v10301 = vrot.slane %v8109, %v10300
  %v10302 = vsel %vm9199, %v10301, %v10297
  %v10303 = vlaneseq
  %v10304 = vshrl.u32 %v10303, 7
  %v10305 = vsub.s32 %v9175, %v10304
  %v10306 = vrot.slane %v8111, %v10305
  %v10307 = vlaneseq
  %v10308 = vshrl.u32 %v10307, 7
  %v10309 = vsub.s32 %v9180, %v10308
  %v10310 = vrot.slane %v8113, %v10309
  %v10311 = vsel %vm9185, %v10310, %v10306
  %v10312 = vlaneseq
  %v10313 = vshrl.u32 %v10312, 7
  %v10314 = vsub.s32 %v9187, %v10313
  %v10315 = vrot.slane %v8115, %v10314
  %v10316 = vsel %vm9192, %v10315, %v10311
  %v10317 = vlaneseq
  %v10318 = vshrl.u32 %v10317, 7
  %v10319 = vsub.s32 %v9194, %v10318
  %v10320 = vrot.slane %v8117, %v10319
  %v10321 = vsel %vm9199, %v10320, %v10316
  %v10322 = vlaneseq
  %v10323 = vshrl.u32 %v10322, 7
  %v10324 = vsub.s32 %v9175, %v10323
  %v10325 = vrot.slane %v8119, %v10324
  %v10326 = vlaneseq
  %v10327 = vshrl.u32 %v10326, 7
  %v10328 = vsub.s32 %v9180, %v10327
  %v10329 = vrot.slane %v8121, %v10328
  %v10330 = vsel %vm9185, %v10329, %v10325
  %v10331 = vlaneseq
  %v10332 = vshrl.u32 %v10331, 7
  %v10333 = vsub.s32 %v9187, %v10332
  %v10334 = vrot.slane %v8123, %v10333
  %v10335 = vsel %vm9192, %v10334, %v10330
  %v10336 = vlaneseq
  %v10337 = vshrl.u32 %v10336, 7
  %v10338 = vsub.s32 %v9194, %v10337
  %v10339 = vrot.slane %v8125, %v10338
  %v10340 = vsel %vm9199, %v10339, %v10335
  %v10341 = vlaneseq
  %v10342 = vshrl.u32 %v10341, 7
  %v10343 = vsub.s32 %v9175, %v10342
  %v10344 = vrot.slane %v8127, %v10343
  %v10345 = vlaneseq
  %v10346 = vshrl.u32 %v10345, 7
  %v10347 = vsub.s32 %v9180, %v10346
  %v10348 = vrot.slane %v8129, %v10347
  %v10349 = vsel %vm9185, %v10348, %v10344
  %v10350 = vlaneseq
  %v10351 = vshrl.u32 %v10350, 7
  %v10352 = vsub.s32 %v9187, %v10351
  %v10353 = vrot.slane %v8131, %v10352
  %v10354 = vsel %vm9192, %v10353, %v10349
  %v10355 = vlaneseq
  %v10356 = vshrl.u32 %v10355, 7
  %v10357 = vsub.s32 %v9194, %v10356
  %v10358 = vrot.slane %v8133, %v10357
  %v10359 = vsel %vm9199, %v10358, %v10354
  %v10360 = vlaneseq
  %v10361 = vshrl.u32 %v10360, 7
  %v10362 = vsub.s32 %v9175, %v10361
  %v10363 = vrot.slane %v8135, %v10362
  %v10364 = vlaneseq
  %v10365 = vshrl.u32 %v10364, 7
  %v10366 = vsub.s32 %v9180, %v10365
  %v10367 = vrot.slane %v8137, %v10366
  %v10368 = vsel %vm9185, %v10367, %v10363
  %v10369 = vlaneseq
  %v10370 = vshrl.u32 %v10369, 7
  %v10371 = vsub.s32 %v9187, %v10370
  %v10372 = vrot.slane %v8139, %v10371
  %v10373 = vsel %vm9192, %v10372, %v10368
  %v10374 = vlaneseq
  %v10375 = vshrl.u32 %v10374, 7
  %v10376 = vsub.s32 %v9194, %v10375
  %v10377 = vrot.slane %v8141, %v10376
  %v10378 = vsel %vm9199, %v10377, %v10373
  %v10379 = vlaneseq
  %v10380 = vshrl.u32 %v10379, 7
  %v10381 = vsub.s32 %v9175, %v10380
  %v10382 = vrot.slane %v8143, %v10381
  %v10383 = vlaneseq
  %v10384 = vshrl.u32 %v10383, 7
  %v10385 = vsub.s32 %v9180, %v10384
  %v10386 = vrot.slane %v8145, %v10385
  %v10387 = vsel %vm9185, %v10386, %v10382
  %v10388 = vlaneseq
  %v10389 = vshrl.u32 %v10388, 7
  %v10390 = vsub.s32 %v9187, %v10389
  %v10391 = vrot.slane %v8147, %v10390
  %v10392 = vsel %vm9192, %v10391, %v10387
  %v10393 = vlaneseq
  %v10394 = vshrl.u32 %v10393, 7
  %v10395 = vsub.s32 %v9194, %v10394
  %v10396 = vrot.slane %v8149, %v10395
  %v10397 = vsel %vm9199, %v10396, %v10392
  %v10398 = vlaneseq
  %v10399 = vshrl.u32 %v10398, 7
  %v10400 = vsub.s32 %v9175, %v10399
  %v10401 = vrot.slane %v8151, %v10400
  %v10402 = vlaneseq
  %v10403 = vshrl.u32 %v10402, 7
  %v10404 = vsub.s32 %v9180, %v10403
  %v10405 = vrot.slane %v8153, %v10404
  %v10406 = vsel %vm9185, %v10405, %v10401
  %v10407 = vlaneseq
  %v10408 = vshrl.u32 %v10407, 7
  %v10409 = vsub.s32 %v9187, %v10408
  %v10410 = vrot.slane %v8155, %v10409
  %v10411 = vsel %vm9192, %v10410, %v10406
  %v10412 = vlaneseq
  %v10413 = vshrl.u32 %v10412, 7
  %v10414 = vsub.s32 %v9194, %v10413
  %v10415 = vrot.slane %v8157, %v10414
  %v10416 = vsel %vm9199, %v10415, %v10411
  %v10417 = vlaneseq
  %v10418 = vshrl.u32 %v10417, 7
  %v10419 = vsub.s32 %v9175, %v10418
  %v10420 = vrot.slane %v8159, %v10419
  %v10421 = vlaneseq
  %v10422 = vshrl.u32 %v10421, 7
  %v10423 = vsub.s32 %v9180, %v10422
  %v10424 = vrot.slane %v8161, %v10423
  %v10425 = vsel %vm9185, %v10424, %v10420
  %v10426 = vlaneseq
  %v10427 = vshrl.u32 %v10426, 7
  %v10428 = vsub.s32 %v9187, %v10427
  %v10429 = vrot.slane %v8163, %v10428
  %v10430 = vsel %vm9192, %v10429, %v10425
  %v10431 = vlaneseq
  %v10432 = vshrl.u32 %v10431, 7
  %v10433 = vsub.s32 %v9194, %v10432
  %v10434 = vrot.slane %v8165, %v10433
  %v10435 = vsel %vm9199, %v10434, %v10430
  %v10436 = vlaneseq
  %v10437 = vshrl.u32 %v10436, 7
  %v10438 = vsub.s32 %v9175, %v10437
  %v10439 = vrot.slane %v8167, %v10438
  %v10440 = vlaneseq
  %v10441 = vshrl.u32 %v10440, 7
  %v10442 = vsub.s32 %v9180, %v10441
  %v10443 = vrot.slane %v8169, %v10442
  %v10444 = vsel %vm9185, %v10443, %v10439
  %v10445 = vlaneseq
  %v10446 = vshrl.u32 %v10445, 7
  %v10447 = vsub.s32 %v9187, %v10446
  %v10448 = vrot.slane %v8171, %v10447
  %v10449 = vsel %vm9192, %v10448, %v10444
  %v10450 = vlaneseq
  %v10451 = vshrl.u32 %v10450, 7
  %v10452 = vsub.s32 %v9194, %v10451
  %v10453 = vrot.slane %v8173, %v10452
  %v10454 = vsel %vm9199, %v10453, %v10449
  %v10455 = vlaneseq
  %v10456 = vshrl.u32 %v10455, 7
  %v10457 = vsub.s32 %v9175, %v10456
  %v10458 = vrot.slane %v8175, %v10457
  %v10459 = vlaneseq
  %v10460 = vshrl.u32 %v10459, 7
  %v10461 = vsub.s32 %v9180, %v10460
  %v10462 = vrot.slane %v8177, %v10461
  %v10463 = vsel %vm9185, %v10462, %v10458
  %v10464 = vlaneseq
  %v10465 = vshrl.u32 %v10464, 7
  %v10466 = vsub.s32 %v9187, %v10465
  %v10467 = vrot.slane %v8179, %v10466
  %v10468 = vsel %vm9192, %v10467, %v10463
  %v10469 = vlaneseq
  %v10470 = vshrl.u32 %v10469, 7
  %v10471 = vsub.s32 %v9194, %v10470
  %v10472 = vrot.slane %v8181, %v10471
  %v10473 = vsel %vm9199, %v10472, %v10468
  %v10474 = vlaneseq
  %v10475 = vshrl.u32 %v10474, 7
  %v10476 = vsub.s32 %v9175, %v10475
  %v10477 = vrot.slane %v8183, %v10476
  %v10478 = vlaneseq
  %v10479 = vshrl.u32 %v10478, 7
  %v10480 = vsub.s32 %v9180, %v10479
  %v10481 = vrot.slane %v8185, %v10480
  %v10482 = vsel %vm9185, %v10481, %v10477
  %v10483 = vlaneseq
  %v10484 = vshrl.u32 %v10483, 7
  %v10485 = vsub.s32 %v9187, %v10484
  %v10486 = vrot.slane %v8187, %v10485
  %v10487 = vsel %vm9192, %v10486, %v10482
  %v10488 = vlaneseq
  %v10489 = vshrl.u32 %v10488, 7
  %v10490 = vsub.s32 %v9194, %v10489
  %v10491 = vrot.slane %v8189, %v10490
  %v10492 = vsel %vm9199, %v10491, %v10487
  %v10493 = vlaneseq
  %v10494 = vshrl.u32 %v10493, 7
  %v10495 = vsub.s32 %v9175, %v10494
  %v10496 = vrot.slane %v8191, %v10495
  %v10497 = vlaneseq
  %v10498 = vshrl.u32 %v10497, 7
  %v10499 = vsub.s32 %v9180, %v10498
  %v10500 = vrot.slane %v8193, %v10499
  %v10501 = vsel %vm9185, %v10500, %v10496
  %v10502 = vlaneseq
  %v10503 = vshrl.u32 %v10502, 7
  %v10504 = vsub.s32 %v9187, %v10503
  %v10505 = vrot.slane %v8195, %v10504
  %v10506 = vsel %vm9192, %v10505, %v10501
  %v10507 = vlaneseq
  %v10508 = vshrl.u32 %v10507, 7
  %v10509 = vsub.s32 %v9194, %v10508
  %v10510 = vrot.slane %v8197, %v10509
  %v10511 = vsel %vm9199, %v10510, %v10506
  %v10512 = vlaneseq
  %v10513 = vshrl.u32 %v10512, 7
  %v10514 = vsub.s32 %v9175, %v10513
  %v10515 = vrot.slane %v8199, %v10514
  %v10516 = vlaneseq
  %v10517 = vshrl.u32 %v10516, 7
  %v10518 = vsub.s32 %v9180, %v10517
  %v10519 = vrot.slane %v8201, %v10518
  %v10520 = vsel %vm9185, %v10519, %v10515
  %v10521 = vlaneseq
  %v10522 = vshrl.u32 %v10521, 7
  %v10523 = vsub.s32 %v9187, %v10522
  %v10524 = vrot.slane %v8203, %v10523
  %v10525 = vsel %vm9192, %v10524, %v10520
  %v10526 = vlaneseq
  %v10527 = vshrl.u32 %v10526, 7
  %v10528 = vsub.s32 %v9194, %v10527
  %v10529 = vrot.slane %v8205, %v10528
  %v10530 = vsel %vm9199, %v10529, %v10525
  %v10531 = vlaneseq
  %v10532 = vshrl.u32 %v10531, 7
  %v10533 = vsub.s32 %v9175, %v10532
  %v10534 = vrot.slane %v8207, %v10533
  %v10535 = vlaneseq
  %v10536 = vshrl.u32 %v10535, 7
  %v10537 = vsub.s32 %v9180, %v10536
  %v10538 = vrot.slane %v8209, %v10537
  %v10539 = vsel %vm9185, %v10538, %v10534
  %v10540 = vlaneseq
  %v10541 = vshrl.u32 %v10540, 7
  %v10542 = vsub.s32 %v9187, %v10541
  %v10543 = vrot.slane %v8211, %v10542
  %v10544 = vsel %vm9192, %v10543, %v10539
  %v10545 = vlaneseq
  %v10546 = vshrl.u32 %v10545, 7
  %v10547 = vsub.s32 %v9194, %v10546
  %v10548 = vrot.slane %v8213, %v10547
  %v10549 = vsel %vm9199, %v10548, %v10544
  %v10550 = vlaneseq
  %v10551 = vshrl.u32 %v10550, 7
  %v10552 = vsub.s32 %v9175, %v10551
  %v10553 = vrot.slane %v8215, %v10552
  %v10554 = vlaneseq
  %v10555 = vshrl.u32 %v10554, 7
  %v10556 = vsub.s32 %v9180, %v10555
  %v10557 = vrot.slane %v8217, %v10556
  %v10558 = vsel %vm9185, %v10557, %v10553
  %v10559 = vlaneseq
  %v10560 = vshrl.u32 %v10559, 7
  %v10561 = vsub.s32 %v9187, %v10560
  %v10562 = vrot.slane %v8219, %v10561
  %v10563 = vsel %vm9192, %v10562, %v10558
  %v10564 = vlaneseq
  %v10565 = vshrl.u32 %v10564, 7
  %v10566 = vsub.s32 %v9194, %v10565
  %v10567 = vrot.slane %v8221, %v10566
  %v10568 = vsel %vm9199, %v10567, %v10563
  %v10569 = vlaneseq
  %v10570 = vshrl.u32 %v10569, 7
  %v10571 = vsub.s32 %v9175, %v10570
  %v10572 = vrot.slane %v8223, %v10571
  %v10573 = vlaneseq
  %v10574 = vshrl.u32 %v10573, 7
  %v10575 = vsub.s32 %v9180, %v10574
  %v10576 = vrot.slane %v8225, %v10575
  %v10577 = vsel %vm9185, %v10576, %v10572
  %v10578 = vlaneseq
  %v10579 = vshrl.u32 %v10578, 7
  %v10580 = vsub.s32 %v9187, %v10579
  %v10581 = vrot.slane %v8227, %v10580
  %v10582 = vsel %vm9192, %v10581, %v10577
  %v10583 = vlaneseq
  %v10584 = vshrl.u32 %v10583, 7
  %v10585 = vsub.s32 %v9194, %v10584
  %v10586 = vrot.slane %v8229, %v10585
  %v10587 = vsel %vm9199, %v10586, %v10582
  %v10588 = vlaneseq
  %v10589 = vshrl.u32 %v10588, 7
  %v10590 = vsub.s32 %v9175, %v10589
  %v10591 = vrot.slane %v8231, %v10590
  %v10592 = vlaneseq
  %v10593 = vshrl.u32 %v10592, 7
  %v10594 = vsub.s32 %v9180, %v10593
  %v10595 = vrot.slane %v8233, %v10594
  %v10596 = vsel %vm9185, %v10595, %v10591
  %v10597 = vlaneseq
  %v10598 = vshrl.u32 %v10597, 7
  %v10599 = vsub.s32 %v9187, %v10598
  %v10600 = vrot.slane %v8235, %v10599
  %v10601 = vsel %vm9192, %v10600, %v10596
  %v10602 = vlaneseq
  %v10603 = vshrl.u32 %v10602, 7
  %v10604 = vsub.s32 %v9194, %v10603
  %v10605 = vrot.slane %v8237, %v10604
  %v10606 = vsel %vm9199, %v10605, %v10601
  %v10607 = vlaneseq
  %v10608 = vshrl.u32 %v10607, 7
  %v10609 = vsub.s32 %v9175, %v10608
  %v10610 = vrot.slane %v8239, %v10609
  %v10611 = vlaneseq
  %v10612 = vshrl.u32 %v10611, 7
  %v10613 = vsub.s32 %v9180, %v10612
  %v10614 = vrot.slane %v8241, %v10613
  %v10615 = vsel %vm9185, %v10614, %v10610
  %v10616 = vlaneseq
  %v10617 = vshrl.u32 %v10616, 7
  %v10618 = vsub.s32 %v9187, %v10617
  %v10619 = vrot.slane %v8243, %v10618
  %v10620 = vsel %vm9192, %v10619, %v10615
  %v10621 = vlaneseq
  %v10622 = vshrl.u32 %v10621, 7
  %v10623 = vsub.s32 %v9194, %v10622
  %v10624 = vrot.slane %v8245, %v10623
  %v10625 = vsel %vm9199, %v10624, %v10620
  %v10626 = vlaneseq
  %v10627 = vshrl.u32 %v10626, 7
  %v10628 = vsub.s32 %v9175, %v10627
  %v10629 = vrot.slane %v8247, %v10628
  %v10630 = vlaneseq
  %v10631 = vshrl.u32 %v10630, 7
  %v10632 = vsub.s32 %v9180, %v10631
  %v10633 = vrot.slane %v8249, %v10632
  %v10634 = vsel %vm9185, %v10633, %v10629
  %v10635 = vlaneseq
  %v10636 = vshrl.u32 %v10635, 7
  %v10637 = vsub.s32 %v9187, %v10636
  %v10638 = vrot.slane %v8251, %v10637
  %v10639 = vsel %vm9192, %v10638, %v10634
  %v10640 = vlaneseq
  %v10641 = vshrl.u32 %v10640, 7
  %v10642 = vsub.s32 %v9194, %v10641
  %v10643 = vrot.slane %v8253, %v10642
  %v10644 = vsel %vm9199, %v10643, %v10639
  %v10645 = vlaneseq
  %v10646 = vshrl.u32 %v10645, 7
  %v10647 = vsub.s32 %v9175, %v10646
  %v10648 = vrot.slane %v8255, %v10647
  %v10649 = vlaneseq
  %v10650 = vshrl.u32 %v10649, 7
  %v10651 = vsub.s32 %v9180, %v10650
  %v10652 = vrot.slane %v8257, %v10651
  %v10653 = vsel %vm9185, %v10652, %v10648
  %v10654 = vlaneseq
  %v10655 = vshrl.u32 %v10654, 7
  %v10656 = vsub.s32 %v9187, %v10655
  %v10657 = vrot.slane %v8259, %v10656
  %v10658 = vsel %vm9192, %v10657, %v10653
  %v10659 = vlaneseq
  %v10660 = vshrl.u32 %v10659, 7
  %v10661 = vsub.s32 %v9194, %v10660
  %v10662 = vrot.slane %v8261, %v10661
  %v10663 = vsel %vm9199, %v10662, %v10658
  %v10664 = vlaneseq
  %v10665 = vshrl.u32 %v10664, 7
  %v10666 = vsub.s32 %v9175, %v10665
  %v10667 = vrot.slane %v8263, %v10666
  %v10668 = vlaneseq
  %v10669 = vshrl.u32 %v10668, 7
  %v10670 = vsub.s32 %v9180, %v10669
  %v10671 = vrot.slane %v8265, %v10670
  %v10672 = vsel %vm9185, %v10671, %v10667
  %v10673 = vlaneseq
  %v10674 = vshrl.u32 %v10673, 7
  %v10675 = vsub.s32 %v9187, %v10674
  %v10676 = vrot.slane %v8267, %v10675
  %v10677 = vsel %vm9192, %v10676, %v10672
  %v10678 = vlaneseq
  %v10679 = vshrl.u32 %v10678, 7
  %v10680 = vsub.s32 %v9194, %v10679
  %v10681 = vrot.slane %v8269, %v10680
  %v10682 = vsel %vm9199, %v10681, %v10677
  %v10683 = vlaneseq
  %v10684 = vshrl.u32 %v10683, 7
  %v10685 = vsub.s32 %v9175, %v10684
  %v10686 = vrot.slane %v8271, %v10685
  %v10687 = vlaneseq
  %v10688 = vshrl.u32 %v10687, 7
  %v10689 = vsub.s32 %v9180, %v10688
  %v10690 = vrot.slane %v8273, %v10689
  %v10691 = vsel %vm9185, %v10690, %v10686
  %v10692 = vlaneseq
  %v10693 = vshrl.u32 %v10692, 7
  %v10694 = vsub.s32 %v9187, %v10693
  %v10695 = vrot.slane %v8275, %v10694
  %v10696 = vsel %vm9192, %v10695, %v10691
  %v10697 = vlaneseq
  %v10698 = vshrl.u32 %v10697, 7
  %v10699 = vsub.s32 %v9194, %v10698
  %v10700 = vrot.slane %v8277, %v10699
  %v10701 = vsel %vm9199, %v10700, %v10696
  %v10702 = vlaneseq
  %v10703 = vshrl.u32 %v10702, 7
  %v10704 = vsub.s32 %v9175, %v10703
  %v10705 = vrot.slane %v8279, %v10704
  %v10706 = vlaneseq
  %v10707 = vshrl.u32 %v10706, 7
  %v10708 = vsub.s32 %v9180, %v10707
  %v10709 = vrot.slane %v8281, %v10708
  %v10710 = vsel %vm9185, %v10709, %v10705
  %v10711 = vlaneseq
  %v10712 = vshrl.u32 %v10711, 7
  %v10713 = vsub.s32 %v9187, %v10712
  %v10714 = vrot.slane %v8283, %v10713
  %v10715 = vsel %vm9192, %v10714, %v10710
  %v10716 = vlaneseq
  %v10717 = vshrl.u32 %v10716, 7
  %v10718 = vsub.s32 %v9194, %v10717
  %v10719 = vrot.slane %v8285, %v10718
  %v10720 = vsel %vm9199, %v10719, %v10715
  %v10721 = vlaneseq
  %v10722 = vshrl.u32 %v10721, 7
  %v10723 = vsub.s32 %v9175, %v10722
  %v10724 = vrot.slane %v8287, %v10723
  %v10725 = vlaneseq
  %v10726 = vshrl.u32 %v10725, 7
  %v10727 = vsub.s32 %v9180, %v10726
  %v10728 = vrot.slane %v8289, %v10727
  %v10729 = vsel %vm9185, %v10728, %v10724
  %v10730 = vlaneseq
  %v10731 = vshrl.u32 %v10730, 7
  %v10732 = vsub.s32 %v9187, %v10731
  %v10733 = vrot.slane %v8291, %v10732
  %v10734 = vsel %vm9192, %v10733, %v10729
  %v10735 = vlaneseq
  %v10736 = vshrl.u32 %v10735, 7
  %v10737 = vsub.s32 %v9194, %v10736
  %v10738 = vrot.slane %v8293, %v10737
  %v10739 = vsel %vm9199, %v10738, %v10734
  %v10740 = vlaneseq
  %v10741 = vshrl.u32 %v10740, 7
  %v10742 = vsub.s32 %v9175, %v10741
  %v10743 = vrot.slane %v8295, %v10742
  %v10744 = vlaneseq
  %v10745 = vshrl.u32 %v10744, 7
  %v10746 = vsub.s32 %v9180, %v10745
  %v10747 = vrot.slane %v8297, %v10746
  %v10748 = vsel %vm9185, %v10747, %v10743
  %v10749 = vlaneseq
  %v10750 = vshrl.u32 %v10749, 7
  %v10751 = vsub.s32 %v9187, %v10750
  %v10752 = vrot.slane %v8299, %v10751
  %v10753 = vsel %vm9192, %v10752, %v10748
  %v10754 = vlaneseq
  %v10755 = vshrl.u32 %v10754, 7
  %v10756 = vsub.s32 %v9194, %v10755
  %v10757 = vrot.slane %v8301, %v10756
  %v10758 = vsel %vm9199, %v10757, %v10753
  %v10759 = vlaneseq
  %v10760 = vshrl.u32 %v10759, 7
  %v10761 = vsub.s32 %v9175, %v10760
  %v10762 = vrot.slane %v8303, %v10761
  %v10763 = vlaneseq
  %v10764 = vshrl.u32 %v10763, 7
  %v10765 = vsub.s32 %v9180, %v10764
  %v10766 = vrot.slane %v8305, %v10765
  %v10767 = vsel %vm9185, %v10766, %v10762
  %v10768 = vlaneseq
  %v10769 = vshrl.u32 %v10768, 7
  %v10770 = vsub.s32 %v9187, %v10769
  %v10771 = vrot.slane %v8307, %v10770
  %v10772 = vsel %vm9192, %v10771, %v10767
  %v10773 = vlaneseq
  %v10774 = vshrl.u32 %v10773, 7
  %v10775 = vsub.s32 %v9194, %v10774
  %v10776 = vrot.slane %v8309, %v10775
  %v10777 = vsel %vm9199, %v10776, %v10772
  %v10778 = vlaneseq
  %v10779 = vshrl.u32 %v10778, 7
  %v10780 = vsub.s32 %v9175, %v10779
  %v10781 = vrot.slane %v8311, %v10780
  %v10782 = vlaneseq
  %v10783 = vshrl.u32 %v10782, 7
  %v10784 = vsub.s32 %v9180, %v10783
  %v10785 = vrot.slane %v8313, %v10784
  %v10786 = vsel %vm9185, %v10785, %v10781
  %v10787 = vlaneseq
  %v10788 = vshrl.u32 %v10787, 7
  %v10789 = vsub.s32 %v9187, %v10788
  %v10790 = vrot.slane %v8315, %v10789
  %v10791 = vsel %vm9192, %v10790, %v10786
  %v10792 = vlaneseq
  %v10793 = vshrl.u32 %v10792, 7
  %v10794 = vsub.s32 %v9194, %v10793
  %v10795 = vrot.slane %v8317, %v10794
  %v10796 = vsel %vm9199, %v10795, %v10791
  %v10797 = vlaneseq
  %v10798 = vshrl.u32 %v10797, 7
  %v10799 = vsub.s32 %v9175, %v10798
  %v10800 = vrot.slane %v8319, %v10799
  %v10801 = vlaneseq
  %v10802 = vshrl.u32 %v10801, 7
  %v10803 = vsub.s32 %v9180, %v10802
  %v10804 = vrot.slane %v8321, %v10803
  %v10805 = vsel %vm9185, %v10804, %v10800
  %v10806 = vlaneseq
  %v10807 = vshrl.u32 %v10806, 7
  %v10808 = vsub.s32 %v9187, %v10807
  %v10809 = vrot.slane %v8323, %v10808
  %v10810 = vsel %vm9192, %v10809, %v10805
  %v10811 = vlaneseq
  %v10812 = vshrl.u32 %v10811, 7
  %v10813 = vsub.s32 %v9194, %v10812
  %v10814 = vrot.slane %v8325, %v10813
  %v10815 = vsel %vm9199, %v10814, %v10810
  %v10816 = vlaneseq
  %v10817 = vshrl.u32 %v10816, 7
  %v10818 = vsub.s32 %v9175, %v10817
  %v10819 = vrot.slane %v8327, %v10818
  %v10820 = vlaneseq
  %v10821 = vshrl.u32 %v10820, 7
  %v10822 = vsub.s32 %v9180, %v10821
  %v10823 = vrot.slane %v8329, %v10822
  %v10824 = vsel %vm9185, %v10823, %v10819
  %v10825 = vlaneseq
  %v10826 = vshrl.u32 %v10825, 7
  %v10827 = vsub.s32 %v9187, %v10826
  %v10828 = vrot.slane %v8331, %v10827
  %v10829 = vsel %vm9192, %v10828, %v10824
  %v10830 = vlaneseq
  %v10831 = vshrl.u32 %v10830, 7
  %v10832 = vsub.s32 %v9194, %v10831
  %v10833 = vrot.slane %v8333, %v10832
  %v10834 = vsel %vm9199, %v10833, %v10829
  %v10835 = vlaneseq
  %v10836 = vshrl.u32 %v10835, 7
  %v10837 = vsub.s32 %v9175, %v10836
  %v10838 = vrot.slane %v8335, %v10837
  %v10839 = vlaneseq
  %v10840 = vshrl.u32 %v10839, 7
  %v10841 = vsub.s32 %v9180, %v10840
  %v10842 = vrot.slane %v8337, %v10841
  %v10843 = vsel %vm9185, %v10842, %v10838
  %v10844 = vlaneseq
  %v10845 = vshrl.u32 %v10844, 7
  %v10846 = vsub.s32 %v9187, %v10845
  %v10847 = vrot.slane %v8339, %v10846
  %v10848 = vsel %vm9192, %v10847, %v10843
  %v10849 = vlaneseq
  %v10850 = vshrl.u32 %v10849, 7
  %v10851 = vsub.s32 %v9194, %v10850
  %v10852 = vrot.slane %v8341, %v10851
  %v10853 = vsel %vm9199, %v10852, %v10848
  %v10854 = vlaneseq
  %v10855 = vshrl.u32 %v10854, 7
  %v10856 = vsub.s32 %v9175, %v10855
  %v10857 = vrot.slane %v8343, %v10856
  %v10858 = vlaneseq
  %v10859 = vshrl.u32 %v10858, 7
  %v10860 = vsub.s32 %v9180, %v10859
  %v10861 = vrot.slane %v8345, %v10860
  %v10862 = vsel %vm9185, %v10861, %v10857
  %v10863 = vlaneseq
  %v10864 = vshrl.u32 %v10863, 7
  %v10865 = vsub.s32 %v9187, %v10864
  %v10866 = vrot.slane %v8347, %v10865
  %v10867 = vsel %vm9192, %v10866, %v10862
  %v10868 = vlaneseq
  %v10869 = vshrl.u32 %v10868, 7
  %v10870 = vsub.s32 %v9194, %v10869
  %v10871 = vrot.slane %v8349, %v10870
  %v10872 = vsel %vm9199, %v10871, %v10867
  %v10873 = vlaneseq
  %v10874 = vshrl.u32 %v10873, 7
  %v10875 = vsub.s32 %v9175, %v10874
  %v10876 = vrot.slane %v8351, %v10875
  %v10877 = vlaneseq
  %v10878 = vshrl.u32 %v10877, 7
  %v10879 = vsub.s32 %v9180, %v10878
  %v10880 = vrot.slane %v8353, %v10879
  %v10881 = vsel %vm9185, %v10880, %v10876
  %v10882 = vlaneseq
  %v10883 = vshrl.u32 %v10882, 7
  %v10884 = vsub.s32 %v9187, %v10883
  %v10885 = vrot.slane %v8355, %v10884
  %v10886 = vsel %vm9192, %v10885, %v10881
  %v10887 = vlaneseq
  %v10888 = vshrl.u32 %v10887, 7
  %v10889 = vsub.s32 %v9194, %v10888
  %v10890 = vrot.slane %v8357, %v10889
  %v10891 = vsel %vm9199, %v10890, %v10886
  %v10892 = vlaneseq
  %v10893 = vshrl.u32 %v10892, 7
  %v10894 = vsub.s32 %v9175, %v10893
  %v10895 = vrot.slane %v8359, %v10894
  %v10896 = vlaneseq
  %v10897 = vshrl.u32 %v10896, 7
  %v10898 = vsub.s32 %v9180, %v10897
  %v10899 = vrot.slane %v8361, %v10898
  %v10900 = vsel %vm9185, %v10899, %v10895
  %v10901 = vlaneseq
  %v10902 = vshrl.u32 %v10901, 7
  %v10903 = vsub.s32 %v9187, %v10902
  %v10904 = vrot.slane %v8363, %v10903
  %v10905 = vsel %vm9192, %v10904, %v10900
  %v10906 = vlaneseq
  %v10907 = vshrl.u32 %v10906, 7
  %v10908 = vsub.s32 %v9194, %v10907
  %v10909 = vrot.slane %v8365, %v10908
  %v10910 = vsel %vm9199, %v10909, %v10905
  %v10911 = vlaneseq
  %v10912 = vshrl.u32 %v10911, 7
  %v10913 = vsub.s32 %v9175, %v10912
  %v10914 = vrot.slane %v8367, %v10913
  %v10915 = vlaneseq
  %v10916 = vshrl.u32 %v10915, 7
  %v10917 = vsub.s32 %v9180, %v10916
  %v10918 = vrot.slane %v8369, %v10917
  %v10919 = vsel %vm9185, %v10918, %v10914
  %v10920 = vlaneseq
  %v10921 = vshrl.u32 %v10920, 7
  %v10922 = vsub.s32 %v9187, %v10921
  %v10923 = vrot.slane %v8371, %v10922
  %v10924 = vsel %vm9192, %v10923, %v10919
  %v10925 = vlaneseq
  %v10926 = vshrl.u32 %v10925, 7
  %v10927 = vsub.s32 %v9194, %v10926
  %v10928 = vrot.slane %v8373, %v10927
  %v10929 = vsel %vm9199, %v10928, %v10924
  %v10930 = vlaneseq
  %v10931 = vshrl.u32 %v10930, 7
  %v10932 = vsub.s32 %v9175, %v10931
  %v10933 = vrot.slane %v8375, %v10932
  %v10934 = vlaneseq
  %v10935 = vshrl.u32 %v10934, 7
  %v10936 = vsub.s32 %v9180, %v10935
  %v10937 = vrot.slane %v8377, %v10936
  %v10938 = vsel %vm9185, %v10937, %v10933
  %v10939 = vlaneseq
  %v10940 = vshrl.u32 %v10939, 7
  %v10941 = vsub.s32 %v9187, %v10940
  %v10942 = vrot.slane %v8379, %v10941
  %v10943 = vsel %vm9192, %v10942, %v10938
  %v10944 = vlaneseq
  %v10945 = vshrl.u32 %v10944, 7
  %v10946 = vsub.s32 %v9194, %v10945
  %v10947 = vrot.slane %v8381, %v10946
  %v10948 = vsel %vm9199, %v10947, %v10943
  %v10949 = vlaneseq
  %v10950 = vshrl.u32 %v10949, 7
  %v10951 = vsub.s32 %v9175, %v10950
  %v10952 = vrot.slane %v8383, %v10951
  %v10953 = vlaneseq
  %v10954 = vshrl.u32 %v10953, 7
  %v10955 = vsub.s32 %v9180, %v10954
  %v10956 = vrot.slane %v8385, %v10955
  %v10957 = vsel %vm9185, %v10956, %v10952
  %v10958 = vlaneseq
  %v10959 = vshrl.u32 %v10958, 7
  %v10960 = vsub.s32 %v9187, %v10959
  %v10961 = vrot.slane %v8387, %v10960
  %v10962 = vsel %vm9192, %v10961, %v10957
  %v10963 = vlaneseq
  %v10964 = vshrl.u32 %v10963, 7
  %v10965 = vsub.s32 %v9194, %v10964
  %v10966 = vrot.slane %v8389, %v10965
  %v10967 = vsel %vm9199, %v10966, %v10962
  %v10968 = vlaneseq
  %v10969 = vshrl.u32 %v10968, 7
  %v10970 = vsub.s32 %v9175, %v10969
  %v10971 = vrot.slane %v8391, %v10970
  %v10972 = vlaneseq
  %v10973 = vshrl.u32 %v10972, 7
  %v10974 = vsub.s32 %v9180, %v10973
  %v10975 = vrot.slane %v8393, %v10974
  %v10976 = vsel %vm9185, %v10975, %v10971
  %v10977 = vlaneseq
  %v10978 = vshrl.u32 %v10977, 7
  %v10979 = vsub.s32 %v9187, %v10978
  %v10980 = vrot.slane %v8395, %v10979
  %v10981 = vsel %vm9192, %v10980, %v10976
  %v10982 = vlaneseq
  %v10983 = vshrl.u32 %v10982, 7
  %v10984 = vsub.s32 %v9194, %v10983
  %v10985 = vrot.slane %v8397, %v10984
  %v10986 = vsel %vm9199, %v10985, %v10981
  %v10987 = vlaneseq
  %v10988 = vshrl.u32 %v10987, 7
  %v10989 = vsub.s32 %v9175, %v10988
  %v10990 = vrot.slane %v8399, %v10989
  %v10991 = vlaneseq
  %v10992 = vshrl.u32 %v10991, 7
  %v10993 = vsub.s32 %v9180, %v10992
  %v10994 = vrot.slane %v8401, %v10993
  %v10995 = vsel %vm9185, %v10994, %v10990
  %v10996 = vlaneseq
  %v10997 = vshrl.u32 %v10996, 7
  %v10998 = vsub.s32 %v9187, %v10997
  %v10999 = vrot.slane %v8403, %v10998
  %v11000 = vsel %vm9192, %v10999, %v10995
  %v11001 = vlaneseq
  %v11002 = vshrl.u32 %v11001, 7
  %v11003 = vsub.s32 %v9194, %v11002
  %v11004 = vrot.slane %v8405, %v11003
  %v11005 = vsel %vm9199, %v11004, %v11000
  %v11006 = vlaneseq
  %v11007 = vshrl.u32 %v11006, 7
  %v11008 = vsub.s32 %v9175, %v11007
  %v11009 = vrot.slane %v8407, %v11008
  %v11010 = vlaneseq
  %v11011 = vshrl.u32 %v11010, 7
  %v11012 = vsub.s32 %v9180, %v11011
  %v11013 = vrot.slane %v8409, %v11012
  %v11014 = vsel %vm9185, %v11013, %v11009
  %v11015 = vlaneseq
  %v11016 = vshrl.u32 %v11015, 7
  %v11017 = vsub.s32 %v9187, %v11016
  %v11018 = vrot.slane %v8411, %v11017
  %v11019 = vsel %vm9192, %v11018, %v11014
  %v11020 = vlaneseq
  %v11021 = vshrl.u32 %v11020, 7
  %v11022 = vsub.s32 %v9194, %v11021
  %v11023 = vrot.slane %v8413, %v11022
  %v11024 = vsel %vm9199, %v11023, %v11019
  %v11025 = vlaneseq
  %v11026 = vshrl.u32 %v11025, 7
  %v11027 = vsub.s32 %v9175, %v11026
  %v11028 = vrot.slane %v8415, %v11027
  %v11029 = vlaneseq
  %v11030 = vshrl.u32 %v11029, 7
  %v11031 = vsub.s32 %v9180, %v11030
  %v11032 = vrot.slane %v8417, %v11031
  %v11033 = vsel %vm9185, %v11032, %v11028
  %v11034 = vlaneseq
  %v11035 = vshrl.u32 %v11034, 7
  %v11036 = vsub.s32 %v9187, %v11035
  %v11037 = vrot.slane %v8419, %v11036
  %v11038 = vsel %vm9192, %v11037, %v11033
  %v11039 = vlaneseq
  %v11040 = vshrl.u32 %v11039, 7
  %v11041 = vsub.s32 %v9194, %v11040
  %v11042 = vrot.slane %v8421, %v11041
  %v11043 = vsel %vm9199, %v11042, %v11038
  %v11044 = vlaneseq
  %v11045 = vshrl.u32 %v11044, 7
  %v11046 = vsub.s32 %v9175, %v11045
  %v11047 = vrot.slane %v8423, %v11046
  %v11048 = vlaneseq
  %v11049 = vshrl.u32 %v11048, 7
  %v11050 = vsub.s32 %v9180, %v11049
  %v11051 = vrot.slane %v8425, %v11050
  %v11052 = vsel %vm9185, %v11051, %v11047
  %v11053 = vlaneseq
  %v11054 = vshrl.u32 %v11053, 7
  %v11055 = vsub.s32 %v9187, %v11054
  %v11056 = vrot.slane %v8427, %v11055
  %v11057 = vsel %vm9192, %v11056, %v11052
  %v11058 = vlaneseq
  %v11059 = vshrl.u32 %v11058, 7
  %v11060 = vsub.s32 %v9194, %v11059
  %v11061 = vrot.slane %v8429, %v11060
  %v11062 = vsel %vm9199, %v11061, %v11057
  %v11063 = vlaneseq
  %v11064 = vshrl.u32 %v11063, 7
  %v11065 = vsub.s32 %v9175, %v11064
  %v11066 = vrot.slane %v8431, %v11065
  %v11067 = vlaneseq
  %v11068 = vshrl.u32 %v11067, 7
  %v11069 = vsub.s32 %v9180, %v11068
  %v11070 = vrot.slane %v8433, %v11069
  %v11071 = vsel %vm9185, %v11070, %v11066
  %v11072 = vlaneseq
  %v11073 = vshrl.u32 %v11072, 7
  %v11074 = vsub.s32 %v9187, %v11073
  %v11075 = vrot.slane %v8435, %v11074
  %v11076 = vsel %vm9192, %v11075, %v11071
  %v11077 = vlaneseq
  %v11078 = vshrl.u32 %v11077, 7
  %v11079 = vsub.s32 %v9194, %v11078
  %v11080 = vrot.slane %v8437, %v11079
  %v11081 = vsel %vm9199, %v11080, %v11076
  %v11082 = vlaneseq
  %v11083 = vshrl.u32 %v11082, 7
  %v11084 = vsub.s32 %v9175, %v11083
  %v11085 = vrot.slane %v8439, %v11084
  %v11086 = vlaneseq
  %v11087 = vshrl.u32 %v11086, 7
  %v11088 = vsub.s32 %v9180, %v11087
  %v11089 = vrot.slane %v8441, %v11088
  %v11090 = vsel %vm9185, %v11089, %v11085
  %v11091 = vlaneseq
  %v11092 = vshrl.u32 %v11091, 7
  %v11093 = vsub.s32 %v9187, %v11092
  %v11094 = vrot.slane %v8443, %v11093
  %v11095 = vsel %vm9192, %v11094, %v11090
  %v11096 = vlaneseq
  %v11097 = vshrl.u32 %v11096, 7
  %v11098 = vsub.s32 %v9194, %v11097
  %v11099 = vrot.slane %v8445, %v11098
  %v11100 = vsel %vm9199, %v11099, %v11095
  %v11101 = vlaneseq
  %v11102 = vshrl.u32 %v11101, 7
  %v11103 = vsub.s32 %v9175, %v11102
  %v11104 = vrot.slane %v8447, %v11103
  %v11105 = vlaneseq
  %v11106 = vshrl.u32 %v11105, 7
  %v11107 = vsub.s32 %v9180, %v11106
  %v11108 = vrot.slane %v8449, %v11107
  %v11109 = vsel %vm9185, %v11108, %v11104
  %v11110 = vlaneseq
  %v11111 = vshrl.u32 %v11110, 7
  %v11112 = vsub.s32 %v9187, %v11111
  %v11113 = vrot.slane %v8451, %v11112
  %v11114 = vsel %vm9192, %v11113, %v11109
  %v11115 = vlaneseq
  %v11116 = vshrl.u32 %v11115, 7
  %v11117 = vsub.s32 %v9194, %v11116
  %v11118 = vrot.slane %v8453, %v11117
  %v11119 = vsel %vm9199, %v11118, %v11114
  %v11120 = vlaneseq
  %v11121 = vshrl.u32 %v11120, 7
  %v11122 = vsub.s32 %v9175, %v11121
  %v11123 = vrot.slane %v8455, %v11122
  %v11124 = vlaneseq
  %v11125 = vshrl.u32 %v11124, 7
  %v11126 = vsub.s32 %v9180, %v11125
  %v11127 = vrot.slane %v8457, %v11126
  %v11128 = vsel %vm9185, %v11127, %v11123
  %v11129 = vlaneseq
  %v11130 = vshrl.u32 %v11129, 7
  %v11131 = vsub.s32 %v9187, %v11130
  %v11132 = vrot.slane %v8459, %v11131
  %v11133 = vsel %vm9192, %v11132, %v11128
  %v11134 = vlaneseq
  %v11135 = vshrl.u32 %v11134, 7
  %v11136 = vsub.s32 %v9194, %v11135
  %v11137 = vrot.slane %v8461, %v11136
  %v11138 = vsel %vm9199, %v11137, %v11133
  %v11139 = vlaneseq
  %v11140 = vshrl.u32 %v11139, 7
  %v11141 = vsub.s32 %v9175, %v11140
  %v11142 = vrot.slane %v8463, %v11141
  %v11143 = vlaneseq
  %v11144 = vshrl.u32 %v11143, 7
  %v11145 = vsub.s32 %v9180, %v11144
  %v11146 = vrot.slane %v8465, %v11145
  %v11147 = vsel %vm9185, %v11146, %v11142
  %v11148 = vlaneseq
  %v11149 = vshrl.u32 %v11148, 7
  %v11150 = vsub.s32 %v9187, %v11149
  %v11151 = vrot.slane %v8467, %v11150
  %v11152 = vsel %vm9192, %v11151, %v11147
  %v11153 = vlaneseq
  %v11154 = vshrl.u32 %v11153, 7
  %v11155 = vsub.s32 %v9194, %v11154
  %v11156 = vrot.slane %v8469, %v11155
  %v11157 = vsel %vm9199, %v11156, %v11152
  %v11158 = vlaneseq
  %v11159 = vshrl.u32 %v11158, 7
  %v11160 = vsub.s32 %v9175, %v11159
  %v11161 = vrot.slane %v8471, %v11160
  %v11162 = vlaneseq
  %v11163 = vshrl.u32 %v11162, 7
  %v11164 = vsub.s32 %v9180, %v11163
  %v11165 = vrot.slane %v8473, %v11164
  %v11166 = vsel %vm9185, %v11165, %v11161
  %v11167 = vlaneseq
  %v11168 = vshrl.u32 %v11167, 7
  %v11169 = vsub.s32 %v9187, %v11168
  %v11170 = vrot.slane %v8475, %v11169
  %v11171 = vsel %vm9192, %v11170, %v11166
  %v11172 = vlaneseq
  %v11173 = vshrl.u32 %v11172, 7
  %v11174 = vsub.s32 %v9194, %v11173
  %v11175 = vrot.slane %v8477, %v11174
  %v11176 = vsel %vm9199, %v11175, %v11171
  %v11177 = vlaneseq
  %v11178 = vshrl.u32 %v11177, 7
  %v11179 = vsub.s32 %v9175, %v11178
  %v11180 = vrot.slane %v8479, %v11179
  %v11181 = vlaneseq
  %v11182 = vshrl.u32 %v11181, 7
  %v11183 = vsub.s32 %v9180, %v11182
  %v11184 = vrot.slane %v8481, %v11183
  %v11185 = vsel %vm9185, %v11184, %v11180
  %v11186 = vlaneseq
  %v11187 = vshrl.u32 %v11186, 7
  %v11188 = vsub.s32 %v9187, %v11187
  %v11189 = vrot.slane %v8483, %v11188
  %v11190 = vsel %vm9192, %v11189, %v11185
  %v11191 = vlaneseq
  %v11192 = vshrl.u32 %v11191, 7
  %v11193 = vsub.s32 %v9194, %v11192
  %v11194 = vrot.slane %v8485, %v11193
  %v11195 = vsel %vm9199, %v11194, %v11190
  %v11196 = vlaneseq
  %v11197 = vshrl.u32 %v11196, 7
  %v11198 = vsub.s32 %v9175, %v11197
  %v11199 = vrot.slane %v8487, %v11198
  %v11200 = vlaneseq
  %v11201 = vshrl.u32 %v11200, 7
  %v11202 = vsub.s32 %v9180, %v11201
  %v11203 = vrot.slane %v8489, %v11202
  %v11204 = vsel %vm9185, %v11203, %v11199
  %v11205 = vlaneseq
  %v11206 = vshrl.u32 %v11205, 7
  %v11207 = vsub.s32 %v9187, %v11206
  %v11208 = vrot.slane %v8491, %v11207
  %v11209 = vsel %vm9192, %v11208, %v11204
  %v11210 = vlaneseq
  %v11211 = vshrl.u32 %v11210, 7
  %v11212 = vsub.s32 %v9194, %v11211
  %v11213 = vrot.slane %v8493, %v11212
  %v11214 = vsel %vm9199, %v11213, %v11209
  %v11215 = vlaneseq
  %v11216 = vshrl.u32 %v11215, 7
  %v11217 = vsub.s32 %v9175, %v11216
  %v11218 = vrot.slane %v8495, %v11217
  %v11219 = vlaneseq
  %v11220 = vshrl.u32 %v11219, 7
  %v11221 = vsub.s32 %v9180, %v11220
  %v11222 = vrot.slane %v8497, %v11221
  %v11223 = vsel %vm9185, %v11222, %v11218
  %v11224 = vlaneseq
  %v11225 = vshrl.u32 %v11224, 7
  %v11226 = vsub.s32 %v9187, %v11225
  %v11227 = vrot.slane %v8499, %v11226
  %v11228 = vsel %vm9192, %v11227, %v11223
  %v11229 = vlaneseq
  %v11230 = vshrl.u32 %v11229, 7
  %v11231 = vsub.s32 %v9194, %v11230
  %v11232 = vrot.slane %v8501, %v11231
  %v11233 = vsel %vm9199, %v11232, %v11228
  %v11234 = vlaneseq
  %v11235 = vshrl.u32 %v11234, 7
  %v11236 = vsub.s32 %v9175, %v11235
  %v11237 = vrot.slane %v8503, %v11236
  %v11238 = vlaneseq
  %v11239 = vshrl.u32 %v11238, 7
  %v11240 = vsub.s32 %v9180, %v11239
  %v11241 = vrot.slane %v8505, %v11240
  %v11242 = vsel %vm9185, %v11241, %v11237
  %v11243 = vlaneseq
  %v11244 = vshrl.u32 %v11243, 7
  %v11245 = vsub.s32 %v9187, %v11244
  %v11246 = vrot.slane %v8507, %v11245
  %v11247 = vsel %vm9192, %v11246, %v11242
  %v11248 = vlaneseq
  %v11249 = vshrl.u32 %v11248, 7
  %v11250 = vsub.s32 %v9194, %v11249
  %v11251 = vrot.slane %v8509, %v11250
  %v11252 = vsel %vm9199, %v11251, %v11247
  %v11253 = vlaneseq
  %v11254 = vshrl.u32 %v11253, 7
  %v11255 = vsub.s32 %v9175, %v11254
  %v11256 = vrot.slane %v8511, %v11255
  %v11257 = vlaneseq
  %v11258 = vshrl.u32 %v11257, 7
  %v11259 = vsub.s32 %v9180, %v11258
  %v11260 = vrot.slane %v8513, %v11259
  %v11261 = vsel %vm9185, %v11260, %v11256
  %v11262 = vlaneseq
  %v11263 = vshrl.u32 %v11262, 7
  %v11264 = vsub.s32 %v9187, %v11263
  %v11265 = vrot.slane %v8515, %v11264
  %v11266 = vsel %vm9192, %v11265, %v11261
  %v11267 = vlaneseq
  %v11268 = vshrl.u32 %v11267, 7
  %v11269 = vsub.s32 %v9194, %v11268
  %v11270 = vrot.slane %v8517, %v11269
  %v11271 = vsel %vm9199, %v11270, %v11266
  %v11272 = vlaneseq
  %v11273 = vshrl.u32 %v11272, 7
  %v11274 = vsub.s32 %v9175, %v11273
  %v11275 = vrot.slane %v8519, %v11274
  %v11276 = vlaneseq
  %v11277 = vshrl.u32 %v11276, 7
  %v11278 = vsub.s32 %v9180, %v11277
  %v11279 = vrot.slane %v8521, %v11278
  %v11280 = vsel %vm9185, %v11279, %v11275
  %v11281 = vlaneseq
  %v11282 = vshrl.u32 %v11281, 7
  %v11283 = vsub.s32 %v9187, %v11282
  %v11284 = vrot.slane %v8523, %v11283
  %v11285 = vsel %vm9192, %v11284, %v11280
  %v11286 = vlaneseq
  %v11287 = vshrl.u32 %v11286, 7
  %v11288 = vsub.s32 %v9194, %v11287
  %v11289 = vrot.slane %v8525, %v11288
  %v11290 = vsel %vm9199, %v11289, %v11285
  %v11291 = vlaneseq
  %v11292 = vshrl.u32 %v11291, 7
  %v11293 = vsub.s32 %v9175, %v11292
  %v11294 = vrot.slane %v8527, %v11293
  %v11295 = vlaneseq
  %v11296 = vshrl.u32 %v11295, 7
  %v11297 = vsub.s32 %v9180, %v11296
  %v11298 = vrot.slane %v8529, %v11297
  %v11299 = vsel %vm9185, %v11298, %v11294
  %v11300 = vlaneseq
  %v11301 = vshrl.u32 %v11300, 7
  %v11302 = vsub.s32 %v9187, %v11301
  %v11303 = vrot.slane %v8531, %v11302
  %v11304 = vsel %vm9192, %v11303, %v11299
  %v11305 = vlaneseq
  %v11306 = vshrl.u32 %v11305, 7
  %v11307 = vsub.s32 %v9194, %v11306
  %v11308 = vrot.slane %v8533, %v11307
  %v11309 = vsel %vm9199, %v11308, %v11304
  %v11310 = vlaneseq
  %v11311 = vshrl.u32 %v11310, 7
  %v11312 = vsub.s32 %v9175, %v11311
  %v11313 = vrot.slane %v8535, %v11312
  %v11314 = vlaneseq
  %v11315 = vshrl.u32 %v11314, 7
  %v11316 = vsub.s32 %v9180, %v11315
  %v11317 = vrot.slane %v8537, %v11316
  %v11318 = vsel %vm9185, %v11317, %v11313
  %v11319 = vlaneseq
  %v11320 = vshrl.u32 %v11319, 7
  %v11321 = vsub.s32 %v9187, %v11320
  %v11322 = vrot.slane %v8539, %v11321
  %v11323 = vsel %vm9192, %v11322, %v11318
  %v11324 = vlaneseq
  %v11325 = vshrl.u32 %v11324, 7
  %v11326 = vsub.s32 %v9194, %v11325
  %v11327 = vrot.slane %v8541, %v11326
  %v11328 = vsel %vm9199, %v11327, %v11323
  %v11329 = vlaneseq
  %v11330 = vshrl.u32 %v11329, 7
  %v11331 = vsub.s32 %v9175, %v11330
  %v11332 = vrot.slane %v8543, %v11331
  %v11333 = vlaneseq
  %v11334 = vshrl.u32 %v11333, 7
  %v11335 = vsub.s32 %v9180, %v11334
  %v11336 = vrot.slane %v8545, %v11335
  %v11337 = vsel %vm9185, %v11336, %v11332
  %v11338 = vlaneseq
  %v11339 = vshrl.u32 %v11338, 7
  %v11340 = vsub.s32 %v9187, %v11339
  %v11341 = vrot.slane %v8547, %v11340
  %v11342 = vsel %vm9192, %v11341, %v11337
  %v11343 = vlaneseq
  %v11344 = vshrl.u32 %v11343, 7
  %v11345 = vsub.s32 %v9194, %v11344
  %v11346 = vrot.slane %v8549, %v11345
  %v11347 = vsel %vm9199, %v11346, %v11342
  %v11348 = vlaneseq
  %v11349 = vshrl.u32 %v11348, 7
  %v11350 = vsub.s32 %v9175, %v11349
  %v11351 = vrot.slane %v8551, %v11350
  %v11352 = vlaneseq
  %v11353 = vshrl.u32 %v11352, 7
  %v11354 = vsub.s32 %v9180, %v11353
  %v11355 = vrot.slane %v8553, %v11354
  %v11356 = vsel %vm9185, %v11355, %v11351
  %v11357 = vlaneseq
  %v11358 = vshrl.u32 %v11357, 7
  %v11359 = vsub.s32 %v9187, %v11358
  %v11360 = vrot.slane %v8555, %v11359
  %v11361 = vsel %vm9192, %v11360, %v11356
  %v11362 = vlaneseq
  %v11363 = vshrl.u32 %v11362, 7
  %v11364 = vsub.s32 %v9194, %v11363
  %v11365 = vrot.slane %v8557, %v11364
  %v11366 = vsel %vm9199, %v11365, %v11361
  %v11367 = vlaneseq
  %v11368 = vshrl.u32 %v11367, 7
  %v11369 = vsub.s32 %v9175, %v11368
  %v11370 = vrot.slane %v8559, %v11369
  %v11371 = vlaneseq
  %v11372 = vshrl.u32 %v11371, 7
  %v11373 = vsub.s32 %v9180, %v11372
  %v11374 = vrot.slane %v8561, %v11373
  %v11375 = vsel %vm9185, %v11374, %v11370
  %v11376 = vlaneseq
  %v11377 = vshrl.u32 %v11376, 7
  %v11378 = vsub.s32 %v9187, %v11377
  %v11379 = vrot.slane %v8563, %v11378
  %v11380 = vsel %vm9192, %v11379, %v11375
  %v11381 = vlaneseq
  %v11382 = vshrl.u32 %v11381, 7
  %v11383 = vsub.s32 %v9194, %v11382
  %v11384 = vrot.slane %v8565, %v11383
  %v11385 = vsel %vm9199, %v11384, %v11380
  %v11386 = vlaneseq
  %v11387 = vshrl.u32 %v11386, 7
  %v11388 = vsub.s32 %v9175, %v11387
  %v11389 = vrot.slane %v8567, %v11388
  %v11390 = vlaneseq
  %v11391 = vshrl.u32 %v11390, 7
  %v11392 = vsub.s32 %v9180, %v11391
  %v11393 = vrot.slane %v8569, %v11392
  %v11394 = vsel %vm9185, %v11393, %v11389
  %v11395 = vlaneseq
  %v11396 = vshrl.u32 %v11395, 7
  %v11397 = vsub.s32 %v9187, %v11396
  %v11398 = vrot.slane %v8571, %v11397
  %v11399 = vsel %vm9192, %v11398, %v11394
  %v11400 = vlaneseq
  %v11401 = vshrl.u32 %v11400, 7
  %v11402 = vsub.s32 %v9194, %v11401
  %v11403 = vrot.slane %v8573, %v11402
  %v11404 = vsel %vm9199, %v11403, %v11399
  %v11405 = vlaneseq
  %v11406 = vshrl.u32 %v11405, 7
  %v11407 = vsub.s32 %v9175, %v11406
  %v11408 = vrot.slane %v8575, %v11407
  %v11409 = vlaneseq
  %v11410 = vshrl.u32 %v11409, 7
  %v11411 = vsub.s32 %v9180, %v11410
  %v11412 = vrot.slane %v8577, %v11411
  %v11413 = vsel %vm9185, %v11412, %v11408
  %v11414 = vlaneseq
  %v11415 = vshrl.u32 %v11414, 7
  %v11416 = vsub.s32 %v9187, %v11415
  %v11417 = vrot.slane %v8579, %v11416
  %v11418 = vsel %vm9192, %v11417, %v11413
  %v11419 = vlaneseq
  %v11420 = vshrl.u32 %v11419, 7
  %v11421 = vsub.s32 %v9194, %v11420
  %v11422 = vrot.slane %v8581, %v11421
  %v11423 = vsel %vm9199, %v11422, %v11418
  %v11424 = vlaneseq
  %v11425 = vshrl.u32 %v11424, 7
  %v11426 = vsub.s32 %v9175, %v11425
  %v11427 = vrot.slane %v8583, %v11426
  %v11428 = vlaneseq
  %v11429 = vshrl.u32 %v11428, 7
  %v11430 = vsub.s32 %v9180, %v11429
  %v11431 = vrot.slane %v8585, %v11430
  %v11432 = vsel %vm9185, %v11431, %v11427
  %v11433 = vlaneseq
  %v11434 = vshrl.u32 %v11433, 7
  %v11435 = vsub.s32 %v9187, %v11434
  %v11436 = vrot.slane %v8587, %v11435
  %v11437 = vsel %vm9192, %v11436, %v11432
  %v11438 = vlaneseq
  %v11439 = vshrl.u32 %v11438, 7
  %v11440 = vsub.s32 %v9194, %v11439
  %v11441 = vrot.slane %v8589, %v11440
  %v11442 = vsel %vm9199, %v11441, %v11437
  %v11443 = vlaneseq
  %v11444 = vshrl.u32 %v11443, 7
  %v11445 = vsub.s32 %v9175, %v11444
  %v11446 = vrot.slane %v8591, %v11445
  %v11447 = vlaneseq
  %v11448 = vshrl.u32 %v11447, 7
  %v11449 = vsub.s32 %v9180, %v11448
  %v11450 = vrot.slane %v8593, %v11449
  %v11451 = vsel %vm9185, %v11450, %v11446
  %v11452 = vlaneseq
  %v11453 = vshrl.u32 %v11452, 7
  %v11454 = vsub.s32 %v9187, %v11453
  %v11455 = vrot.slane %v8595, %v11454
  %v11456 = vsel %vm9192, %v11455, %v11451
  %v11457 = vlaneseq
  %v11458 = vshrl.u32 %v11457, 7
  %v11459 = vsub.s32 %v9194, %v11458
  %v11460 = vrot.slane %v8597, %v11459
  %v11461 = vsel %vm9199, %v11460, %v11456
  %v11462 = vlaneseq
  %v11463 = vshrl.u32 %v11462, 7
  %v11464 = vsub.s32 %v9175, %v11463
  %v11465 = vrot.slane %v8599, %v11464
  %v11466 = vlaneseq
  %v11467 = vshrl.u32 %v11466, 7
  %v11468 = vsub.s32 %v9180, %v11467
  %v11469 = vrot.slane %v8601, %v11468
  %v11470 = vsel %vm9185, %v11469, %v11465
  %v11471 = vlaneseq
  %v11472 = vshrl.u32 %v11471, 7
  %v11473 = vsub.s32 %v9187, %v11472
  %v11474 = vrot.slane %v8603, %v11473
  %v11475 = vsel %vm9192, %v11474, %v11470
  %v11476 = vlaneseq
  %v11477 = vshrl.u32 %v11476, 7
  %v11478 = vsub.s32 %v9194, %v11477
  %v11479 = vrot.slane %v8605, %v11478
  %v11480 = vsel %vm9199, %v11479, %v11475
  %v11481 = vlaneseq
  %v11482 = vshrl.u32 %v11481, 7
  %v11483 = vsub.s32 %v9175, %v11482
  %v11484 = vrot.slane %v8607, %v11483
  %v11485 = vlaneseq
  %v11486 = vshrl.u32 %v11485, 7
  %v11487 = vsub.s32 %v9180, %v11486
  %v11488 = vrot.slane %v8609, %v11487
  %v11489 = vsel %vm9185, %v11488, %v11484
  %v11490 = vlaneseq
  %v11491 = vshrl.u32 %v11490, 7
  %v11492 = vsub.s32 %v9187, %v11491
  %v11493 = vrot.slane %v8611, %v11492
  %v11494 = vsel %vm9192, %v11493, %v11489
  %v11495 = vlaneseq
  %v11496 = vshrl.u32 %v11495, 7
  %v11497 = vsub.s32 %v9194, %v11496
  %v11498 = vrot.slane %v8613, %v11497
  %v11499 = vsel %vm9199, %v11498, %v11494
  %v11500 = vlaneseq
  %v11501 = vshrl.u32 %v11500, 7
  %v11502 = vsub.s32 %v9175, %v11501
  %v11503 = vrot.slane %v8615, %v11502
  %v11504 = vlaneseq
  %v11505 = vshrl.u32 %v11504, 7
  %v11506 = vsub.s32 %v9180, %v11505
  %v11507 = vrot.slane %v8617, %v11506
  %v11508 = vsel %vm9185, %v11507, %v11503
  %v11509 = vlaneseq
  %v11510 = vshrl.u32 %v11509, 7
  %v11511 = vsub.s32 %v9187, %v11510
  %v11512 = vrot.slane %v8619, %v11511
  %v11513 = vsel %vm9192, %v11512, %v11508
  %v11514 = vlaneseq
  %v11515 = vshrl.u32 %v11514, 7
  %v11516 = vsub.s32 %v9194, %v11515
  %v11517 = vrot.slane %v8621, %v11516
  %v11518 = vsel %vm9199, %v11517, %v11513
  %v11519 = vlaneseq
  %v11520 = vshrl.u32 %v11519, 7
  %v11521 = vsub.s32 %v9175, %v11520
  %v11522 = vrot.slane %v8623, %v11521
  %v11523 = vlaneseq
  %v11524 = vshrl.u32 %v11523, 7
  %v11525 = vsub.s32 %v9180, %v11524
  %v11526 = vrot.slane %v8625, %v11525
  %v11527 = vsel %vm9185, %v11526, %v11522
  %v11528 = vlaneseq
  %v11529 = vshrl.u32 %v11528, 7
  %v11530 = vsub.s32 %v9187, %v11529
  %v11531 = vrot.slane %v8627, %v11530
  %v11532 = vsel %vm9192, %v11531, %v11527
  %v11533 = vlaneseq
  %v11534 = vshrl.u32 %v11533, 7
  %v11535 = vsub.s32 %v9194, %v11534
  %v11536 = vrot.slane %v8629, %v11535
  %v11537 = vsel %vm9199, %v11536, %v11532
  %v11538 = vlaneseq
  %v11539 = vshrl.u32 %v11538, 7
  %v11540 = vsub.s32 %v9175, %v11539
  %v11541 = vrot.slane %v8631, %v11540
  %v11542 = vlaneseq
  %v11543 = vshrl.u32 %v11542, 7
  %v11544 = vsub.s32 %v9180, %v11543
  %v11545 = vrot.slane %v8633, %v11544
  %v11546 = vsel %vm9185, %v11545, %v11541
  %v11547 = vlaneseq
  %v11548 = vshrl.u32 %v11547, 7
  %v11549 = vsub.s32 %v9187, %v11548
  %v11550 = vrot.slane %v8635, %v11549
  %v11551 = vsel %vm9192, %v11550, %v11546
  %v11552 = vlaneseq
  %v11553 = vshrl.u32 %v11552, 7
  %v11554 = vsub.s32 %v9194, %v11553
  %v11555 = vrot.slane %v8637, %v11554
  %v11556 = vsel %vm9199, %v11555, %v11551
  %v11557 = vlaneseq
  %v11558 = vshrl.u32 %v11557, 7
  %v11559 = vsub.s32 %v9175, %v11558
  %v11560 = vrot.slane %v8639, %v11559
  %v11561 = vlaneseq
  %v11562 = vshrl.u32 %v11561, 7
  %v11563 = vsub.s32 %v9180, %v11562
  %v11564 = vrot.slane %v8641, %v11563
  %v11565 = vsel %vm9185, %v11564, %v11560
  %v11566 = vlaneseq
  %v11567 = vshrl.u32 %v11566, 7
  %v11568 = vsub.s32 %v9187, %v11567
  %v11569 = vrot.slane %v8643, %v11568
  %v11570 = vsel %vm9192, %v11569, %v11565
  %v11571 = vlaneseq
  %v11572 = vshrl.u32 %v11571, 7
  %v11573 = vsub.s32 %v9194, %v11572
  %v11574 = vrot.slane %v8645, %v11573
  %v11575 = vsel %vm9199, %v11574, %v11570
  %v11576 = vlaneseq
  %v11577 = vshrl.u32 %v11576, 7
  %v11578 = vsub.s32 %v9175, %v11577
  %v11579 = vrot.slane %v8647, %v11578
  %v11580 = vlaneseq
  %v11581 = vshrl.u32 %v11580, 7
  %v11582 = vsub.s32 %v9180, %v11581
  %v11583 = vrot.slane %v8649, %v11582
  %v11584 = vsel %vm9185, %v11583, %v11579
  %v11585 = vlaneseq
  %v11586 = vshrl.u32 %v11585, 7
  %v11587 = vsub.s32 %v9187, %v11586
  %v11588 = vrot.slane %v8651, %v11587
  %v11589 = vsel %vm9192, %v11588, %v11584
  %v11590 = vlaneseq
  %v11591 = vshrl.u32 %v11590, 7
  %v11592 = vsub.s32 %v9194, %v11591
  %v11593 = vrot.slane %v8653, %v11592
  %v11594 = vsel %vm9199, %v11593, %v11589
  %v11595 = vlaneseq
  %v11596 = vshrl.u32 %v11595, 7
  %v11597 = vsub.s32 %v9175, %v11596
  %v11598 = vrot.slane %v8655, %v11597
  %v11599 = vlaneseq
  %v11600 = vshrl.u32 %v11599, 7
  %v11601 = vsub.s32 %v9180, %v11600
  %v11602 = vrot.slane %v8657, %v11601
  %v11603 = vsel %vm9185, %v11602, %v11598
  %v11604 = vlaneseq
  %v11605 = vshrl.u32 %v11604, 7
  %v11606 = vsub.s32 %v9187, %v11605
  %v11607 = vrot.slane %v8659, %v11606
  %v11608 = vsel %vm9192, %v11607, %v11603
  %v11609 = vlaneseq
  %v11610 = vshrl.u32 %v11609, 7
  %v11611 = vsub.s32 %v9194, %v11610
  %v11612 = vrot.slane %v8661, %v11611
  %v11613 = vsel %vm9199, %v11612, %v11608
  %vm11614 = vcmask 1041409
  %v11615 = vsel %vm11614, %v9219, %v9200
  %vm11616 = vcmask 1042434
  %v11617 = vsel %vm11616, %v9238, %v11615
  %vm11618 = vcmask 1043459
  %v11619 = vsel %vm11618, %v9257, %v11617
  %vm11620 = vcmask 1044484
  %v11621 = vsel %vm11620, %v9276, %v11619
  %vm11622 = vcmask 1045509
  %v11623 = vsel %vm11622, %v9295, %v11621
  %vm11624 = vcmask 1046534
  %v11625 = vsel %vm11624, %v9314, %v11623
  %vm11626 = vcmask 1047559
  %v11627 = vsel %vm11626, %v9333, %v11625
  %v11628 = vsel %vm11614, %v9371, %v9352
  %v11629 = vsel %vm11616, %v9390, %v11628
  %v11630 = vsel %vm11618, %v9409, %v11629
  %v11631 = vsel %vm11620, %v9428, %v11630
  %v11632 = vsel %vm11622, %v9447, %v11631
  %v11633 = vsel %vm11624, %v9466, %v11632
  %v11634 = vsel %vm11626, %v9485, %v11633
  %v11635 = vsel %vm11614, %v9523, %v9504
  %v11636 = vsel %vm11616, %v9542, %v11635
  %v11637 = vsel %vm11618, %v9561, %v11636
  %v11638 = vsel %vm11620, %v9580, %v11637
  %v11639 = vsel %vm11622, %v9599, %v11638
  %v11640 = vsel %vm11624, %v9618, %v11639
  %v11641 = vsel %vm11626, %v9637, %v11640
  %v11642 = vsel %vm11614, %v9675, %v9656
  %v11643 = vsel %vm11616, %v9694, %v11642
  %v11644 = vsel %vm11618, %v9713, %v11643
  %v11645 = vsel %vm11620, %v9732, %v11644
  %v11646 = vsel %vm11622, %v9751, %v11645
  %v11647 = vsel %vm11624, %v9770, %v11646
  %v11648 = vsel %vm11626, %v9789, %v11647
  %v11649 = vsel %vm11614, %v9827, %v9808
  %v11650 = vsel %vm11616, %v9846, %v11649
  %v11651 = vsel %vm11618, %v9865, %v11650
  %v11652 = vsel %vm11620, %v9884, %v11651
  %v11653 = vsel %vm11622, %v9903, %v11652
  %v11654 = vsel %vm11624, %v9922, %v11653
  %v11655 = vsel %vm11626, %v9941, %v11654
  %v11656 = vsel %vm11614, %v9979, %v9960
  %v11657 = vsel %vm11616, %v9998, %v11656
  %v11658 = vsel %vm11618, %v10017, %v11657
  %v11659 = vsel %vm11620, %v10036, %v11658
  %v11660 = vsel %vm11622, %v10055, %v11659
  %v11661 = vsel %vm11624, %v10074, %v11660
  %v11662 = vsel %vm11626, %v10093, %v11661
  %v11663 = vsel %vm11614, %v10131, %v10112
  %v11664 = vsel %vm11616, %v10150, %v11663
  %v11665 = vsel %vm11618, %v10169, %v11664
  %v11666 = vsel %vm11620, %v10188, %v11665
  %v11667 = vsel %vm11622, %v10207, %v11666
  %v11668 = vsel %vm11624, %v10226, %v11667
  %v11669 = vsel %vm11626, %v10245, %v11668
  %v11670 = vsel %vm11614, %v10283, %v10264
  %v11671 = vsel %vm11616, %v10302, %v11670
  %v11672 = vsel %vm11618, %v10321, %v11671
  %v11673 = vsel %vm11620, %v10340, %v11672
  %v11674 = vsel %vm11622, %v10359, %v11673
  %v11675 = vsel %vm11624, %v10378, %v11674
  %v11676 = vsel %vm11626, %v10397, %v11675
  %v11677 = vsel %vm11614, %v10435, %v10416
  %v11678 = vsel %vm11616, %v10454, %v11677
  %v11679 = vsel %vm11618, %v10473, %v11678
  %v11680 = vsel %vm11620, %v10492, %v11679
  %v11681 = vsel %vm11622, %v10511, %v11680
  %v11682 = vsel %vm11624, %v10530, %v11681
  %v11683 = vsel %vm11626, %v10549, %v11682
  %v11684 = vsel %vm11614, %v10587, %v10568
  %v11685 = vsel %vm11616, %v10606, %v11684
  %v11686 = vsel %vm11618, %v10625, %v11685
  %v11687 = vsel %vm11620, %v10644, %v11686
  %v11688 = vsel %vm11622, %v10663, %v11687
  %v11689 = vsel %vm11624, %v10682, %v11688
  %v11690 = vsel %vm11626, %v10701, %v11689
  %v11691 = vsel %vm11614, %v10739, %v10720
  %v11692 = vsel %vm11616, %v10758, %v11691
  %v11693 = vsel %vm11618, %v10777, %v11692
  %v11694 = vsel %vm11620, %v10796, %v11693
  %v11695 = vsel %vm11622, %v10815, %v11694
  %v11696 = vsel %vm11624, %v10834, %v11695
  %v11697 = vsel %vm11626, %v10853, %v11696
  %v11698 = vsel %vm11614, %v10891, %v10872
  %v11699 = vsel %vm11616, %v10910, %v11698
  %v11700 = vsel %vm11618, %v10929, %v11699
  %v11701 = vsel %vm11620, %v10948, %v11700
  %v11702 = vsel %vm11622, %v10967, %v11701
  %v11703 = vsel %vm11624, %v10986, %v11702
  %v11704 = vsel %vm11626, %v11005, %v11703
  %v11705 = vsel %vm11614, %v11043, %v11024
  %v11706 = vsel %vm11616, %v11062, %v11705
  %v11707 = vsel %vm11618, %v11081, %v11706
  %v11708 = vsel %vm11620, %v11100, %v11707
  %v11709 = vsel %vm11622, %v11119, %v11708
  %v11710 = vsel %vm11624, %v11138, %v11709
  %v11711 = vsel %vm11626, %v11157, %v11710
  %v11712 = vsel %vm11614, %v11195, %v11176
  %v11713 = vsel %vm11616, %v11214, %v11712
  %v11714 = vsel %vm11618, %v11233, %v11713
  %v11715 = vsel %vm11620, %v11252, %v11714
  %v11716 = vsel %vm11622, %v11271, %v11715
  %v11717 = vsel %vm11624, %v11290, %v11716
  %v11718 = vsel %vm11626, %v11309, %v11717
  %v11719 = vsel %vm11614, %v11347, %v11328
  %v11720 = vsel %vm11616, %v11366, %v11719
  %v11721 = vsel %vm11618, %v11385, %v11720
  %v11722 = vsel %vm11620, %v11404, %v11721
  %v11723 = vsel %vm11622, %v11423, %v11722
  %v11724 = vsel %vm11624, %v11442, %v11723
  %v11725 = vsel %vm11626, %v11461, %v11724
  %v11726 = vsel %vm11614, %v11499, %v11480
  %v11727 = vsel %vm11616, %v11518, %v11726
  %v11728 = vsel %vm11618, %v11537, %v11727
  %v11729 = vsel %vm11620, %v11556, %v11728
  %v11730 = vsel %vm11622, %v11575, %v11729
  %v11731 = vsel %vm11624, %v11594, %v11730
  %v11732 = vsel %vm11626, %v11613, %v11731
  %v11749 = vmul.f32 %v14, %v11627
  %v11750 = vmul.f32 %v15, %v11634
  %v11751 = vmul.f32 %v16, %v11641
  %v11752 = vmul.f32 %v17, %v11648
  %v11753 = vmul.f32 %v18, %v11655
  %v11754 = vmul.f32 %v19, %v11662
  %v11755 = vmul.f32 %v20, %v11669
  %v11756 = vmul.f32 %v21, %v11676
  %v11757 = vmul.f32 %v22, %v11683
  %v11758 = vmul.f32 %v23, %v11690
  %v11759 = vmul.f32 %v24, %v11697
  %v11760 = vmul.f32 %v25, %v11704
  %v11761 = vmul.f32 %v26, %v11711
  %v11762 = vmul.f32 %v27, %v11718
  %v11763 = vmul.f32 %v28, %v11725
  %v11764 = vmul.f32 %v29, %v11732
  %v11765 = vadd.f32 %v130, %v11749
  %v11766 = vadd.f32 %v131, %v11750
  %v11767 = vadd.f32 %v132, %v11751
  %v11768 = vadd.f32 %v133, %v11752
  %v11769 = vadd.f32 %v134, %v11753
  %v11770 = vadd.f32 %v135, %v11754
  %v11771 = vadd.f32 %v136, %v11755
  %v11772 = vadd.f32 %v137, %v11756
  %v11773 = vadd.f32 %v138, %v11757
  %v11774 = vadd.f32 %v139, %v11758
  %v11775 = vadd.f32 %v140, %v11759
  %v11776 = vadd.f32 %v141, %v11760
  %v11777 = vadd.f32 %v142, %v11761
  %v11778 = vadd.f32 %v143, %v11762
  %v11779 = vadd.f32 %v144, %v11763
  %v11780 = vadd.f32 %v145, %v11764
  %vm11781 = vcmask 261120
  %11782 = vst.msk [vmem:[%s3] sm:$0xff] %vm11781, %v11765
  %11783 = vst.msk [vmem:[%s3 + $0x8] sm:$0xff] %vm11781, %v11766
  %11784 = vst.msk [vmem:[%s3 + $0x10] sm:$0xff] %vm11781, %v11767
  %11785 = vst.msk [vmem:[%s3 + $0x18] sm:$0xff] %vm11781, %v11768
  %11786 = vst.msk [vmem:[%s3 + $0x20] sm:$0xff] %vm11781, %v11769
  %11787 = vst.msk [vmem:[%s3 + $0x28] sm:$0xff] %vm11781, %v11770
  %11788 = vst.msk [vmem:[%s3 + $0x30] sm:$0xff] %vm11781, %v11771
  %11789 = vst.msk [vmem:[%s3 + $0x38] sm:$0xff] %vm11781, %v11772
  %11790 = vst.msk [vmem:[%s3 + $0x40] sm:$0xff] %vm11781, %v11773
  %11791 = vst.msk [vmem:[%s3 + $0x48] sm:$0xff] %vm11781, %v11774
  %11792 = vst.msk [vmem:[%s3 + $0x50] sm:$0xff] %vm11781, %v11775
  %11793 = vst.msk [vmem:[%s3 + $0x58] sm:$0xff] %vm11781, %v11776
  %11794 = vst.msk [vmem:[%s3 + $0x60] sm:$0xff] %vm11781, %v11777
  %11795 = vst.msk [vmem:[%s3 + $0x68] sm:$0xff] %vm11781, %v11778
  %11796 = vst.msk [vmem:[%s3 + $0x70] sm:$0xff] %vm11781, %v11779
  %11797 = vst.msk [vmem:[%s3 + $0x78] sm:$0xff] %vm11781, %v11780
  // Predicated region
  $region14: #{tpu_custom_call.1} parent=0 // pred_check
    _
  $region15: #{tpu_custom_call.1} parent=0 // pred_check_branch
    %11799 = sbr.rel (0) target = $region17
  $region16: #{tpu_custom_call.1} parent=0 // pred_region
    _
  $region17: #{tpu_custom_call.1} parent=0 // pred_fallthru
    _
  // Predicated region
  $region18: #{tpu_custom_call.1} parent=0 // pred_check
    _
  $region19: #{tpu_custom_call.1} parent=0 // pred_check_branch
    %11801 = sbr.rel (0) target = $region21
  $region20: #{tpu_custom_call.1} parent=0 // pred_region
    _
  $region21: #{tpu_custom_call.1} parent=0 // pred_fallthru
    _

</llo_original>
